<compile_context>
chip_gen: v7x
topology: tpu7x:2x2x1
jax: 0.10.0
libtpu: 0.0.40
codegen_flags: <defaults>
</compile_context>

<pallas_src>
import functools

import jax
import jax.numpy as jnp
from jax.experimental import pallas as pl
from jax.experimental.pallas import tpu as pltpu

_EPS = 1e-5  # PyTorch BatchNorm1d default eps


# ------------------------------ Pallas kernels ------------------------------

def convnet_kernel(x_ref, w1_ref, s1_ref, b1_ref,
                   wblk_ref, sblk_ref, bblk_ref,
                   w2_ref, s2_ref, b2_ref, sel_ref,
                   out_ref, *, Bt, L):
    """Fused conv trunk for a tile of Bt examples.

    x_ref:   (Bt, L) f32 input (Cin = 1)
    w*_ref:  folded conv+BN params; conv weights are bf16 (Cout, 3*Cin),
             scale/bias are f32 (Cout, 1)
    sel_ref: (L, L//2) bf16 0/1 stride-2 selection matrix for MaxPool1d(2)
    out_ref: (Bt, 20, L//2) bf16 feature maps (torch channel-major order)
    """
    f32 = jnp.float32
    bf16 = jnp.bfloat16

    def conv3_bn_relu(x, w2d, scale, bias, residual=None):
        # x: (Cin, Lx) f32.  'same' k=3 conv via zero-filled +/-1 lane shifts
        # and a single im2col matmul (Cout, 3*Cin) @ (3*Cin, Lx) on the MXU.
        cin, lx = x.shape
        zc = jnp.zeros((cin, 1), f32)
        xm1 = jnp.concatenate([zc, x[:, :lx - 1]], axis=1)   # x[l-1] (k=0 tap)
        xp1 = jnp.concatenate([x[:, 1:], zc], axis=1)        # x[l+1] (k=2 tap)
        xcol = jnp.concatenate([xm1, x, xp1], axis=0)        # (3*Cin, Lx)
        acc = jnp.dot(w2d, xcol.astype(bf16),
                      preferred_element_type=f32)            # (Cout, Lx) f32
        y = acc * scale + bias                               # folded BN, f32 epilogue
        if residual is not None:
            y = y + residual
        return jnp.maximum(y, 0.0)

    # Load weights once per grid step (they are resident in VMEM).
    w1, s1, b1 = w1_ref[...], s1_ref[...], b1_ref[...]
    w2, s2, b2 = w2_ref[...], s2_ref[...], b2_ref[...]
    blk = [(wblk_ref[k], sblk_ref[k], bblk_ref[k]) for k in range(8)]
    sel = sel_ref[...]                                       # (L, L//2) bf16
    x_tile = x_ref[...]                                      # (Bt, L) f32

    for b in range(Bt):                                      # static batch-tile unroll
        x0 = x_tile[b:b + 1, :]                              # (1, L): Cin = 1
        act = conv3_bn_relu(x0, w1, s1, b1)                  # (10, L)
        for j in range(4):                                   # 4 residual blocks
            identity = act
            wa, sa, ba = blk[2 * j]
            wb, sb, bb = blk[2 * j + 1]
            h = conv3_bn_relu(act, wa, sa, ba)
            act = conv3_bn_relu(h, wb, sb, bb, residual=identity)
        # MaxPool1d(2): pairwise max, then stride-2 compaction as a 0/1 matmul.
        zc = jnp.zeros((act.shape[0], 1), f32)
        nxt = jnp.concatenate([act[:, 1:], zc], axis=1)      # act[l+1]
        p = jnp.maximum(act, nxt)                            # (10, L)
        pooled = jnp.dot(p.astype(bf16), sel,
                         preferred_element_type=f32)         # (10, L//2)
        y2 = conv3_bn_relu(pooled, w2, s2, b2)               # (20, L//2)
        out_ref[b] = y2.astype(out_ref.dtype)


def fc_heads_kernel(x_ref, w1_ref, b1_ref, wh_ref, bh_ref, out_ref):
    # fc1 + ReLU, then both regression heads as one (300, 2) matmul.
    h = jnp.dot(x_ref[...], w1_ref[...], preferred_element_type=jnp.float32)
    h = jnp.maximum(h + b1_ref[...], 0.0)                    # (B, 300) f32
    o = jnp.dot(h.astype(jnp.bfloat16), wh_ref[...],
                preferred_element_type=jnp.float32) + bh_ref[...]
    out_ref[...] = o                                         # (B, 2) = [sbp | dbp]


# -------------------------------- wrappers ----------------------------------

def _const_spec(a):
    # Whole-array block with a constant index map: loaded once, stays resident.
    return pl.BlockSpec(a.shape, lambda i, _nd=a.ndim: (0,) * _nd)


def conv_stack(x, p, *, Bt):
    """x: (Bpad, L) f32 -> (Bpad, 20, L//2) bf16 feature maps."""
    Bpad, L = x.shape
    nb = Bpad // Bt
    Lh = L // 2
    w1, s1, b1 = p["conv1"]
    w2, s2, b2 = p["conv2"]
    consts = [w1, s1, b1, p["blk_w"], p["blk_s"], p["blk_b"],
              w2, s2, b2, p["pool_sel"]]
    return pl.pallas_call(
        functools.partial(convnet_kernel, Bt=Bt, L=L),
        out_shape=jax.ShapeDtypeStruct((Bpad, 20, Lh), jnp.bfloat16),
        grid=(nb,),
        in_specs=[pl.BlockSpec((Bt, L), lambda i: (i, 0))]
                 + [_const_spec(a) for a in consts],
        out_specs=pl.BlockSpec((Bt, 20, Lh), lambda i: (i, 0, 0)),
        compiler_params=pltpu.CompilerParams(dimension_semantics=("parallel",)),
    )(x, *consts)


def fc_heads(flat, p):
    """flat: (Bpad, 2000) bf16 -> (Bpad, 2) f32 [sbp, dbp]."""
    Bp = flat.shape[0]
    args = (flat, p["fc1_w"], p["fc1_b"], p["head_w"], p["head_b"])
    return pl.pallas_call(
        fc_heads_kernel,
        out_shape=jax.ShapeDtypeStruct((Bp, 2), jnp.float32),
        grid=(1,),
        in_specs=[_const_spec(a) for a in args],
        out_specs=pl.BlockSpec((Bp, 2), lambda i: (0, 0)),
        compiler_params=pltpu.CompilerParams(dimension_semantics=("arbitrary",)),
    )(*args)


# ---------------------------- parameter creation ----------------------------

def _conv_bn_params(key, cin, cout):
    ks = jax.random.split(key, 6)
    w = jax.random.normal(ks[0], (cout, cin, 3), jnp.float32) * 0.2  # torch (Cout,Cin,K)
    conv_b = jax.random.normal(ks[1], (cout,), jnp.float32) * 0.1
    gamma = 1.0 + 0.1 * jax.random.normal(ks[2], (cout,), jnp.float32)
    beta = 0.1 * jax.random.normal(ks[3], (cout,), jnp.float32)
    mean = 0.1 * jax.random.normal(ks[4], (cout,), jnp.float32)
    var = 0.5 + jax.random.uniform(ks[5], (cout,), jnp.float32)
    scale = gamma / jnp.sqrt(var + _EPS)
    bias = beta + (conv_b - mean) * scale                     # fold conv bias + BN shift
    # (Cout, Cin, K) -> (Cout, K*Cin), matching the kernel's im2col row order
    # xcol = [x[l-1] | x[l] | x[l+1]], Cin rows per tap.
    w2d = jnp.transpose(w, (0, 2, 1)).reshape(cout, 3 * cin)
    return (w2d.astype(jnp.bfloat16),
            scale.reshape(cout, 1).astype(jnp.float32),
            bias.reshape(cout, 1).astype(jnp.float32))


def _linear_params(key, fin, fout):
    k1, k2 = jax.random.split(key)
    w = jax.random.normal(k1, (fout, fin), jnp.float32) / jnp.sqrt(float(fin))
    b = jax.random.normal(k2, (fout,), jnp.float32) * 0.05
    return w, b


def init_params(key, *, L=200):
    keys = jax.random.split(key, 9)
    p = {"conv1": _conv_bn_params(keys[0], 1, 10)}
    blk_w, blk_s, blk_b = [], [], []
    for i in range(4):                                        # ResidualBlock(10,10,stride=1)
        k1, k2 = jax.random.split(keys[1 + i])
        for kk in (k1, k2):
            w2d, s, b = _conv_bn_params(kk, 10, 10)
            blk_w.append(w2d); blk_s.append(s); blk_b.append(b)
    p["blk_w"] = jnp.stack(blk_w)                             # (8, 10, 30) bf16
    p["blk_s"] = jnp.stack(blk_s)                             # (8, 10, 1) f32
    p["blk_b"] = jnp.stack(blk_b)                             # (8, 10, 1) f32
    p["conv2"] = _conv_bn_params(keys[5], 10, 20)

    w1, b1 = _linear_params(keys[6], 20 * (L // 2), 300)      # fc1: 2000 -> 300
    ws, bs = _linear_params(keys[7], 300, 1)                  # fc2_sbp
    wd, bd = _linear_params(keys[8], 300, 1)                  # fc2_dbp
    p["fc1_w"] = w1.T.astype(jnp.bfloat16)                    # (2000, 300)
    p["fc1_b"] = b1.reshape(1, 300)
    p["head_w"] = jnp.concatenate([ws.T, wd.T], axis=1).astype(jnp.bfloat16)  # (300, 2)
    p["head_b"] = jnp.concatenate([bs, bd]).reshape(1, 2)

    # Stride-2 selection matrix for MaxPool1d(2): S[c, m] = 1 iff c == 2*m.
    r = jnp.arange(L)[:, None]
    c = jnp.arange(L // 2)[None, :]
    p["pool_sel"] = (r == 2 * c).astype(jnp.bfloat16)         # (L, L//2)
    return p


# --------------------------------- forward ----------------------------------

def resnet_forward(params, x_ncl):
    """x_ncl: (B, 1, L) PyTorch NCL input. Returns (sbp, dbp), each (B, 1)."""
    B, _, L = x_ncl.shape
    x = x_ncl.reshape(B, L).astype(jnp.float32)               # Cin = 1 -> (B, L)
    Bt = B if B <= 8 else 8                                   # batch tile per grid step
    Bpad = ((B + Bt - 1) // Bt) * Bt
    if Bpad != B:
        x = jnp.pad(x, ((0, Bpad - B), (0, 0)))
    feat = conv_stack(x, params, Bt=Bt)                       # (Bpad, 20, L//2) bf16
    flat = feat.reshape(Bpad, -1)                             # torch flatten order (channel-major)
    out = fc_heads(flat, params)                              # (Bpad, 2) f32
    return out[:B, 0:1], out[:B, 1:2]


if __name__ == "__main__":
    key = jax.random.PRNGKey(0)
    pkey, xkey = jax.random.split(key)
    params = init_params(pkey, L=200)
    # fc1 expects 2000 = 20 * (L/2) features => L must be 200
    x = jax.random.normal(xkey, (2, 1, 200), jnp.float32)
    sbp, dbp = jax.jit(resnet_forward)(params, x)
    jax.block_until_ready((sbp, dbp))
    assert sbp.shape == (2, 1) and dbp.shape == (2, 1)
    assert bool(jnp.all(jnp.isfinite(sbp))) and bool(jnp.all(jnp.isfinite(dbp)))
    print("KERNEL_OK")
</pallas_src>

<mosaic_0001>
module attributes {stable_mosaic.version = 11 : i64} {
  func.func @convnet_kernel(%arg0: i32, %arg1: memref<2x200xf32, #tpu.memory_space<vmem>>, %arg2: memref<10x3xbf16, #tpu.memory_space<vmem>>, %arg3: memref<10x1xf32, #tpu.memory_space<vmem>>, %arg4: memref<10x1xf32, #tpu.memory_space<vmem>>, %arg5: memref<8x10x30xbf16, #tpu.memory_space<vmem>>, %arg6: memref<8x10x1xf32, #tpu.memory_space<vmem>>, %arg7: memref<8x10x1xf32, #tpu.memory_space<vmem>>, %arg8: memref<20x30xbf16, #tpu.memory_space<vmem>>, %arg9: memref<20x1xf32, #tpu.memory_space<vmem>>, %arg10: memref<20x1xf32, #tpu.memory_space<vmem>>, %arg11: memref<200x100xbf16, #tpu.memory_space<vmem>>, %arg12: memref<2x20x100xbf16, #tpu.memory_space<vmem>>) attributes {dimension_semantics = [#tpu.dimension_semantics<parallel>], iteration_bounds = array<i64: 1>, scalar_prefetch = 0 : i64, scratch_operands = 0 : i64, tpu.core_type = #tpu.core_type<tc>, window_params = [{transform_indices = @transform_0, window_bounds = array<i64: 2, 200>}, {pipeline_mode = #tpu.pipeline_mode<synchronous>, transform_indices = @transform_1, window_bounds = array<i64: 10, 3>}, {pipeline_mode = #tpu.pipeline_mode<synchronous>, transform_indices = @transform_2, window_bounds = array<i64: 10, 1>}, {pipeline_mode = #tpu.pipeline_mode<synchronous>, transform_indices = @transform_3, window_bounds = array<i64: 10, 1>}, {pipeline_mode = #tpu.pipeline_mode<synchronous>, transform_indices = @transform_4, window_bounds = array<i64: 8, 10, 30>}, {pipeline_mode = #tpu.pipeline_mode<synchronous>, transform_indices = @transform_5, window_bounds = array<i64: 8, 10, 1>}, {pipeline_mode = #tpu.pipeline_mode<synchronous>, transform_indices = @transform_6, window_bounds = array<i64: 8, 10, 1>}, {pipeline_mode = #tpu.pipeline_mode<synchronous>, transform_indices = @transform_7, window_bounds = array<i64: 20, 30>}, {pipeline_mode = #tpu.pipeline_mode<synchronous>, transform_indices = @transform_8, window_bounds = array<i64: 20, 1>}, {pipeline_mode = #tpu.pipeline_mode<synchronous>, transform_indices = @transform_9, window_bounds = array<i64: 20, 1>}, {pipeline_mode = #tpu.pipeline_mode<synchronous>, transform_indices = @transform_10, window_bounds = array<i64: 200, 100>}, {transform_indices = @transform_11, window_bounds = array<i64: 2, 20, 100>}]} {
    %c0 = arith.constant 0 : index
    %c0_0 = arith.constant 0 : index
    %0 = vector.load %arg2[%c0, %c0_0] : memref<10x3xbf16, #tpu.memory_space<vmem>>, vector<10x3xbf16>
    %c0_1 = arith.constant 0 : index
    %c0_2 = arith.constant 0 : index
    %1 = vector.load %arg3[%c0_1, %c0_2] : memref<10x1xf32, #tpu.memory_space<vmem>>, vector<10x1xf32>
    %c0_3 = arith.constant 0 : index
    %c0_4 = arith.constant 0 : index
    %2 = vector.load %arg4[%c0_3, %c0_4] : memref<10x1xf32, #tpu.memory_space<vmem>>, vector<10x1xf32>
    %c0_5 = arith.constant 0 : index
    %c0_6 = arith.constant 0 : index
    %3 = vector.load %arg8[%c0_5, %c0_6] : memref<20x30xbf16, #tpu.memory_space<vmem>>, vector<20x30xbf16>
    %c0_7 = arith.constant 0 : index
    %c0_8 = arith.constant 0 : index
    %4 = vector.load %arg9[%c0_7, %c0_8] : memref<20x1xf32, #tpu.memory_space<vmem>>, vector<20x1xf32>
    %c0_9 = arith.constant 0 : index
    %c0_10 = arith.constant 0 : index
    %5 = vector.load %arg10[%c0_9, %c0_10] : memref<20x1xf32, #tpu.memory_space<vmem>>, vector<20x1xf32>
    %c0_11 = arith.constant 0 : index
    %c0_12 = arith.constant 0 : index
    %c0_13 = arith.constant 0 : index
    %6 = vector.load %arg5[%c0_11, %c0_12, %c0_13] : memref<8x10x30xbf16, #tpu.memory_space<vmem>>, vector<1x10x30xbf16>
    %7 = vector.shape_cast %6 : vector<1x10x30xbf16> to vector<10x30xbf16>
    %c0_14 = arith.constant 0 : index
    %c0_15 = arith.constant 0 : index
    %c0_16 = arith.constant 0 : index
    %8 = vector.load %arg6[%c0_14, %c0_15, %c0_16] : memref<8x10x1xf32, #tpu.memory_space<vmem>>, vector<1x10x1xf32>
    %9 = vector.shape_cast %8 : vector<1x10x1xf32> to vector<10x1xf32>
    %c0_17 = arith.constant 0 : index
    %c0_18 = arith.constant 0 : index
    %c0_19 = arith.constant 0 : index
    %10 = vector.load %arg7[%c0_17, %c0_18, %c0_19] : memref<8x10x1xf32, #tpu.memory_space<vmem>>, vector<1x10x1xf32>
    %11 = vector.shape_cast %10 : vector<1x10x1xf32> to vector<10x1xf32>
    %c1 = arith.constant 1 : index
    %c0_20 = arith.constant 0 : index
    %c0_21 = arith.constant 0 : index
    %12 = vector.load %arg5[%c1, %c0_20, %c0_21] : memref<8x10x30xbf16, #tpu.memory_space<vmem>>, vector<1x10x30xbf16>
    %13 = vector.shape_cast %12 : vector<1x10x30xbf16> to vector<10x30xbf16>
    %c1_22 = arith.constant 1 : index
    %c0_23 = arith.constant 0 : index
    %c0_24 = arith.constant 0 : index
    %14 = vector.load %arg6[%c1_22, %c0_23, %c0_24] : memref<8x10x1xf32, #tpu.memory_space<vmem>>, vector<1x10x1xf32>
    %15 = vector.shape_cast %14 : vector<1x10x1xf32> to vector<10x1xf32>
    %c1_25 = arith.constant 1 : index
    %c0_26 = arith.constant 0 : index
    %c0_27 = arith.constant 0 : index
    %16 = vector.load %arg7[%c1_25, %c0_26, %c0_27] : memref<8x10x1xf32, #tpu.memory_space<vmem>>, vector<1x10x1xf32>
    %17 = vector.shape_cast %16 : vector<1x10x1xf32> to vector<10x1xf32>
    %c2 = arith.constant 2 : index
    %c0_28 = arith.constant 0 : index
    %c0_29 = arith.constant 0 : index
    %18 = vector.load %arg5[%c2, %c0_28, %c0_29] : memref<8x10x30xbf16, #tpu.memory_space<vmem>>, vector<1x10x30xbf16>
    %19 = vector.shape_cast %18 : vector<1x10x30xbf16> to vector<10x30xbf16>
    %c2_30 = arith.constant 2 : index
    %c0_31 = arith.constant 0 : index
    %c0_32 = arith.constant 0 : index
    %20 = vector.load %arg6[%c2_30, %c0_31, %c0_32] : memref<8x10x1xf32, #tpu.memory_space<vmem>>, vector<1x10x1xf32>
    %21 = vector.shape_cast %20 : vector<1x10x1xf32> to vector<10x1xf32>
    %c2_33 = arith.constant 2 : index
    %c0_34 = arith.constant 0 : index
    %c0_35 = arith.constant 0 : index
    %22 = vector.load %arg7[%c2_33, %c0_34, %c0_35] : memref<8x10x1xf32, #tpu.memory_space<vmem>>, vector<1x10x1xf32>
    %23 = vector.shape_cast %22 : vector<1x10x1xf32> to vector<10x1xf32>
    %c3 = arith.constant 3 : index
    %c0_36 = arith.constant 0 : index
    %c0_37 = arith.constant 0 : index
    %24 = vector.load %arg5[%c3, %c0_36, %c0_37] : memref<8x10x30xbf16, #tpu.memory_space<vmem>>, vector<1x10x30xbf16>
    %25 = vector.shape_cast %24 : vector<1x10x30xbf16> to vector<10x30xbf16>
    %c3_38 = arith.constant 3 : index
    %c0_39 = arith.constant 0 : index
    %c0_40 = arith.constant 0 : index
    %26 = vector.load %arg6[%c3_38, %c0_39, %c0_40] : memref<8x10x1xf32, #tpu.memory_space<vmem>>, vector<1x10x1xf32>
    %27 = vector.shape_cast %26 : vector<1x10x1xf32> to vector<10x1xf32>
    %c3_41 = arith.constant 3 : index
    %c0_42 = arith.constant 0 : index
    %c0_43 = arith.constant 0 : index
    %28 = vector.load %arg7[%c3_41, %c0_42, %c0_43] : memref<8x10x1xf32, #tpu.memory_space<vmem>>, vector<1x10x1xf32>
    %29 = vector.shape_cast %28 : vector<1x10x1xf32> to vector<10x1xf32>
    %c4 = arith.constant 4 : index
    %c0_44 = arith.constant 0 : index
    %c0_45 = arith.constant 0 : index
    %30 = vector.load %arg5[%c4, %c0_44, %c0_45] : memref<8x10x30xbf16, #tpu.memory_space<vmem>>, vector<1x10x30xbf16>
    %31 = vector.shape_cast %30 : vector<1x10x30xbf16> to vector<10x30xbf16>
    %c4_46 = arith.constant 4 : index
    %c0_47 = arith.constant 0 : index
    %c0_48 = arith.constant 0 : index
    %32 = vector.load %arg6[%c4_46, %c0_47, %c0_48] : memref<8x10x1xf32, #tpu.memory_space<vmem>>, vector<1x10x1xf32>
    %33 = vector.shape_cast %32 : vector<1x10x1xf32> to vector<10x1xf32>
    %c4_49 = arith.constant 4 : index
    %c0_50 = arith.constant 0 : index
    %c0_51 = arith.constant 0 : index
    %34 = vector.load %arg7[%c4_49, %c0_50, %c0_51] : memref<8x10x1xf32, #tpu.memory_space<vmem>>, vector<1x10x1xf32>
    %35 = vector.shape_cast %34 : vector<1x10x1xf32> to vector<10x1xf32>
    %c5 = arith.constant 5 : index
    %c0_52 = arith.constant 0 : index
    %c0_53 = arith.constant 0 : index
    %36 = vector.load %arg5[%c5, %c0_52, %c0_53] : memref<8x10x30xbf16, #tpu.memory_space<vmem>>, vector<1x10x30xbf16>
    %37 = vector.shape_cast %36 : vector<1x10x30xbf16> to vector<10x30xbf16>
    %c5_54 = arith.constant 5 : index
    %c0_55 = arith.constant 0 : index
    %c0_56 = arith.constant 0 : index
    %38 = vector.load %arg6[%c5_54, %c0_55, %c0_56] : memref<8x10x1xf32, #tpu.memory_space<vmem>>, vector<1x10x1xf32>
    %39 = vector.shape_cast %38 : vector<1x10x1xf32> to vector<10x1xf32>
    %c5_57 = arith.constant 5 : index
    %c0_58 = arith.constant 0 : index
    %c0_59 = arith.constant 0 : index
    %40 = vector.load %arg7[%c5_57, %c0_58, %c0_59] : memref<8x10x1xf32, #tpu.memory_space<vmem>>, vector<1x10x1xf32>
    %41 = vector.shape_cast %40 : vector<1x10x1xf32> to vector<10x1xf32>
    %c6 = arith.constant 6 : index
    %c0_60 = arith.constant 0 : index
    %c0_61 = arith.constant 0 : index
    %42 = vector.load %arg5[%c6, %c0_60, %c0_61] : memref<8x10x30xbf16, #tpu.memory_space<vmem>>, vector<1x10x30xbf16>
    %43 = vector.shape_cast %42 : vector<1x10x30xbf16> to vector<10x30xbf16>
    %c6_62 = arith.constant 6 : index
    %c0_63 = arith.constant 0 : index
    %c0_64 = arith.constant 0 : index
    %44 = vector.load %arg6[%c6_62, %c0_63, %c0_64] : memref<8x10x1xf32, #tpu.memory_space<vmem>>, vector<1x10x1xf32>
    %45 = vector.shape_cast %44 : vector<1x10x1xf32> to vector<10x1xf32>
    %c6_65 = arith.constant 6 : index
    %c0_66 = arith.constant 0 : index
    %c0_67 = arith.constant 0 : index
    %46 = vector.load %arg7[%c6_65, %c0_66, %c0_67] : memref<8x10x1xf32, #tpu.memory_space<vmem>>, vector<1x10x1xf32>
    %47 = vector.shape_cast %46 : vector<1x10x1xf32> to vector<10x1xf32>
    %c7 = arith.constant 7 : index
    %c0_68 = arith.constant 0 : index
    %c0_69 = arith.constant 0 : index
    %48 = vector.load %arg5[%c7, %c0_68, %c0_69] : memref<8x10x30xbf16, #tpu.memory_space<vmem>>, vector<1x10x30xbf16>
    %49 = vector.shape_cast %48 : vector<1x10x30xbf16> to vector<10x30xbf16>
    %c7_70 = arith.constant 7 : index
    %c0_71 = arith.constant 0 : index
    %c0_72 = arith.constant 0 : index
    %50 = vector.load %arg6[%c7_70, %c0_71, %c0_72] : memref<8x10x1xf32, #tpu.memory_space<vmem>>, vector<1x10x1xf32>
    %51 = vector.shape_cast %50 : vector<1x10x1xf32> to vector<10x1xf32>
    %c7_73 = arith.constant 7 : index
    %c0_74 = arith.constant 0 : index
    %c0_75 = arith.constant 0 : index
    %52 = vector.load %arg7[%c7_73, %c0_74, %c0_75] : memref<8x10x1xf32, #tpu.memory_space<vmem>>, vector<1x10x1xf32>
    %53 = vector.shape_cast %52 : vector<1x10x1xf32> to vector<10x1xf32>
    %c0_76 = arith.constant 0 : index
    %c0_77 = arith.constant 0 : index
    %54 = vector.load %arg11[%c0_76, %c0_77] : memref<200x100xbf16, #tpu.memory_space<vmem>>, vector<200x100xbf16>
    %c0_78 = arith.constant 0 : index
    %c0_79 = arith.constant 0 : index
    %55 = vector.load %arg1[%c0_78, %c0_79] : memref<2x200xf32, #tpu.memory_space<vmem>>, vector<2x200xf32>
    %56 = vector.extract_strided_slice %55 {offsets = [0, 0], sizes = [1, 200], strides = [1, 1]} : vector<2x200xf32> to vector<1x200xf32>
    %cst = arith.constant 0.000000e+00 : f32
    %57 = vector.broadcast %cst : f32 to vector<1x1xf32>
    %58 = vector.extract_strided_slice %56 {offsets = [0, 0], sizes = [1, 199], strides = [1, 1]} : vector<1x200xf32> to vector<1x199xf32>
    %59 = tpu.concatenate %57, %58 in 1 : vector<1x1xf32>, vector<1x199xf32> -> vector<1x200xf32>
    %60 = vector.extract_strided_slice %56 {offsets = [0, 1], sizes = [1, 199], strides = [1, 1]} : vector<1x200xf32> to vector<1x199xf32>
    %61 = tpu.concatenate %60, %57 in 1 : vector<1x199xf32>, vector<1x1xf32> -> vector<1x200xf32>
    %62 = tpu.concatenate %59, %56, %61 in 0 : vector<1x200xf32>, vector<1x200xf32>, vector<1x200xf32> -> vector<3x200xf32>
    %63 = arith.truncf %62 : vector<3x200xf32> to vector<3x200xbf16>
    %cst_80 = arith.constant dense<0.000000e+00> : vector<10x200xf32>
    %64 = tpu.matmul %0, %63, %cst_80 {dimension_numbers = #tpu.dot_dimension_numbers<[1], [0], [0], [1], [0, 0, 1, 1], [], []>} : vector<10x3xbf16>, vector<3x200xbf16>, vector<10x200xf32> -> vector<10x200xf32>
    %65 = vector.broadcast %1 : vector<10x1xf32> to vector<10x200xf32>
    %66 = arith.mulf %64, %65 : vector<10x200xf32>
    %67 = vector.broadcast %2 : vector<10x1xf32> to vector<10x200xf32>
    %68 = arith.addf %66, %67 : vector<10x200xf32>
    %cst_81 = arith.constant 0.000000e+00 : f32
    %69 = vector.broadcast %cst_81 : f32 to vector<10x200xf32>
    %70 = arith.maximumf %68, %69 : vector<10x200xf32>
    %cst_82 = arith.constant 0.000000e+00 : f32
    %71 = vector.broadcast %cst_82 : f32 to vector<10x1xf32>
    %72 = vector.extract_strided_slice %70 {offsets = [0, 0], sizes = [10, 199], strides = [1, 1]} : vector<10x200xf32> to vector<10x199xf32>
    %73 = tpu.concatenate %71, %72 in 1 : vector<10x1xf32>, vector<10x199xf32> -> vector<10x200xf32>
    %74 = vector.extract_strided_slice %70 {offsets = [0, 1], sizes = [10, 199], strides = [1, 1]} : vector<10x200xf32> to vector<10x199xf32>
    %75 = tpu.concatenate %74, %71 in 1 : vector<10x199xf32>, vector<10x1xf32> -> vector<10x200xf32>
    %76 = tpu.concatenate %73, %70, %75 in 0 : vector<10x200xf32>, vector<10x200xf32>, vector<10x200xf32> -> vector<30x200xf32>
    %77 = arith.truncf %76 : vector<30x200xf32> to vector<30x200xbf16>
    %cst_83 = arith.constant dense<0.000000e+00> : vector<10x200xf32>
    %78 = tpu.matmul %7, %77, %cst_83 {dimension_numbers = #tpu.dot_dimension_numbers<[1], [0], [0], [1], [0, 0, 1, 1], [], []>} : vector<10x30xbf16>, vector<30x200xbf16>, vector<10x200xf32> -> vector<10x200xf32>
    %79 = vector.broadcast %9 : vector<10x1xf32> to vector<10x200xf32>
    %80 = arith.mulf %78, %79 : vector<10x200xf32>
    %81 = vector.broadcast %11 : vector<10x1xf32> to vector<10x200xf32>
    %82 = arith.addf %80, %81 : vector<10x200xf32>
    %cst_84 = arith.constant 0.000000e+00 : f32
    %83 = vector.broadcast %cst_84 : f32 to vector<10x200xf32>
    %84 = arith.maximumf %82, %83 : vector<10x200xf32>
    %cst_85 = arith.constant 0.000000e+00 : f32
    %85 = vector.broadcast %cst_85 : f32 to vector<10x1xf32>
    %86 = vector.extract_strided_slice %84 {offsets = [0, 0], sizes = [10, 199], strides = [1, 1]} : vector<10x200xf32> to vector<10x199xf32>
    %87 = tpu.concatenate %85, %86 in 1 : vector<10x1xf32>, vector<10x199xf32> -> vector<10x200xf32>
    %88 = vector.extract_strided_slice %84 {offsets = [0, 1], sizes = [10, 199], strides = [1, 1]} : vector<10x200xf32> to vector<10x199xf32>
    %89 = tpu.concatenate %88, %85 in 1 : vector<10x199xf32>, vector<10x1xf32> -> vector<10x200xf32>
    %90 = tpu.concatenate %87, %84, %89 in 0 : vector<10x200xf32>, vector<10x200xf32>, vector<10x200xf32> -> vector<30x200xf32>
    %91 = arith.truncf %90 : vector<30x200xf32> to vector<30x200xbf16>
    %cst_86 = arith.constant dense<0.000000e+00> : vector<10x200xf32>
    %92 = tpu.matmul %13, %91, %cst_86 {dimension_numbers = #tpu.dot_dimension_numbers<[1], [0], [0], [1], [0, 0, 1, 1], [], []>} : vector<10x30xbf16>, vector<30x200xbf16>, vector<10x200xf32> -> vector<10x200xf32>
    %93 = vector.broadcast %15 : vector<10x1xf32> to vector<10x200xf32>
    %94 = arith.mulf %92, %93 : vector<10x200xf32>
    %95 = vector.broadcast %17 : vector<10x1xf32> to vector<10x200xf32>
    %96 = arith.addf %94, %95 : vector<10x200xf32>
    %97 = arith.addf %96, %70 : vector<10x200xf32>
    %cst_87 = arith.constant 0.000000e+00 : f32
    %98 = vector.broadcast %cst_87 : f32 to vector<10x200xf32>
    %99 = arith.maximumf %97, %98 : vector<10x200xf32>
    %cst_88 = arith.constant 0.000000e+00 : f32
    %100 = vector.broadcast %cst_88 : f32 to vector<10x1xf32>
    %101 = vector.extract_strided_slice %99 {offsets = [0, 0], sizes = [10, 199], strides = [1, 1]} : vector<10x200xf32> to vector<10x199xf32>
    %102 = tpu.concatenate %100, %101 in 1 : vector<10x1xf32>, vector<10x199xf32> -> vector<10x200xf32>
    %103 = vector.extract_strided_slice %99 {offsets = [0, 1], sizes = [10, 199], strides = [1, 1]} : vector<10x200xf32> to vector<10x199xf32>
    %104 = tpu.concatenate %103, %100 in 1 : vector<10x199xf32>, vector<10x1xf32> -> vector<10x200xf32>
    %105 = tpu.concatenate %102, %99, %104 in 0 : vector<10x200xf32>, vector<10x200xf32>, vector<10x200xf32> -> vector<30x200xf32>
    %106 = arith.truncf %105 : vector<30x200xf32> to vector<30x200xbf16>
    %cst_89 = arith.constant dense<0.000000e+00> : vector<10x200xf32>
    %107 = tpu.matmul %19, %106, %cst_89 {dimension_numbers = #tpu.dot_dimension_numbers<[1], [0], [0], [1], [0, 0, 1, 1], [], []>} : vector<10x30xbf16>, vector<30x200xbf16>, vector<10x200xf32> -> vector<10x200xf32>
    %108 = vector.broadcast %21 : vector<10x1xf32> to vector<10x200xf32>
    %109 = arith.mulf %107, %108 : vector<10x200xf32>
    %110 = vector.broadcast %23 : vector<10x1xf32> to vector<10x200xf32>
    %111 = arith.addf %109, %110 : vector<10x200xf32>
    %cst_90 = arith.constant 0.000000e+00 : f32
    %112 = vector.broadcast %cst_90 : f32 to vector<10x200xf32>
    %113 = arith.maximumf %111, %112 : vector<10x200xf32>
    %cst_91 = arith.constant 0.000000e+00 : f32
    %114 = vector.broadcast %cst_91 : f32 to vector<10x1xf32>
    %115 = vector.extract_strided_slice %113 {offsets = [0, 0], sizes = [10, 199], strides = [1, 1]} : vector<10x200xf32> to vector<10x199xf32>
    %116 = tpu.concatenate %114, %115 in 1 : vector<10x1xf32>, vector<10x199xf32> -> vector<10x200xf32>
    %117 = vector.extract_strided_slice %113 {offsets = [0, 1], sizes = [10, 199], strides = [1, 1]} : vector<10x200xf32> to vector<10x199xf32>
    %118 = tpu.concatenate %117, %114 in 1 : vector<10x199xf32>, vector<10x1xf32> -> vector<10x200xf32>
    %119 = tpu.concatenate %116, %113, %118 in 0 : vector<10x200xf32>, vector<10x200xf32>, vector<10x200xf32> -> vector<30x200xf32>
    %120 = arith.truncf %119 : vector<30x200xf32> to vector<30x200xbf16>
    %cst_92 = arith.constant dense<0.000000e+00> : vector<10x200xf32>
    %121 = tpu.matmul %25, %120, %cst_92 {dimension_numbers = #tpu.dot_dimension_numbers<[1], [0], [0], [1], [0, 0, 1, 1], [], []>} : vector<10x30xbf16>, vector<30x200xbf16>, vector<10x200xf32> -> vector<10x200xf32>
    %122 = vector.broadcast %27 : vector<10x1xf32> to vector<10x200xf32>
    %123 = arith.mulf %121, %122 : vector<10x200xf32>
    %124 = vector.broadcast %29 : vector<10x1xf32> to vector<10x200xf32>
    %125 = arith.addf %123, %124 : vector<10x200xf32>
    %126 = arith.addf %125, %99 : vector<10x200xf32>
    %cst_93 = arith.constant 0.000000e+00 : f32
    %127 = vector.broadcast %cst_93 : f32 to vector<10x200xf32>
    %128 = arith.maximumf %126, %127 : vector<10x200xf32>
    %cst_94 = arith.constant 0.000000e+00 : f32
    %129 = vector.broadcast %cst_94 : f32 to vector<10x1xf32>
    %130 = vector.extract_strided_slice %128 {offsets = [0, 0], sizes = [10, 199], strides = [1, 1]} : vector<10x200xf32> to vector<10x199xf32>
    %131 = tpu.concatenate %129, %130 in 1 : vector<10x1xf32>, vector<10x199xf32> -> vector<10x200xf32>
    %132 = vector.extract_strided_slice %128 {offsets = [0, 1], sizes = [10, 199], strides = [1, 1]} : vector<10x200xf32> to vector<10x199xf32>
    %133 = tpu.concatenate %132, %129 in 1 : vector<10x199xf32>, vector<10x1xf32> -> vector<10x200xf32>
    %134 = tpu.concatenate %131, %128, %133 in 0 : vector<10x200xf32>, vector<10x200xf32>, vector<10x200xf32> -> vector<30x200xf32>
    %135 = arith.truncf %134 : vector<30x200xf32> to vector<30x200xbf16>
    %cst_95 = arith.constant dense<0.000000e+00> : vector<10x200xf32>
    %136 = tpu.matmul %31, %135, %cst_95 {dimension_numbers = #tpu.dot_dimension_numbers<[1], [0], [0], [1], [0, 0, 1, 1], [], []>} : vector<10x30xbf16>, vector<30x200xbf16>, vector<10x200xf32> -> vector<10x200xf32>
    %137 = vector.broadcast %33 : vector<10x1xf32> to vector<10x200xf32>
    %138 = arith.mulf %136, %137 : vector<10x200xf32>
    %139 = vector.broadcast %35 : vector<10x1xf32> to vector<10x200xf32>
    %140 = arith.addf %138, %139 : vector<10x200xf32>
    %cst_96 = arith.constant 0.000000e+00 : f32
    %141 = vector.broadcast %cst_96 : f32 to vector<10x200xf32>
    %142 = arith.maximumf %140, %141 : vector<10x200xf32>
    %cst_97 = arith.constant 0.000000e+00 : f32
    %143 = vector.broadcast %cst_97 : f32 to vector<10x1xf32>
    %144 = vector.extract_strided_slice %142 {offsets = [0, 0], sizes = [10, 199], strides = [1, 1]} : vector<10x200xf32> to vector<10x199xf32>
    %145 = tpu.concatenate %143, %144 in 1 : vector<10x1xf32>, vector<10x199xf32> -> vector<10x200xf32>
    %146 = vector.extract_strided_slice %142 {offsets = [0, 1], sizes = [10, 199], strides = [1, 1]} : vector<10x200xf32> to vector<10x199xf32>
    %147 = tpu.concatenate %146, %143 in 1 : vector<10x199xf32>, vector<10x1xf32> -> vector<10x200xf32>
    %148 = tpu.concatenate %145, %142, %147 in 0 : vector<10x200xf32>, vector<10x200xf32>, vector<10x200xf32> -> vector<30x200xf32>
    %149 = arith.truncf %148 : vector<30x200xf32> to vector<30x200xbf16>
    %cst_98 = arith.constant dense<0.000000e+00> : vector<10x200xf32>
    %150 = tpu.matmul %37, %149, %cst_98 {dimension_numbers = #tpu.dot_dimension_numbers<[1], [0], [0], [1], [0, 0, 1, 1], [], []>} : vector<10x30xbf16>, vector<30x200xbf16>, vector<10x200xf32> -> vector<10x200xf32>
    %151 = vector.broadcast %39 : vector<10x1xf32> to vector<10x200xf32>
    %152 = arith.mulf %150, %151 : vector<10x200xf32>
    %153 = vector.broadcast %41 : vector<10x1xf32> to vector<10x200xf32>
    %154 = arith.addf %152, %153 : vector<10x200xf32>
    %155 = arith.addf %154, %128 : vector<10x200xf32>
    %cst_99 = arith.constant 0.000000e+00 : f32
    %156 = vector.broadcast %cst_99 : f32 to vector<10x200xf32>
    %157 = arith.maximumf %155, %156 : vector<10x200xf32>
    %cst_100 = arith.constant 0.000000e+00 : f32
    %158 = vector.broadcast %cst_100 : f32 to vector<10x1xf32>
    %159 = vector.extract_strided_slice %157 {offsets = [0, 0], sizes = [10, 199], strides = [1, 1]} : vector<10x200xf32> to vector<10x199xf32>
    %160 = tpu.concatenate %158, %159 in 1 : vector<10x1xf32>, vector<10x199xf32> -> vector<10x200xf32>
    %161 = vector.extract_strided_slice %157 {offsets = [0, 1], sizes = [10, 199], strides = [1, 1]} : vector<10x200xf32> to vector<10x199xf32>
    %162 = tpu.concatenate %161, %158 in 1 : vector<10x199xf32>, vector<10x1xf32> -> vector<10x200xf32>
    %163 = tpu.concatenate %160, %157, %162 in 0 : vector<10x200xf32>, vector<10x200xf32>, vector<10x200xf32> -> vector<30x200xf32>
    %164 = arith.truncf %163 : vector<30x200xf32> to vector<30x200xbf16>
    %cst_101 = arith.constant dense<0.000000e+00> : vector<10x200xf32>
    %165 = tpu.matmul %43, %164, %cst_101 {dimension_numbers = #tpu.dot_dimension_numbers<[1], [0], [0], [1], [0, 0, 1, 1], [], []>} : vector<10x30xbf16>, vector<30x200xbf16>, vector<10x200xf32> -> vector<10x200xf32>
    %166 = vector.broadcast %45 : vector<10x1xf32> to vector<10x200xf32>
    %167 = arith.mulf %165, %166 : vector<10x200xf32>
    %168 = vector.broadcast %47 : vector<10x1xf32> to vector<10x200xf32>
    %169 = arith.addf %167, %168 : vector<10x200xf32>
    %cst_102 = arith.constant 0.000000e+00 : f32
    %170 = vector.broadcast %cst_102 : f32 to vector<10x200xf32>
    %171 = arith.maximumf %169, %170 : vector<10x200xf32>
    %cst_103 = arith.constant 0.000000e+00 : f32
    %172 = vector.broadcast %cst_103 : f32 to vector<10x1xf32>
    %173 = vector.extract_strided_slice %171 {offsets = [0, 0], sizes = [10, 199], strides = [1, 1]} : vector<10x200xf32> to vector<10x199xf32>
    %174 = tpu.concatenate %172, %173 in 1 : vector<10x1xf32>, vector<10x199xf32> -> vector<10x200xf32>
    %175 = vector.extract_strided_slice %171 {offsets = [0, 1], sizes = [10, 199], strides = [1, 1]} : vector<10x200xf32> to vector<10x199xf32>
    %176 = tpu.concatenate %175, %172 in 1 : vector<10x199xf32>, vector<10x1xf32> -> vector<10x200xf32>
    %177 = tpu.concatenate %174, %171, %176 in 0 : vector<10x200xf32>, vector<10x200xf32>, vector<10x200xf32> -> vector<30x200xf32>
    %178 = arith.truncf %177 : vector<30x200xf32> to vector<30x200xbf16>
    %cst_104 = arith.constant dense<0.000000e+00> : vector<10x200xf32>
    %179 = tpu.matmul %49, %178, %cst_104 {dimension_numbers = #tpu.dot_dimension_numbers<[1], [0], [0], [1], [0, 0, 1, 1], [], []>} : vector<10x30xbf16>, vector<30x200xbf16>, vector<10x200xf32> -> vector<10x200xf32>
    %180 = vector.broadcast %51 : vector<10x1xf32> to vector<10x200xf32>
    %181 = arith.mulf %179, %180 : vector<10x200xf32>
    %182 = vector.broadcast %53 : vector<10x1xf32> to vector<10x200xf32>
    %183 = arith.addf %181, %182 : vector<10x200xf32>
    %184 = arith.addf %183, %157 : vector<10x200xf32>
    %cst_105 = arith.constant 0.000000e+00 : f32
    %185 = vector.broadcast %cst_105 : f32 to vector<10x200xf32>
    %186 = arith.maximumf %184, %185 : vector<10x200xf32>
    %cst_106 = arith.constant 0.000000e+00 : f32
    %187 = vector.broadcast %cst_106 : f32 to vector<10x1xf32>
    %188 = vector.extract_strided_slice %186 {offsets = [0, 1], sizes = [10, 199], strides = [1, 1]} : vector<10x200xf32> to vector<10x199xf32>
    %189 = tpu.concatenate %188, %187 in 1 : vector<10x199xf32>, vector<10x1xf32> -> vector<10x200xf32>
    %190 = arith.maximumf %186, %189 : vector<10x200xf32>
    %191 = arith.truncf %190 : vector<10x200xf32> to vector<10x200xbf16>
    %cst_107 = arith.constant dense<0.000000e+00> : vector<10x100xf32>
    %192 = tpu.matmul %191, %54, %cst_107 {dimension_numbers = #tpu.dot_dimension_numbers<[1], [0], [0], [1], [0, 0, 1, 1], [], []>} : vector<10x200xbf16>, vector<200x100xbf16>, vector<10x100xf32> -> vector<10x100xf32>
    %cst_108 = arith.constant 0.000000e+00 : f32
    %193 = vector.broadcast %cst_108 : f32 to vector<10x1xf32>
    %194 = vector.extract_strided_slice %192 {offsets = [0, 0], sizes = [10, 99], strides = [1, 1]} : vector<10x100xf32> to vector<10x99xf32>
    %195 = tpu.concatenate %193, %194 in 1 : vector<10x1xf32>, vector<10x99xf32> -> vector<10x100xf32>
    %196 = vector.extract_strided_slice %192 {offsets = [0, 1], sizes = [10, 99], strides = [1, 1]} : vector<10x100xf32> to vector<10x99xf32>
    %197 = tpu.concatenate %196, %193 in 1 : vector<10x99xf32>, vector<10x1xf32> -> vector<10x100xf32>
    %198 = tpu.concatenate %195, %192, %197 in 0 : vector<10x100xf32>, vector<10x100xf32>, vector<10x100xf32> -> vector<30x100xf32>
    %199 = arith.truncf %198 : vector<30x100xf32> to vector<30x100xbf16>
    %cst_109 = arith.constant dense<0.000000e+00> : vector<20x100xf32>
    %200 = tpu.matmul %3, %199, %cst_109 {dimension_numbers = #tpu.dot_dimension_numbers<[1], [0], [0], [1], [0, 0, 1, 1], [], []>} : vector<20x30xbf16>, vector<30x100xbf16>, vector<20x100xf32> -> vector<20x100xf32>
    %201 = vector.broadcast %4 : vector<20x1xf32> to vector<20x100xf32>
    %202 = arith.mulf %200, %201 : vector<20x100xf32>
    %203 = vector.broadcast %5 : vector<20x1xf32> to vector<20x100xf32>
    %204 = arith.addf %202, %203 : vector<20x100xf32>
    %cst_110 = arith.constant 0.000000e+00 : f32
    %205 = vector.broadcast %cst_110 : f32 to vector<20x100xf32>
    %206 = arith.maximumf %204, %205 : vector<20x100xf32>
    %207 = arith.truncf %206 : vector<20x100xf32> to vector<20x100xbf16>
    %c0_111 = arith.constant 0 : index
    %c0_112 = arith.constant 0 : index
    %c0_113 = arith.constant 0 : index
    %208 = vector.load %arg12[%c0_111, %c0_112, %c0_113] : memref<2x20x100xbf16, #tpu.memory_space<vmem>>, vector<1x20x100xbf16>
    %209 = vector.shape_cast %208 : vector<1x20x100xbf16> to vector<20x100xbf16>
    %210 = vector.shape_cast %207 : vector<20x100xbf16> to vector<1x20x100xbf16>
    tpu.vector_store %arg12[%c0_111, %c0_112, %c0_113], %210 {strides = array<i32>} : memref<2x20x100xbf16, #tpu.memory_space<vmem>>, vector<1x20x100xbf16>,
    %211 = vector.extract_strided_slice %55 {offsets = [1, 0], sizes = [1, 200], strides = [1, 1]} : vector<2x200xf32> to vector<1x200xf32>
    %cst_114 = arith.constant 0.000000e+00 : f32
    %212 = vector.broadcast %cst_114 : f32 to vector<1x1xf32>
    %213 = vector.extract_strided_slice %211 {offsets = [0, 0], sizes = [1, 199], strides = [1, 1]} : vector<1x200xf32> to vector<1x199xf32>
    %214 = tpu.concatenate %212, %213 in 1 : vector<1x1xf32>, vector<1x199xf32> -> vector<1x200xf32>
    %215 = vector.extract_strided_slice %211 {offsets = [0, 1], sizes = [1, 199], strides = [1, 1]} : vector<1x200xf32> to vector<1x199xf32>
    %216 = tpu.concatenate %215, %212 in 1 : vector<1x199xf32>, vector<1x1xf32> -> vector<1x200xf32>
    %217 = tpu.concatenate %214, %211, %216 in 0 : vector<1x200xf32>, vector<1x200xf32>, vector<1x200xf32> -> vector<3x200xf32>
    %218 = arith.truncf %217 : vector<3x200xf32> to vector<3x200xbf16>
    %cst_115 = arith.constant dense<0.000000e+00> : vector<10x200xf32>
    %219 = tpu.matmul %0, %218, %cst_115 {dimension_numbers = #tpu.dot_dimension_numbers<[1], [0], [0], [1], [0, 0, 1, 1], [], []>} : vector<10x3xbf16>, vector<3x200xbf16>, vector<10x200xf32> -> vector<10x200xf32>
    %220 = vector.broadcast %1 : vector<10x1xf32> to vector<10x200xf32>
    %221 = arith.mulf %219, %220 : vector<10x200xf32>
    %222 = vector.broadcast %2 : vector<10x1xf32> to vector<10x200xf32>
    %223 = arith.addf %221, %222 : vector<10x200xf32>
    %cst_116 = arith.constant 0.000000e+00 : f32
    %224 = vector.broadcast %cst_116 : f32 to vector<10x200xf32>
    %225 = arith.maximumf %223, %224 : vector<10x200xf32>
    %cst_117 = arith.constant 0.000000e+00 : f32
    %226 = vector.broadcast %cst_117 : f32 to vector<10x1xf32>
    %227 = vector.extract_strided_slice %225 {offsets = [0, 0], sizes = [10, 199], strides = [1, 1]} : vector<10x200xf32> to vector<10x199xf32>
    %228 = tpu.concatenate %226, %227 in 1 : vector<10x1xf32>, vector<10x199xf32> -> vector<10x200xf32>
    %229 = vector.extract_strided_slice %225 {offsets = [0, 1], sizes = [10, 199], strides = [1, 1]} : vector<10x200xf32> to vector<10x199xf32>
    %230 = tpu.concatenate %229, %226 in 1 : vector<10x199xf32>, vector<10x1xf32> -> vector<10x200xf32>
    %231 = tpu.concatenate %228, %225, %230 in 0 : vector<10x200xf32>, vector<10x200xf32>, vector<10x200xf32> -> vector<30x200xf32>
    %232 = arith.truncf %231 : vector<30x200xf32> to vector<30x200xbf16>
    %cst_118 = arith.constant dense<0.000000e+00> : vector<10x200xf32>
    %233 = tpu.matmul %7, %232, %cst_118 {dimension_numbers = #tpu.dot_dimension_numbers<[1], [0], [0], [1], [0, 0, 1, 1], [], []>} : vector<10x30xbf16>, vector<30x200xbf16>, vector<10x200xf32> -> vector<10x200xf32>
    %234 = vector.broadcast %9 : vector<10x1xf32> to vector<10x200xf32>
    %235 = arith.mulf %233, %234 : vector<10x200xf32>
    %236 = vector.broadcast %11 : vector<10x1xf32> to vector<10x200xf32>
    %237 = arith.addf %235, %236 : vector<10x200xf32>
    %cst_119 = arith.constant 0.000000e+00 : f32
    %238 = vector.broadcast %cst_119 : f32 to vector<10x200xf32>
    %239 = arith.maximumf %237, %238 : vector<10x200xf32>
    %cst_120 = arith.constant 0.000000e+00 : f32
    %240 = vector.broadcast %cst_120 : f32 to vector<10x1xf32>
    %241 = vector.extract_strided_slice %239 {offsets = [0, 0], sizes = [10, 199], strides = [1, 1]} : vector<10x200xf32> to vector<10x199xf32>
    %242 = tpu.concatenate %240, %241 in 1 : vector<10x1xf32>, vector<10x199xf32> -> vector<10x200xf32>
    %243 = vector.extract_strided_slice %239 {offsets = [0, 1], sizes = [10, 199], strides = [1, 1]} : vector<10x200xf32> to vector<10x199xf32>
    %244 = tpu.concatenate %243, %240 in 1 : vector<10x199xf32>, vector<10x1xf32> -> vector<10x200xf32>
    %245 = tpu.concatenate %242, %239, %244 in 0 : vector<10x200xf32>, vector<10x200xf32>, vector<10x200xf32> -> vector<30x200xf32>
    %246 = arith.truncf %245 : vector<30x200xf32> to vector<30x200xbf16>
    %cst_121 = arith.constant dense<0.000000e+00> : vector<10x200xf32>
    %247 = tpu.matmul %13, %246, %cst_121 {dimension_numbers = #tpu.dot_dimension_numbers<[1], [0], [0], [1], [0, 0, 1, 1], [], []>} : vector<10x30xbf16>, vector<30x200xbf16>, vector<10x200xf32> -> vector<10x200xf32>
    %248 = vector.broadcast %15 : vector<10x1xf32> to vector<10x200xf32>
    %249 = arith.mulf %247, %248 : vector<10x200xf32>
    %250 = vector.broadcast %17 : vector<10x1xf32> to vector<10x200xf32>
    %251 = arith.addf %249, %250 : vector<10x200xf32>
    %252 = arith.addf %251, %225 : vector<10x200xf32>
    %cst_122 = arith.constant 0.000000e+00 : f32
    %253 = vector.broadcast %cst_122 : f32 to vector<10x200xf32>
    %254 = arith.maximumf %252, %253 : vector<10x200xf32>
    %cst_123 = arith.constant 0.000000e+00 : f32
    %255 = vector.broadcast %cst_123 : f32 to vector<10x1xf32>
    %256 = vector.extract_strided_slice %254 {offsets = [0, 0], sizes = [10, 199], strides = [1, 1]} : vector<10x200xf32> to vector<10x199xf32>
    %257 = tpu.concatenate %255, %256 in 1 : vector<10x1xf32>, vector<10x199xf32> -> vector<10x200xf32>
    %258 = vector.extract_strided_slice %254 {offsets = [0, 1], sizes = [10, 199], strides = [1, 1]} : vector<10x200xf32> to vector<10x199xf32>
    %259 = tpu.concatenate %258, %255 in 1 : vector<10x199xf32>, vector<10x1xf32> -> vector<10x200xf32>
    %260 = tpu.concatenate %257, %254, %259 in 0 : vector<10x200xf32>, vector<10x200xf32>, vector<10x200xf32> -> vector<30x200xf32>
    %261 = arith.truncf %260 : vector<30x200xf32> to vector<30x200xbf16>
    %cst_124 = arith.constant dense<0.000000e+00> : vector<10x200xf32>
    %262 = tpu.matmul %19, %261, %cst_124 {dimension_numbers = #tpu.dot_dimension_numbers<[1], [0], [0], [1], [0, 0, 1, 1], [], []>} : vector<10x30xbf16>, vector<30x200xbf16>, vector<10x200xf32> -> vector<10x200xf32>
    %263 = vector.broadcast %21 : vector<10x1xf32> to vector<10x200xf32>
    %264 = arith.mulf %262, %263 : vector<10x200xf32>
    %265 = vector.broadcast %23 : vector<10x1xf32> to vector<10x200xf32>
    %266 = arith.addf %264, %265 : vector<10x200xf32>
    %cst_125 = arith.constant 0.000000e+00 : f32
    %267 = vector.broadcast %cst_125 : f32 to vector<10x200xf32>
    %268 = arith.maximumf %266, %267 : vector<10x200xf32>
    %cst_126 = arith.constant 0.000000e+00 : f32
    %269 = vector.broadcast %cst_126 : f32 to vector<10x1xf32>
    %270 = vector.extract_strided_slice %268 {offsets = [0, 0], sizes = [10, 199], strides = [1, 1]} : vector<10x200xf32> to vector<10x199xf32>
    %271 = tpu.concatenate %269, %270 in 1 : vector<10x1xf32>, vector<10x199xf32> -> vector<10x200xf32>
    %272 = vector.extract_strided_slice %268 {offsets = [0, 1], sizes = [10, 199], strides = [1, 1]} : vector<10x200xf32> to vector<10x199xf32>
    %273 = tpu.concatenate %272, %269 in 1 : vector<10x199xf32>, vector<10x1xf32> -> vector<10x200xf32>
    %274 = tpu.concatenate %271, %268, %273 in 0 : vector<10x200xf32>, vector<10x200xf32>, vector<10x200xf32> -> vector<30x200xf32>
    %275 = arith.truncf %274 : vector<30x200xf32> to vector<30x200xbf16>
    %cst_127 = arith.constant dense<0.000000e+00> : vector<10x200xf32>
    %276 = tpu.matmul %25, %275, %cst_127 {dimension_numbers = #tpu.dot_dimension_numbers<[1], [0], [0], [1], [0, 0, 1, 1], [], []>} : vector<10x30xbf16>, vector<30x200xbf16>, vector<10x200xf32> -> vector<10x200xf32>
    %277 = vector.broadcast %27 : vector<10x1xf32> to vector<10x200xf32>
    %278 = arith.mulf %276, %277 : vector<10x200xf32>
    %279 = vector.broadcast %29 : vector<10x1xf32> to vector<10x200xf32>
    %280 = arith.addf %278, %279 : vector<10x200xf32>
    %281 = arith.addf %280, %254 : vector<10x200xf32>
    %cst_128 = arith.constant 0.000000e+00 : f32
    %282 = vector.broadcast %cst_128 : f32 to vector<10x200xf32>
    %283 = arith.maximumf %281, %282 : vector<10x200xf32>
    %cst_129 = arith.constant 0.000000e+00 : f32
    %284 = vector.broadcast %cst_129 : f32 to vector<10x1xf32>
    %285 = vector.extract_strided_slice %283 {offsets = [0, 0], sizes = [10, 199], strides = [1, 1]} : vector<10x200xf32> to vector<10x199xf32>
    %286 = tpu.concatenate %284, %285 in 1 : vector<10x1xf32>, vector<10x199xf32> -> vector<10x200xf32>
    %287 = vector.extract_strided_slice %283 {offsets = [0, 1], sizes = [10, 199], strides = [1, 1]} : vector<10x200xf32> to vector<10x199xf32>
    %288 = tpu.concatenate %287, %284 in 1 : vector<10x199xf32>, vector<10x1xf32> -> vector<10x200xf32>
    %289 = tpu.concatenate %286, %283, %288 in 0 : vector<10x200xf32>, vector<10x200xf32>, vector<10x200xf32> -> vector<30x200xf32>
    %290 = arith.truncf %289 : vector<30x200xf32> to vector<30x200xbf16>
    %cst_130 = arith.constant dense<0.000000e+00> : vector<10x200xf32>
    %291 = tpu.matmul %31, %290, %cst_130 {dimension_numbers = #tpu.dot_dimension_numbers<[1], [0], [0], [1], [0, 0, 1, 1], [], []>} : vector<10x30xbf16>, vector<30x200xbf16>, vector<10x200xf32> -> vector<10x200xf32>
    %292 = vector.broadcast %33 : vector<10x1xf32> to vector<10x200xf32>
    %293 = arith.mulf %291, %292 : vector<10x200xf32>
    %294 = vector.broadcast %35 : vector<10x1xf32> to vector<10x200xf32>
    %295 = arith.addf %293, %294 : vector<10x200xf32>
    %cst_131 = arith.constant 0.000000e+00 : f32
    %296 = vector.broadcast %cst_131 : f32 to vector<10x200xf32>
    %297 = arith.maximumf %295, %296 : vector<10x200xf32>
    %cst_132 = arith.constant 0.000000e+00 : f32
    %298 = vector.broadcast %cst_132 : f32 to vector<10x1xf32>
    %299 = vector.extract_strided_slice %297 {offsets = [0, 0], sizes = [10, 199], strides = [1, 1]} : vector<10x200xf32> to vector<10x199xf32>
    %300 = tpu.concatenate %298, %299 in 1 : vector<10x1xf32>, vector<10x199xf32> -> vector<10x200xf32>
    %301 = vector.extract_strided_slice %297 {offsets = [0, 1], sizes = [10, 199], strides = [1, 1]} : vector<10x200xf32> to vector<10x199xf32>
    %302 = tpu.concatenate %301, %298 in 1 : vector<10x199xf32>, vector<10x1xf32> -> vector<10x200xf32>
    %303 = tpu.concatenate %300, %297, %302 in 0 : vector<10x200xf32>, vector<10x200xf32>, vector<10x200xf32> -> vector<30x200xf32>
    %304 = arith.truncf %303 : vector<30x200xf32> to vector<30x200xbf16>
    %cst_133 = arith.constant dense<0.000000e+00> : vector<10x200xf32>
    %305 = tpu.matmul %37, %304, %cst_133 {dimension_numbers = #tpu.dot_dimension_numbers<[1], [0], [0], [1], [0, 0, 1, 1], [], []>} : vector<10x30xbf16>, vector<30x200xbf16>, vector<10x200xf32> -> vector<10x200xf32>
    %306 = vector.broadcast %39 : vector<10x1xf32> to vector<10x200xf32>
    %307 = arith.mulf %305, %306 : vector<10x200xf32>
    %308 = vector.broadcast %41 : vector<10x1xf32> to vector<10x200xf32>
    %309 = arith.addf %307, %308 : vector<10x200xf32>
    %310 = arith.addf %309, %283 : vector<10x200xf32>
    %cst_134 = arith.constant 0.000000e+00 : f32
    %311 = vector.broadcast %cst_134 : f32 to vector<10x200xf32>
    %312 = arith.maximumf %310, %311 : vector<10x200xf32>
    %cst_135 = arith.constant 0.000000e+00 : f32
    %313 = vector.broadcast %cst_135 : f32 to vector<10x1xf32>
    %314 = vector.extract_strided_slice %312 {offsets = [0, 0], sizes = [10, 199], strides = [1, 1]} : vector<10x200xf32> to vector<10x199xf32>
    %315 = tpu.concatenate %313, %314 in 1 : vector<10x1xf32>, vector<10x199xf32> -> vector<10x200xf32>
    %316 = vector.extract_strided_slice %312 {offsets = [0, 1], sizes = [10, 199], strides = [1, 1]} : vector<10x200xf32> to vector<10x199xf32>
    %317 = tpu.concatenate %316, %313 in 1 : vector<10x199xf32>, vector<10x1xf32> -> vector<10x200xf32>
    %318 = tpu.concatenate %315, %312, %317 in 0 : vector<10x200xf32>, vector<10x200xf32>, vector<10x200xf32> -> vector<30x200xf32>
    %319 = arith.truncf %318 : vector<30x200xf32> to vector<30x200xbf16>
    %cst_136 = arith.constant dense<0.000000e+00> : vector<10x200xf32>
    %320 = tpu.matmul %43, %319, %cst_136 {dimension_numbers = #tpu.dot_dimension_numbers<[1], [0], [0], [1], [0, 0, 1, 1], [], []>} : vector<10x30xbf16>, vector<30x200xbf16>, vector<10x200xf32> -> vector<10x200xf32>
    %321 = vector.broadcast %45 : vector<10x1xf32> to vector<10x200xf32>
    %322 = arith.mulf %320, %321 : vector<10x200xf32>
    %323 = vector.broadcast %47 : vector<10x1xf32> to vector<10x200xf32>
    %324 = arith.addf %322, %323 : vector<10x200xf32>
    %cst_137 = arith.constant 0.000000e+00 : f32
    %325 = vector.broadcast %cst_137 : f32 to vector<10x200xf32>
    %326 = arith.maximumf %324, %325 : vector<10x200xf32>
    %cst_138 = arith.constant 0.000000e+00 : f32
    %327 = vector.broadcast %cst_138 : f32 to vector<10x1xf32>
    %328 = vector.extract_strided_slice %326 {offsets = [0, 0], sizes = [10, 199], strides = [1, 1]} : vector<10x200xf32> to vector<10x199xf32>
    %329 = tpu.concatenate %327, %328 in 1 : vector<10x1xf32>, vector<10x199xf32> -> vector<10x200xf32>
    %330 = vector.extract_strided_slice %326 {offsets = [0, 1], sizes = [10, 199], strides = [1, 1]} : vector<10x200xf32> to vector<10x199xf32>
    %331 = tpu.concatenate %330, %327 in 1 : vector<10x199xf32>, vector<10x1xf32> -> vector<10x200xf32>
    %332 = tpu.concatenate %329, %326, %331 in 0 : vector<10x200xf32>, vector<10x200xf32>, vector<10x200xf32> -> vector<30x200xf32>
    %333 = arith.truncf %332 : vector<30x200xf32> to vector<30x200xbf16>
    %cst_139 = arith.constant dense<0.000000e+00> : vector<10x200xf32>
    %334 = tpu.matmul %49, %333, %cst_139 {dimension_numbers = #tpu.dot_dimension_numbers<[1], [0], [0], [1], [0, 0, 1, 1], [], []>} : vector<10x30xbf16>, vector<30x200xbf16>, vector<10x200xf32> -> vector<10x200xf32>
    %335 = vector.broadcast %51 : vector<10x1xf32> to vector<10x200xf32>
    %336 = arith.mulf %334, %335 : vector<10x200xf32>
    %337 = vector.broadcast %53 : vector<10x1xf32> to vector<10x200xf32>
    %338 = arith.addf %336, %337 : vector<10x200xf32>
    %339 = arith.addf %338, %312 : vector<10x200xf32>
    %cst_140 = arith.constant 0.000000e+00 : f32
    %340 = vector.broadcast %cst_140 : f32 to vector<10x200xf32>
    %341 = arith.maximumf %339, %340 : vector<10x200xf32>
    %cst_141 = arith.constant 0.000000e+00 : f32
    %342 = vector.broadcast %cst_141 : f32 to vector<10x1xf32>
    %343 = vector.extract_strided_slice %341 {offsets = [0, 1], sizes = [10, 199], strides = [1, 1]} : vector<10x200xf32> to vector<10x199xf32>
    %344 = tpu.concatenate %343, %342 in 1 : vector<10x199xf32>, vector<10x1xf32> -> vector<10x200xf32>
    %345 = arith.maximumf %341, %344 : vector<10x200xf32>
    %346 = arith.truncf %345 : vector<10x200xf32> to vector<10x200xbf16>
    %cst_142 = arith.constant dense<0.000000e+00> : vector<10x100xf32>
    %347 = tpu.matmul %346, %54, %cst_142 {dimension_numbers = #tpu.dot_dimension_numbers<[1], [0], [0], [1], [0, 0, 1, 1], [], []>} : vector<10x200xbf16>, vector<200x100xbf16>, vector<10x100xf32> -> vector<10x100xf32>
    %cst_143 = arith.constant 0.000000e+00 : f32
    %348 = vector.broadcast %cst_143 : f32 to vector<10x1xf32>
    %349 = vector.extract_strided_slice %347 {offsets = [0, 0], sizes = [10, 99], strides = [1, 1]} : vector<10x100xf32> to vector<10x99xf32>
    %350 = tpu.concatenate %348, %349 in 1 : vector<10x1xf32>, vector<10x99xf32> -> vector<10x100xf32>
    %351 = vector.extract_strided_slice %347 {offsets = [0, 1], sizes = [10, 99], strides = [1, 1]} : vector<10x100xf32> to vector<10x99xf32>
    %352 = tpu.concatenate %351, %348 in 1 : vector<10x99xf32>, vector<10x1xf32> -> vector<10x100xf32>
    %353 = tpu.concatenate %350, %347, %352 in 0 : vector<10x100xf32>, vector<10x100xf32>, vector<10x100xf32> -> vector<30x100xf32>
    %354 = arith.truncf %353 : vector<30x100xf32> to vector<30x100xbf16>
    %cst_144 = arith.constant dense<0.000000e+00> : vector<20x100xf32>
    %355 = tpu.matmul %3, %354, %cst_144 {dimension_numbers = #tpu.dot_dimension_numbers<[1], [0], [0], [1], [0, 0, 1, 1], [], []>} : vector<20x30xbf16>, vector<30x100xbf16>, vector<20x100xf32> -> vector<20x100xf32>
    %356 = vector.broadcast %4 : vector<20x1xf32> to vector<20x100xf32>
    %357 = arith.mulf %355, %356 : vector<20x100xf32>
    %358 = vector.broadcast %5 : vector<20x1xf32> to vector<20x100xf32>
    %359 = arith.addf %357, %358 : vector<20x100xf32>
    %cst_145 = arith.constant 0.000000e+00 : f32
    %360 = vector.broadcast %cst_145 : f32 to vector<20x100xf32>
    %361 = arith.maximumf %359, %360 : vector<20x100xf32>
    %362 = arith.truncf %361 : vector<20x100xf32> to vector<20x100xbf16>
    %c1_146 = arith.constant 1 : index
    %c0_147 = arith.constant 0 : index
    %c0_148 = arith.constant 0 : index
    %363 = vector.load %arg12[%c1_146, %c0_147, %c0_148] : memref<2x20x100xbf16, #tpu.memory_space<vmem>>, vector<1x20x100xbf16>
    %364 = vector.shape_cast %363 : vector<1x20x100xbf16> to vector<20x100xbf16>
    %365 = vector.shape_cast %362 : vector<20x100xbf16> to vector<1x20x100xbf16>
    tpu.vector_store %arg12[%c1_146, %c0_147, %c0_148], %365 {strides = array<i32>} : memref<2x20x100xbf16, #tpu.memory_space<vmem>>, vector<1x20x100xbf16>,
    return
  }
  func.func @transform_0(%arg0: i32) -> (i32, i32) {
    %c0_i32 = arith.constant 0 : i32
    %c0_i32_0 = arith.constant 0 : i32
    return %arg0, %c0_i32 : i32, i32
  }
  func.func @transform_1(%arg0: i32) -> (i32, i32) {
    %c0_i32 = arith.constant 0 : i32
    %c0_i32_0 = arith.constant 0 : i32
    %c0_i32_1 = arith.constant 0 : i32
    return %c0_i32, %c0_i32_0 : i32, i32
  }
  func.func @transform_2(%arg0: i32) -> (i32, i32) {
    %c0_i32 = arith.constant 0 : i32
    %c0_i32_0 = arith.constant 0 : i32
    %c0_i32_1 = arith.constant 0 : i32
    return %c0_i32, %c0_i32_0 : i32, i32
  }
  func.func @transform_3(%arg0: i32) -> (i32, i32) {
    %c0_i32 = arith.constant 0 : i32
    %c0_i32_0 = arith.constant 0 : i32
    %c0_i32_1 = arith.constant 0 : i32
    return %c0_i32, %c0_i32_0 : i32, i32
  }
  func.func @transform_4(%arg0: i32) -> (i32, i32, i32) {
    %c0_i32 = arith.constant 0 : i32
    %c0_i32_0 = arith.constant 0 : i32
    %c0_i32_1 = arith.constant 0 : i32
    %c0_i32_2 = arith.constant 0 : i32
    return %c0_i32, %c0_i32_0, %c0_i32_1 : i32, i32, i32
  }
  func.func @transform_5(%arg0: i32) -> (i32, i32, i32) {
    %c0_i32 = arith.constant 0 : i32
    %c0_i32_0 = arith.constant 0 : i32
    %c0_i32_1 = arith.constant 0 : i32
    %c0_i32_2 = arith.constant 0 : i32
    return %c0_i32, %c0_i32_0, %c0_i32_1 : i32, i32, i32
  }
  func.func @transform_6(%arg0: i32) -> (i32, i32, i32) {
    %c0_i32 = arith.constant 0 : i32
    %c0_i32_0 = arith.constant 0 : i32
    %c0_i32_1 = arith.constant 0 : i32
    %c0_i32_2 = arith.constant 0 : i32
    return %c0_i32, %c0_i32_0, %c0_i32_1 : i32, i32, i32
  }
  func.func @transform_7(%arg0: i32) -> (i32, i32) {
    %c0_i32 = arith.constant 0 : i32
    %c0_i32_0 = arith.constant 0 : i32
    %c0_i32_1 = arith.constant 0 : i32
    return %c0_i32, %c0_i32_0 : i32, i32
  }
  func.func @transform_8(%arg0: i32) -> (i32, i32) {
    %c0_i32 = arith.constant 0 : i32
    %c0_i32_0 = arith.constant 0 : i32
    %c0_i32_1 = arith.constant 0 : i32
    return %c0_i32, %c0_i32_0 : i32, i32
  }
  func.func @transform_9(%arg0: i32) -> (i32, i32) {
    %c0_i32 = arith.constant 0 : i32
    %c0_i32_0 = arith.constant 0 : i32
    %c0_i32_1 = arith.constant 0 : i32
    return %c0_i32, %c0_i32_0 : i32, i32
  }
  func.func @transform_10(%arg0: i32) -> (i32, i32) {
    %c0_i32 = arith.constant 0 : i32
    %c0_i32_0 = arith.constant 0 : i32
    %c0_i32_1 = arith.constant 0 : i32
    return %c0_i32, %c0_i32_0 : i32, i32
  }
  func.func @transform_11(%arg0: i32) -> (i32, i32, i32) {
    %c0_i32 = arith.constant 0 : i32
    %c0_i32_0 = arith.constant 0 : i32
    %c0_i32_1 = arith.constant 0 : i32
    return %arg0, %c0_i32, %c0_i32_0 : i32, i32, i32
  }
}

module attributes {stable_mosaic.version = 11 : i64} {
  func.func @fc_heads_kernel(%arg0: i32, %arg1: memref<2x2000xbf16, #tpu.memory_space<vmem>>, %arg2: memref<2000x300xbf16, #tpu.memory_space<vmem>>, %arg3: memref<1x300xf32, #tpu.memory_space<vmem>>, %arg4: memref<300x2xbf16, #tpu.memory_space<vmem>>, %arg5: memref<1x2xf32, #tpu.memory_space<vmem>>, %arg6: memref<2x2xf32, #tpu.memory_space<vmem>>) attributes {dimension_semantics = [#tpu.dimension_semantics<arbitrary>], iteration_bounds = array<i64: 1>, scalar_prefetch = 0 : i64, scratch_operands = 0 : i64, tpu.core_type = #tpu.core_type<tc>, window_params = [{pipeline_mode = #tpu.pipeline_mode<synchronous>, transform_indices = @transform_0, window_bounds = array<i64: 2, 2000>}, {pipeline_mode = #tpu.pipeline_mode<synchronous>, transform_indices = @transform_1, window_bounds = array<i64: 2000, 300>}, {pipeline_mode = #tpu.pipeline_mode<synchronous>, transform_indices = @transform_2, window_bounds = array<i64: 1, 300>}, {pipeline_mode = #tpu.pipeline_mode<synchronous>, transform_indices = @transform_3, window_bounds = array<i64: 300, 2>}, {pipeline_mode = #tpu.pipeline_mode<synchronous>, transform_indices = @transform_4, window_bounds = array<i64: 1, 2>}, {pipeline_mode = #tpu.pipeline_mode<synchronous>, transform_indices = @transform_5, window_bounds = array<i64: 2, 2>}]} {
    %c0 = arith.constant 0 : index
    %c0_0 = arith.constant 0 : index
    %0 = vector.load %arg1[%c0, %c0_0] : memref<2x2000xbf16, #tpu.memory_space<vmem>>, vector<2x2000xbf16>
    %c0_1 = arith.constant 0 : index
    %c0_2 = arith.constant 0 : index
    %1 = vector.load %arg2[%c0_1, %c0_2] : memref<2000x300xbf16, #tpu.memory_space<vmem>>, vector<2000x300xbf16>
    %cst = arith.constant dense<0.000000e+00> : vector<2x300xf32>
    %2 = tpu.matmul %0, %1, %cst {dimension_numbers = #tpu.dot_dimension_numbers<[1], [0], [0], [1], [0, 0, 1, 1], [], []>} : vector<2x2000xbf16>, vector<2000x300xbf16>, vector<2x300xf32> -> vector<2x300xf32>
    %c0_3 = arith.constant 0 : index
    %c0_4 = arith.constant 0 : index
    %3 = vector.load %arg3[%c0_3, %c0_4] : memref<1x300xf32, #tpu.memory_space<vmem>>, vector<1x300xf32>
    %4 = vector.broadcast %3 : vector<1x300xf32> to vector<2x300xf32>
    %5 = arith.addf %2, %4 : vector<2x300xf32>
    %cst_5 = arith.constant 0.000000e+00 : f32
    %6 = vector.broadcast %cst_5 : f32 to vector<2x300xf32>
    %7 = arith.maximumf %5, %6 : vector<2x300xf32>
    %8 = arith.truncf %7 : vector<2x300xf32> to vector<2x300xbf16>
    %c0_6 = arith.constant 0 : index
    %c0_7 = arith.constant 0 : index
    %9 = vector.load %arg4[%c0_6, %c0_7] : memref<300x2xbf16, #tpu.memory_space<vmem>>, vector<300x2xbf16>
    %cst_8 = arith.constant dense<0.000000e+00> : vector<2x2xf32>
    %10 = tpu.matmul %8, %9, %cst_8 {dimension_numbers = #tpu.dot_dimension_numbers<[1], [0], [0], [1], [0, 0, 1, 1], [], []>} : vector<2x300xbf16>, vector<300x2xbf16>, vector<2x2xf32> -> vector<2x2xf32>
    %c0_9 = arith.constant 0 : index
    %c0_10 = arith.constant 0 : index
    %11 = vector.load %arg5[%c0_9, %c0_10] : memref<1x2xf32, #tpu.memory_space<vmem>>, vector<1x2xf32>
    %12 = vector.broadcast %11 : vector<1x2xf32> to vector<2x2xf32>
    %13 = arith.addf %10, %12 : vector<2x2xf32>
    %c0_11 = arith.constant 0 : index
    %c0_12 = arith.constant 0 : index
    %14 = vector.load %arg6[%c0_11, %c0_12] : memref<2x2xf32, #tpu.memory_space<vmem>>, vector<2x2xf32>
    tpu.vector_store %arg6[%c0_11, %c0_12], %13 {strides = array<i32>} : memref<2x2xf32, #tpu.memory_space<vmem>>, vector<2x2xf32>,
    return
  }
  func.func @transform_0(%arg0: i32) -> (i32, i32) {
    %c0_i32 = arith.constant 0 : i32
    %c0_i32_0 = arith.constant 0 : i32
    %c0_i32_1 = arith.constant 0 : i32
    return %c0_i32, %c0_i32_0 : i32, i32
  }
  func.func @transform_1(%arg0: i32) -> (i32, i32) {
    %c0_i32 = arith.constant 0 : i32
    %c0_i32_0 = arith.constant 0 : i32
    %c0_i32_1 = arith.constant 0 : i32
    return %c0_i32, %c0_i32_0 : i32, i32
  }
  func.func @transform_2(%arg0: i32) -> (i32, i32) {
    %c0_i32 = arith.constant 0 : i32
    %c0_i32_0 = arith.constant 0 : i32
    %c0_i32_1 = arith.constant 0 : i32
    return %c0_i32, %c0_i32_0 : i32, i32
  }
  func.func @transform_3(%arg0: i32) -> (i32, i32) {
    %c0_i32 = arith.constant 0 : i32
    %c0_i32_0 = arith.constant 0 : i32
    %c0_i32_1 = arith.constant 0 : i32
    return %c0_i32, %c0_i32_0 : i32, i32
  }
  func.func @transform_4(%arg0: i32) -> (i32, i32) {
    %c0_i32 = arith.constant 0 : i32
    %c0_i32_0 = arith.constant 0 : i32
    %c0_i32_1 = arith.constant 0 : i32
    return %c0_i32, %c0_i32_0 : i32, i32
  }
  func.func @transform_5(%arg0: i32) -> (i32, i32) {
    %c0_i32 = arith.constant 0 : i32
    %c0_i32_0 = arith.constant 0 : i32
    %c0_i32_1 = arith.constant 0 : i32
    return %c0_i32, %c0_i32_0 : i32, i32
  }
}

</mosaic_0001>

<llo_original>
// kernel: resnet_forward.2
$region0: #{resnet_forward.2}
  #allocation0 [shape = 'u32[]', space=smem, size = 0x4, offset = 0x4, fixed_abs, tag = 'smem constant byte address 0x4 - core index']
  #allocation1 [shape = 'u32[144,128]{1,0:T(1,128)}', space=vmem, size = 0x12000, scoped, tag = 'internal scratch']
  %s0 = inlined_call_operand.vmem [shape: f32[2,200], index: 0, kind: input, shape index: {}]
  %s1 = inlined_call_operand.vmem [shape: bf16[10,3], index: 1, kind: input, shape index: {}]
  %s2 = inlined_call_operand.vmem [shape: f32[10,1], index: 2, kind: input, shape index: {}]
  %s3 = inlined_call_operand.vmem [shape: f32[10,1], index: 3, kind: input, shape index: {}]
  %s4 = inlined_call_operand.vmem [shape: bf16[8,10,30], index: 4, kind: input, shape index: {}]
  %s5 = inlined_call_operand.vmem [shape: f32[8,10,1], index: 5, kind: input, shape index: {}]
  %s6 = inlined_call_operand.vmem [shape: f32[8,10,1], index: 6, kind: input, shape index: {}]
  %s7 = inlined_call_operand.hbm [shape: bf16[20,30], index: 7, kind: input, shape index: {}]
  %s8 = inlined_call_operand.vmem [shape: f32[20,1], index: 8, kind: input, shape index: {}]
  %s9 = inlined_call_operand.vmem [shape: f32[20,1], index: 9, kind: input, shape index: {}]
  %s10 = inlined_call_operand.hbm [shape: bf16[200,100], index: 10, kind: input, shape index: {}]
  %s11 = inlined_call_operand.vmem [shape: bf16[2,20,100], index: 11, kind: output, shape index: {}]
  %s12 = sld [smem:[#allocation0]]
  $region62: #{resnet_forward.2} parent=0
    _
  %s14 = ssub.s32 1, %s12
  %s15 = scalar_select 0, %s14, %s12
  $region1: #{resnet_forward.2} parent=0
    #allocation2 [shape = 'u8[6144]{0}', space=vmem, size = 0x1800, scoped, tag = 'input window, operand 7, single buffered']
    #allocation3 [shape = 's32[1]{0}', space=sflag, size = 0x4, scoped, tag = 'scoped memory for resnet_forward.2']
    #allocation4 [shape = 'u8[51200]{0}', space=vmem, size = 0xc800, scoped, tag = 'input window, operand 10, single buffered']
    #allocation5 [shape = 's32[1]{0}', space=sflag, size = 0x4, scoped, tag = 'scoped memory for resnet_forward.2']
    %16 = vsyncpa [#allocation3], 0
    %17 = vsyncpa [#allocation5], 0
    // Predicated region
    $region2: #{resnet_forward.2} parent=1 // pred_check
      _
    $region3: #{resnet_forward.2} parent=1 // pred_check_branch
      %19 = sbr.rel (0) target = $region5
    $region4: #{resnet_forward.2} parent=1 // pred_region
      _
    $region5: #{resnet_forward.2} parent=1 // pred_fallthru
      _
    // Predicated region
    $region6: #{resnet_forward.2} parent=1 // pred_check
      _
    $region7: #{resnet_forward.2} parent=1 // pred_check_branch
      %21 = sbr.rel (0) target = $region9
    $region8: #{resnet_forward.2} parent=1 // pred_region
      _
    $region9: #{resnet_forward.2} parent=1 // pred_fallthru
      _
    // Predicated region
    $region10: #{resnet_forward.2} parent=1 // pred_check
      _
    $region11: #{resnet_forward.2} parent=1 // pred_check_branch
      %23 = sbr.rel (0) target = $region13
    $region12: #{resnet_forward.2} parent=1 // pred_region
      _
    $region13: #{resnet_forward.2} parent=1 // pred_fallthru
      _
    // Predicated region
    $region14: #{resnet_forward.2} parent=1 // pred_check
      _
    $region15: #{resnet_forward.2} parent=1 // pred_check_branch
      %25 = sbr.rel (0) target = $region17
    $region16: #{resnet_forward.2} parent=1 // pred_region
      _
    $region17: #{resnet_forward.2} parent=1 // pred_fallthru
      _
    // Predicated region
    $region18: #{resnet_forward.2} parent=1 // pred_check
      _
    $region19: #{resnet_forward.2} parent=1 // pred_check_branch
      %27 = sbr.rel (0) target = $region21
    $region20: #{resnet_forward.2} parent=1 // pred_region
      _
    $region21: #{resnet_forward.2} parent=1 // pred_fallthru
      _
    // Predicated region
    $region22: #{resnet_forward.2} parent=1 // pred_check
      _
    $region23: #{resnet_forward.2} parent=1 // pred_check_branch
      %29 = sbr.rel (0) target = $region25
    $region24: #{resnet_forward.2} parent=1 // pred_region
      _
    $region25: #{resnet_forward.2} parent=1 // pred_fallthru
      _
    // Predicated region
    $region26: #{resnet_forward.2} parent=1 // pred_check
      _
    $region27: #{resnet_forward.2} parent=1 // pred_check_branch
      %31 = sbr.rel (0) target = $region29
    $region28: #{resnet_forward.2} parent=1 // pred_region
      _
    $region29: #{resnet_forward.2} parent=1 // pred_fallthru
      _
    // Predicated region
    $region30: #{resnet_forward.2} parent=1 // pred_check
      _
    $region31: #{resnet_forward.2} parent=1 // pred_check_branch
      %33 = sbr.rel (0) target = $region33
    $region32: #{resnet_forward.2} parent=1 // pred_region
      %s35 = ssub.s32 192, 192
      %36 = vsyncadd [#allocation3], %s35
      %s37 = sshll.u32 [#allocation2], 4
      %s38 = int_to_ptr.vmem [resolvable:$true] %s37
      %43 = dma.hbm_to_vmem [thread:$0]  %s7, 192, %s38, [#allocation3], 64, 64, 4
    $region33: #{resnet_forward.2} parent=1 // pred_fallthru
      _
    // Predicated region
    $region34: #{resnet_forward.2} parent=1 // pred_check
      _
    $region35: #{resnet_forward.2} parent=1 // pred_check_branch
      %45 = sbr.rel (0) target = $region37
    $region36: #{resnet_forward.2} parent=1 // pred_region
      _
    $region37: #{resnet_forward.2} parent=1 // pred_fallthru
      _
    // Predicated region
    $region38: #{resnet_forward.2} parent=1 // pred_check
      _
    $region39: #{resnet_forward.2} parent=1 // pred_check_branch
      %47 = sbr.rel (0) target = $region41
    $region40: #{resnet_forward.2} parent=1 // pred_region
      _
    $region41: #{resnet_forward.2} parent=1 // pred_fallthru
      _
    // Predicated region
    $region42: #{resnet_forward.2} parent=1 // pred_check
      _
    $region43: #{resnet_forward.2} parent=1 // pred_check_branch
      %49 = sbr.rel (0) target = $region45
    $region44: #{resnet_forward.2} parent=1 // pred_region
      %s51 = ssub.s32 1600, 1600
      %52 = vsyncadd [#allocation5], %s51
      %s53 = sshll.u32 [#allocation4], 4
      %s54 = int_to_ptr.vmem [resolvable:$true] %s53
      %59 = dma.hbm_to_vmem [thread:$0]  %s10, 1600, %s54, [#allocation5], 64, 64, 4
    $region45: #{resnet_forward.2} parent=1 // pred_fallthru
      _
    // Predicated region
    $region46: #{resnet_forward.2} parent=1 // pred_check
      _
    $region47: #{resnet_forward.2} parent=1 // pred_check_branch
      %61 = sbr.rel (0) target = $region49
    $region48: #{resnet_forward.2} parent=1 // pred_region
      %62 = dma.done [#allocation3], 192
    $region49: #{resnet_forward.2} parent=1 // pred_fallthru
      _
    // Predicated region
    $region50: #{resnet_forward.2} parent=1 // pred_check
      _
    $region51: #{resnet_forward.2} parent=1 // pred_check_branch
      %64 = sbr.rel (0) target = $region53
    $region52: #{resnet_forward.2} parent=1 // pred_region
      %65 = dma.done [#allocation5], 1600
    $region53: #{resnet_forward.2} parent=1 // pred_fallthru
      _
    %v67 = vld [vmem:[%s1] sm:$0xf]
    %v68 = vld [vmem:[%s1 + $0x4] sm:$0x1]
    %v69 = vld [vmem:[%s2] sm:$0xff]
    %v70 = vld [vmem:[%s2 + $0x8] sm:$0x3]
    %v71 = vld [vmem:[%s3] sm:$0xff]
    %v72 = vld [vmem:[%s3 + $0x8] sm:$0x3]
    %v73 = vld [vmem:[#allocation2] sm:$0xf]
    %v74 = vld [vmem:[#allocation2 + $0x4] sm:$0xf]
    %v75 = vld [vmem:[#allocation2 + $0x8] sm:$0x3]
    %v76 = vld [vmem:[%s8] sm:$0xff]
    %v77 = vld [vmem:[%s8 + $0x8] sm:$0xff]
    %v78 = vld [vmem:[%s8 + $0x10] sm:$0xf]
    %v79 = vld [vmem:[%s9] sm:$0xff]
    %v80 = vld [vmem:[%s9 + $0x8] sm:$0xff]
    %v81 = vld [vmem:[%s9 + $0x10] sm:$0xf]
    %v82 = vld [vmem:[%s4] sm:$0xf]
    %v83 = vld [vmem:[%s4 + $0x4] sm:$0x1]
    %v84 = vld [vmem:[%s5] sm:$0xff]
    %v85 = vld [vmem:[%s5 + $0x8] sm:$0x3]
    %v86 = vld [vmem:[%s6] sm:$0xff]
    %v87 = vld [vmem:[%s6 + $0x8] sm:$0x3]
    %s88 = scalar_lea.vmem %s4, 8
    %v89 = vld [vmem:[%s88] sm:$0xf]
    %v90 = vld [vmem:[%s88 + $0x4] sm:$0x1]
    %s91 = scalar_lea.vmem %s5, 16
    %v92 = vld [vmem:[%s91] sm:$0xff]
    %v93 = vld [vmem:[%s91 + $0x8] sm:$0x3]
    %s94 = scalar_lea.vmem %s6, 16
    %v95 = vld [vmem:[%s94] sm:$0xff]
    %v96 = vld [vmem:[%s94 + $0x8] sm:$0x3]
    %s97 = scalar_lea.vmem %s4, 16
    %v98 = vld [vmem:[%s97] sm:$0xf]
    %v99 = vld [vmem:[%s97 + $0x4] sm:$0x1]
    %s100 = scalar_lea.vmem %s5, 32
    %v101 = vld [vmem:[%s100] sm:$0xff]
    %v102 = vld [vmem:[%s100 + $0x8] sm:$0x3]
    %s103 = scalar_lea.vmem %s6, 32
    %v104 = vld [vmem:[%s103] sm:$0xff]
    %v105 = vld [vmem:[%s103 + $0x8] sm:$0x3]
    %s106 = scalar_lea.vmem %s4, 24
    %v107 = vld [vmem:[%s106] sm:$0xf]
    %v108 = vld [vmem:[%s106 + $0x4] sm:$0x1]
    %s109 = scalar_lea.vmem %s5, 48
    %v110 = vld [vmem:[%s109] sm:$0xff]
    %v111 = vld [vmem:[%s109 + $0x8] sm:$0x3]
    %s112 = scalar_lea.vmem %s6, 48
    %v113 = vld [vmem:[%s112] sm:$0xff]
    %v114 = vld [vmem:[%s112 + $0x8] sm:$0x3]
    %s115 = scalar_lea.vmem %s4, 32
    %v116 = vld [vmem:[%s115] sm:$0xf]
    %v117 = vld [vmem:[%s115 + $0x4] sm:$0x1]
    %s118 = scalar_lea.vmem %s5, 64
    %v119 = vld [vmem:[%s118] sm:$0xff]
    %v120 = vld [vmem:[%s118 + $0x8] sm:$0x3]
    %s121 = scalar_lea.vmem %s6, 64
    %v122 = vld [vmem:[%s121] sm:$0xff]
    %v123 = vld [vmem:[%s121 + $0x8] sm:$0x3]
    %s124 = scalar_lea.vmem %s4, 40
    %v125 = vld [vmem:[%s124] sm:$0xf]
    %v126 = vld [vmem:[%s124 + $0x4] sm:$0x1]
    %s127 = scalar_lea.vmem %s5, 80
    %v128 = vld [vmem:[%s127] sm:$0xff]
    %v129 = vld [vmem:[%s127 + $0x8] sm:$0x3]
    %s130 = scalar_lea.vmem %s6, 80
    %v131 = vld [vmem:[%s130] sm:$0xff]
    %v132 = vld [vmem:[%s130 + $0x8] sm:$0x3]
    %s133 = scalar_lea.vmem %s4, 48
    %v134 = vld [vmem:[%s133] sm:$0xf]
    %v135 = vld [vmem:[%s133 + $0x4] sm:$0x1]
    %s136 = scalar_lea.vmem %s5, 96
    %v137 = vld [vmem:[%s136] sm:$0xff]
    %v138 = vld [vmem:[%s136 + $0x8] sm:$0x3]
    %s139 = scalar_lea.vmem %s6, 96
    %v140 = vld [vmem:[%s139] sm:$0xff]
    %v141 = vld [vmem:[%s139 + $0x8] sm:$0x3]
    %s142 = scalar_lea.vmem %s4, 56
    %v143 = vld [vmem:[%s142] sm:$0xf]
    %v144 = vld [vmem:[%s142 + $0x4] sm:$0x1]
    %s145 = scalar_lea.vmem %s5, 112
    %v146 = vld [vmem:[%s145] sm:$0xff]
    %v147 = vld [vmem:[%s145 + $0x8] sm:$0x3]
    %s148 = scalar_lea.vmem %s6, 112
    %v149 = vld [vmem:[%s148] sm:$0xff]
    %v150 = vld [vmem:[%s148 + $0x8] sm:$0x3]
    %v151 = vld [vmem:[#allocation4] sm:$0xf]
    %v152 = vld [vmem:[#allocation4 + $0x4] sm:$0xf]
    %v153 = vld [vmem:[#allocation4 + $0x8] sm:$0xf]
    %v154 = vld [vmem:[#allocation4 + $0xc] sm:$0xf]
    %v155 = vld [vmem:[#allocation4 + $0x10] sm:$0xf]
    %v156 = vld [vmem:[#allocation4 + $0x14] sm:$0xf]
    %v157 = vld [vmem:[#allocation4 + $0x18] sm:$0xf]
    %v158 = vld [vmem:[#allocation4 + $0x1c] sm:$0xf]
    %v159 = vld [vmem:[#allocation4 + $0x20] sm:$0xf]
    %v160 = vld [vmem:[#allocation4 + $0x24] sm:$0xf]
    %v161 = vld [vmem:[#allocation4 + $0x28] sm:$0xf]
    %v162 = vld [vmem:[#allocation4 + $0x2c] sm:$0xf]
    %v163 = vld [vmem:[#allocation4 + $0x30] sm:$0xf]
    %v164 = vld [vmem:[#allocation4 + $0x34] sm:$0xf]
    %v165 = vld [vmem:[#allocation4 + $0x38] sm:$0xf]
    %v166 = vld [vmem:[#allocation4 + $0x3c] sm:$0xf]
    %v167 = vld [vmem:[#allocation4 + $0x40] sm:$0xf]
    %v168 = vld [vmem:[#allocation4 + $0x44] sm:$0xf]
    %v169 = vld [vmem:[#allocation4 + $0x48] sm:$0xf]
    %v170 = vld [vmem:[#allocation4 + $0x4c] sm:$0xf]
    %v171 = vld [vmem:[#allocation4 + $0x50] sm:$0xf]
    %v172 = vld [vmem:[#allocation4 + $0x54] sm:$0xf]
    %v173 = vld [vmem:[#allocation4 + $0x58] sm:$0xf]
    %v174 = vld [vmem:[#allocation4 + $0x5c] sm:$0xf]
    %v175 = vld [vmem:[#allocation4 + $0x60] sm:$0xf]
    %v176 = vld [vmem:[%s0] sm:$0xf]
    %v178 = vlaneseq
    %v179 = vshrl.u32 %v178, 7
    %v180 = vsub.s32 0, %v179
    %v181 = vrot.slane %v176, %v180
    %v182 = vlaneseq
    %v183 = vshrl.u32 %v182, 7
    %v184 = vsub.s32 2, %v183
    %v185 = vrot.slane %v176, %v184
    %186 = vrot.lane.b32.xlu0 %v181, 1
    %v187 = vpop.permute.xlu0 %186
    %188 = vrot.lane.b32.xlu0 %v185, 1
    %v189 = vpop.permute.xlu0 %188
    %vm190 = vcmask 7168
    %v191 = vsel %vm190, %v187, %v189
    %v194 = vsel %vm190, 0.0, %v187
    %195 = vrot.lane.b32.xlu0 %v181, 127
    %v196 = vpop.permute.xlu0 %195
    %197 = vrot.lane.b32.xlu0 %v185, 127
    %v198 = vpop.permute.xlu0 %197
    %vm199 = vcmask 1039360
    %v200 = vsel %vm199, %v196, %v198
    %vm202 = vcmask 580608
    %v203 = vsel %vm202, %v198, 0.0
    %v207 = vrot.slane %v200, 6
    %v208 = vrot.slane %v203, 6
    %vm211 = vcmask 1040384
    %v212 = vsel %vm211, %v194, %v181
    %v213 = vsel %vm211, %v191, %v185
    %vm214 = vcmask 1041408
    %v215 = vsel %vm214, %v212, %v207
    %v216 = vsel %vm214, %v213, %v208
    %v217 = vpack.c.bf16 %v215, %v215
    %v218 = vpack.c.bf16 %v216, %v216
    %v221 = vunpack.c.l.b16 %v67
    %v222 = vunpack.c.l.b16 %v68
    %v223 = vpack.c.b16 %v222, %v221
    %vm224 = vcmask 23552
    %v226 = vsel %vm224, %v223, 0
    %v228 = vsel %vm211, 4294967295, 65535
    %v229 = vsel %vm214, %v228, 0
    %v231 = vand.u32 %v217, %v229
    %v234 = vand.u32 %v218, %v229
    %236 = vmatprep.subr.bf16.mxu0 %v234
    %237 = vmatpush1.bf16.msra.mxu0 %v231
    %238 = vmatprep.subr.bf16.mxu0 0
    %239 = vmatpush1.bf16.msra.mxu0 0
    %240 = vmatprep.subr.bf16.mxu0 0
    %241 = vmatpush1.bf16.msra.mxu0 0
    %242 = vmatprep.subr.bf16.mxu0 0
    %243 = vmatpush1.bf16.msra.mxu0 0
    %244 = vmatprep.subr.bf16.mxu0 0
    %245 = vmatpush1.bf16.msra.mxu0 0
    %246 = vmatprep.subr.bf16.mxu0 0
    %247 = vmatpush1.bf16.msra.mxu0 0
    %248 = vmatprep.subr.bf16.mxu0 0
    %249 = vmatpush1.bf16.msra.mxu0 0
    %250 = vmatprep.subr.bf16.mxu0 0
    %251 = vmatpush1.bf16.msra.mxu0 0
    %252 = vmatprep.subr.bf16.mxu0 0
    %253 = vmatpush1.bf16.msra.mxu0 0
    %254 = vmatprep.subr.bf16.mxu0 0
    %255 = vmatpush1.bf16.msra.mxu0 0
    %256 = vmatprep.subr.bf16.mxu0 0
    %257 = vmatpush1.bf16.msra.mxu0 0
    %258 = vmatprep.subr.bf16.mxu0 0
    %259 = vmatpush1.bf16.msra.mxu0 0
    %260 = vmatprep.subr.bf16.mxu0 0
    %261 = vmatpush1.bf16.msra.mxu0 0
    %262 = vmatprep.subr.bf16.mxu0 0
    %263 = vmatpush1.bf16.msra.mxu0 0
    %264 = vmatprep.subr.bf16.mxu0 0
    %265 = vmatpush1.bf16.msra.mxu0 0
    %266 = vmatprep.subr.bf16.mxu0 0
    %267 = vmatpush1.bf16.msra.mxu0 0
    %268 = vmatprep.mubr.bf16.mxu0 0
    %269 = vmatmul.mubr.bf16.gmra.mrb[0].mxu0 %v226
    %v270 = vpop.f32.mrb[0].mxu0
    %v271 = vadd.f32 0.0, %v270
    %v272 = vpop.f32.mrb[0].mxu0
    %v273 = vadd.f32 0.0, %v272
    %v274 = vpop.f32.mrb[0].mxu0
    %v275 = vadd.f32 0.0, %v274
    %v276 = vpop.f32.mrb[0].mxu0
    %v277 = vadd.f32 0.0, %v276
    %278 = vdwg.mxu0
    %280 = vset.pattern.permute.xlu0 0
    %281 = vperm.xlu0 %280, %v69
    %v282 = vpop.permute.xlu0 %281
    %285 = vset.pattern.permute.xlu0 0
    %286 = vperm.xlu0 %285, %v70
    %v287 = vpop.permute.xlu0 %286
    %v289 = vmul.f32 %v271, %v282
    %v290 = vmul.f32 %v273, %v282
    %v291 = vmul.f32 %v275, %v287
    %v292 = vmul.f32 %v277, %v287
    %294 = vset.pattern.permute.xlu0 0
    %295 = vperm.xlu0 %294, %v71
    %v296 = vpop.permute.xlu0 %295
    %299 = vset.pattern.permute.xlu0 0
    %300 = vperm.xlu0 %299, %v72
    %v301 = vpop.permute.xlu0 %300
    %v303 = vadd.f32 %v289, %v296
    %v304 = vadd.f32 %v290, %v296
    %v305 = vadd.f32 %v291, %v301
    %v306 = vadd.f32 %v292, %v301
    %v307 = vmax.f32 %v303, 0.0
    %v308 = vmax.f32 %v304, 0.0
    %v309 = vmax.f32 %v305, 0.0
    %v310 = vmax.f32 %v306, 0.0
    %315 = vrot.lane.b32.xlu0 %v307, 1
    %v316 = vpop.permute.xlu0 %315
    %317 = vrot.lane.b32.xlu0 %v308, 1
    %v318 = vpop.permute.xlu0 %317
    %319 = vrot.lane.b32.xlu0 %v309, 1
    %v320 = vpop.permute.xlu0 %319
    %321 = vrot.lane.b32.xlu0 %v310, 1
    %v322 = vpop.permute.xlu0 %321
    %v323 = vsel %vm190, %v316, %v318
    %v324 = vsel %vm190, %v320, %v322
    %v329 = vsel %vm190, 0.0, %v316
    %v330 = vsel %vm190, 0.0, %v320
    %331 = vrot.lane.b32.xlu0 %v307, 127
    %v332 = vpop.permute.xlu0 %331
    %333 = vrot.lane.b32.xlu0 %v308, 127
    %v334 = vpop.permute.xlu0 %333
    %335 = vrot.lane.b32.xlu0 %v309, 127
    %v336 = vpop.permute.xlu0 %335
    %337 = vrot.lane.b32.xlu0 %v310, 127
    %v338 = vpop.permute.xlu0 %337
    %v339 = vsel %vm199, %v332, %v334
    %v340 = vsel %vm199, %v336, %v338
    %v343 = vsel %vm202, %v334, 0.0
    %v344 = vsel %vm202, %v338, 0.0
    %v345 = vrot.slane %v307, 6
    %v346 = vrot.slane %v308, 6
    %v347 = vrot.slane %v309, 6
    %v348 = vsel %vm214, %v345, %v347
    %v349 = vrot.slane %v310, 6
    %v350 = vsel %vm214, %v346, %v349
    %vm357 = vcmask 1043456
    %v358 = vrot.slane %v339, 4
    %v359 = vrot.slane %v343, 4
    %v360 = vrot.slane %v340, 4
    %v361 = vsel %vm357, %v358, %v360
    %v362 = vrot.slane %v344, 4
    %v363 = vsel %vm357, %v359, %v362
    %v368 = vsel %vm214, %v330, %v345
    %v369 = vsel %vm214, %v324, %v346
    %v370 = vsel %vm357, %v348, %v358
    %v371 = vsel %vm357, %v350, %v359
    %v372 = vpack.c.bf16 %v368, %v329
    %v373 = vpack.c.bf16 %v369, %v323
    %v374 = vpack.c.bf16 %v361, %v370
    %v375 = vpack.c.bf16 %v363, %v371
    %v378 = vunpack.c.l.b16 %v82
    %v379 = vunpack.c.l.b16 %v83
    %v380 = vpack.c.b16 %v379, %v378
    %vm381 = vcmask 244736
    %v383 = vsel %vm381, %v380, 0
    %vm385 = vcmask 1046528
    %v387 = vsel %vm385, %v374, 0
    %v390 = vsel %vm385, %v375, 0
    %392 = vmatprep.subr.bf16.mxu0 %v373
    %393 = vmatpush1.bf16.msra.mxu0 %v372
    %394 = vmatprep.subr.bf16.mxu0 %v390
    %395 = vmatpush1.bf16.msra.mxu0 %v387
    %396 = vmatprep.subr.bf16.mxu0 0
    %397 = vmatpush1.bf16.msra.mxu0 0
    %398 = vmatprep.subr.bf16.mxu0 0
    %399 = vmatpush1.bf16.msra.mxu0 0
    %400 = vmatprep.subr.bf16.mxu0 0
    %401 = vmatpush1.bf16.msra.mxu0 0
    %402 = vmatprep.subr.bf16.mxu0 0
    %403 = vmatpush1.bf16.msra.mxu0 0
    %404 = vmatprep.subr.bf16.mxu0 0
    %405 = vmatpush1.bf16.msra.mxu0 0
    %406 = vmatprep.subr.bf16.mxu0 0
    %407 = vmatpush1.bf16.msra.mxu0 0
    %408 = vmatprep.subr.bf16.mxu0 0
    %409 = vmatpush1.bf16.msra.mxu0 0
    %410 = vmatprep.subr.bf16.mxu0 0
    %411 = vmatpush1.bf16.msra.mxu0 0
    %412 = vmatprep.subr.bf16.mxu0 0
    %413 = vmatpush1.bf16.msra.mxu0 0
    %414 = vmatprep.subr.bf16.mxu0 0
    %415 = vmatpush1.bf16.msra.mxu0 0
    %416 = vmatprep.subr.bf16.mxu0 0
    %417 = vmatpush1.bf16.msra.mxu0 0
    %418 = vmatprep.subr.bf16.mxu0 0
    %419 = vmatpush1.bf16.msra.mxu0 0
    %420 = vmatprep.subr.bf16.mxu0 0
    %421 = vmatpush1.bf16.msra.mxu0 0
    %422 = vmatprep.subr.bf16.mxu0 0
    %423 = vmatpush1.bf16.msra.mxu0 0
    %424 = vmatprep.mubr.bf16.mxu0 0
    %425 = vmatmul.mubr.bf16.gmra.mrb[0].mxu0 %v383
    %v426 = vpop.f32.mrb[0].mxu0
    %v427 = vadd.f32 0.0, %v426
    %v428 = vpop.f32.mrb[0].mxu0
    %v429 = vadd.f32 0.0, %v428
    %v430 = vpop.f32.mrb[0].mxu0
    %v431 = vadd.f32 0.0, %v430
    %v432 = vpop.f32.mrb[0].mxu0
    %v433 = vadd.f32 0.0, %v432
    %434 = vdwg.mxu0
    %436 = vset.pattern.permute.xlu0 0
    %437 = vperm.xlu0 %436, %v84
    %v438 = vpop.permute.xlu0 %437
    %441 = vset.pattern.permute.xlu0 0
    %442 = vperm.xlu0 %441, %v85
    %v443 = vpop.permute.xlu0 %442
    %v445 = vmul.f32 %v427, %v438
    %v446 = vmul.f32 %v429, %v438
    %v447 = vmul.f32 %v431, %v443
    %v448 = vmul.f32 %v433, %v443
    %450 = vset.pattern.permute.xlu0 0
    %451 = vperm.xlu0 %450, %v86
    %v452 = vpop.permute.xlu0 %451
    %455 = vset.pattern.permute.xlu0 0
    %456 = vperm.xlu0 %455, %v87
    %v457 = vpop.permute.xlu0 %456
    %v459 = vadd.f32 %v445, %v452
    %v460 = vadd.f32 %v446, %v452
    %v461 = vadd.f32 %v447, %v457
    %v462 = vadd.f32 %v448, %v457
    %v463 = vmax.f32 %v459, 0.0
    %v464 = vmax.f32 %v460, 0.0
    %v465 = vmax.f32 %v461, 0.0
    %v466 = vmax.f32 %v462, 0.0
    %471 = vrot.lane.b32.xlu0 %v463, 1
    %v472 = vpop.permute.xlu0 %471
    %473 = vrot.lane.b32.xlu0 %v464, 1
    %v474 = vpop.permute.xlu0 %473
    %475 = vrot.lane.b32.xlu0 %v465, 1
    %v476 = vpop.permute.xlu0 %475
    %477 = vrot.lane.b32.xlu0 %v466, 1
    %v478 = vpop.permute.xlu0 %477
    %v479 = vsel %vm190, %v472, %v474
    %v480 = vsel %vm190, %v476, %v478
    %v485 = vsel %vm190, 0.0, %v472
    %v486 = vsel %vm190, 0.0, %v476
    %487 = vrot.lane.b32.xlu0 %v463, 127
    %v488 = vpop.permute.xlu0 %487
    %489 = vrot.lane.b32.xlu0 %v464, 127
    %v490 = vpop.permute.xlu0 %489
    %491 = vrot.lane.b32.xlu0 %v465, 127
    %v492 = vpop.permute.xlu0 %491
    %493 = vrot.lane.b32.xlu0 %v466, 127
    %v494 = vpop.permute.xlu0 %493
    %v495 = vsel %vm199, %v488, %v490
    %v496 = vsel %vm199, %v492, %v494
    %v499 = vsel %vm202, %v490, 0.0
    %v500 = vsel %vm202, %v494, 0.0
    %v501 = vrot.slane %v463, 6
    %v502 = vrot.slane %v464, 6
    %v503 = vrot.slane %v465, 6
    %v504 = vsel %vm214, %v501, %v503
    %v505 = vrot.slane %v466, 6
    %v506 = vsel %vm214, %v502, %v505
    %v513 = vrot.slane %v495, 4
    %v514 = vrot.slane %v499, 4
    %v515 = vrot.slane %v496, 4
    %v516 = vsel %vm357, %v513, %v515
    %v517 = vrot.slane %v500, 4
    %v518 = vsel %vm357, %v514, %v517
    %v523 = vsel %vm214, %v486, %v501
    %v524 = vsel %vm214, %v480, %v502
    %v525 = vsel %vm357, %v504, %v513
    %v526 = vsel %vm357, %v506, %v514
    %v527 = vpack.c.bf16 %v523, %v485
    %v528 = vpack.c.bf16 %v524, %v479
    %v529 = vpack.c.bf16 %v516, %v525
    %v530 = vpack.c.bf16 %v518, %v526
    %v533 = vunpack.c.l.b16 %v89
    %v534 = vunpack.c.l.b16 %v90
    %v535 = vpack.c.b16 %v534, %v533
    %v537 = vsel %vm381, %v535, 0
    %v540 = vsel %vm385, %v529, 0
    %v543 = vsel %vm385, %v530, 0
    %545 = vmatprep.subr.bf16.mxu0 %v528
    %546 = vmatpush1.bf16.msra.mxu0 %v527
    %547 = vmatprep.subr.bf16.mxu0 %v543
    %548 = vmatpush1.bf16.msra.mxu0 %v540
    %549 = vmatprep.subr.bf16.mxu0 0
    %550 = vmatpush1.bf16.msra.mxu0 0
    %551 = vmatprep.subr.bf16.mxu0 0
    %552 = vmatpush1.bf16.msra.mxu0 0
    %553 = vmatprep.subr.bf16.mxu0 0
    %554 = vmatpush1.bf16.msra.mxu0 0
    %555 = vmatprep.subr.bf16.mxu0 0
    %556 = vmatpush1.bf16.msra.mxu0 0
    %557 = vmatprep.subr.bf16.mxu0 0
    %558 = vmatpush1.bf16.msra.mxu0 0
    %559 = vmatprep.subr.bf16.mxu0 0
    %560 = vmatpush1.bf16.msra.mxu0 0
    %561 = vmatprep.subr.bf16.mxu0 0
    %562 = vmatpush1.bf16.msra.mxu0 0
    %563 = vmatprep.subr.bf16.mxu0 0
    %564 = vmatpush1.bf16.msra.mxu0 0
    %565 = vmatprep.subr.bf16.mxu0 0
    %566 = vmatpush1.bf16.msra.mxu0 0
    %567 = vmatprep.subr.bf16.mxu0 0
    %568 = vmatpush1.bf16.msra.mxu0 0
    %569 = vmatprep.subr.bf16.mxu0 0
    %570 = vmatpush1.bf16.msra.mxu0 0
    %571 = vmatprep.subr.bf16.mxu0 0
    %572 = vmatpush1.bf16.msra.mxu0 0
    %573 = vmatprep.subr.bf16.mxu0 0
    %574 = vmatpush1.bf16.msra.mxu0 0
    %575 = vmatprep.subr.bf16.mxu0 0
    %576 = vmatpush1.bf16.msra.mxu0 0
    %577 = vmatprep.mubr.bf16.mxu0 0
    %578 = vmatmul.mubr.bf16.gmra.mrb[0].mxu0 %v537
    %v579 = vpop.f32.mrb[0].mxu0
    %v580 = vadd.f32 0.0, %v579
    %v581 = vpop.f32.mrb[0].mxu0
    %v582 = vadd.f32 0.0, %v581
    %v583 = vpop.f32.mrb[0].mxu0
    %v584 = vadd.f32 0.0, %v583
    %v585 = vpop.f32.mrb[0].mxu0
    %v586 = vadd.f32 0.0, %v585
    %587 = vdwg.mxu0
    %589 = vset.pattern.permute.xlu0 0
    %590 = vperm.xlu0 %589, %v92
    %v591 = vpop.permute.xlu0 %590
    %594 = vset.pattern.permute.xlu0 0
    %595 = vperm.xlu0 %594, %v93
    %v596 = vpop.permute.xlu0 %595
    %v598 = vmul.f32 %v580, %v591
    %v599 = vmul.f32 %v582, %v591
    %v600 = vmul.f32 %v584, %v596
    %v601 = vmul.f32 %v586, %v596
    %603 = vset.pattern.permute.xlu0 0
    %604 = vperm.xlu0 %603, %v95
    %v605 = vpop.permute.xlu0 %604
    %608 = vset.pattern.permute.xlu0 0
    %609 = vperm.xlu0 %608, %v96
    %v610 = vpop.permute.xlu0 %609
    %v612 = vadd.f32 %v598, %v605
    %v613 = vadd.f32 %v599, %v605
    %v614 = vadd.f32 %v600, %v610
    %v615 = vadd.f32 %v601, %v610
    %v616 = vadd.f32 %v612, %v307
    %v617 = vadd.f32 %v613, %v308
    %v618 = vadd.f32 %v614, %v309
    %v619 = vadd.f32 %v615, %v310
    %v620 = vmax.f32 %v616, 0.0
    %v621 = vmax.f32 %v617, 0.0
    %v622 = vmax.f32 %v618, 0.0
    %v623 = vmax.f32 %v619, 0.0
    %628 = vrot.lane.b32.xlu0 %v620, 1
    %v629 = vpop.permute.xlu0 %628
    %630 = vrot.lane.b32.xlu0 %v621, 1
    %v631 = vpop.permute.xlu0 %630
    %632 = vrot.lane.b32.xlu0 %v622, 1
    %v633 = vpop.permute.xlu0 %632
    %634 = vrot.lane.b32.xlu0 %v623, 1
    %v635 = vpop.permute.xlu0 %634
    %v636 = vsel %vm190, %v629, %v631
    %v637 = vsel %vm190, %v633, %v635
    %v642 = vsel %vm190, 0.0, %v629
    %v643 = vsel %vm190, 0.0, %v633
    %644 = vrot.lane.b32.xlu0 %v620, 127
    %v645 = vpop.permute.xlu0 %644
    %646 = vrot.lane.b32.xlu0 %v621, 127
    %v647 = vpop.permute.xlu0 %646
    %648 = vrot.lane.b32.xlu0 %v622, 127
    %v649 = vpop.permute.xlu0 %648
    %650 = vrot.lane.b32.xlu0 %v623, 127
    %v651 = vpop.permute.xlu0 %650
    %v652 = vsel %vm199, %v645, %v647
    %v653 = vsel %vm199, %v649, %v651
    %v656 = vsel %vm202, %v647, 0.0
    %v657 = vsel %vm202, %v651, 0.0
    %v658 = vrot.slane %v620, 6
    %v659 = vrot.slane %v621, 6
    %v660 = vrot.slane %v622, 6
    %v661 = vsel %vm214, %v658, %v660
    %v662 = vrot.slane %v623, 6
    %v663 = vsel %vm214, %v659, %v662
    %v670 = vrot.slane %v652, 4
    %v671 = vrot.slane %v656, 4
    %v672 = vrot.slane %v653, 4
    %v673 = vsel %vm357, %v670, %v672
    %v674 = vrot.slane %v657, 4
    %v675 = vsel %vm357, %v671, %v674
    %v680 = vsel %vm214, %v643, %v658
    %v681 = vsel %vm214, %v637, %v659
    %v682 = vsel %vm357, %v661, %v670
    %v683 = vsel %vm357, %v663, %v671
    %v684 = vpack.c.bf16 %v680, %v642
    %v685 = vpack.c.bf16 %v681, %v636
    %v686 = vpack.c.bf16 %v673, %v682
    %v687 = vpack.c.bf16 %v675, %v683
    %v690 = vunpack.c.l.b16 %v98
    %v691 = vunpack.c.l.b16 %v99
    %v692 = vpack.c.b16 %v691, %v690
    %v694 = vsel %vm381, %v692, 0
    %v697 = vsel %vm385, %v686, 0
    %v700 = vsel %vm385, %v687, 0
    %702 = vmatprep.subr.bf16.mxu0 %v685
    %703 = vmatpush1.bf16.msra.mxu0 %v684
    %704 = vmatprep.subr.bf16.mxu0 %v700
    %705 = vmatpush1.bf16.msra.mxu0 %v697
    %706 = vmatprep.subr.bf16.mxu0 0
    %707 = vmatpush1.bf16.msra.mxu0 0
    %708 = vmatprep.subr.bf16.mxu0 0
    %709 = vmatpush1.bf16.msra.mxu0 0
    %710 = vmatprep.subr.bf16.mxu0 0
    %711 = vmatpush1.bf16.msra.mxu0 0
    %712 = vmatprep.subr.bf16.mxu0 0
    %713 = vmatpush1.bf16.msra.mxu0 0
    %714 = vmatprep.subr.bf16.mxu0 0
    %715 = vmatpush1.bf16.msra.mxu0 0
    %716 = vmatprep.subr.bf16.mxu0 0
    %717 = vmatpush1.bf16.msra.mxu0 0
    %718 = vmatprep.subr.bf16.mxu0 0
    %719 = vmatpush1.bf16.msra.mxu0 0
    %720 = vmatprep.subr.bf16.mxu0 0
    %721 = vmatpush1.bf16.msra.mxu0 0
    %722 = vmatprep.subr.bf16.mxu0 0
    %723 = vmatpush1.bf16.msra.mxu0 0
    %724 = vmatprep.subr.bf16.mxu0 0
    %725 = vmatpush1.bf16.msra.mxu0 0
    %726 = vmatprep.subr.bf16.mxu0 0
    %727 = vmatpush1.bf16.msra.mxu0 0
    %728 = vmatprep.subr.bf16.mxu0 0
    %729 = vmatpush1.bf16.msra.mxu0 0
    %730 = vmatprep.subr.bf16.mxu0 0
    %731 = vmatpush1.bf16.msra.mxu0 0
    %732 = vmatprep.subr.bf16.mxu0 0
    %733 = vmatpush1.bf16.msra.mxu0 0
    %734 = vmatprep.mubr.bf16.mxu0 0
    %735 = vmatmul.mubr.bf16.gmra.mrb[0].mxu0 %v694
    %v736 = vpop.f32.mrb[0].mxu0
    %v737 = vadd.f32 0.0, %v736
    %v738 = vpop.f32.mrb[0].mxu0
    %v739 = vadd.f32 0.0, %v738
    %v740 = vpop.f32.mrb[0].mxu0
    %v741 = vadd.f32 0.0, %v740
    %v742 = vpop.f32.mrb[0].mxu0
    %v743 = vadd.f32 0.0, %v742
    %744 = vdwg.mxu0
    %746 = vset.pattern.permute.xlu0 0
    %747 = vperm.xlu0 %746, %v101
    %v748 = vpop.permute.xlu0 %747
    %751 = vset.pattern.permute.xlu0 0
    %752 = vperm.xlu0 %751, %v102
    %v753 = vpop.permute.xlu0 %752
    %v755 = vmul.f32 %v737, %v748
    %v756 = vmul.f32 %v739, %v748
    %v757 = vmul.f32 %v741, %v753
    %v758 = vmul.f32 %v743, %v753
    %760 = vset.pattern.permute.xlu0 0
    %761 = vperm.xlu0 %760, %v104
    %v762 = vpop.permute.xlu0 %761
    %765 = vset.pattern.permute.xlu0 0
    %766 = vperm.xlu0 %765, %v105
    %v767 = vpop.permute.xlu0 %766
    %v769 = vadd.f32 %v755, %v762
    %v770 = vadd.f32 %v756, %v762
    %v771 = vadd.f32 %v757, %v767
    %v772 = vadd.f32 %v758, %v767
    %v773 = vmax.f32 %v769, 0.0
    %v774 = vmax.f32 %v770, 0.0
    %v775 = vmax.f32 %v771, 0.0
    %v776 = vmax.f32 %v772, 0.0
    %781 = vrot.lane.b32.xlu0 %v773, 1
    %v782 = vpop.permute.xlu0 %781
    %783 = vrot.lane.b32.xlu0 %v774, 1
    %v784 = vpop.permute.xlu0 %783
    %785 = vrot.lane.b32.xlu0 %v775, 1
    %v786 = vpop.permute.xlu0 %785
    %787 = vrot.lane.b32.xlu0 %v776, 1
    %v788 = vpop.permute.xlu0 %787
    %v789 = vsel %vm190, %v782, %v784
    %v790 = vsel %vm190, %v786, %v788
    %v795 = vsel %vm190, 0.0, %v782
    %v796 = vsel %vm190, 0.0, %v786
    %797 = vrot.lane.b32.xlu0 %v773, 127
    %v798 = vpop.permute.xlu0 %797
    %799 = vrot.lane.b32.xlu0 %v774, 127
    %v800 = vpop.permute.xlu0 %799
    %801 = vrot.lane.b32.xlu0 %v775, 127
    %v802 = vpop.permute.xlu0 %801
    %803 = vrot.lane.b32.xlu0 %v776, 127
    %v804 = vpop.permute.xlu0 %803
    %v805 = vsel %vm199, %v798, %v800
    %v806 = vsel %vm199, %v802, %v804
    %v809 = vsel %vm202, %v800, 0.0
    %v810 = vsel %vm202, %v804, 0.0
    %v811 = vrot.slane %v773, 6
    %v812 = vrot.slane %v774, 6
    %v813 = vrot.slane %v775, 6
    %v814 = vsel %vm214, %v811, %v813
    %v815 = vrot.slane %v776, 6
    %v816 = vsel %vm214, %v812, %v815
    %v823 = vrot.slane %v805, 4
    %v824 = vrot.slane %v809, 4
    %v825 = vrot.slane %v806, 4
    %v826 = vsel %vm357, %v823, %v825
    %v827 = vrot.slane %v810, 4
    %v828 = vsel %vm357, %v824, %v827
    %v833 = vsel %vm214, %v796, %v811
    %v834 = vsel %vm214, %v790, %v812
    %v835 = vsel %vm357, %v814, %v823
    %v836 = vsel %vm357, %v816, %v824
    %v837 = vpack.c.bf16 %v833, %v795
    %v838 = vpack.c.bf16 %v834, %v789
    %v839 = vpack.c.bf16 %v826, %v835
    %v840 = vpack.c.bf16 %v828, %v836
    %v843 = vunpack.c.l.b16 %v107
    %v844 = vunpack.c.l.b16 %v108
    %v845 = vpack.c.b16 %v844, %v843
    %v847 = vsel %vm381, %v845, 0
    %v850 = vsel %vm385, %v839, 0
    %v853 = vsel %vm385, %v840, 0
    %855 = vmatprep.subr.bf16.mxu0 %v838
    %856 = vmatpush1.bf16.msra.mxu0 %v837
    %857 = vmatprep.subr.bf16.mxu0 %v853
    %858 = vmatpush1.bf16.msra.mxu0 %v850
    %859 = vmatprep.subr.bf16.mxu0 0
    %860 = vmatpush1.bf16.msra.mxu0 0
    %861 = vmatprep.subr.bf16.mxu0 0
    %862 = vmatpush1.bf16.msra.mxu0 0
    %863 = vmatprep.subr.bf16.mxu0 0
    %864 = vmatpush1.bf16.msra.mxu0 0
    %865 = vmatprep.subr.bf16.mxu0 0
    %866 = vmatpush1.bf16.msra.mxu0 0
    %867 = vmatprep.subr.bf16.mxu0 0
    %868 = vmatpush1.bf16.msra.mxu0 0
    %869 = vmatprep.subr.bf16.mxu0 0
    %870 = vmatpush1.bf16.msra.mxu0 0
    %871 = vmatprep.subr.bf16.mxu0 0
    %872 = vmatpush1.bf16.msra.mxu0 0
    %873 = vmatprep.subr.bf16.mxu0 0
    %874 = vmatpush1.bf16.msra.mxu0 0
    %875 = vmatprep.subr.bf16.mxu0 0
    %876 = vmatpush1.bf16.msra.mxu0 0
    %877 = vmatprep.subr.bf16.mxu0 0
    %878 = vmatpush1.bf16.msra.mxu0 0
    %879 = vmatprep.subr.bf16.mxu0 0
    %880 = vmatpush1.bf16.msra.mxu0 0
    %881 = vmatprep.subr.bf16.mxu0 0
    %882 = vmatpush1.bf16.msra.mxu0 0
    %883 = vmatprep.subr.bf16.mxu0 0
    %884 = vmatpush1.bf16.msra.mxu0 0
    %885 = vmatprep.subr.bf16.mxu0 0
    %886 = vmatpush1.bf16.msra.mxu0 0
    %887 = vmatprep.mubr.bf16.mxu0 0
    %888 = vmatmul.mubr.bf16.gmra.mrb[0].mxu0 %v847
    %v889 = vpop.f32.mrb[0].mxu0
    %v890 = vadd.f32 0.0, %v889
    %v891 = vpop.f32.mrb[0].mxu0
    %v892 = vadd.f32 0.0, %v891
    %v893 = vpop.f32.mrb[0].mxu0
    %v894 = vadd.f32 0.0, %v893
    %v895 = vpop.f32.mrb[0].mxu0
    %v896 = vadd.f32 0.0, %v895
    %897 = vdwg.mxu0
    %899 = vset.pattern.permute.xlu0 0
    %900 = vperm.xlu0 %899, %v110
    %v901 = vpop.permute.xlu0 %900
    %904 = vset.pattern.permute.xlu0 0
    %905 = vperm.xlu0 %904, %v111
    %v906 = vpop.permute.xlu0 %905
    %v908 = vmul.f32 %v890, %v901
    %v909 = vmul.f32 %v892, %v901
    %v910 = vmul.f32 %v894, %v906
    %v911 = vmul.f32 %v896, %v906
    %913 = vset.pattern.permute.xlu0 0
    %914 = vperm.xlu0 %913, %v113
    %v915 = vpop.permute.xlu0 %914
    %918 = vset.pattern.permute.xlu0 0
    %919 = vperm.xlu0 %918, %v114
    %v920 = vpop.permute.xlu0 %919
    %v922 = vadd.f32 %v908, %v915
    %v923 = vadd.f32 %v909, %v915
    %v924 = vadd.f32 %v910, %v920
    %v925 = vadd.f32 %v911, %v920
    %v926 = vadd.f32 %v922, %v620
    %v927 = vadd.f32 %v923, %v621
    %v928 = vadd.f32 %v924, %v622
    %v929 = vadd.f32 %v925, %v623
    %v930 = vmax.f32 %v926, 0.0
    %v931 = vmax.f32 %v927, 0.0
    %v932 = vmax.f32 %v928, 0.0
    %v933 = vmax.f32 %v929, 0.0
    %938 = vrot.lane.b32.xlu0 %v930, 1
    %v939 = vpop.permute.xlu0 %938
    %940 = vrot.lane.b32.xlu0 %v931, 1
    %v941 = vpop.permute.xlu0 %940
    %942 = vrot.lane.b32.xlu0 %v932, 1
    %v943 = vpop.permute.xlu0 %942
    %944 = vrot.lane.b32.xlu0 %v933, 1
    %v945 = vpop.permute.xlu0 %944
    %v946 = vsel %vm190, %v939, %v941
    %v947 = vsel %vm190, %v943, %v945
    %v952 = vsel %vm190, 0.0, %v939
    %v953 = vsel %vm190, 0.0, %v943
    %954 = vrot.lane.b32.xlu0 %v930, 127
    %v955 = vpop.permute.xlu0 %954
    %956 = vrot.lane.b32.xlu0 %v931, 127
    %v957 = vpop.permute.xlu0 %956
    %958 = vrot.lane.b32.xlu0 %v932, 127
    %v959 = vpop.permute.xlu0 %958
    %960 = vrot.lane.b32.xlu0 %v933, 127
    %v961 = vpop.permute.xlu0 %960
    %v962 = vsel %vm199, %v955, %v957
    %v963 = vsel %vm199, %v959, %v961
    %v966 = vsel %vm202, %v957, 0.0
    %v967 = vsel %vm202, %v961, 0.0
    %v968 = vrot.slane %v930, 6
    %v969 = vrot.slane %v931, 6
    %v970 = vrot.slane %v932, 6
    %v971 = vsel %vm214, %v968, %v970
    %v972 = vrot.slane %v933, 6
    %v973 = vsel %vm214, %v969, %v972
    %v980 = vrot.slane %v962, 4
    %v981 = vrot.slane %v966, 4
    %v982 = vrot.slane %v963, 4
    %v983 = vsel %vm357, %v980, %v982
    %v984 = vrot.slane %v967, 4
    %v985 = vsel %vm357, %v981, %v984
    %v990 = vsel %vm214, %v953, %v968
    %v991 = vsel %vm214, %v947, %v969
    %v992 = vsel %vm357, %v971, %v980
    %v993 = vsel %vm357, %v973, %v981
    %v994 = vpack.c.bf16 %v990, %v952
    %v995 = vpack.c.bf16 %v991, %v946
    %v996 = vpack.c.bf16 %v983, %v992
    %v997 = vpack.c.bf16 %v985, %v993
    %v1000 = vunpack.c.l.b16 %v116
    %v1001 = vunpack.c.l.b16 %v117
    %v1002 = vpack.c.b16 %v1001, %v1000
    %v1004 = vsel %vm381, %v1002, 0
    %v1007 = vsel %vm385, %v996, 0
    %v1010 = vsel %vm385, %v997, 0
    %1012 = vmatprep.subr.bf16.mxu0 %v995
    %1013 = vmatpush1.bf16.msra.mxu0 %v994
    %1014 = vmatprep.subr.bf16.mxu0 %v1010
    %1015 = vmatpush1.bf16.msra.mxu0 %v1007
    %1016 = vmatprep.subr.bf16.mxu0 0
    %1017 = vmatpush1.bf16.msra.mxu0 0
    %1018 = vmatprep.subr.bf16.mxu0 0
    %1019 = vmatpush1.bf16.msra.mxu0 0
    %1020 = vmatprep.subr.bf16.mxu0 0
    %1021 = vmatpush1.bf16.msra.mxu0 0
    %1022 = vmatprep.subr.bf16.mxu0 0
    %1023 = vmatpush1.bf16.msra.mxu0 0
    %1024 = vmatprep.subr.bf16.mxu0 0
    %1025 = vmatpush1.bf16.msra.mxu0 0
    %1026 = vmatprep.subr.bf16.mxu0 0
    %1027 = vmatpush1.bf16.msra.mxu0 0
    %1028 = vmatprep.subr.bf16.mxu0 0
    %1029 = vmatpush1.bf16.msra.mxu0 0
    %1030 = vmatprep.subr.bf16.mxu0 0
    %1031 = vmatpush1.bf16.msra.mxu0 0
    %1032 = vmatprep.subr.bf16.mxu0 0
    %1033 = vmatpush1.bf16.msra.mxu0 0
    %1034 = vmatprep.subr.bf16.mxu0 0
    %1035 = vmatpush1.bf16.msra.mxu0 0
    %1036 = vmatprep.subr.bf16.mxu0 0
    %1037 = vmatpush1.bf16.msra.mxu0 0
    %1038 = vmatprep.subr.bf16.mxu0 0
    %1039 = vmatpush1.bf16.msra.mxu0 0
    %1040 = vmatprep.subr.bf16.mxu0 0
    %1041 = vmatpush1.bf16.msra.mxu0 0
    %1042 = vmatprep.subr.bf16.mxu0 0
    %1043 = vmatpush1.bf16.msra.mxu0 0
    %1044 = vmatprep.mubr.bf16.mxu0 0
    %1045 = vmatmul.mubr.bf16.gmra.mrb[0].mxu0 %v1004
    %v1046 = vpop.f32.mrb[0].mxu0
    %v1047 = vadd.f32 0.0, %v1046
    %v1048 = vpop.f32.mrb[0].mxu0
    %v1049 = vadd.f32 0.0, %v1048
    %v1050 = vpop.f32.mrb[0].mxu0
    %v1051 = vadd.f32 0.0, %v1050
    %v1052 = vpop.f32.mrb[0].mxu0
    %v1053 = vadd.f32 0.0, %v1052
    %1054 = vdwg.mxu0
    %1056 = vset.pattern.permute.xlu0 0
    %1057 = vperm.xlu0 %1056, %v119
    %v1058 = vpop.permute.xlu0 %1057
    %1061 = vset.pattern.permute.xlu0 0
    %1062 = vperm.xlu0 %1061, %v120
    %v1063 = vpop.permute.xlu0 %1062
    %v1065 = vmul.f32 %v1047, %v1058
    %v1066 = vmul.f32 %v1049, %v1058
    %v1067 = vmul.f32 %v1051, %v1063
    %v1068 = vmul.f32 %v1053, %v1063
    %1070 = vset.pattern.permute.xlu0 0
    %1071 = vperm.xlu0 %1070, %v122
    %v1072 = vpop.permute.xlu0 %1071
    %1075 = vset.pattern.permute.xlu0 0
    %1076 = vperm.xlu0 %1075, %v123
    %v1077 = vpop.permute.xlu0 %1076
    %v1079 = vadd.f32 %v1065, %v1072
    %v1080 = vadd.f32 %v1066, %v1072
    %v1081 = vadd.f32 %v1067, %v1077
    %v1082 = vadd.f32 %v1068, %v1077
    %v1083 = vmax.f32 %v1079, 0.0
    %v1084 = vmax.f32 %v1080, 0.0
    %v1085 = vmax.f32 %v1081, 0.0
    %v1086 = vmax.f32 %v1082, 0.0
    %1091 = vrot.lane.b32.xlu0 %v1083, 1
    %v1092 = vpop.permute.xlu0 %1091
    %1093 = vrot.lane.b32.xlu0 %v1084, 1
    %v1094 = vpop.permute.xlu0 %1093
    %1095 = vrot.lane.b32.xlu0 %v1085, 1
    %v1096 = vpop.permute.xlu0 %1095
    %1097 = vrot.lane.b32.xlu0 %v1086, 1
    %v1098 = vpop.permute.xlu0 %1097
    %v1099 = vsel %vm190, %v1092, %v1094
    %v1100 = vsel %vm190, %v1096, %v1098
    %v1105 = vsel %vm190, 0.0, %v1092
    %v1106 = vsel %vm190, 0.0, %v1096
    %1107 = vrot.lane.b32.xlu0 %v1083, 127
    %v1108 = vpop.permute.xlu0 %1107
    %1109 = vrot.lane.b32.xlu0 %v1084, 127
    %v1110 = vpop.permute.xlu0 %1109
    %1111 = vrot.lane.b32.xlu0 %v1085, 127
    %v1112 = vpop.permute.xlu0 %1111
    %1113 = vrot.lane.b32.xlu0 %v1086, 127
    %v1114 = vpop.permute.xlu0 %1113
    %v1115 = vsel %vm199, %v1108, %v1110
    %v1116 = vsel %vm199, %v1112, %v1114
    %v1119 = vsel %vm202, %v1110, 0.0
    %v1120 = vsel %vm202, %v1114, 0.0
    %v1121 = vrot.slane %v1083, 6
    %v1122 = vrot.slane %v1084, 6
    %v1123 = vrot.slane %v1085, 6
    %v1124 = vsel %vm214, %v1121, %v1123
    %v1125 = vrot.slane %v1086, 6
    %v1126 = vsel %vm214, %v1122, %v1125
    %v1133 = vrot.slane %v1115, 4
    %v1134 = vrot.slane %v1119, 4
    %v1135 = vrot.slane %v1116, 4
    %v1136 = vsel %vm357, %v1133, %v1135
    %v1137 = vrot.slane %v1120, 4
    %v1138 = vsel %vm357, %v1134, %v1137
    %v1143 = vsel %vm214, %v1106, %v1121
    %v1144 = vsel %vm214, %v1100, %v1122
    %v1145 = vsel %vm357, %v1124, %v1133
    %v1146 = vsel %vm357, %v1126, %v1134
    %v1147 = vpack.c.bf16 %v1143, %v1105
    %v1148 = vpack.c.bf16 %v1144, %v1099
    %v1149 = vpack.c.bf16 %v1136, %v1145
    %v1150 = vpack.c.bf16 %v1138, %v1146
    %v1153 = vunpack.c.l.b16 %v125
    %v1154 = vunpack.c.l.b16 %v126
    %v1155 = vpack.c.b16 %v1154, %v1153
    %v1157 = vsel %vm381, %v1155, 0
    %v1160 = vsel %vm385, %v1149, 0
    %v1163 = vsel %vm385, %v1150, 0
    %1165 = vmatprep.subr.bf16.mxu0 %v1148
    %1166 = vmatpush1.bf16.msra.mxu0 %v1147
    %1167 = vmatprep.subr.bf16.mxu0 %v1163
    %1168 = vmatpush1.bf16.msra.mxu0 %v1160
    %1169 = vmatprep.subr.bf16.mxu0 0
    %1170 = vmatpush1.bf16.msra.mxu0 0
    %1171 = vmatprep.subr.bf16.mxu0 0
    %1172 = vmatpush1.bf16.msra.mxu0 0
    %1173 = vmatprep.subr.bf16.mxu0 0
    %1174 = vmatpush1.bf16.msra.mxu0 0
    %1175 = vmatprep.subr.bf16.mxu0 0
    %1176 = vmatpush1.bf16.msra.mxu0 0
    %1177 = vmatprep.subr.bf16.mxu0 0
    %1178 = vmatpush1.bf16.msra.mxu0 0
    %1179 = vmatprep.subr.bf16.mxu0 0
    %1180 = vmatpush1.bf16.msra.mxu0 0
    %1181 = vmatprep.subr.bf16.mxu0 0
    %1182 = vmatpush1.bf16.msra.mxu0 0
    %1183 = vmatprep.subr.bf16.mxu0 0
    %1184 = vmatpush1.bf16.msra.mxu0 0
    %1185 = vmatprep.subr.bf16.mxu0 0
    %1186 = vmatpush1.bf16.msra.mxu0 0
    %1187 = vmatprep.subr.bf16.mxu0 0
    %1188 = vmatpush1.bf16.msra.mxu0 0
    %1189 = vmatprep.subr.bf16.mxu0 0
    %1190 = vmatpush1.bf16.msra.mxu0 0
    %1191 = vmatprep.subr.bf16.mxu0 0
    %1192 = vmatpush1.bf16.msra.mxu0 0
    %1193 = vmatprep.subr.bf16.mxu0 0
    %1194 = vmatpush1.bf16.msra.mxu0 0
    %1195 = vmatprep.subr.bf16.mxu0 0
    %1196 = vmatpush1.bf16.msra.mxu0 0
    %1197 = vmatprep.mubr.bf16.mxu0 0
    %1198 = vmatmul.mubr.bf16.gmra.mrb[0].mxu0 %v1157
    %v1199 = vpop.f32.mrb[0].mxu0
    %v1200 = vadd.f32 0.0, %v1199
    %v1201 = vpop.f32.mrb[0].mxu0
    %v1202 = vadd.f32 0.0, %v1201
    %v1203 = vpop.f32.mrb[0].mxu0
    %v1204 = vadd.f32 0.0, %v1203
    %v1205 = vpop.f32.mrb[0].mxu0
    %v1206 = vadd.f32 0.0, %v1205
    %1207 = vdwg.mxu0
    %1209 = vset.pattern.permute.xlu0 0
    %1210 = vperm.xlu0 %1209, %v128
    %v1211 = vpop.permute.xlu0 %1210
    %1214 = vset.pattern.permute.xlu0 0
    %1215 = vperm.xlu0 %1214, %v129
    %v1216 = vpop.permute.xlu0 %1215
    %v1218 = vmul.f32 %v1200, %v1211
    %v1219 = vmul.f32 %v1202, %v1211
    %v1220 = vmul.f32 %v1204, %v1216
    %v1221 = vmul.f32 %v1206, %v1216
    %1223 = vset.pattern.permute.xlu0 0
    %1224 = vperm.xlu0 %1223, %v131
    %v1225 = vpop.permute.xlu0 %1224
    %1228 = vset.pattern.permute.xlu0 0
    %1229 = vperm.xlu0 %1228, %v132
    %v1230 = vpop.permute.xlu0 %1229
    %v1232 = vadd.f32 %v1218, %v1225
    %v1233 = vadd.f32 %v1219, %v1225
    %v1234 = vadd.f32 %v1220, %v1230
    %v1235 = vadd.f32 %v1221, %v1230
    %v1236 = vadd.f32 %v1232, %v930
    %v1237 = vadd.f32 %v1233, %v931
    %v1238 = vadd.f32 %v1234, %v932
    %v1239 = vadd.f32 %v1235, %v933
    %v1240 = vmax.f32 %v1236, 0.0
    %v1241 = vmax.f32 %v1237, 0.0
    %v1242 = vmax.f32 %v1238, 0.0
    %v1243 = vmax.f32 %v1239, 0.0
    %1248 = vrot.lane.b32.xlu0 %v1240, 1
    %v1249 = vpop.permute.xlu0 %1248
    %1250 = vrot.lane.b32.xlu0 %v1241, 1
    %v1251 = vpop.permute.xlu0 %1250
    %1252 = vrot.lane.b32.xlu0 %v1242, 1
    %v1253 = vpop.permute.xlu0 %1252
    %1254 = vrot.lane.b32.xlu0 %v1243, 1
    %v1255 = vpop.permute.xlu0 %1254
    %v1256 = vsel %vm190, %v1249, %v1251
    %v1257 = vsel %vm190, %v1253, %v1255
    %v1262 = vsel %vm190, 0.0, %v1249
    %v1263 = vsel %vm190, 0.0, %v1253
    %1264 = vrot.lane.b32.xlu0 %v1240, 127
    %v1265 = vpop.permute.xlu0 %1264
    %1266 = vrot.lane.b32.xlu0 %v1241, 127
    %v1267 = vpop.permute.xlu0 %1266
    %1268 = vrot.lane.b32.xlu0 %v1242, 127
    %v1269 = vpop.permute.xlu0 %1268
    %1270 = vrot.lane.b32.xlu0 %v1243, 127
    %v1271 = vpop.permute.xlu0 %1270
    %v1272 = vsel %vm199, %v1265, %v1267
    %v1273 = vsel %vm199, %v1269, %v1271
    %v1276 = vsel %vm202, %v1267, 0.0
    %v1277 = vsel %vm202, %v1271, 0.0
    %v1278 = vrot.slane %v1240, 6
    %v1279 = vrot.slane %v1241, 6
    %v1280 = vrot.slane %v1242, 6
    %v1281 = vsel %vm214, %v1278, %v1280
    %v1282 = vrot.slane %v1243, 6
    %v1283 = vsel %vm214, %v1279, %v1282
    %v1290 = vrot.slane %v1272, 4
    %v1291 = vrot.slane %v1276, 4
    %v1292 = vrot.slane %v1273, 4
    %v1293 = vsel %vm357, %v1290, %v1292
    %v1294 = vrot.slane %v1277, 4
    %v1295 = vsel %vm357, %v1291, %v1294
    %v1300 = vsel %vm214, %v1263, %v1278
    %v1301 = vsel %vm214, %v1257, %v1279
    %v1302 = vsel %vm357, %v1281, %v1290
    %v1303 = vsel %vm357, %v1283, %v1291
    %v1304 = vpack.c.bf16 %v1300, %v1262
    %v1305 = vpack.c.bf16 %v1301, %v1256
    %v1306 = vpack.c.bf16 %v1293, %v1302
    %v1307 = vpack.c.bf16 %v1295, %v1303
    %v1310 = vunpack.c.l.b16 %v134
    %v1311 = vunpack.c.l.b16 %v135
    %v1312 = vpack.c.b16 %v1311, %v1310
    %v1314 = vsel %vm381, %v1312, 0
    %v1317 = vsel %vm385, %v1306, 0
    %v1320 = vsel %vm385, %v1307, 0
    %1322 = vmatprep.subr.bf16.mxu0 %v1305
    %1323 = vmatpush1.bf16.msra.mxu0 %v1304
    %1324 = vmatprep.subr.bf16.mxu0 %v1320
    %1325 = vmatpush1.bf16.msra.mxu0 %v1317
    %1326 = vmatprep.subr.bf16.mxu0 0
    %1327 = vmatpush1.bf16.msra.mxu0 0
    %1328 = vmatprep.subr.bf16.mxu0 0
    %1329 = vmatpush1.bf16.msra.mxu0 0
    %1330 = vmatprep.subr.bf16.mxu0 0
    %1331 = vmatpush1.bf16.msra.mxu0 0
    %1332 = vmatprep.subr.bf16.mxu0 0
    %1333 = vmatpush1.bf16.msra.mxu0 0
    %1334 = vmatprep.subr.bf16.mxu0 0
    %1335 = vmatpush1.bf16.msra.mxu0 0
    %1336 = vmatprep.subr.bf16.mxu0 0
    %1337 = vmatpush1.bf16.msra.mxu0 0
    %1338 = vmatprep.subr.bf16.mxu0 0
    %1339 = vmatpush1.bf16.msra.mxu0 0
    %1340 = vmatprep.subr.bf16.mxu0 0
    %1341 = vmatpush1.bf16.msra.mxu0 0
    %1342 = vmatprep.subr.bf16.mxu0 0
    %1343 = vmatpush1.bf16.msra.mxu0 0
    %1344 = vmatprep.subr.bf16.mxu0 0
    %1345 = vmatpush1.bf16.msra.mxu0 0
    %1346 = vmatprep.subr.bf16.mxu0 0
    %1347 = vmatpush1.bf16.msra.mxu0 0
    %1348 = vmatprep.subr.bf16.mxu0 0
    %1349 = vmatpush1.bf16.msra.mxu0 0
    %1350 = vmatprep.subr.bf16.mxu0 0
    %1351 = vmatpush1.bf16.msra.mxu0 0
    %1352 = vmatprep.subr.bf16.mxu0 0
    %1353 = vmatpush1.bf16.msra.mxu0 0
    %1354 = vmatprep.mubr.bf16.mxu0 0
    %1355 = vmatmul.mubr.bf16.gmra.mrb[0].mxu0 %v1314
    %v1356 = vpop.f32.mrb[0].mxu0
    %v1357 = vadd.f32 0.0, %v1356
    %v1358 = vpop.f32.mrb[0].mxu0
    %v1359 = vadd.f32 0.0, %v1358
    %v1360 = vpop.f32.mrb[0].mxu0
    %v1361 = vadd.f32 0.0, %v1360
    %v1362 = vpop.f32.mrb[0].mxu0
    %v1363 = vadd.f32 0.0, %v1362
    %1364 = vdwg.mxu0
    %1366 = vset.pattern.permute.xlu0 0
    %1367 = vperm.xlu0 %1366, %v137
    %v1368 = vpop.permute.xlu0 %1367
    %1371 = vset.pattern.permute.xlu0 0
    %1372 = vperm.xlu0 %1371, %v138
    %v1373 = vpop.permute.xlu0 %1372
    %v1375 = vmul.f32 %v1357, %v1368
    %v1376 = vmul.f32 %v1359, %v1368
    %v1377 = vmul.f32 %v1361, %v1373
    %v1378 = vmul.f32 %v1363, %v1373
    %1380 = vset.pattern.permute.xlu0 0
    %1381 = vperm.xlu0 %1380, %v140
    %v1382 = vpop.permute.xlu0 %1381
    %1385 = vset.pattern.permute.xlu0 0
    %1386 = vperm.xlu0 %1385, %v141
    %v1387 = vpop.permute.xlu0 %1386
    %v1389 = vadd.f32 %v1375, %v1382
    %v1390 = vadd.f32 %v1376, %v1382
    %v1391 = vadd.f32 %v1377, %v1387
    %v1392 = vadd.f32 %v1378, %v1387
    %v1393 = vmax.f32 %v1389, 0.0
    %v1394 = vmax.f32 %v1390, 0.0
    %v1395 = vmax.f32 %v1391, 0.0
    %v1396 = vmax.f32 %v1392, 0.0
    %1401 = vrot.lane.b32.xlu0 %v1393, 1
    %v1402 = vpop.permute.xlu0 %1401
    %1403 = vrot.lane.b32.xlu0 %v1394, 1
    %v1404 = vpop.permute.xlu0 %1403
    %1405 = vrot.lane.b32.xlu0 %v1395, 1
    %v1406 = vpop.permute.xlu0 %1405
    %1407 = vrot.lane.b32.xlu0 %v1396, 1
    %v1408 = vpop.permute.xlu0 %1407
    %v1409 = vsel %vm190, %v1402, %v1404
    %v1410 = vsel %vm190, %v1406, %v1408
    %v1415 = vsel %vm190, 0.0, %v1402
    %v1416 = vsel %vm190, 0.0, %v1406
    %1417 = vrot.lane.b32.xlu0 %v1393, 127
    %v1418 = vpop.permute.xlu0 %1417
    %1419 = vrot.lane.b32.xlu0 %v1394, 127
    %v1420 = vpop.permute.xlu0 %1419
    %1421 = vrot.lane.b32.xlu0 %v1395, 127
    %v1422 = vpop.permute.xlu0 %1421
    %1423 = vrot.lane.b32.xlu0 %v1396, 127
    %v1424 = vpop.permute.xlu0 %1423
    %v1425 = vsel %vm199, %v1418, %v1420
    %v1426 = vsel %vm199, %v1422, %v1424
    %v1429 = vsel %vm202, %v1420, 0.0
    %v1430 = vsel %vm202, %v1424, 0.0
    %v1431 = vrot.slane %v1393, 6
    %v1432 = vrot.slane %v1394, 6
    %v1433 = vrot.slane %v1395, 6
    %v1434 = vsel %vm214, %v1431, %v1433
    %v1435 = vrot.slane %v1396, 6
    %v1436 = vsel %vm214, %v1432, %v1435
    %v1443 = vrot.slane %v1425, 4
    %v1444 = vrot.slane %v1429, 4
    %v1445 = vrot.slane %v1426, 4
    %v1446 = vsel %vm357, %v1443, %v1445
    %v1447 = vrot.slane %v1430, 4
    %v1448 = vsel %vm357, %v1444, %v1447
    %v1453 = vsel %vm214, %v1416, %v1431
    %v1454 = vsel %vm214, %v1410, %v1432
    %v1455 = vsel %vm357, %v1434, %v1443
    %v1456 = vsel %vm357, %v1436, %v1444
    %v1457 = vpack.c.bf16 %v1453, %v1415
    %v1458 = vpack.c.bf16 %v1454, %v1409
    %v1459 = vpack.c.bf16 %v1446, %v1455
    %v1460 = vpack.c.bf16 %v1448, %v1456
    %v1463 = vunpack.c.l.b16 %v143
    %v1464 = vunpack.c.l.b16 %v144
    %v1465 = vpack.c.b16 %v1464, %v1463
    %v1467 = vsel %vm381, %v1465, 0
    %v1470 = vsel %vm385, %v1459, 0
    %v1473 = vsel %vm385, %v1460, 0
    %1475 = vmatprep.subr.bf16.mxu0 %v1458
    %1476 = vmatpush1.bf16.msra.mxu0 %v1457
    %1477 = vmatprep.subr.bf16.mxu0 %v1473
    %1478 = vmatpush1.bf16.msra.mxu0 %v1470
    %1479 = vmatprep.subr.bf16.mxu0 0
    %1480 = vmatpush1.bf16.msra.mxu0 0
    %1481 = vmatprep.subr.bf16.mxu0 0
    %1482 = vmatpush1.bf16.msra.mxu0 0
    %1483 = vmatprep.subr.bf16.mxu0 0
    %1484 = vmatpush1.bf16.msra.mxu0 0
    %1485 = vmatprep.subr.bf16.mxu0 0
    %1486 = vmatpush1.bf16.msra.mxu0 0
    %1487 = vmatprep.subr.bf16.mxu0 0
    %1488 = vmatpush1.bf16.msra.mxu0 0
    %1489 = vmatprep.subr.bf16.mxu0 0
    %1490 = vmatpush1.bf16.msra.mxu0 0
    %1491 = vmatprep.subr.bf16.mxu0 0
    %1492 = vmatpush1.bf16.msra.mxu0 0
    %1493 = vmatprep.subr.bf16.mxu0 0
    %1494 = vmatpush1.bf16.msra.mxu0 0
    %1495 = vmatprep.subr.bf16.mxu0 0
    %1496 = vmatpush1.bf16.msra.mxu0 0
    %1497 = vmatprep.subr.bf16.mxu0 0
    %1498 = vmatpush1.bf16.msra.mxu0 0
    %1499 = vmatprep.subr.bf16.mxu0 0
    %1500 = vmatpush1.bf16.msra.mxu0 0
    %1501 = vmatprep.subr.bf16.mxu0 0
    %1502 = vmatpush1.bf16.msra.mxu0 0
    %1503 = vmatprep.subr.bf16.mxu0 0
    %1504 = vmatpush1.bf16.msra.mxu0 0
    %1505 = vmatprep.subr.bf16.mxu0 0
    %1506 = vmatpush1.bf16.msra.mxu0 0
    %1507 = vmatprep.mubr.bf16.mxu0 0
    %1508 = vmatmul.mubr.bf16.gmra.mrb[0].mxu0 %v1467
    %v1509 = vpop.f32.mrb[0].mxu0
    %v1510 = vadd.f32 0.0, %v1509
    %v1511 = vpop.f32.mrb[0].mxu0
    %v1512 = vadd.f32 0.0, %v1511
    %v1513 = vpop.f32.mrb[0].mxu0
    %v1514 = vadd.f32 0.0, %v1513
    %v1515 = vpop.f32.mrb[0].mxu0
    %v1516 = vadd.f32 0.0, %v1515
    %1517 = vdwg.mxu0
    %1519 = vset.pattern.permute.xlu0 0
    %1520 = vperm.xlu0 %1519, %v146
    %v1521 = vpop.permute.xlu0 %1520
    %1524 = vset.pattern.permute.xlu0 0
    %1525 = vperm.xlu0 %1524, %v147
    %v1526 = vpop.permute.xlu0 %1525
    %v1528 = vmul.f32 %v1510, %v1521
    %v1529 = vmul.f32 %v1512, %v1521
    %v1530 = vmul.f32 %v1514, %v1526
    %v1531 = vmul.f32 %v1516, %v1526
    %1533 = vset.pattern.permute.xlu0 0
    %1534 = vperm.xlu0 %1533, %v149
    %v1535 = vpop.permute.xlu0 %1534
    %1538 = vset.pattern.permute.xlu0 0
    %1539 = vperm.xlu0 %1538, %v150
    %v1540 = vpop.permute.xlu0 %1539
    %v1542 = vadd.f32 %v1528, %v1535
    %v1543 = vadd.f32 %v1529, %v1535
    %v1544 = vadd.f32 %v1530, %v1540
    %v1545 = vadd.f32 %v1531, %v1540
    %v1546 = vadd.f32 %v1542, %v1240
    %v1547 = vadd.f32 %v1543, %v1241
    %v1548 = vadd.f32 %v1544, %v1242
    %v1549 = vadd.f32 %v1545, %v1243
    %v1550 = vmax.f32 %v1546, 0.0
    %v1551 = vmax.f32 %v1547, 0.0
    %v1552 = vmax.f32 %v1548, 0.0
    %v1553 = vmax.f32 %v1549, 0.0
    %1558 = vrot.lane.b32.xlu0 %v1550, 127
    %v1559 = vpop.permute.xlu0 %1558
    %1560 = vrot.lane.b32.xlu0 %v1551, 127
    %v1561 = vpop.permute.xlu0 %1560
    %1562 = vrot.lane.b32.xlu0 %v1552, 127
    %v1563 = vpop.permute.xlu0 %1562
    %1564 = vrot.lane.b32.xlu0 %v1553, 127
    %v1565 = vpop.permute.xlu0 %1564
    %v1566 = vsel %vm199, %v1559, %v1561
    %v1567 = vsel %vm199, %v1563, %v1565
    %v1572 = vsel %vm202, %v1561, 0.0
    %v1573 = vsel %vm202, %v1565, 0.0
    %v1574 = vmax.f32 %v1550, %v1566
    %v1575 = vmax.f32 %v1551, %v1572
    %v1576 = vmax.f32 %v1552, %v1567
    %v1577 = vmax.f32 %v1553, %v1573
    %v1578 = vpack.c.bf16 %v1576, %v1574
    %v1579 = vpack.c.bf16 %v1577, %v1575
    %v1605 = vunpack.c.l.b16 %v151
    %v1606 = vunpack.c.l.b16 %v152
    %v1607 = vunpack.c.l.b16 %v153
    %v1608 = vunpack.c.l.b16 %v154
    %v1609 = vunpack.c.l.b16 %v155
    %v1610 = vunpack.c.l.b16 %v156
    %v1611 = vunpack.c.l.b16 %v157
    %v1612 = vunpack.c.l.b16 %v158
    %v1613 = vunpack.c.l.b16 %v159
    %v1614 = vunpack.c.l.b16 %v160
    %v1615 = vunpack.c.l.b16 %v161
    %v1616 = vunpack.c.l.b16 %v162
    %v1617 = vunpack.c.l.b16 %v163
    %v1618 = vunpack.c.l.b16 %v164
    %v1619 = vunpack.c.l.b16 %v165
    %v1620 = vunpack.c.l.b16 %v166
    %v1621 = vunpack.c.l.b16 %v167
    %v1622 = vunpack.c.l.b16 %v168
    %v1623 = vunpack.c.l.b16 %v169
    %v1624 = vunpack.c.l.b16 %v170
    %v1625 = vunpack.c.l.b16 %v171
    %v1626 = vunpack.c.l.b16 %v172
    %v1627 = vunpack.c.l.b16 %v173
    %v1628 = vunpack.c.l.b16 %v174
    %v1629 = vunpack.c.l.b16 %v175
    %v1630 = vpack.c.b16 %v1606, %v1605
    %v1631 = vpack.c.b16 %v1608, %v1607
    %v1632 = vpack.c.b16 %v1610, %v1609
    %v1633 = vpack.c.b16 %v1612, %v1611
    %v1634 = vpack.c.b16 %v1614, %v1613
    %v1635 = vpack.c.b16 %v1616, %v1615
    %v1636 = vpack.c.b16 %v1618, %v1617
    %v1637 = vpack.c.b16 %v1620, %v1619
    %v1638 = vpack.c.b16 %v1622, %v1621
    %v1639 = vpack.c.b16 %v1624, %v1623
    %v1640 = vpack.c.b16 %v1626, %v1625
    %v1641 = vpack.c.b16 %v1628, %v1627
    %v1642 = vpack.c.b16 %v1629, %v1629
    %vm1655 = vcmask 588800
    %v1657 = vsel %vm1655, %v1579, 0
    %v1660 = vsel %vm357, %v1642, 0
    %1662 = vmatprep.subr.bf16.mxu0 0
    %1663 = vmatpush1.bf16.msra.mxu0 %v1630
    %1664 = vmatprep.subr.bf16.mxu0 0
    %1665 = vmatpush1.bf16.msra.mxu0 %v1631
    %1666 = vmatprep.subr.bf16.mxu0 0
    %1667 = vmatpush1.bf16.msra.mxu0 %v1632
    %1668 = vmatprep.subr.bf16.mxu0 0
    %1669 = vmatpush1.bf16.msra.mxu0 %v1633
    %1670 = vmatprep.subr.bf16.mxu0 0
    %1671 = vmatpush1.bf16.msra.mxu0 %v1634
    %1672 = vmatprep.subr.bf16.mxu0 0
    %1673 = vmatpush1.bf16.msra.mxu0 %v1635
    %1674 = vmatprep.subr.bf16.mxu0 0
    %1675 = vmatpush1.bf16.msra.mxu0 %v1636
    %1676 = vmatprep.subr.bf16.mxu0 0
    %1677 = vmatpush1.bf16.msra.mxu0 %v1637
    %1678 = vmatprep.subr.bf16.mxu0 0
    %1679 = vmatpush1.bf16.msra.mxu0 %v1638
    %1680 = vmatprep.subr.bf16.mxu0 0
    %1681 = vmatpush1.bf16.msra.mxu0 %v1639
    %1682 = vmatprep.subr.bf16.mxu0 0
    %1683 = vmatpush1.bf16.msra.mxu0 %v1640
    %1684 = vmatprep.subr.bf16.mxu0 0
    %1685 = vmatpush1.bf16.msra.mxu0 %v1641
    %1686 = vmatprep.subr.bf16.mxu0 0
    %1687 = vmatpush1.bf16.msra.mxu0 %v1660
    %1688 = vmatprep.subr.bf16.mxu0 0
    %1689 = vmatpush1.bf16.msra.mxu0 0
    %1690 = vmatprep.subr.bf16.mxu0 0
    %1691 = vmatpush1.bf16.msra.mxu0 0
    %1692 = vmatprep.subr.bf16.mxu0 0
    %1693 = vmatpush1.bf16.msra.mxu0 0
    %1694 = vmatprep.mubr.bf16.mxu0 %v1657
    %1695 = vmatmul.mubr.bf16.gmra.mrb[0].mxu0 %v1578
    %v1696 = vpop.f32.mrb[0].mxu0
    %v1697 = vadd.f32 0.0, %v1696
    %v1698 = vpop.f32.mrb[0].mxu0
    %v1699 = vpop.f32.mrb[0].mxu0
    %v1700 = vadd.f32 0.0, %v1699
    %v1701 = vpop.f32.mrb[0].mxu0
    %1702 = vdwg.mxu0
    %1705 = vrot.lane.b32.xlu0 %v1697, 1
    %v1706 = vpop.permute.xlu0 %1705
    %1707 = vrot.lane.b32.xlu0 %v1700, 1
    %v1708 = vpop.permute.xlu0 %1707
    %v1711 = vsel %vm190, 0.0, %v1706
    %v1712 = vsel %vm190, 0.0, %v1708
    %1713 = vrot.lane.b32.xlu0 %v1697, 127
    %v1714 = vpop.permute.xlu0 %1713
    %1715 = vrot.lane.b32.xlu0 %v1700, 127
    %v1716 = vpop.permute.xlu0 %1715
    %vm1719 = vcmask 809984
    %v1720 = vsel %vm1719, %v1714, 0.0
    %v1721 = vsel %vm1719, %v1716, 0.0
    %v1722 = vrot.slane %v1697, 6
    %v1723 = vrot.slane %v1700, 6
    %v1724 = vsel %vm214, %v1722, %v1723
    %v1729 = vrot.slane %v1720, 4
    %v1730 = vrot.slane %v1721, 4
    %v1731 = vsel %vm357, %v1729, %v1730
    %v1734 = vsel %vm214, %v1712, %v1722
    %v1735 = vsel %vm357, %v1724, %v1729
    %v1736 = vpack.c.bf16 %v1734, %v1711
    %v1737 = vpack.c.bf16 %v1731, %v1735
    %v1741 = vunpack.c.l.b16 %v73
    %v1742 = vunpack.c.l.b16 %v74
    %v1743 = vunpack.c.l.b16 %v75
    %v1744 = vpack.c.b16 %v1742, %v1741
    %v1745 = vpack.c.b16 %v1743, %v1743
    %v1747 = vsel %vm381, %v1744, 0
    %v1750 = vsel %vm381, %v1745, 0
    %v1753 = vsel %vm385, %v1737, 0
    %1755 = vmatprep.subr.bf16.mxu0 0
    %1756 = vmatpush1.bf16.msra.mxu0 %v1736
    %1757 = vmatprep.subr.bf16.mxu0 0
    %1758 = vmatpush1.bf16.msra.mxu0 %v1753
    %1759 = vmatprep.subr.bf16.mxu0 0
    %1760 = vmatpush1.bf16.msra.mxu0 0
    %1761 = vmatprep.subr.bf16.mxu0 0
    %1762 = vmatpush1.bf16.msra.mxu0 0
    %1763 = vmatprep.subr.bf16.mxu0 0
    %1764 = vmatpush1.bf16.msra.mxu0 0
    %1765 = vmatprep.subr.bf16.mxu0 0
    %1766 = vmatpush1.bf16.msra.mxu0 0
    %1767 = vmatprep.subr.bf16.mxu0 0
    %1768 = vmatpush1.bf16.msra.mxu0 0
    %1769 = vmatprep.subr.bf16.mxu0 0
    %1770 = vmatpush1.bf16.msra.mxu0 0
    %1771 = vmatprep.subr.bf16.mxu0 0
    %1772 = vmatpush1.bf16.msra.mxu0 0
    %1773 = vmatprep.subr.bf16.mxu0 0
    %1774 = vmatpush1.bf16.msra.mxu0 0
    %1775 = vmatprep.subr.bf16.mxu0 0
    %1776 = vmatpush1.bf16.msra.mxu0 0
    %1777 = vmatprep.subr.bf16.mxu0 0
    %1778 = vmatpush1.bf16.msra.mxu0 0
    %1779 = vmatprep.subr.bf16.mxu0 0
    %1780 = vmatpush1.bf16.msra.mxu0 0
    %1781 = vmatprep.subr.bf16.mxu0 0
    %1782 = vmatpush1.bf16.msra.mxu0 0
    %1783 = vmatprep.subr.bf16.mxu0 0
    %1784 = vmatpush1.bf16.msra.mxu0 0
    %1785 = vmatprep.subr.bf16.mxu0 0
    %1786 = vmatpush1.bf16.msra.mxu0 0
    %1787 = vmatprep.mubr.bf16.mxu0 0
    %1788 = vmatmul.mubr.bf16.gmra.mrb[0].mxu0 %v1747
    %v1789 = vpop.f32.mrb[0].mxu0
    %v1790 = vadd.f32 0.0, %v1789
    %v1791 = vpop.f32.mrb[0].mxu0
    %v1792 = vpop.f32.mrb[0].mxu0
    %v1793 = vadd.f32 0.0, %v1792
    %v1794 = vpop.f32.mrb[0].mxu0
    %1795 = vmatprep.mubr.bf16.mxu0 0
    %1796 = vmatmul.mubr.bf16.gmra.mrb[0].mxu0 %v1750
    %v1797 = vpop.f32.mrb[0].mxu0
    %v1798 = vadd.f32 0.0, %v1797
    %v1799 = vpop.f32.mrb[0].mxu0
    %v1800 = vpop.f32.mrb[0].mxu0
    %v1801 = vpop.f32.mrb[0].mxu0
    %1802 = vdwg.mxu0
    %1804 = vset.pattern.permute.xlu0 0
    %1805 = vperm.xlu0 %1804, %v76
    %v1806 = vpop.permute.xlu0 %1805
    %1809 = vset.pattern.permute.xlu0 0
    %1810 = vperm.xlu0 %1809, %v77
    %v1811 = vpop.permute.xlu0 %1810
    %1814 = vset.pattern.permute.xlu0 0
    %1815 = vperm.xlu0 %1814, %v78
    %v1816 = vpop.permute.xlu0 %1815
    %v1818 = vmul.f32 %v1790, %v1806
    %v1819 = vmul.f32 %v1793, %v1811
    %v1820 = vmul.f32 %v1798, %v1816
    %1822 = vset.pattern.permute.xlu0 0
    %1823 = vperm.xlu0 %1822, %v79
    %v1824 = vpop.permute.xlu0 %1823
    %1827 = vset.pattern.permute.xlu0 0
    %1828 = vperm.xlu0 %1827, %v80
    %v1829 = vpop.permute.xlu0 %1828
    %1832 = vset.pattern.permute.xlu0 0
    %1833 = vperm.xlu0 %1832, %v81
    %v1834 = vpop.permute.xlu0 %1833
    %v1836 = vadd.f32 %v1818, %v1824
    %v1837 = vadd.f32 %v1819, %v1829
    %v1838 = vadd.f32 %v1820, %v1834
    %v1839 = vmax.f32 %v1836, 0.0
    %v1840 = vmax.f32 %v1837, 0.0
    %v1841 = vmax.f32 %v1838, 0.0
    %v1842 = vpack.c.bf16 %v1840, %v1839
    %v1843 = vpack.c.bf16 %v1841, %v1841
    %v1846 = vunpack.c.l.b16 %v1842
    %v1847 = vunpack.c.h.b16 %v1842
    %v1848 = vunpack.c.l.b16 %v1843
    %v1849 = vpack.c.b16 %v1846, %v1846
    %v1850 = vpack.c.b16 %v1847, %v1847
    %v1851 = vpack.c.b16 %v1848, %v1848
    %vm1855 = vcmask 814080
    %1856 = vst.msk [vmem:[%s11] sm:$0xf] %vm1855, %v1849
    %1857 = vst.msk [vmem:[%s11 + $0x4] sm:$0xf] %vm1855, %v1850
    %vm1858 = vcmask 812032
    %1859 = vst.msk [vmem:[%s11 + $0x8] sm:$0x3] %vm1858, %v1851
    %v1860 = vlaneseq
    %v1861 = vshrl.u32 %v1860, 7
    %v1862 = vsub.s32 1, %v1861
    %v1863 = vrot.slane %v176, %v1862
    %v1864 = vlaneseq
    %v1865 = vshrl.u32 %v1864, 7
    %v1866 = vsub.s32 3, %v1865
    %v1867 = vrot.slane %v176, %v1866
    %1868 = vrot.lane.b32.xlu0 %v1863, 1
    %v1869 = vpop.permute.xlu0 %1868
    %1870 = vrot.lane.b32.xlu0 %v1867, 1
    %v1871 = vpop.permute.xlu0 %1870
    %v1872 = vsel %vm190, %v1869, %v1871
    %v1875 = vsel %vm190, 0.0, %v1869
    %1876 = vrot.lane.b32.xlu0 %v1863, 127
    %v1877 = vpop.permute.xlu0 %1876
    %1878 = vrot.lane.b32.xlu0 %v1867, 127
    %v1879 = vpop.permute.xlu0 %1878
    %v1880 = vsel %vm199, %v1877, %v1879
    %v1882 = vsel %vm202, %v1879, 0.0
    %v1886 = vrot.slane %v1880, 7
    %v1887 = vrot.slane %v1882, 7
    %v1890 = vsel %vm211, %v1875, %v1863
    %v1891 = vsel %vm211, %v1872, %v1867
    %v1892 = vsel %vm214, %v1890, %v1886
    %v1893 = vsel %vm214, %v1891, %v1887
    %v1894 = vpack.c.bf16 %v1892, %v1892
    %v1895 = vpack.c.bf16 %v1893, %v1893
    %v1897 = vand.u32 %v1894, %v229
    %v1900 = vand.u32 %v1895, %v229
    %1902 = vmatprep.subr.bf16.mxu0 %v1900
    %1903 = vmatpush1.bf16.msra.mxu0 %v1897
    %1904 = vmatprep.subr.bf16.mxu0 0
    %1905 = vmatpush1.bf16.msra.mxu0 0
    %1906 = vmatprep.subr.bf16.mxu0 0
    %1907 = vmatpush1.bf16.msra.mxu0 0
    %1908 = vmatprep.subr.bf16.mxu0 0
    %1909 = vmatpush1.bf16.msra.mxu0 0
    %1910 = vmatprep.subr.bf16.mxu0 0
    %1911 = vmatpush1.bf16.msra.mxu0 0
    %1912 = vmatprep.subr.bf16.mxu0 0
    %1913 = vmatpush1.bf16.msra.mxu0 0
    %1914 = vmatprep.subr.bf16.mxu0 0
    %1915 = vmatpush1.bf16.msra.mxu0 0
    %1916 = vmatprep.subr.bf16.mxu0 0
    %1917 = vmatpush1.bf16.msra.mxu0 0
    %1918 = vmatprep.subr.bf16.mxu0 0
    %1919 = vmatpush1.bf16.msra.mxu0 0
    %1920 = vmatprep.subr.bf16.mxu0 0
    %1921 = vmatpush1.bf16.msra.mxu0 0
    %1922 = vmatprep.subr.bf16.mxu0 0
    %1923 = vmatpush1.bf16.msra.mxu0 0
    %1924 = vmatprep.subr.bf16.mxu0 0
    %1925 = vmatpush1.bf16.msra.mxu0 0
    %1926 = vmatprep.subr.bf16.mxu0 0
    %1927 = vmatpush1.bf16.msra.mxu0 0
    %1928 = vmatprep.subr.bf16.mxu0 0
    %1929 = vmatpush1.bf16.msra.mxu0 0
    %1930 = vmatprep.subr.bf16.mxu0 0
    %1931 = vmatpush1.bf16.msra.mxu0 0
    %1932 = vmatprep.subr.bf16.mxu0 0
    %1933 = vmatpush1.bf16.msra.mxu0 0
    %1934 = vmatprep.mubr.bf16.mxu0 0
    %1935 = vmatmul.mubr.bf16.gmra.mrb[0].mxu0 %v226
    %v1936 = vpop.f32.mrb[0].mxu0
    %v1937 = vadd.f32 0.0, %v1936
    %v1938 = vpop.f32.mrb[0].mxu0
    %v1939 = vadd.f32 0.0, %v1938
    %v1940 = vpop.f32.mrb[0].mxu0
    %v1941 = vadd.f32 0.0, %v1940
    %v1942 = vpop.f32.mrb[0].mxu0
    %v1943 = vadd.f32 0.0, %v1942
    %1944 = vdwg.mxu0
    %v1945 = vmul.f32 %v1937, %v282
    %v1946 = vmul.f32 %v1939, %v282
    %v1947 = vmul.f32 %v1941, %v287
    %v1948 = vmul.f32 %v1943, %v287
    %v1949 = vadd.f32 %v1945, %v296
    %v1950 = vadd.f32 %v1946, %v296
    %v1951 = vadd.f32 %v1947, %v301
    %v1952 = vadd.f32 %v1948, %v301
    %v1953 = vmax.f32 %v1949, 0.0
    %v1954 = vmax.f32 %v1950, 0.0
    %v1955 = vmax.f32 %v1951, 0.0
    %v1956 = vmax.f32 %v1952, 0.0
    %1961 = vrot.lane.b32.xlu0 %v1953, 1
    %v1962 = vpop.permute.xlu0 %1961
    %1963 = vrot.lane.b32.xlu0 %v1954, 1
    %v1964 = vpop.permute.xlu0 %1963
    %1965 = vrot.lane.b32.xlu0 %v1955, 1
    %v1966 = vpop.permute.xlu0 %1965
    %1967 = vrot.lane.b32.xlu0 %v1956, 1
    %v1968 = vpop.permute.xlu0 %1967
    %v1969 = vsel %vm190, %v1962, %v1964
    %v1970 = vsel %vm190, %v1966, %v1968
    %v1975 = vsel %vm190, 0.0, %v1962
    %v1976 = vsel %vm190, 0.0, %v1966
    %1977 = vrot.lane.b32.xlu0 %v1953, 127
    %v1978 = vpop.permute.xlu0 %1977
    %1979 = vrot.lane.b32.xlu0 %v1954, 127
    %v1980 = vpop.permute.xlu0 %1979
    %1981 = vrot.lane.b32.xlu0 %v1955, 127
    %v1982 = vpop.permute.xlu0 %1981
    %1983 = vrot.lane.b32.xlu0 %v1956, 127
    %v1984 = vpop.permute.xlu0 %1983
    %v1985 = vsel %vm199, %v1978, %v1980
    %v1986 = vsel %vm199, %v1982, %v1984
    %v1989 = vsel %vm202, %v1980, 0.0
    %v1990 = vsel %vm202, %v1984, 0.0
    %v1991 = vrot.slane %v1953, 6
    %v1992 = vrot.slane %v1954, 6
    %v1993 = vrot.slane %v1955, 6
    %v1994 = vsel %vm214, %v1991, %v1993
    %v1995 = vrot.slane %v1956, 6
    %v1996 = vsel %vm214, %v1992, %v1995
    %v2003 = vrot.slane %v1985, 4
    %v2004 = vrot.slane %v1989, 4
    %v2005 = vrot.slane %v1986, 4
    %v2006 = vsel %vm357, %v2003, %v2005
    %v2007 = vrot.slane %v1990, 4
    %v2008 = vsel %vm357, %v2004, %v2007
    %v2013 = vsel %vm214, %v1976, %v1991
    %v2014 = vsel %vm214, %v1970, %v1992
    %v2015 = vsel %vm357, %v1994, %v2003
    %v2016 = vsel %vm357, %v1996, %v2004
    %v2017 = vpack.c.bf16 %v2013, %v1975
    %v2018 = vpack.c.bf16 %v2014, %v1969
    %v2019 = vpack.c.bf16 %v2006, %v2015
    %v2020 = vpack.c.bf16 %v2008, %v2016
    %v2022 = vsel %vm385, %v2019, 0
    %v2025 = vsel %vm385, %v2020, 0
    %2027 = vmatprep.subr.bf16.mxu0 %v2018
    %2028 = vmatpush1.bf16.msra.mxu0 %v2017
    %2029 = vmatprep.subr.bf16.mxu0 %v2025
    %2030 = vmatpush1.bf16.msra.mxu0 %v2022
    %2031 = vmatprep.subr.bf16.mxu0 0
    %2032 = vmatpush1.bf16.msra.mxu0 0
    %2033 = vmatprep.subr.bf16.mxu0 0
    %2034 = vmatpush1.bf16.msra.mxu0 0
    %2035 = vmatprep.subr.bf16.mxu0 0
    %2036 = vmatpush1.bf16.msra.mxu0 0
    %2037 = vmatprep.subr.bf16.mxu0 0
    %2038 = vmatpush1.bf16.msra.mxu0 0
    %2039 = vmatprep.subr.bf16.mxu0 0
    %2040 = vmatpush1.bf16.msra.mxu0 0
    %2041 = vmatprep.subr.bf16.mxu0 0
    %2042 = vmatpush1.bf16.msra.mxu0 0
    %2043 = vmatprep.subr.bf16.mxu0 0
    %2044 = vmatpush1.bf16.msra.mxu0 0
    %2045 = vmatprep.subr.bf16.mxu0 0
    %2046 = vmatpush1.bf16.msra.mxu0 0
    %2047 = vmatprep.subr.bf16.mxu0 0
    %2048 = vmatpush1.bf16.msra.mxu0 0
    %2049 = vmatprep.subr.bf16.mxu0 0
    %2050 = vmatpush1.bf16.msra.mxu0 0
    %2051 = vmatprep.subr.bf16.mxu0 0
    %2052 = vmatpush1.bf16.msra.mxu0 0
    %2053 = vmatprep.subr.bf16.mxu0 0
    %2054 = vmatpush1.bf16.msra.mxu0 0
    %2055 = vmatprep.subr.bf16.mxu0 0
    %2056 = vmatpush1.bf16.msra.mxu0 0
    %2057 = vmatprep.subr.bf16.mxu0 0
    %2058 = vmatpush1.bf16.msra.mxu0 0
    %2059 = vmatprep.mubr.bf16.mxu0 0
    %2060 = vmatmul.mubr.bf16.gmra.mrb[0].mxu0 %v383
    %v2061 = vpop.f32.mrb[0].mxu0
    %v2062 = vadd.f32 0.0, %v2061
    %v2063 = vpop.f32.mrb[0].mxu0
    %v2064 = vadd.f32 0.0, %v2063
    %v2065 = vpop.f32.mrb[0].mxu0
    %v2066 = vadd.f32 0.0, %v2065
    %v2067 = vpop.f32.mrb[0].mxu0
    %v2068 = vadd.f32 0.0, %v2067
    %2069 = vdwg.mxu0
    %v2070 = vmul.f32 %v2062, %v438
    %v2071 = vmul.f32 %v2064, %v438
    %v2072 = vmul.f32 %v2066, %v443
    %v2073 = vmul.f32 %v2068, %v443
    %v2074 = vadd.f32 %v2070, %v452
    %v2075 = vadd.f32 %v2071, %v452
    %v2076 = vadd.f32 %v2072, %v457
    %v2077 = vadd.f32 %v2073, %v457
    %v2078 = vmax.f32 %v2074, 0.0
    %v2079 = vmax.f32 %v2075, 0.0
    %v2080 = vmax.f32 %v2076, 0.0
    %v2081 = vmax.f32 %v2077, 0.0
    %2086 = vrot.lane.b32.xlu0 %v2078, 1
    %v2087 = vpop.permute.xlu0 %2086
    %2088 = vrot.lane.b32.xlu0 %v2079, 1
    %v2089 = vpop.permute.xlu0 %2088
    %2090 = vrot.lane.b32.xlu0 %v2080, 1
    %v2091 = vpop.permute.xlu0 %2090
    %2092 = vrot.lane.b32.xlu0 %v2081, 1
    %v2093 = vpop.permute.xlu0 %2092
    %v2094 = vsel %vm190, %v2087, %v2089
    %v2095 = vsel %vm190, %v2091, %v2093
    %v2100 = vsel %vm190, 0.0, %v2087
    %v2101 = vsel %vm190, 0.0, %v2091
    %2102 = vrot.lane.b32.xlu0 %v2078, 127
    %v2103 = vpop.permute.xlu0 %2102
    %2104 = vrot.lane.b32.xlu0 %v2079, 127
    %v2105 = vpop.permute.xlu0 %2104
    %2106 = vrot.lane.b32.xlu0 %v2080, 127
    %v2107 = vpop.permute.xlu0 %2106
    %2108 = vrot.lane.b32.xlu0 %v2081, 127
    %v2109 = vpop.permute.xlu0 %2108
    %v2110 = vsel %vm199, %v2103, %v2105
    %v2111 = vsel %vm199, %v2107, %v2109
    %v2114 = vsel %vm202, %v2105, 0.0
    %v2115 = vsel %vm202, %v2109, 0.0
    %v2116 = vrot.slane %v2078, 6
    %v2117 = vrot.slane %v2079, 6
    %v2118 = vrot.slane %v2080, 6
    %v2119 = vsel %vm214, %v2116, %v2118
    %v2120 = vrot.slane %v2081, 6
    %v2121 = vsel %vm214, %v2117, %v2120
    %v2128 = vrot.slane %v2110, 4
    %v2129 = vrot.slane %v2114, 4
    %v2130 = vrot.slane %v2111, 4
    %v2131 = vsel %vm357, %v2128, %v2130
    %v2132 = vrot.slane %v2115, 4
    %v2133 = vsel %vm357, %v2129, %v2132
    %v2138 = vsel %vm214, %v2101, %v2116
    %v2139 = vsel %vm214, %v2095, %v2117
    %v2140 = vsel %vm357, %v2119, %v2128
    %v2141 = vsel %vm357, %v2121, %v2129
    %v2142 = vpack.c.bf16 %v2138, %v2100
    %v2143 = vpack.c.bf16 %v2139, %v2094
    %v2144 = vpack.c.bf16 %v2131, %v2140
    %v2145 = vpack.c.bf16 %v2133, %v2141
    %v2147 = vsel %vm385, %v2144, 0
    %v2150 = vsel %vm385, %v2145, 0
    %2152 = vmatprep.subr.bf16.mxu0 %v2143
    %2153 = vmatpush1.bf16.msra.mxu0 %v2142
    %2154 = vmatprep.subr.bf16.mxu0 %v2150
    %2155 = vmatpush1.bf16.msra.mxu0 %v2147
    %2156 = vmatprep.subr.bf16.mxu0 0
    %2157 = vmatpush1.bf16.msra.mxu0 0
    %2158 = vmatprep.subr.bf16.mxu0 0
    %2159 = vmatpush1.bf16.msra.mxu0 0
    %2160 = vmatprep.subr.bf16.mxu0 0
    %2161 = vmatpush1.bf16.msra.mxu0 0
    %2162 = vmatprep.subr.bf16.mxu0 0
    %2163 = vmatpush1.bf16.msra.mxu0 0
    %2164 = vmatprep.subr.bf16.mxu0 0
    %2165 = vmatpush1.bf16.msra.mxu0 0
    %2166 = vmatprep.subr.bf16.mxu0 0
    %2167 = vmatpush1.bf16.msra.mxu0 0
    %2168 = vmatprep.subr.bf16.mxu0 0
    %2169 = vmatpush1.bf16.msra.mxu0 0
    %2170 = vmatprep.subr.bf16.mxu0 0
    %2171 = vmatpush1.bf16.msra.mxu0 0
    %2172 = vmatprep.subr.bf16.mxu0 0
    %2173 = vmatpush1.bf16.msra.mxu0 0
    %2174 = vmatprep.subr.bf16.mxu0 0
    %2175 = vmatpush1.bf16.msra.mxu0 0
    %2176 = vmatprep.subr.bf16.mxu0 0
    %2177 = vmatpush1.bf16.msra.mxu0 0
    %2178 = vmatprep.subr.bf16.mxu0 0
    %2179 = vmatpush1.bf16.msra.mxu0 0
    %2180 = vmatprep.subr.bf16.mxu0 0
    %2181 = vmatpush1.bf16.msra.mxu0 0
    %2182 = vmatprep.subr.bf16.mxu0 0
    %2183 = vmatpush1.bf16.msra.mxu0 0
    %2184 = vmatprep.mubr.bf16.mxu0 0
    %2185 = vmatmul.mubr.bf16.gmra.mrb[0].mxu0 %v537
    %v2186 = vpop.f32.mrb[0].mxu0
    %v2187 = vadd.f32 0.0, %v2186
    %v2188 = vpop.f32.mrb[0].mxu0
    %v2189 = vadd.f32 0.0, %v2188
    %v2190 = vpop.f32.mrb[0].mxu0
    %v2191 = vadd.f32 0.0, %v2190
    %v2192 = vpop.f32.mrb[0].mxu0
    %v2193 = vadd.f32 0.0, %v2192
    %2194 = vdwg.mxu0
    %v2195 = vmul.f32 %v2187, %v591
    %v2196 = vmul.f32 %v2189, %v591
    %v2197 = vmul.f32 %v2191, %v596
    %v2198 = vmul.f32 %v2193, %v596
    %v2199 = vadd.f32 %v2195, %v605
    %v2200 = vadd.f32 %v2196, %v605
    %v2201 = vadd.f32 %v2197, %v610
    %v2202 = vadd.f32 %v2198, %v610
    %v2203 = vadd.f32 %v2199, %v1953
    %v2204 = vadd.f32 %v2200, %v1954
    %v2205 = vadd.f32 %v2201, %v1955
    %v2206 = vadd.f32 %v2202, %v1956
    %v2207 = vmax.f32 %v2203, 0.0
    %v2208 = vmax.f32 %v2204, 0.0
    %v2209 = vmax.f32 %v2205, 0.0
    %v2210 = vmax.f32 %v2206, 0.0
    %2215 = vrot.lane.b32.xlu0 %v2207, 1
    %v2216 = vpop.permute.xlu0 %2215
    %2217 = vrot.lane.b32.xlu0 %v2208, 1
    %v2218 = vpop.permute.xlu0 %2217
    %2219 = vrot.lane.b32.xlu0 %v2209, 1
    %v2220 = vpop.permute.xlu0 %2219
    %2221 = vrot.lane.b32.xlu0 %v2210, 1
    %v2222 = vpop.permute.xlu0 %2221
    %v2223 = vsel %vm190, %v2216, %v2218
    %v2224 = vsel %vm190, %v2220, %v2222
    %v2229 = vsel %vm190, 0.0, %v2216
    %v2230 = vsel %vm190, 0.0, %v2220
    %2231 = vrot.lane.b32.xlu0 %v2207, 127
    %v2232 = vpop.permute.xlu0 %2231
    %2233 = vrot.lane.b32.xlu0 %v2208, 127
    %v2234 = vpop.permute.xlu0 %2233
    %2235 = vrot.lane.b32.xlu0 %v2209, 127
    %v2236 = vpop.permute.xlu0 %2235
    %2237 = vrot.lane.b32.xlu0 %v2210, 127
    %v2238 = vpop.permute.xlu0 %2237
    %v2239 = vsel %vm199, %v2232, %v2234
    %v2240 = vsel %vm199, %v2236, %v2238
    %v2243 = vsel %vm202, %v2234, 0.0
    %v2244 = vsel %vm202, %v2238, 0.0
    %v2245 = vrot.slane %v2207, 6
    %v2246 = vrot.slane %v2208, 6
    %v2247 = vrot.slane %v2209, 6
    %v2248 = vsel %vm214, %v2245, %v2247
    %v2249 = vrot.slane %v2210, 6
    %v2250 = vsel %vm214, %v2246, %v2249
    %v2257 = vrot.slane %v2239, 4
    %v2258 = vrot.slane %v2243, 4
    %v2259 = vrot.slane %v2240, 4
    %v2260 = vsel %vm357, %v2257, %v2259
    %v2261 = vrot.slane %v2244, 4
    %v2262 = vsel %vm357, %v2258, %v2261
    %v2267 = vsel %vm214, %v2230, %v2245
    %v2268 = vsel %vm214, %v2224, %v2246
    %v2269 = vsel %vm357, %v2248, %v2257
    %v2270 = vsel %vm357, %v2250, %v2258
    %v2271 = vpack.c.bf16 %v2267, %v2229
    %v2272 = vpack.c.bf16 %v2268, %v2223
    %v2273 = vpack.c.bf16 %v2260, %v2269
    %v2274 = vpack.c.bf16 %v2262, %v2270
    %v2276 = vsel %vm385, %v2273, 0
    %v2279 = vsel %vm385, %v2274, 0
    %2281 = vmatprep.subr.bf16.mxu0 %v2272
    %2282 = vmatpush1.bf16.msra.mxu0 %v2271
    %2283 = vmatprep.subr.bf16.mxu0 %v2279
    %2284 = vmatpush1.bf16.msra.mxu0 %v2276
    %2285 = vmatprep.subr.bf16.mxu0 0
    %2286 = vmatpush1.bf16.msra.mxu0 0
    %2287 = vmatprep.subr.bf16.mxu0 0
    %2288 = vmatpush1.bf16.msra.mxu0 0
    %2289 = vmatprep.subr.bf16.mxu0 0
    %2290 = vmatpush1.bf16.msra.mxu0 0
    %2291 = vmatprep.subr.bf16.mxu0 0
    %2292 = vmatpush1.bf16.msra.mxu0 0
    %2293 = vmatprep.subr.bf16.mxu0 0
    %2294 = vmatpush1.bf16.msra.mxu0 0
    %2295 = vmatprep.subr.bf16.mxu0 0
    %2296 = vmatpush1.bf16.msra.mxu0 0
    %2297 = vmatprep.subr.bf16.mxu0 0
    %2298 = vmatpush1.bf16.msra.mxu0 0
    %2299 = vmatprep.subr.bf16.mxu0 0
    %2300 = vmatpush1.bf16.msra.mxu0 0
    %2301 = vmatprep.subr.bf16.mxu0 0
    %2302 = vmatpush1.bf16.msra.mxu0 0
    %2303 = vmatprep.subr.bf16.mxu0 0
    %2304 = vmatpush1.bf16.msra.mxu0 0
    %2305 = vmatprep.subr.bf16.mxu0 0
    %2306 = vmatpush1.bf16.msra.mxu0 0
    %2307 = vmatprep.subr.bf16.mxu0 0
    %2308 = vmatpush1.bf16.msra.mxu0 0
    %2309 = vmatprep.subr.bf16.mxu0 0
    %2310 = vmatpush1.bf16.msra.mxu0 0
    %2311 = vmatprep.subr.bf16.mxu0 0
    %2312 = vmatpush1.bf16.msra.mxu0 0
    %2313 = vmatprep.mubr.bf16.mxu0 0
    %2314 = vmatmul.mubr.bf16.gmra.mrb[0].mxu0 %v694
    %v2315 = vpop.f32.mrb[0].mxu0
    %v2316 = vadd.f32 0.0, %v2315
    %v2317 = vpop.f32.mrb[0].mxu0
    %v2318 = vadd.f32 0.0, %v2317
    %v2319 = vpop.f32.mrb[0].mxu0
    %v2320 = vadd.f32 0.0, %v2319
    %v2321 = vpop.f32.mrb[0].mxu0
    %v2322 = vadd.f32 0.0, %v2321
    %2323 = vdwg.mxu0
    %v2324 = vmul.f32 %v2316, %v748
    %v2325 = vmul.f32 %v2318, %v748
    %v2326 = vmul.f32 %v2320, %v753
    %v2327 = vmul.f32 %v2322, %v753
    %v2328 = vadd.f32 %v2324, %v762
    %v2329 = vadd.f32 %v2325, %v762
    %v2330 = vadd.f32 %v2326, %v767
    %v2331 = vadd.f32 %v2327, %v767
    %v2332 = vmax.f32 %v2328, 0.0
    %v2333 = vmax.f32 %v2329, 0.0
    %v2334 = vmax.f32 %v2330, 0.0
    %v2335 = vmax.f32 %v2331, 0.0
    %2340 = vrot.lane.b32.xlu0 %v2332, 1
    %v2341 = vpop.permute.xlu0 %2340
    %2342 = vrot.lane.b32.xlu0 %v2333, 1
    %v2343 = vpop.permute.xlu0 %2342
    %2344 = vrot.lane.b32.xlu0 %v2334, 1
    %v2345 = vpop.permute.xlu0 %2344
    %2346 = vrot.lane.b32.xlu0 %v2335, 1
    %v2347 = vpop.permute.xlu0 %2346
    %v2348 = vsel %vm190, %v2341, %v2343
    %v2349 = vsel %vm190, %v2345, %v2347
    %v2354 = vsel %vm190, 0.0, %v2341
    %v2355 = vsel %vm190, 0.0, %v2345
    %2356 = vrot.lane.b32.xlu0 %v2332, 127
    %v2357 = vpop.permute.xlu0 %2356
    %2358 = vrot.lane.b32.xlu0 %v2333, 127
    %v2359 = vpop.permute.xlu0 %2358
    %2360 = vrot.lane.b32.xlu0 %v2334, 127
    %v2361 = vpop.permute.xlu0 %2360
    %2362 = vrot.lane.b32.xlu0 %v2335, 127
    %v2363 = vpop.permute.xlu0 %2362
    %v2364 = vsel %vm199, %v2357, %v2359
    %v2365 = vsel %vm199, %v2361, %v2363
    %v2368 = vsel %vm202, %v2359, 0.0
    %v2369 = vsel %vm202, %v2363, 0.0
    %v2370 = vrot.slane %v2332, 6
    %v2371 = vrot.slane %v2333, 6
    %v2372 = vrot.slane %v2334, 6
    %v2373 = vsel %vm214, %v2370, %v2372
    %v2374 = vrot.slane %v2335, 6
    %v2375 = vsel %vm214, %v2371, %v2374
    %v2382 = vrot.slane %v2364, 4
    %v2383 = vrot.slane %v2368, 4
    %v2384 = vrot.slane %v2365, 4
    %v2385 = vsel %vm357, %v2382, %v2384
    %v2386 = vrot.slane %v2369, 4
    %v2387 = vsel %vm357, %v2383, %v2386
    %v2392 = vsel %vm214, %v2355, %v2370
    %v2393 = vsel %vm214, %v2349, %v2371
    %v2394 = vsel %vm357, %v2373, %v2382
    %v2395 = vsel %vm357, %v2375, %v2383
    %v2396 = vpack.c.bf16 %v2392, %v2354
    %v2397 = vpack.c.bf16 %v2393, %v2348
    %v2398 = vpack.c.bf16 %v2385, %v2394
    %v2399 = vpack.c.bf16 %v2387, %v2395
    %v2401 = vsel %vm385, %v2398, 0
    %v2404 = vsel %vm385, %v2399, 0
    %2406 = vmatprep.subr.bf16.mxu0 %v2397
    %2407 = vmatpush1.bf16.msra.mxu0 %v2396
    %2408 = vmatprep.subr.bf16.mxu0 %v2404
    %2409 = vmatpush1.bf16.msra.mxu0 %v2401
    %2410 = vmatprep.subr.bf16.mxu0 0
    %2411 = vmatpush1.bf16.msra.mxu0 0
    %2412 = vmatprep.subr.bf16.mxu0 0
    %2413 = vmatpush1.bf16.msra.mxu0 0
    %2414 = vmatprep.subr.bf16.mxu0 0
    %2415 = vmatpush1.bf16.msra.mxu0 0
    %2416 = vmatprep.subr.bf16.mxu0 0
    %2417 = vmatpush1.bf16.msra.mxu0 0
    %2418 = vmatprep.subr.bf16.mxu0 0
    %2419 = vmatpush1.bf16.msra.mxu0 0
    %2420 = vmatprep.subr.bf16.mxu0 0
    %2421 = vmatpush1.bf16.msra.mxu0 0
    %2422 = vmatprep.subr.bf16.mxu0 0
    %2423 = vmatpush1.bf16.msra.mxu0 0
    %2424 = vmatprep.subr.bf16.mxu0 0
    %2425 = vmatpush1.bf16.msra.mxu0 0
    %2426 = vmatprep.subr.bf16.mxu0 0
    %2427 = vmatpush1.bf16.msra.mxu0 0
    %2428 = vmatprep.subr.bf16.mxu0 0
    %2429 = vmatpush1.bf16.msra.mxu0 0
    %2430 = vmatprep.subr.bf16.mxu0 0
    %2431 = vmatpush1.bf16.msra.mxu0 0
    %2432 = vmatprep.subr.bf16.mxu0 0
    %2433 = vmatpush1.bf16.msra.mxu0 0
    %2434 = vmatprep.subr.bf16.mxu0 0
    %2435 = vmatpush1.bf16.msra.mxu0 0
    %2436 = vmatprep.subr.bf16.mxu0 0
    %2437 = vmatpush1.bf16.msra.mxu0 0
    %2438 = vmatprep.mubr.bf16.mxu0 0
    %2439 = vmatmul.mubr.bf16.gmra.mrb[0].mxu0 %v847
    %v2440 = vpop.f32.mrb[0].mxu0
    %v2441 = vadd.f32 0.0, %v2440
    %v2442 = vpop.f32.mrb[0].mxu0
    %v2443 = vadd.f32 0.0, %v2442
    %v2444 = vpop.f32.mrb[0].mxu0
    %v2445 = vadd.f32 0.0, %v2444
    %v2446 = vpop.f32.mrb[0].mxu0
    %v2447 = vadd.f32 0.0, %v2446
    %2448 = vdwg.mxu0
    %v2449 = vmul.f32 %v2441, %v901
    %v2450 = vmul.f32 %v2443, %v901
    %v2451 = vmul.f32 %v2445, %v906
    %v2452 = vmul.f32 %v2447, %v906
    %v2453 = vadd.f32 %v2449, %v915
    %v2454 = vadd.f32 %v2450, %v915
    %v2455 = vadd.f32 %v2451, %v920
    %v2456 = vadd.f32 %v2452, %v920
    %v2457 = vadd.f32 %v2453, %v2207
    %v2458 = vadd.f32 %v2454, %v2208
    %v2459 = vadd.f32 %v2455, %v2209
    %v2460 = vadd.f32 %v2456, %v2210
    %v2461 = vmax.f32 %v2457, 0.0
    %v2462 = vmax.f32 %v2458, 0.0
    %v2463 = vmax.f32 %v2459, 0.0
    %v2464 = vmax.f32 %v2460, 0.0
    %2469 = vrot.lane.b32.xlu0 %v2461, 1
    %v2470 = vpop.permute.xlu0 %2469
    %2471 = vrot.lane.b32.xlu0 %v2462, 1
    %v2472 = vpop.permute.xlu0 %2471
    %2473 = vrot.lane.b32.xlu0 %v2463, 1
    %v2474 = vpop.permute.xlu0 %2473
    %2475 = vrot.lane.b32.xlu0 %v2464, 1
    %v2476 = vpop.permute.xlu0 %2475
    %v2477 = vsel %vm190, %v2470, %v2472
    %v2478 = vsel %vm190, %v2474, %v2476
    %v2483 = vsel %vm190, 0.0, %v2470
    %v2484 = vsel %vm190, 0.0, %v2474
    %2485 = vrot.lane.b32.xlu0 %v2461, 127
    %v2486 = vpop.permute.xlu0 %2485
    %2487 = vrot.lane.b32.xlu0 %v2462, 127
    %v2488 = vpop.permute.xlu0 %2487
    %2489 = vrot.lane.b32.xlu0 %v2463, 127
    %v2490 = vpop.permute.xlu0 %2489
    %2491 = vrot.lane.b32.xlu0 %v2464, 127
    %v2492 = vpop.permute.xlu0 %2491
    %v2493 = vsel %vm199, %v2486, %v2488
    %v2494 = vsel %vm199, %v2490, %v2492
    %v2497 = vsel %vm202, %v2488, 0.0
    %v2498 = vsel %vm202, %v2492, 0.0
    %v2499 = vrot.slane %v2461, 6
    %v2500 = vrot.slane %v2462, 6
    %v2501 = vrot.slane %v2463, 6
    %v2502 = vsel %vm214, %v2499, %v2501
    %v2503 = vrot.slane %v2464, 6
    %v2504 = vsel %vm214, %v2500, %v2503
    %v2511 = vrot.slane %v2493, 4
    %v2512 = vrot.slane %v2497, 4
    %v2513 = vrot.slane %v2494, 4
    %v2514 = vsel %vm357, %v2511, %v2513
    %v2515 = vrot.slane %v2498, 4
    %v2516 = vsel %vm357, %v2512, %v2515
    %v2521 = vsel %vm214, %v2484, %v2499
    %v2522 = vsel %vm214, %v2478, %v2500
    %v2523 = vsel %vm357, %v2502, %v2511
    %v2524 = vsel %vm357, %v2504, %v2512
    %v2525 = vpack.c.bf16 %v2521, %v2483
    %v2526 = vpack.c.bf16 %v2522, %v2477
    %v2527 = vpack.c.bf16 %v2514, %v2523
    %v2528 = vpack.c.bf16 %v2516, %v2524
    %v2530 = vsel %vm385, %v2527, 0
    %v2533 = vsel %vm385, %v2528, 0
    %2535 = vmatprep.subr.bf16.mxu0 %v2526
    %2536 = vmatpush1.bf16.msra.mxu0 %v2525
    %2537 = vmatprep.subr.bf16.mxu0 %v2533
    %2538 = vmatpush1.bf16.msra.mxu0 %v2530
    %2539 = vmatprep.subr.bf16.mxu0 0
    %2540 = vmatpush1.bf16.msra.mxu0 0
    %2541 = vmatprep.subr.bf16.mxu0 0
    %2542 = vmatpush1.bf16.msra.mxu0 0
    %2543 = vmatprep.subr.bf16.mxu0 0
    %2544 = vmatpush1.bf16.msra.mxu0 0
    %2545 = vmatprep.subr.bf16.mxu0 0
    %2546 = vmatpush1.bf16.msra.mxu0 0
    %2547 = vmatprep.subr.bf16.mxu0 0
    %2548 = vmatpush1.bf16.msra.mxu0 0
    %2549 = vmatprep.subr.bf16.mxu0 0
    %2550 = vmatpush1.bf16.msra.mxu0 0
    %2551 = vmatprep.subr.bf16.mxu0 0
    %2552 = vmatpush1.bf16.msra.mxu0 0
    %2553 = vmatprep.subr.bf16.mxu0 0
    %2554 = vmatpush1.bf16.msra.mxu0 0
    %2555 = vmatprep.subr.bf16.mxu0 0
    %2556 = vmatpush1.bf16.msra.mxu0 0
    %2557 = vmatprep.subr.bf16.mxu0 0
    %2558 = vmatpush1.bf16.msra.mxu0 0
    %2559 = vmatprep.subr.bf16.mxu0 0
    %2560 = vmatpush1.bf16.msra.mxu0 0
    %2561 = vmatprep.subr.bf16.mxu0 0
    %2562 = vmatpush1.bf16.msra.mxu0 0
    %2563 = vmatprep.subr.bf16.mxu0 0
    %2564 = vmatpush1.bf16.msra.mxu0 0
    %2565 = vmatprep.subr.bf16.mxu0 0
    %2566 = vmatpush1.bf16.msra.mxu0 0
    %2567 = vmatprep.mubr.bf16.mxu0 0
    %2568 = vmatmul.mubr.bf16.gmra.mrb[0].mxu0 %v1004
    %v2569 = vpop.f32.mrb[0].mxu0
    %v2570 = vadd.f32 0.0, %v2569
    %v2571 = vpop.f32.mrb[0].mxu0
    %v2572 = vadd.f32 0.0, %v2571
    %v2573 = vpop.f32.mrb[0].mxu0
    %v2574 = vadd.f32 0.0, %v2573
    %v2575 = vpop.f32.mrb[0].mxu0
    %v2576 = vadd.f32 0.0, %v2575
    %2577 = vdwg.mxu0
    %v2578 = vmul.f32 %v2570, %v1058
    %v2579 = vmul.f32 %v2572, %v1058
    %v2580 = vmul.f32 %v2574, %v1063
    %v2581 = vmul.f32 %v2576, %v1063
    %v2582 = vadd.f32 %v2578, %v1072
    %v2583 = vadd.f32 %v2579, %v1072
    %v2584 = vadd.f32 %v2580, %v1077
    %v2585 = vadd.f32 %v2581, %v1077
    %v2586 = vmax.f32 %v2582, 0.0
    %v2587 = vmax.f32 %v2583, 0.0
    %v2588 = vmax.f32 %v2584, 0.0
    %v2589 = vmax.f32 %v2585, 0.0
    %2594 = vrot.lane.b32.xlu0 %v2586, 1
    %v2595 = vpop.permute.xlu0 %2594
    %2596 = vrot.lane.b32.xlu0 %v2587, 1
    %v2597 = vpop.permute.xlu0 %2596
    %2598 = vrot.lane.b32.xlu0 %v2588, 1
    %v2599 = vpop.permute.xlu0 %2598
    %2600 = vrot.lane.b32.xlu0 %v2589, 1
    %v2601 = vpop.permute.xlu0 %2600
    %v2602 = vsel %vm190, %v2595, %v2597
    %v2603 = vsel %vm190, %v2599, %v2601
    %v2608 = vsel %vm190, 0.0, %v2595
    %v2609 = vsel %vm190, 0.0, %v2599
    %2610 = vrot.lane.b32.xlu0 %v2586, 127
    %v2611 = vpop.permute.xlu0 %2610
    %2612 = vrot.lane.b32.xlu0 %v2587, 127
    %v2613 = vpop.permute.xlu0 %2612
    %2614 = vrot.lane.b32.xlu0 %v2588, 127
    %v2615 = vpop.permute.xlu0 %2614
    %2616 = vrot.lane.b32.xlu0 %v2589, 127
    %v2617 = vpop.permute.xlu0 %2616
    %v2618 = vsel %vm199, %v2611, %v2613
    %v2619 = vsel %vm199, %v2615, %v2617
    %v2622 = vsel %vm202, %v2613, 0.0
    %v2623 = vsel %vm202, %v2617, 0.0
    %v2624 = vrot.slane %v2586, 6
    %v2625 = vrot.slane %v2587, 6
    %v2626 = vrot.slane %v2588, 6
    %v2627 = vsel %vm214, %v2624, %v2626
    %v2628 = vrot.slane %v2589, 6
    %v2629 = vsel %vm214, %v2625, %v2628
    %v2636 = vrot.slane %v2618, 4
    %v2637 = vrot.slane %v2622, 4
    %v2638 = vrot.slane %v2619, 4
    %v2639 = vsel %vm357, %v2636, %v2638
    %v2640 = vrot.slane %v2623, 4
    %v2641 = vsel %vm357, %v2637, %v2640
    %v2646 = vsel %vm214, %v2609, %v2624
    %v2647 = vsel %vm214, %v2603, %v2625
    %v2648 = vsel %vm357, %v2627, %v2636
    %v2649 = vsel %vm357, %v2629, %v2637
    %v2650 = vpack.c.bf16 %v2646, %v2608
    %v2651 = vpack.c.bf16 %v2647, %v2602
    %v2652 = vpack.c.bf16 %v2639, %v2648
    %v2653 = vpack.c.bf16 %v2641, %v2649
    %v2655 = vsel %vm385, %v2652, 0
    %v2658 = vsel %vm385, %v2653, 0
    %2660 = vmatprep.subr.bf16.mxu0 %v2651
    %2661 = vmatpush1.bf16.msra.mxu0 %v2650
    %2662 = vmatprep.subr.bf16.mxu0 %v2658
    %2663 = vmatpush1.bf16.msra.mxu0 %v2655
    %2664 = vmatprep.subr.bf16.mxu0 0
    %2665 = vmatpush1.bf16.msra.mxu0 0
    %2666 = vmatprep.subr.bf16.mxu0 0
    %2667 = vmatpush1.bf16.msra.mxu0 0
    %2668 = vmatprep.subr.bf16.mxu0 0
    %2669 = vmatpush1.bf16.msra.mxu0 0
    %2670 = vmatprep.subr.bf16.mxu0 0
    %2671 = vmatpush1.bf16.msra.mxu0 0
    %2672 = vmatprep.subr.bf16.mxu0 0
    %2673 = vmatpush1.bf16.msra.mxu0 0
    %2674 = vmatprep.subr.bf16.mxu0 0
    %2675 = vmatpush1.bf16.msra.mxu0 0
    %2676 = vmatprep.subr.bf16.mxu0 0
    %2677 = vmatpush1.bf16.msra.mxu0 0
    %2678 = vmatprep.subr.bf16.mxu0 0
    %2679 = vmatpush1.bf16.msra.mxu0 0
    %2680 = vmatprep.subr.bf16.mxu0 0
    %2681 = vmatpush1.bf16.msra.mxu0 0
    %2682 = vmatprep.subr.bf16.mxu0 0
    %2683 = vmatpush1.bf16.msra.mxu0 0
    %2684 = vmatprep.subr.bf16.mxu0 0
    %2685 = vmatpush1.bf16.msra.mxu0 0
    %2686 = vmatprep.subr.bf16.mxu0 0
    %2687 = vmatpush1.bf16.msra.mxu0 0
    %2688 = vmatprep.subr.bf16.mxu0 0
    %2689 = vmatpush1.bf16.msra.mxu0 0
    %2690 = vmatprep.subr.bf16.mxu0 0
    %2691 = vmatpush1.bf16.msra.mxu0 0
    %2692 = vmatprep.mubr.bf16.mxu0 0
    %2693 = vmatmul.mubr.bf16.gmra.mrb[0].mxu0 %v1157
    %v2694 = vpop.f32.mrb[0].mxu0
    %v2695 = vadd.f32 0.0, %v2694
    %v2696 = vpop.f32.mrb[0].mxu0
    %v2697 = vadd.f32 0.0, %v2696
    %v2698 = vpop.f32.mrb[0].mxu0
    %v2699 = vadd.f32 0.0, %v2698
    %v2700 = vpop.f32.mrb[0].mxu0
    %v2701 = vadd.f32 0.0, %v2700
    %2702 = vdwg.mxu0
    %v2703 = vmul.f32 %v2695, %v1211
    %v2704 = vmul.f32 %v2697, %v1211
    %v2705 = vmul.f32 %v2699, %v1216
    %v2706 = vmul.f32 %v2701, %v1216
    %v2707 = vadd.f32 %v2703, %v1225
    %v2708 = vadd.f32 %v2704, %v1225
    %v2709 = vadd.f32 %v2705, %v1230
    %v2710 = vadd.f32 %v2706, %v1230
    %v2711 = vadd.f32 %v2707, %v2461
    %v2712 = vadd.f32 %v2708, %v2462
    %v2713 = vadd.f32 %v2709, %v2463
    %v2714 = vadd.f32 %v2710, %v2464
    %v2715 = vmax.f32 %v2711, 0.0
    %v2716 = vmax.f32 %v2712, 0.0
    %v2717 = vmax.f32 %v2713, 0.0
    %v2718 = vmax.f32 %v2714, 0.0
    %2723 = vrot.lane.b32.xlu0 %v2715, 1
    %v2724 = vpop.permute.xlu0 %2723
    %2725 = vrot.lane.b32.xlu0 %v2716, 1
    %v2726 = vpop.permute.xlu0 %2725
    %2727 = vrot.lane.b32.xlu0 %v2717, 1
    %v2728 = vpop.permute.xlu0 %2727
    %2729 = vrot.lane.b32.xlu0 %v2718, 1
    %v2730 = vpop.permute.xlu0 %2729
    %v2731 = vsel %vm190, %v2724, %v2726
    %v2732 = vsel %vm190, %v2728, %v2730
    %v2737 = vsel %vm190, 0.0, %v2724
    %v2738 = vsel %vm190, 0.0, %v2728
    %2739 = vrot.lane.b32.xlu0 %v2715, 127
    %v2740 = vpop.permute.xlu0 %2739
    %2741 = vrot.lane.b32.xlu0 %v2716, 127
    %v2742 = vpop.permute.xlu0 %2741
    %2743 = vrot.lane.b32.xlu0 %v2717, 127
    %v2744 = vpop.permute.xlu0 %2743
    %2745 = vrot.lane.b32.xlu0 %v2718, 127
    %v2746 = vpop.permute.xlu0 %2745
    %v2747 = vsel %vm199, %v2740, %v2742
    %v2748 = vsel %vm199, %v2744, %v2746
    %v2751 = vsel %vm202, %v2742, 0.0
    %v2752 = vsel %vm202, %v2746, 0.0
    %v2753 = vrot.slane %v2715, 6
    %v2754 = vrot.slane %v2716, 6
    %v2755 = vrot.slane %v2717, 6
    %v2756 = vsel %vm214, %v2753, %v2755
    %v2757 = vrot.slane %v2718, 6
    %v2758 = vsel %vm214, %v2754, %v2757
    %v2765 = vrot.slane %v2747, 4
    %v2766 = vrot.slane %v2751, 4
    %v2767 = vrot.slane %v2748, 4
    %v2768 = vsel %vm357, %v2765, %v2767
    %v2769 = vrot.slane %v2752, 4
    %v2770 = vsel %vm357, %v2766, %v2769
    %v2775 = vsel %vm214, %v2738, %v2753
    %v2776 = vsel %vm214, %v2732, %v2754
    %v2777 = vsel %vm357, %v2756, %v2765
    %v2778 = vsel %vm357, %v2758, %v2766
    %v2779 = vpack.c.bf16 %v2775, %v2737
    %v2780 = vpack.c.bf16 %v2776, %v2731
    %v2781 = vpack.c.bf16 %v2768, %v2777
    %v2782 = vpack.c.bf16 %v2770, %v2778
    %v2784 = vsel %vm385, %v2781, 0
    %v2787 = vsel %vm385, %v2782, 0
    %2789 = vmatprep.subr.bf16.mxu0 %v2780
    %2790 = vmatpush1.bf16.msra.mxu0 %v2779
    %2791 = vmatprep.subr.bf16.mxu0 %v2787
    %2792 = vmatpush1.bf16.msra.mxu0 %v2784
    %2793 = vmatprep.subr.bf16.mxu0 0
    %2794 = vmatpush1.bf16.msra.mxu0 0
    %2795 = vmatprep.subr.bf16.mxu0 0
    %2796 = vmatpush1.bf16.msra.mxu0 0
    %2797 = vmatprep.subr.bf16.mxu0 0
    %2798 = vmatpush1.bf16.msra.mxu0 0
    %2799 = vmatprep.subr.bf16.mxu0 0
    %2800 = vmatpush1.bf16.msra.mxu0 0
    %2801 = vmatprep.subr.bf16.mxu0 0
    %2802 = vmatpush1.bf16.msra.mxu0 0
    %2803 = vmatprep.subr.bf16.mxu0 0
    %2804 = vmatpush1.bf16.msra.mxu0 0
    %2805 = vmatprep.subr.bf16.mxu0 0
    %2806 = vmatpush1.bf16.msra.mxu0 0
    %2807 = vmatprep.subr.bf16.mxu0 0
    %2808 = vmatpush1.bf16.msra.mxu0 0
    %2809 = vmatprep.subr.bf16.mxu0 0
    %2810 = vmatpush1.bf16.msra.mxu0 0
    %2811 = vmatprep.subr.bf16.mxu0 0
    %2812 = vmatpush1.bf16.msra.mxu0 0
    %2813 = vmatprep.subr.bf16.mxu0 0
    %2814 = vmatpush1.bf16.msra.mxu0 0
    %2815 = vmatprep.subr.bf16.mxu0 0
    %2816 = vmatpush1.bf16.msra.mxu0 0
    %2817 = vmatprep.subr.bf16.mxu0 0
    %2818 = vmatpush1.bf16.msra.mxu0 0
    %2819 = vmatprep.subr.bf16.mxu0 0
    %2820 = vmatpush1.bf16.msra.mxu0 0
    %2821 = vmatprep.mubr.bf16.mxu0 0
    %2822 = vmatmul.mubr.bf16.gmra.mrb[0].mxu0 %v1314
    %v2823 = vpop.f32.mrb[0].mxu0
    %v2824 = vadd.f32 0.0, %v2823
    %v2825 = vpop.f32.mrb[0].mxu0
    %v2826 = vadd.f32 0.0, %v2825
    %v2827 = vpop.f32.mrb[0].mxu0
    %v2828 = vadd.f32 0.0, %v2827
    %v2829 = vpop.f32.mrb[0].mxu0
    %v2830 = vadd.f32 0.0, %v2829
    %2831 = vdwg.mxu0
    %v2832 = vmul.f32 %v2824, %v1368
    %v2833 = vmul.f32 %v2826, %v1368
    %v2834 = vmul.f32 %v2828, %v1373
    %v2835 = vmul.f32 %v2830, %v1373
    %v2836 = vadd.f32 %v2832, %v1382
    %v2837 = vadd.f32 %v2833, %v1382
    %v2838 = vadd.f32 %v2834, %v1387
    %v2839 = vadd.f32 %v2835, %v1387
    %v2840 = vmax.f32 %v2836, 0.0
    %v2841 = vmax.f32 %v2837, 0.0
    %v2842 = vmax.f32 %v2838, 0.0
    %v2843 = vmax.f32 %v2839, 0.0
    %2848 = vrot.lane.b32.xlu0 %v2840, 1
    %v2849 = vpop.permute.xlu0 %2848
    %2850 = vrot.lane.b32.xlu0 %v2841, 1
    %v2851 = vpop.permute.xlu0 %2850
    %2852 = vrot.lane.b32.xlu0 %v2842, 1
    %v2853 = vpop.permute.xlu0 %2852
    %2854 = vrot.lane.b32.xlu0 %v2843, 1
    %v2855 = vpop.permute.xlu0 %2854
    %v2856 = vsel %vm190, %v2849, %v2851
    %v2857 = vsel %vm190, %v2853, %v2855
    %v2862 = vsel %vm190, 0.0, %v2849
    %v2863 = vsel %vm190, 0.0, %v2853
    %2864 = vrot.lane.b32.xlu0 %v2840, 127
    %v2865 = vpop.permute.xlu0 %2864
    %2866 = vrot.lane.b32.xlu0 %v2841, 127
    %v2867 = vpop.permute.xlu0 %2866
    %2868 = vrot.lane.b32.xlu0 %v2842, 127
    %v2869 = vpop.permute.xlu0 %2868
    %2870 = vrot.lane.b32.xlu0 %v2843, 127
    %v2871 = vpop.permute.xlu0 %2870
    %v2872 = vsel %vm199, %v2865, %v2867
    %v2873 = vsel %vm199, %v2869, %v2871
    %v2876 = vsel %vm202, %v2867, 0.0
    %v2877 = vsel %vm202, %v2871, 0.0
    %v2878 = vrot.slane %v2840, 6
    %v2879 = vrot.slane %v2841, 6
    %v2880 = vrot.slane %v2842, 6
    %v2881 = vsel %vm214, %v2878, %v2880
    %v2882 = vrot.slane %v2843, 6
    %v2883 = vsel %vm214, %v2879, %v2882
    %v2890 = vrot.slane %v2872, 4
    %v2891 = vrot.slane %v2876, 4
    %v2892 = vrot.slane %v2873, 4
    %v2893 = vsel %vm357, %v2890, %v2892
    %v2894 = vrot.slane %v2877, 4
    %v2895 = vsel %vm357, %v2891, %v2894
    %v2900 = vsel %vm214, %v2863, %v2878
    %v2901 = vsel %vm214, %v2857, %v2879
    %v2902 = vsel %vm357, %v2881, %v2890
    %v2903 = vsel %vm357, %v2883, %v2891
    %v2904 = vpack.c.bf16 %v2900, %v2862
    %v2905 = vpack.c.bf16 %v2901, %v2856
    %v2906 = vpack.c.bf16 %v2893, %v2902
    %v2907 = vpack.c.bf16 %v2895, %v2903
    %v2909 = vsel %vm385, %v2906, 0
    %v2912 = vsel %vm385, %v2907, 0
    %2914 = vmatprep.subr.bf16.mxu0 %v2905
    %2915 = vmatpush1.bf16.msra.mxu0 %v2904
    %2916 = vmatprep.subr.bf16.mxu0 %v2912
    %2917 = vmatpush1.bf16.msra.mxu0 %v2909
    %2918 = vmatprep.subr.bf16.mxu0 0
    %2919 = vmatpush1.bf16.msra.mxu0 0
    %2920 = vmatprep.subr.bf16.mxu0 0
    %2921 = vmatpush1.bf16.msra.mxu0 0
    %2922 = vmatprep.subr.bf16.mxu0 0
    %2923 = vmatpush1.bf16.msra.mxu0 0
    %2924 = vmatprep.subr.bf16.mxu0 0
    %2925 = vmatpush1.bf16.msra.mxu0 0
    %2926 = vmatprep.subr.bf16.mxu0 0
    %2927 = vmatpush1.bf16.msra.mxu0 0
    %2928 = vmatprep.subr.bf16.mxu0 0
    %2929 = vmatpush1.bf16.msra.mxu0 0
    %2930 = vmatprep.subr.bf16.mxu0 0
    %2931 = vmatpush1.bf16.msra.mxu0 0
    %2932 = vmatprep.subr.bf16.mxu0 0
    %2933 = vmatpush1.bf16.msra.mxu0 0
    %2934 = vmatprep.subr.bf16.mxu0 0
    %2935 = vmatpush1.bf16.msra.mxu0 0
    %2936 = vmatprep.subr.bf16.mxu0 0
    %2937 = vmatpush1.bf16.msra.mxu0 0
    %2938 = vmatprep.subr.bf16.mxu0 0
    %2939 = vmatpush1.bf16.msra.mxu0 0
    %2940 = vmatprep.subr.bf16.mxu0 0
    %2941 = vmatpush1.bf16.msra.mxu0 0
    %2942 = vmatprep.subr.bf16.mxu0 0
    %2943 = vmatpush1.bf16.msra.mxu0 0
    %2944 = vmatprep.subr.bf16.mxu0 0
    %2945 = vmatpush1.bf16.msra.mxu0 0
    %2946 = vmatprep.mubr.bf16.mxu0 0
    %2947 = vmatmul.mubr.bf16.gmra.mrb[0].mxu0 %v1467
    %v2948 = vpop.f32.mrb[0].mxu0
    %v2949 = vadd.f32 0.0, %v2948
    %v2950 = vpop.f32.mrb[0].mxu0
    %v2951 = vadd.f32 0.0, %v2950
    %v2952 = vpop.f32.mrb[0].mxu0
    %v2953 = vadd.f32 0.0, %v2952
    %v2954 = vpop.f32.mrb[0].mxu0
    %v2955 = vadd.f32 0.0, %v2954
    %2956 = vdwg.mxu0
    %v2957 = vmul.f32 %v2949, %v1521
    %v2958 = vmul.f32 %v2951, %v1521
    %v2959 = vmul.f32 %v2953, %v1526
    %v2960 = vmul.f32 %v2955, %v1526
    %v2961 = vadd.f32 %v2957, %v1535
    %v2962 = vadd.f32 %v2958, %v1535
    %v2963 = vadd.f32 %v2959, %v1540
    %v2964 = vadd.f32 %v2960, %v1540
    %v2965 = vadd.f32 %v2961, %v2715
    %v2966 = vadd.f32 %v2962, %v2716
    %v2967 = vadd.f32 %v2963, %v2717
    %v2968 = vadd.f32 %v2964, %v2718
    %v2969 = vmax.f32 %v2965, 0.0
    %v2970 = vmax.f32 %v2966, 0.0
    %v2971 = vmax.f32 %v2967, 0.0
    %v2972 = vmax.f32 %v2968, 0.0
    %2977 = vrot.lane.b32.xlu0 %v2969, 127
    %v2978 = vpop.permute.xlu0 %2977
    %2979 = vrot.lane.b32.xlu0 %v2970, 127
    %v2980 = vpop.permute.xlu0 %2979
    %2981 = vrot.lane.b32.xlu0 %v2971, 127
    %v2982 = vpop.permute.xlu0 %2981
    %2983 = vrot.lane.b32.xlu0 %v2972, 127
    %v2984 = vpop.permute.xlu0 %2983
    %v2985 = vsel %vm199, %v2978, %v2980
    %v2986 = vsel %vm199, %v2982, %v2984
    %v2991 = vsel %vm202, %v2980, 0.0
    %v2992 = vsel %vm202, %v2984, 0.0
    %v2993 = vmax.f32 %v2969, %v2985
    %v2994 = vmax.f32 %v2970, %v2991
    %v2995 = vmax.f32 %v2971, %v2986
    %v2996 = vmax.f32 %v2972, %v2992
    %v2997 = vpack.c.bf16 %v2995, %v2993
    %v2998 = vpack.c.bf16 %v2996, %v2994
    %v3000 = vsel %vm1655, %v2998, 0
    %3002 = vmatprep.subr.bf16.mxu0 0
    %3003 = vmatpush1.bf16.msra.mxu0 %v1630
    %3004 = vmatprep.subr.bf16.mxu0 0
    %3005 = vmatpush1.bf16.msra.mxu0 %v1631
    %3006 = vmatprep.subr.bf16.mxu0 0
    %3007 = vmatpush1.bf16.msra.mxu0 %v1632
    %3008 = vmatprep.subr.bf16.mxu0 0
    %3009 = vmatpush1.bf16.msra.mxu0 %v1633
    %3010 = vmatprep.subr.bf16.mxu0 0
    %3011 = vmatpush1.bf16.msra.mxu0 %v1634
    %3012 = vmatprep.subr.bf16.mxu0 0
    %3013 = vmatpush1.bf16.msra.mxu0 %v1635
    %3014 = vmatprep.subr.bf16.mxu0 0
    %3015 = vmatpush1.bf16.msra.mxu0 %v1636
    %3016 = vmatprep.subr.bf16.mxu0 0
    %3017 = vmatpush1.bf16.msra.mxu0 %v1637
    %3018 = vmatprep.subr.bf16.mxu0 0
    %3019 = vmatpush1.bf16.msra.mxu0 %v1638
    %3020 = vmatprep.subr.bf16.mxu0 0
    %3021 = vmatpush1.bf16.msra.mxu0 %v1639
    %3022 = vmatprep.subr.bf16.mxu0 0
    %3023 = vmatpush1.bf16.msra.mxu0 %v1640
    %3024 = vmatprep.subr.bf16.mxu0 0
    %3025 = vmatpush1.bf16.msra.mxu0 %v1641
    %3026 = vmatprep.subr.bf16.mxu0 0
    %3027 = vmatpush1.bf16.msra.mxu0 %v1660
    %3028 = vmatprep.subr.bf16.mxu0 0
    %3029 = vmatpush1.bf16.msra.mxu0 0
    %3030 = vmatprep.subr.bf16.mxu0 0
    %3031 = vmatpush1.bf16.msra.mxu0 0
    %3032 = vmatprep.subr.bf16.mxu0 0
    %3033 = vmatpush1.bf16.msra.mxu0 0
    %3034 = vmatprep.mubr.bf16.mxu0 %v3000
    %3035 = vmatmul.mubr.bf16.gmra.mrb[0].mxu0 %v2997
    %v3036 = vpop.f32.mrb[0].mxu0
    %v3037 = vadd.f32 0.0, %v3036
    %v3038 = vpop.f32.mrb[0].mxu0
    %v3039 = vpop.f32.mrb[0].mxu0
    %v3040 = vadd.f32 0.0, %v3039
    %v3041 = vpop.f32.mrb[0].mxu0
    %3042 = vdwg.mxu0
    %3045 = vrot.lane.b32.xlu0 %v3037, 1
    %v3046 = vpop.permute.xlu0 %3045
    %3047 = vrot.lane.b32.xlu0 %v3040, 1
    %v3048 = vpop.permute.xlu0 %3047
    %v3051 = vsel %vm190, 0.0, %v3046
    %v3052 = vsel %vm190, 0.0, %v3048
    %3053 = vrot.lane.b32.xlu0 %v3037, 127
    %v3054 = vpop.permute.xlu0 %3053
    %3055 = vrot.lane.b32.xlu0 %v3040, 127
    %v3056 = vpop.permute.xlu0 %3055
    %v3059 = vsel %vm1719, %v3054, 0.0
    %v3060 = vsel %vm1719, %v3056, 0.0
    %v3061 = vrot.slane %v3037, 6
    %v3062 = vrot.slane %v3040, 6
    %v3063 = vsel %vm214, %v3061, %v3062
    %v3068 = vrot.slane %v3059, 4
    %v3069 = vrot.slane %v3060, 4
    %v3070 = vsel %vm357, %v3068, %v3069
    %v3073 = vsel %vm214, %v3052, %v3061
    %v3074 = vsel %vm357, %v3063, %v3068
    %v3075 = vpack.c.bf16 %v3073, %v3051
    %v3076 = vpack.c.bf16 %v3070, %v3074
    %v3078 = vsel %vm385, %v3076, 0
    %3080 = vmatprep.subr.bf16.mxu0 0
    %3081 = vmatpush1.bf16.msra.mxu0 %v3075
    %3082 = vmatprep.subr.bf16.mxu0 0
    %3083 = vmatpush1.bf16.msra.mxu0 %v3078
    %3084 = vmatprep.subr.bf16.mxu0 0
    %3085 = vmatpush1.bf16.msra.mxu0 0
    %3086 = vmatprep.subr.bf16.mxu0 0
    %3087 = vmatpush1.bf16.msra.mxu0 0
    %3088 = vmatprep.subr.bf16.mxu0 0
    %3089 = vmatpush1.bf16.msra.mxu0 0
    %3090 = vmatprep.subr.bf16.mxu0 0
    %3091 = vmatpush1.bf16.msra.mxu0 0
    %3092 = vmatprep.subr.bf16.mxu0 0
    %3093 = vmatpush1.bf16.msra.mxu0 0
    %3094 = vmatprep.subr.bf16.mxu0 0
    %3095 = vmatpush1.bf16.msra.mxu0 0
    %3096 = vmatprep.subr.bf16.mxu0 0
    %3097 = vmatpush1.bf16.msra.mxu0 0
    %3098 = vmatprep.subr.bf16.mxu0 0
    %3099 = vmatpush1.bf16.msra.mxu0 0
    %3100 = vmatprep.subr.bf16.mxu0 0
    %3101 = vmatpush1.bf16.msra.mxu0 0
    %3102 = vmatprep.subr.bf16.mxu0 0
    %3103 = vmatpush1.bf16.msra.mxu0 0
    %3104 = vmatprep.subr.bf16.mxu0 0
    %3105 = vmatpush1.bf16.msra.mxu0 0
    %3106 = vmatprep.subr.bf16.mxu0 0
    %3107 = vmatpush1.bf16.msra.mxu0 0
    %3108 = vmatprep.subr.bf16.mxu0 0
    %3109 = vmatpush1.bf16.msra.mxu0 0
    %3110 = vmatprep.subr.bf16.mxu0 0
    %3111 = vmatpush1.bf16.msra.mxu0 0
    %3112 = vmatprep.mubr.bf16.mxu0 0
    %3113 = vmatmul.mubr.bf16.gmra.mrb[0].mxu0 %v1747
    %v3114 = vpop.f32.mrb[0].mxu0
    %v3115 = vadd.f32 0.0, %v3114
    %v3116 = vpop.f32.mrb[0].mxu0
    %v3117 = vpop.f32.mrb[0].mxu0
    %v3118 = vadd.f32 0.0, %v3117
    %v3119 = vpop.f32.mrb[0].mxu0
    %3120 = vmatprep.mubr.bf16.mxu0 0
    %3121 = vmatmul.mubr.bf16.gmra.mrb[0].mxu0 %v1750
    %v3122 = vpop.f32.mrb[0].mxu0
    %v3123 = vadd.f32 0.0, %v3122
    %v3124 = vpop.f32.mrb[0].mxu0
    %v3125 = vpop.f32.mrb[0].mxu0
    %v3126 = vpop.f32.mrb[0].mxu0
    %3127 = vdwg.mxu0
    %v3128 = vmul.f32 %v3115, %v1806
    %v3129 = vmul.f32 %v3118, %v1811
    %v3130 = vmul.f32 %v3123, %v1816
    %v3131 = vadd.f32 %v3128, %v1824
    %v3132 = vadd.f32 %v3129, %v1829
    %v3133 = vadd.f32 %v3130, %v1834
    %v3134 = vmax.f32 %v3131, 0.0
    %v3135 = vmax.f32 %v3132, 0.0
    %v3136 = vmax.f32 %v3133, 0.0
    %v3137 = vpack.c.bf16 %v3135, %v3134
    %v3138 = vpack.c.bf16 %v3136, %v3136
    %v3141 = vunpack.c.l.b16 %v3137
    %v3142 = vunpack.c.h.b16 %v3137
    %v3143 = vunpack.c.l.b16 %v3138
    %v3144 = vpack.c.b16 %v3141, %v3141
    %v3145 = vpack.c.b16 %v3142, %v3142
    %v3146 = vpack.c.b16 %v3143, %v3143
    %s3150 = scalar_lea.vmem %s11, 12
    %3151 = vst.msk [vmem:[%s3150] sm:$0xf] %vm1855, %v3144
    %3152 = vst.msk [vmem:[%s3150 + $0x4] sm:$0xf] %vm1855, %v3145
    %3153 = vst.msk [vmem:[%s3150 + $0x8] sm:$0x3] %vm1858, %v3146
    // Predicated region
    $region54: #{resnet_forward.2} parent=1 // pred_check
      _
    $region55: #{resnet_forward.2} parent=1 // pred_check_branch
      %3155 = sbr.rel (0) target = $region57
    $region56: #{resnet_forward.2} parent=1 // pred_region
      _
    $region57: #{resnet_forward.2} parent=1 // pred_fallthru
      _
    // Predicated region
    $region58: #{resnet_forward.2} parent=1 // pred_check
      _
    $region59: #{resnet_forward.2} parent=1 // pred_check_branch
      %3157 = sbr.rel (0) target = $region61
    $region60: #{resnet_forward.2} parent=1 // pred_region
      _
    $region61: #{resnet_forward.2} parent=1 // pred_fallthru
      _
    %3158 = vsyncpa [#allocation3], 1
    %3159 = vsyncpa [#allocation5], 1

// kernel: resnet_forward.3
$region0: #{resnet_forward.3}
  #allocation0 [shape = 'u32[]', space=smem, size = 0x4, offset = 0x4, fixed_abs, tag = 'smem constant byte address 0x4 - core index']
  #allocation1 [shape = 'u32[144,128]{1,0:T(1,128)}', space=vmem, size = 0x12000, scoped, tag = 'internal scratch']
  %s0 = inlined_call_operand.vmem [shape: bf16[2,2000], index: 0, kind: input, shape index: {}]
  %s1 = inlined_call_operand.vmem [shape: bf16[2000,300], index: 1, kind: input, shape index: {}]
  %s2 = inlined_call_operand.vmem [shape: f32[1,300], index: 2, kind: input, shape index: {}]
  %s3 = inlined_call_operand.vmem [shape: bf16[300,2], index: 3, kind: input, shape index: {}]
  %s4 = inlined_call_operand.vmem [shape: f32[1,2], index: 4, kind: input, shape index: {}]
  %s5 = inlined_call_operand.vmem [shape: f32[2,2], index: 5, kind: output, shape index: {}]
  %s6 = sld [smem:[#allocation0]]
  $region30: #{resnet_forward.3} parent=0
    _
  %s8 = ssub.s32 1, %s6
  %s9 = scalar_select 0, %s8, %s6
  // Predicated region
  $region2: #{resnet_forward.3} parent=0 // pred_check
    _
  $region3: #{resnet_forward.3} parent=0 // pred_check_branch
    %11 = sbr.rel (0) target = $region5
  $region4: #{resnet_forward.3} parent=0 // pred_region
    _
  $region5: #{resnet_forward.3} parent=0 // pred_fallthru
    _
  // Predicated region
  $region6: #{resnet_forward.3} parent=0 // pred_check
    _
  $region7: #{resnet_forward.3} parent=0 // pred_check_branch
    %13 = sbr.rel (0) target = $region9
  $region8: #{resnet_forward.3} parent=0 // pred_region
    _
  $region9: #{resnet_forward.3} parent=0 // pred_fallthru
    _
  // Predicated region
  $region10: #{resnet_forward.3} parent=0 // pred_check
    _
  $region11: #{resnet_forward.3} parent=0 // pred_check_branch
    %15 = sbr.rel (0) target = $region13
  $region12: #{resnet_forward.3} parent=0 // pred_region
    _
  $region13: #{resnet_forward.3} parent=0 // pred_fallthru
    _
  // Predicated region
  $region14: #{resnet_forward.3} parent=0 // pred_check
    _
  $region15: #{resnet_forward.3} parent=0 // pred_check_branch
    %17 = sbr.rel (0) target = $region17
  $region16: #{resnet_forward.3} parent=0 // pred_region
    _
  $region17: #{resnet_forward.3} parent=0 // pred_fallthru
    _
  // Predicated region
  $region18: #{resnet_forward.3} parent=0 // pred_check
    _
  $region19: #{resnet_forward.3} parent=0 // pred_check_branch
    %19 = sbr.rel (0) target = $region21
  $region20: #{resnet_forward.3} parent=0 // pred_region
    _
  $region21: #{resnet_forward.3} parent=0 // pred_fallthru
    _
  %v21 = vld [vmem:[%s0] sm:$0xff]
  %v22 = vld [vmem:[%s0 + $0x8] sm:$0xff]
  %v23 = vld [vmem:[%s1] sm:$0xff]
  %v24 = vld [vmem:[%s1 + $0x8] sm:$0xf]
  %v25 = vld [vmem:[%s1 + $0xc] sm:$0xff]
  %v26 = vld [vmem:[%s1 + $0x14] sm:$0xf]
  %v27 = vld [vmem:[%s1 + $0x18] sm:$0xff]
  %v28 = vld [vmem:[%s1 + $0x20] sm:$0xf]
  %v29 = vld [vmem:[%s1 + $0x24] sm:$0xff]
  %v30 = vld [vmem:[%s1 + $0x2c] sm:$0xf]
  %v31 = vld [vmem:[%s1 + $0x30] sm:$0xff]
  %v32 = vld [vmem:[%s1 + $0x38] sm:$0xf]
  %v33 = vld [vmem:[%s1 + $0x3c] sm:$0xff]
  %v34 = vld [vmem:[%s1 + $0x44] sm:$0xf]
  %v35 = vld [vmem:[%s1 + $0x48] sm:$0xff]
  %v36 = vld [vmem:[%s1 + $0x50] sm:$0xf]
  %v37 = vld [vmem:[%s1 + $0x54] sm:$0xff]
  %v38 = vld [vmem:[%s1 + $0x5c] sm:$0xf]
  %v39 = vld [vmem:[%s1 + $0x60] sm:$0xff]
  %v40 = vld [vmem:[%s1 + $0x68] sm:$0xf]
  %v41 = vld [vmem:[%s1 + $0x6c] sm:$0xff]
  %v42 = vld [vmem:[%s1 + $0x74] sm:$0xf]
  %v43 = vld [vmem:[%s1 + $0x78] sm:$0xff]
  %v44 = vld [vmem:[%s1 + $0x80] sm:$0xf]
  %v45 = vld [vmem:[%s1 + $0x84] sm:$0xff]
  %v46 = vld [vmem:[%s1 + $0x8c] sm:$0xf]
  %v47 = vld [vmem:[%s1 + $0x90] sm:$0xff]
  %v48 = vld [vmem:[%s1 + $0x98] sm:$0xf]
  %v49 = vld [vmem:[%s1 + $0x9c] sm:$0xff]
  %v50 = vld [vmem:[%s1 + $0xa4] sm:$0xf]
  %v51 = vld [vmem:[%s1 + $0xa8] sm:$0xff]
  %v52 = vld [vmem:[%s1 + $0xb0] sm:$0xf]
  %v53 = vld [vmem:[%s1 + $0xb4] sm:$0xff]
  %v54 = vld [vmem:[%s1 + $0xbc] sm:$0xf]
  %v55 = vld [vmem:[%s1 + $0xc0] sm:$0xff]
  %v56 = vld [vmem:[%s1 + $0xc8] sm:$0xf]
  %v57 = vld [vmem:[%s1 + $0xcc] sm:$0xff]
  %v58 = vld [vmem:[%s1 + $0xd4] sm:$0xf]
  %v59 = vld [vmem:[%s1 + $0xd8] sm:$0xff]
  %v60 = vld [vmem:[%s1 + $0xe0] sm:$0xf]
  %v61 = vld [vmem:[%s1 + $0xe4] sm:$0xff]
  %v62 = vld [vmem:[%s1 + $0xec] sm:$0xf]
  %v63 = vld [vmem:[%s1 + $0xf0] sm:$0xff]
  %v64 = vld [vmem:[%s1 + $0xf8] sm:$0xf]
  %v65 = vld [vmem:[%s1 + $0xfc] sm:$0xff]
  %v66 = vld [vmem:[%s1 + $0x104] sm:$0xf]
  %v67 = vld [vmem:[%s1 + $0x108] sm:$0xff]
  %v68 = vld [vmem:[%s1 + $0x110] sm:$0xf]
  %v69 = vld [vmem:[%s1 + $0x114] sm:$0xff]
  %v70 = vld [vmem:[%s1 + $0x11c] sm:$0xf]
  %v71 = vld [vmem:[%s1 + $0x120] sm:$0xff]
  %v72 = vld [vmem:[%s1 + $0x128] sm:$0xf]
  %v73 = vld [vmem:[%s1 + $0x12c] sm:$0xff]
  %v74 = vld [vmem:[%s1 + $0x134] sm:$0xf]
  %v75 = vld [vmem:[%s1 + $0x138] sm:$0xff]
  %v76 = vld [vmem:[%s1 + $0x140] sm:$0xf]
  %v77 = vld [vmem:[%s1 + $0x144] sm:$0xff]
  %v78 = vld [vmem:[%s1 + $0x14c] sm:$0xf]
  %v79 = vld [vmem:[%s1 + $0x150] sm:$0xff]
  %v80 = vld [vmem:[%s1 + $0x158] sm:$0xf]
  %v81 = vld [vmem:[%s1 + $0x15c] sm:$0xff]
  %v82 = vld [vmem:[%s1 + $0x164] sm:$0xf]
  %v83 = vld [vmem:[%s1 + $0x168] sm:$0xff]
  %v84 = vld [vmem:[%s1 + $0x170] sm:$0xf]
  %v85 = vld [vmem:[%s1 + $0x174] sm:$0xff]
  %v86 = vld [vmem:[%s1 + $0x17c] sm:$0xf]
  %v87 = vld [vmem:[%s1 + $0x180] sm:$0xff]
  %v88 = vld [vmem:[%s1 + $0x188] sm:$0xf]
  %v89 = vld [vmem:[%s1 + $0x18c] sm:$0xff]
  %v90 = vld [vmem:[%s1 + $0x194] sm:$0xf]
  %v91 = vld [vmem:[%s1 + $0x198] sm:$0xff]
  %v92 = vld [vmem:[%s1 + $0x1a0] sm:$0xf]
  %v93 = vld [vmem:[%s1 + $0x1a4] sm:$0xff]
  %v94 = vld [vmem:[%s1 + $0x1ac] sm:$0xf]
  %v95 = vld [vmem:[%s1 + $0x1b0] sm:$0xff]
  %v96 = vld [vmem:[%s1 + $0x1b8] sm:$0xf]
  %v97 = vld [vmem:[%s1 + $0x1bc] sm:$0xff]
  %v98 = vld [vmem:[%s1 + $0x1c4] sm:$0xf]
  %v99 = vld [vmem:[%s1 + $0x1c8] sm:$0xff]
  %v100 = vld [vmem:[%s1 + $0x1d0] sm:$0xf]
  %v101 = vld [vmem:[%s1 + $0x1d4] sm:$0xff]
  %v102 = vld [vmem:[%s1 + $0x1dc] sm:$0xf]
  %v103 = vld [vmem:[%s1 + $0x1e0] sm:$0xff]
  %v104 = vld [vmem:[%s1 + $0x1e8] sm:$0xf]
  %v105 = vld [vmem:[%s1 + $0x1ec] sm:$0xff]
  %v106 = vld [vmem:[%s1 + $0x1f4] sm:$0xf]
  %v107 = vld [vmem:[%s1 + $0x1f8] sm:$0xff]
  %v108 = vld [vmem:[%s1 + $0x200] sm:$0xf]
  %v109 = vld [vmem:[%s1 + $0x204] sm:$0xff]
  %v110 = vld [vmem:[%s1 + $0x20c] sm:$0xf]
  %v111 = vld [vmem:[%s1 + $0x210] sm:$0xff]
  %v112 = vld [vmem:[%s1 + $0x218] sm:$0xf]
  %v113 = vld [vmem:[%s1 + $0x21c] sm:$0xff]
  %v114 = vld [vmem:[%s1 + $0x224] sm:$0xf]
  %v115 = vld [vmem:[%s1 + $0x228] sm:$0xff]
  %v116 = vld [vmem:[%s1 + $0x230] sm:$0xf]
  %v117 = vld [vmem:[%s1 + $0x234] sm:$0xff]
  %v118 = vld [vmem:[%s1 + $0x23c] sm:$0xf]
  %v119 = vld [vmem:[%s1 + $0x240] sm:$0xff]
  %v120 = vld [vmem:[%s1 + $0x248] sm:$0xf]
  %v121 = vld [vmem:[%s1 + $0x24c] sm:$0xff]
  %v122 = vld [vmem:[%s1 + $0x254] sm:$0xf]
  %v123 = vld [vmem:[%s1 + $0x258] sm:$0xff]
  %v124 = vld [vmem:[%s1 + $0x260] sm:$0xf]
  %v125 = vld [vmem:[%s1 + $0x264] sm:$0xff]
  %v126 = vld [vmem:[%s1 + $0x26c] sm:$0xf]
  %v127 = vld [vmem:[%s1 + $0x270] sm:$0xff]
  %v128 = vld [vmem:[%s1 + $0x278] sm:$0xf]
  %v129 = vld [vmem:[%s1 + $0x27c] sm:$0xff]
  %v130 = vld [vmem:[%s1 + $0x284] sm:$0xf]
  %v131 = vld [vmem:[%s1 + $0x288] sm:$0xff]
  %v132 = vld [vmem:[%s1 + $0x290] sm:$0xf]
  %v133 = vld [vmem:[%s1 + $0x294] sm:$0xff]
  %v134 = vld [vmem:[%s1 + $0x29c] sm:$0xf]
  %v135 = vld [vmem:[%s1 + $0x2a0] sm:$0xff]
  %v136 = vld [vmem:[%s1 + $0x2a8] sm:$0xf]
  %v137 = vld [vmem:[%s1 + $0x2ac] sm:$0xff]
  %v138 = vld [vmem:[%s1 + $0x2b4] sm:$0xf]
  %v139 = vld [vmem:[%s1 + $0x2b8] sm:$0xff]
  %v140 = vld [vmem:[%s1 + $0x2c0] sm:$0xf]
  %v141 = vld [vmem:[%s1 + $0x2c4] sm:$0xff]
  %v142 = vld [vmem:[%s1 + $0x2cc] sm:$0xf]
  %v143 = vld [vmem:[%s1 + $0x2d0] sm:$0xff]
  %v144 = vld [vmem:[%s1 + $0x2d8] sm:$0xf]
  %v145 = vld [vmem:[%s1 + $0x2dc] sm:$0xff]
  %v146 = vld [vmem:[%s1 + $0x2e4] sm:$0xf]
  %v147 = vld [vmem:[%s1 + $0x2e8] sm:$0xff]
  %v148 = vld [vmem:[%s1 + $0x2f0] sm:$0xf]
  %v149 = vld [vmem:[%s1 + $0x2f4] sm:$0xff]
  %v150 = vld [vmem:[%s1 + $0x2fc] sm:$0xf]
  %v151 = vld [vmem:[%s1 + $0x300] sm:$0xff]
  %v152 = vld [vmem:[%s1 + $0x308] sm:$0xf]
  %v153 = vld [vmem:[%s1 + $0x30c] sm:$0xff]
  %v154 = vld [vmem:[%s1 + $0x314] sm:$0xf]
  %v155 = vld [vmem:[%s1 + $0x318] sm:$0xff]
  %v156 = vld [vmem:[%s1 + $0x320] sm:$0xf]
  %v157 = vld [vmem:[%s1 + $0x324] sm:$0xff]
  %v158 = vld [vmem:[%s1 + $0x32c] sm:$0xf]
  %v159 = vld [vmem:[%s1 + $0x330] sm:$0xff]
  %v160 = vld [vmem:[%s1 + $0x338] sm:$0xf]
  %v161 = vld [vmem:[%s1 + $0x33c] sm:$0xff]
  %v162 = vld [vmem:[%s1 + $0x344] sm:$0xf]
  %v163 = vld [vmem:[%s1 + $0x348] sm:$0xff]
  %v164 = vld [vmem:[%s1 + $0x350] sm:$0xf]
  %v165 = vld [vmem:[%s1 + $0x354] sm:$0xff]
  %v166 = vld [vmem:[%s1 + $0x35c] sm:$0xf]
  %v167 = vld [vmem:[%s1 + $0x360] sm:$0xff]
  %v168 = vld [vmem:[%s1 + $0x368] sm:$0xf]
  %v169 = vld [vmem:[%s1 + $0x36c] sm:$0xff]
  %v170 = vld [vmem:[%s1 + $0x374] sm:$0xf]
  %v171 = vld [vmem:[%s1 + $0x378] sm:$0xff]
  %v172 = vld [vmem:[%s1 + $0x380] sm:$0xf]
  %v173 = vld [vmem:[%s1 + $0x384] sm:$0xff]
  %v174 = vld [vmem:[%s1 + $0x38c] sm:$0xf]
  %v175 = vld [vmem:[%s1 + $0x390] sm:$0xff]
  %v176 = vld [vmem:[%s1 + $0x398] sm:$0xf]
  %v177 = vld [vmem:[%s1 + $0x39c] sm:$0xff]
  %v178 = vld [vmem:[%s1 + $0x3a4] sm:$0xf]
  %v179 = vld [vmem:[%s1 + $0x3a8] sm:$0xff]
  %v180 = vld [vmem:[%s1 + $0x3b0] sm:$0xf]
  %v181 = vld [vmem:[%s1 + $0x3b4] sm:$0xff]
  %v182 = vld [vmem:[%s1 + $0x3bc] sm:$0xf]
  %v183 = vld [vmem:[%s1 + $0x3c0] sm:$0xff]
  %v184 = vld [vmem:[%s1 + $0x3c8] sm:$0xf]
  %v185 = vld [vmem:[%s1 + $0x3cc] sm:$0xff]
  %v186 = vld [vmem:[%s1 + $0x3d4] sm:$0xf]
  %v187 = vld [vmem:[%s1 + $0x3d8] sm:$0xff]
  %v188 = vld [vmem:[%s1 + $0x3e0] sm:$0xf]
  %v189 = vld [vmem:[%s1 + $0x3e4] sm:$0xff]
  %v190 = vld [vmem:[%s1 + $0x3ec] sm:$0xf]
  %v191 = vld [vmem:[%s1 + $0x3f0] sm:$0xff]
  %v192 = vld [vmem:[%s1 + $0x3f8] sm:$0xf]
  %v193 = vld [vmem:[%s1 + $0x3fc] sm:$0xff]
  %v194 = vld [vmem:[%s1 + $0x404] sm:$0xf]
  %v195 = vld [vmem:[%s1 + $0x408] sm:$0xff]
  %v196 = vld [vmem:[%s1 + $0x410] sm:$0xf]
  %v197 = vld [vmem:[%s1 + $0x414] sm:$0xff]
  %v198 = vld [vmem:[%s1 + $0x41c] sm:$0xf]
  %v199 = vld [vmem:[%s1 + $0x420] sm:$0xff]
  %v200 = vld [vmem:[%s1 + $0x428] sm:$0xf]
  %v201 = vld [vmem:[%s1 + $0x42c] sm:$0xff]
  %v202 = vld [vmem:[%s1 + $0x434] sm:$0xf]
  %v203 = vld [vmem:[%s1 + $0x438] sm:$0xff]
  %v204 = vld [vmem:[%s1 + $0x440] sm:$0xf]
  %v205 = vld [vmem:[%s1 + $0x444] sm:$0xff]
  %v206 = vld [vmem:[%s1 + $0x44c] sm:$0xf]
  %v207 = vld [vmem:[%s1 + $0x450] sm:$0xff]
  %v208 = vld [vmem:[%s1 + $0x458] sm:$0xf]
  %v209 = vld [vmem:[%s1 + $0x45c] sm:$0xff]
  %v210 = vld [vmem:[%s1 + $0x464] sm:$0xf]
  %v211 = vld [vmem:[%s1 + $0x468] sm:$0xff]
  %v212 = vld [vmem:[%s1 + $0x470] sm:$0xf]
  %v213 = vld [vmem:[%s1 + $0x474] sm:$0xff]
  %v214 = vld [vmem:[%s1 + $0x47c] sm:$0xf]
  %v215 = vld [vmem:[%s1 + $0x480] sm:$0xff]
  %v216 = vld [vmem:[%s1 + $0x488] sm:$0xf]
  %v217 = vld [vmem:[%s1 + $0x48c] sm:$0xff]
  %v218 = vld [vmem:[%s1 + $0x494] sm:$0xf]
  %v219 = vld [vmem:[%s1 + $0x498] sm:$0xff]
  %v220 = vld [vmem:[%s1 + $0x4a0] sm:$0xf]
  %v221 = vld [vmem:[%s1 + $0x4a4] sm:$0xff]
  %v222 = vld [vmem:[%s1 + $0x4ac] sm:$0xf]
  %v223 = vld [vmem:[%s1 + $0x4b0] sm:$0xff]
  %v224 = vld [vmem:[%s1 + $0x4b8] sm:$0xf]
  %v225 = vld [vmem:[%s1 + $0x4bc] sm:$0xff]
  %v226 = vld [vmem:[%s1 + $0x4c4] sm:$0xf]
  %v227 = vld [vmem:[%s1 + $0x4c8] sm:$0xff]
  %v228 = vld [vmem:[%s1 + $0x4d0] sm:$0xf]
  %v229 = vld [vmem:[%s1 + $0x4d4] sm:$0xff]
  %v230 = vld [vmem:[%s1 + $0x4dc] sm:$0xf]
  %v231 = vld [vmem:[%s1 + $0x4e0] sm:$0xff]
  %v232 = vld [vmem:[%s1 + $0x4e8] sm:$0xf]
  %v233 = vld [vmem:[%s1 + $0x4ec] sm:$0xff]
  %v234 = vld [vmem:[%s1 + $0x4f4] sm:$0xf]
  %v235 = vld [vmem:[%s1 + $0x4f8] sm:$0xff]
  %v236 = vld [vmem:[%s1 + $0x500] sm:$0xf]
  %v237 = vld [vmem:[%s1 + $0x504] sm:$0xff]
  %v238 = vld [vmem:[%s1 + $0x50c] sm:$0xf]
  %v239 = vld [vmem:[%s1 + $0x510] sm:$0xff]
  %v240 = vld [vmem:[%s1 + $0x518] sm:$0xf]
  %v241 = vld [vmem:[%s1 + $0x51c] sm:$0xff]
  %v242 = vld [vmem:[%s1 + $0x524] sm:$0xf]
  %v243 = vld [vmem:[%s1 + $0x528] sm:$0xff]
  %v244 = vld [vmem:[%s1 + $0x530] sm:$0xf]
  %v245 = vld [vmem:[%s1 + $0x534] sm:$0xff]
  %v246 = vld [vmem:[%s1 + $0x53c] sm:$0xf]
  %v247 = vld [vmem:[%s1 + $0x540] sm:$0xff]
  %v248 = vld [vmem:[%s1 + $0x548] sm:$0xf]
  %v249 = vld [vmem:[%s1 + $0x54c] sm:$0xff]
  %v250 = vld [vmem:[%s1 + $0x554] sm:$0xf]
  %v251 = vld [vmem:[%s1 + $0x558] sm:$0xff]
  %v252 = vld [vmem:[%s1 + $0x560] sm:$0xf]
  %v253 = vld [vmem:[%s1 + $0x564] sm:$0xff]
  %v254 = vld [vmem:[%s1 + $0x56c] sm:$0xf]
  %v255 = vld [vmem:[%s1 + $0x570] sm:$0xff]
  %v256 = vld [vmem:[%s1 + $0x578] sm:$0xf]
  %v257 = vld [vmem:[%s1 + $0x57c] sm:$0xff]
  %v258 = vld [vmem:[%s1 + $0x584] sm:$0xf]
  %v259 = vld [vmem:[%s1 + $0x588] sm:$0xff]
  %v260 = vld [vmem:[%s1 + $0x590] sm:$0xf]
  %v261 = vld [vmem:[%s1 + $0x594] sm:$0xff]
  %v262 = vld [vmem:[%s1 + $0x59c] sm:$0xf]
  %v263 = vld [vmem:[%s1 + $0x5a0] sm:$0xff]
  %v264 = vld [vmem:[%s1 + $0x5a8] sm:$0xf]
  %v265 = vld [vmem:[%s1 + $0x5ac] sm:$0xff]
  %v266 = vld [vmem:[%s1 + $0x5b4] sm:$0xf]
  %v267 = vld [vmem:[%s1 + $0x5b8] sm:$0xff]
  %v268 = vld [vmem:[%s1 + $0x5c0] sm:$0xf]
  %v269 = vld [vmem:[%s1 + $0x5c4] sm:$0xff]
  %v270 = vld [vmem:[%s1 + $0x5cc] sm:$0xf]
  %v271 = vld [vmem:[%s1 + $0x5d0] sm:$0xff]
  %v272 = vld [vmem:[%s1 + $0x5d8] sm:$0xf]
  %v273 = vld [vmem:[%s1 + $0x5dc] sm:$0xff]
  %v274 = vld [vmem:[%s1 + $0x5e4] sm:$0xf]
  %v275 = vld [vmem:[%s1 + $0x5e8] sm:$0xff]
  %v276 = vld [vmem:[%s1 + $0x5f0] sm:$0xf]
  %v277 = vld [vmem:[%s1 + $0x5f4] sm:$0xff]
  %v278 = vld [vmem:[%s1 + $0x5fc] sm:$0xf]
  %v279 = vld [vmem:[%s1 + $0x600] sm:$0xff]
  %v280 = vld [vmem:[%s1 + $0x608] sm:$0xf]
  %v281 = vld [vmem:[%s1 + $0x60c] sm:$0xff]
  %v282 = vld [vmem:[%s1 + $0x614] sm:$0xf]
  %v283 = vld [vmem:[%s1 + $0x618] sm:$0xff]
  %v284 = vld [vmem:[%s1 + $0x620] sm:$0xf]
  %v285 = vld [vmem:[%s1 + $0x624] sm:$0xff]
  %v286 = vld [vmem:[%s1 + $0x62c] sm:$0xf]
  %v287 = vld [vmem:[%s1 + $0x630] sm:$0xff]
  %v288 = vld [vmem:[%s1 + $0x638] sm:$0xf]
  %v289 = vld [vmem:[%s1 + $0x63c] sm:$0xff]
  %v290 = vld [vmem:[%s1 + $0x644] sm:$0xf]
  %v291 = vld [vmem:[%s1 + $0x648] sm:$0xff]
  %v292 = vld [vmem:[%s1 + $0x650] sm:$0xf]
  %v293 = vld [vmem:[%s1 + $0x654] sm:$0xff]
  %v294 = vld [vmem:[%s1 + $0x65c] sm:$0xf]
  %v295 = vld [vmem:[%s1 + $0x660] sm:$0xff]
  %v296 = vld [vmem:[%s1 + $0x668] sm:$0xf]
  %v297 = vld [vmem:[%s1 + $0x66c] sm:$0xff]
  %v298 = vld [vmem:[%s1 + $0x674] sm:$0xf]
  %v299 = vld [vmem:[%s1 + $0x678] sm:$0xff]
  %v300 = vld [vmem:[%s1 + $0x680] sm:$0xf]
  %v301 = vld [vmem:[%s1 + $0x684] sm:$0xff]
  %v302 = vld [vmem:[%s1 + $0x68c] sm:$0xf]
  %v303 = vld [vmem:[%s1 + $0x690] sm:$0xff]
  %v304 = vld [vmem:[%s1 + $0x698] sm:$0xf]
  %v305 = vld [vmem:[%s1 + $0x69c] sm:$0xff]
  %v306 = vld [vmem:[%s1 + $0x6a4] sm:$0xf]
  %v307 = vld [vmem:[%s1 + $0x6a8] sm:$0xff]
  %v308 = vld [vmem:[%s1 + $0x6b0] sm:$0xf]
  %v309 = vld [vmem:[%s1 + $0x6b4] sm:$0xff]
  %v310 = vld [vmem:[%s1 + $0x6bc] sm:$0xf]
  %v311 = vld [vmem:[%s1 + $0x6c0] sm:$0xff]
  %v312 = vld [vmem:[%s1 + $0x6c8] sm:$0xf]
  %v313 = vld [vmem:[%s1 + $0x6cc] sm:$0xff]
  %v314 = vld [vmem:[%s1 + $0x6d4] sm:$0xf]
  %v315 = vld [vmem:[%s1 + $0x6d8] sm:$0xff]
  %v316 = vld [vmem:[%s1 + $0x6e0] sm:$0xf]
  %v317 = vld [vmem:[%s1 + $0x6e4] sm:$0xff]
  %v318 = vld [vmem:[%s1 + $0x6ec] sm:$0xf]
  %v319 = vld [vmem:[%s1 + $0x6f0] sm:$0xff]
  %v320 = vld [vmem:[%s1 + $0x6f8] sm:$0xf]
  %v321 = vld [vmem:[%s1 + $0x6fc] sm:$0xff]
  %v322 = vld [vmem:[%s1 + $0x704] sm:$0xf]
  %v323 = vld [vmem:[%s1 + $0x708] sm:$0xff]
  %v324 = vld [vmem:[%s1 + $0x710] sm:$0xf]
  %v325 = vld [vmem:[%s1 + $0x714] sm:$0xff]
  %v326 = vld [vmem:[%s1 + $0x71c] sm:$0xf]
  %v327 = vld [vmem:[%s1 + $0x720] sm:$0xff]
  %v328 = vld [vmem:[%s1 + $0x728] sm:$0xf]
  %v329 = vld [vmem:[%s1 + $0x72c] sm:$0xff]
  %v330 = vld [vmem:[%s1 + $0x734] sm:$0xf]
  %v331 = vld [vmem:[%s1 + $0x738] sm:$0xff]
  %v332 = vld [vmem:[%s1 + $0x740] sm:$0xf]
  %v333 = vld [vmem:[%s1 + $0x744] sm:$0xff]
  %v334 = vld [vmem:[%s1 + $0x74c] sm:$0xf]
  %v335 = vld [vmem:[%s1 + $0x750] sm:$0xff]
  %v336 = vld [vmem:[%s1 + $0x758] sm:$0xf]
  %v337 = vld [vmem:[%s1 + $0x75c] sm:$0xff]
  %v338 = vld [vmem:[%s1 + $0x764] sm:$0xf]
  %v339 = vld [vmem:[%s1 + $0x768] sm:$0xff]
  %v340 = vld [vmem:[%s1 + $0x770] sm:$0xf]
  %v341 = vld [vmem:[%s1 + $0x774] sm:$0xff]
  %v342 = vld [vmem:[%s1 + $0x77c] sm:$0xf]
  %v343 = vld [vmem:[%s1 + $0x780] sm:$0xff]
  %v344 = vld [vmem:[%s1 + $0x788] sm:$0xf]
  %v345 = vld [vmem:[%s1 + $0x78c] sm:$0xff]
  %v346 = vld [vmem:[%s1 + $0x794] sm:$0xf]
  %v347 = vld [vmem:[%s1 + $0x798] sm:$0xff]
  %v348 = vld [vmem:[%s1 + $0x7a0] sm:$0xf]
  %v349 = vld [vmem:[%s1 + $0x7a4] sm:$0xff]
  %v350 = vld [vmem:[%s1 + $0x7ac] sm:$0xf]
  %v351 = vld [vmem:[%s1 + $0x7b0] sm:$0xff]
  %v352 = vld [vmem:[%s1 + $0x7b8] sm:$0xf]
  %v353 = vld [vmem:[%s1 + $0x7bc] sm:$0xff]
  %v354 = vld [vmem:[%s1 + $0x7c4] sm:$0xf]
  %v355 = vld [vmem:[%s1 + $0x7c8] sm:$0xff]
  %v356 = vld [vmem:[%s1 + $0x7d0] sm:$0xf]
  %v357 = vld [vmem:[%s1 + $0x7d4] sm:$0xff]
  %v358 = vld [vmem:[%s1 + $0x7dc] sm:$0xf]
  %v359 = vld [vmem:[%s1 + $0x7e0] sm:$0xff]
  %v360 = vld [vmem:[%s1 + $0x7e8] sm:$0xf]
  %v361 = vld [vmem:[%s1 + $0x7ec] sm:$0xff]
  %v362 = vld [vmem:[%s1 + $0x7f4] sm:$0xf]
  %v363 = vld [vmem:[%s1 + $0x7f8] sm:$0xff]
  %v364 = vld [vmem:[%s1 + $0x800] sm:$0xf]
  %v365 = vld [vmem:[%s1 + $0x804] sm:$0xff]
  %v366 = vld [vmem:[%s1 + $0x80c] sm:$0xf]
  %v367 = vld [vmem:[%s1 + $0x810] sm:$0xff]
  %v368 = vld [vmem:[%s1 + $0x818] sm:$0xf]
  %v369 = vld [vmem:[%s1 + $0x81c] sm:$0xff]
  %v370 = vld [vmem:[%s1 + $0x824] sm:$0xf]
  %v371 = vld [vmem:[%s1 + $0x828] sm:$0xff]
  %v372 = vld [vmem:[%s1 + $0x830] sm:$0xf]
  %v373 = vld [vmem:[%s1 + $0x834] sm:$0xff]
  %v374 = vld [vmem:[%s1 + $0x83c] sm:$0xf]
  %v375 = vld [vmem:[%s1 + $0x840] sm:$0xff]
  %v376 = vld [vmem:[%s1 + $0x848] sm:$0xf]
  %v377 = vld [vmem:[%s1 + $0x84c] sm:$0xff]
  %v378 = vld [vmem:[%s1 + $0x854] sm:$0xf]
  %v379 = vld [vmem:[%s1 + $0x858] sm:$0xff]
  %v380 = vld [vmem:[%s1 + $0x860] sm:$0xf]
  %v381 = vld [vmem:[%s1 + $0x864] sm:$0xff]
  %v382 = vld [vmem:[%s1 + $0x86c] sm:$0xf]
  %v383 = vld [vmem:[%s1 + $0x870] sm:$0xff]
  %v384 = vld [vmem:[%s1 + $0x878] sm:$0xf]
  %v385 = vld [vmem:[%s1 + $0x87c] sm:$0xff]
  %v386 = vld [vmem:[%s1 + $0x884] sm:$0xf]
  %v387 = vld [vmem:[%s1 + $0x888] sm:$0xff]
  %v388 = vld [vmem:[%s1 + $0x890] sm:$0xf]
  %v389 = vld [vmem:[%s1 + $0x894] sm:$0xff]
  %v390 = vld [vmem:[%s1 + $0x89c] sm:$0xf]
  %v391 = vld [vmem:[%s1 + $0x8a0] sm:$0xff]
  %v392 = vld [vmem:[%s1 + $0x8a8] sm:$0xf]
  %v393 = vld [vmem:[%s1 + $0x8ac] sm:$0xff]
  %v394 = vld [vmem:[%s1 + $0x8b4] sm:$0xf]
  %v395 = vld [vmem:[%s1 + $0x8b8] sm:$0xff]
  %v396 = vld [vmem:[%s1 + $0x8c0] sm:$0xf]
  %v397 = vld [vmem:[%s1 + $0x8c4] sm:$0xff]
  %v398 = vld [vmem:[%s1 + $0x8cc] sm:$0xf]
  %v399 = vld [vmem:[%s1 + $0x8d0] sm:$0xff]
  %v400 = vld [vmem:[%s1 + $0x8d8] sm:$0xf]
  %v401 = vld [vmem:[%s1 + $0x8dc] sm:$0xff]
  %v402 = vld [vmem:[%s1 + $0x8e4] sm:$0xf]
  %v403 = vld [vmem:[%s1 + $0x8e8] sm:$0xff]
  %v404 = vld [vmem:[%s1 + $0x8f0] sm:$0xf]
  %v405 = vld [vmem:[%s1 + $0x8f4] sm:$0xff]
  %v406 = vld [vmem:[%s1 + $0x8fc] sm:$0xf]
  %v407 = vld [vmem:[%s1 + $0x900] sm:$0xff]
  %v408 = vld [vmem:[%s1 + $0x908] sm:$0xf]
  %v409 = vld [vmem:[%s1 + $0x90c] sm:$0xff]
  %v410 = vld [vmem:[%s1 + $0x914] sm:$0xf]
  %v411 = vld [vmem:[%s1 + $0x918] sm:$0xff]
  %v412 = vld [vmem:[%s1 + $0x920] sm:$0xf]
  %v413 = vld [vmem:[%s1 + $0x924] sm:$0xff]
  %v414 = vld [vmem:[%s1 + $0x92c] sm:$0xf]
  %v415 = vld [vmem:[%s1 + $0x930] sm:$0xff]
  %v416 = vld [vmem:[%s1 + $0x938] sm:$0xf]
  %v417 = vld [vmem:[%s1 + $0x93c] sm:$0xff]
  %v418 = vld [vmem:[%s1 + $0x944] sm:$0xf]
  %v419 = vld [vmem:[%s1 + $0x948] sm:$0xff]
  %v420 = vld [vmem:[%s1 + $0x950] sm:$0xf]
  %v421 = vld [vmem:[%s1 + $0x954] sm:$0xff]
  %v422 = vld [vmem:[%s1 + $0x95c] sm:$0xf]
  %v423 = vld [vmem:[%s1 + $0x960] sm:$0xff]
  %v424 = vld [vmem:[%s1 + $0x968] sm:$0xf]
  %v425 = vld [vmem:[%s1 + $0x96c] sm:$0xff]
  %v426 = vld [vmem:[%s1 + $0x974] sm:$0xf]
  %v427 = vld [vmem:[%s1 + $0x978] sm:$0xff]
  %v428 = vld [vmem:[%s1 + $0x980] sm:$0xf]
  %v429 = vld [vmem:[%s1 + $0x984] sm:$0xff]
  %v430 = vld [vmem:[%s1 + $0x98c] sm:$0xf]
  %v431 = vld [vmem:[%s1 + $0x990] sm:$0xff]
  %v432 = vld [vmem:[%s1 + $0x998] sm:$0xf]
  %v433 = vld [vmem:[%s1 + $0x99c] sm:$0xff]
  %v434 = vld [vmem:[%s1 + $0x9a4] sm:$0xf]
  %v435 = vld [vmem:[%s1 + $0x9a8] sm:$0xff]
  %v436 = vld [vmem:[%s1 + $0x9b0] sm:$0xf]
  %v437 = vld [vmem:[%s1 + $0x9b4] sm:$0xff]
  %v438 = vld [vmem:[%s1 + $0x9bc] sm:$0xf]
  %v439 = vld [vmem:[%s1 + $0x9c0] sm:$0xff]
  %v440 = vld [vmem:[%s1 + $0x9c8] sm:$0xf]
  %v441 = vld [vmem:[%s1 + $0x9cc] sm:$0xff]
  %v442 = vld [vmem:[%s1 + $0x9d4] sm:$0xf]
  %v443 = vld [vmem:[%s1 + $0x9d8] sm:$0xff]
  %v444 = vld [vmem:[%s1 + $0x9e0] sm:$0xf]
  %v445 = vld [vmem:[%s1 + $0x9e4] sm:$0xff]
  %v446 = vld [vmem:[%s1 + $0x9ec] sm:$0xf]
  %v447 = vld [vmem:[%s1 + $0x9f0] sm:$0xff]
  %v448 = vld [vmem:[%s1 + $0x9f8] sm:$0xf]
  %v449 = vld [vmem:[%s1 + $0x9fc] sm:$0xff]
  %v450 = vld [vmem:[%s1 + $0xa04] sm:$0xf]
  %v451 = vld [vmem:[%s1 + $0xa08] sm:$0xff]
  %v452 = vld [vmem:[%s1 + $0xa10] sm:$0xf]
  %v453 = vld [vmem:[%s1 + $0xa14] sm:$0xff]
  %v454 = vld [vmem:[%s1 + $0xa1c] sm:$0xf]
  %v455 = vld [vmem:[%s1 + $0xa20] sm:$0xff]
  %v456 = vld [vmem:[%s1 + $0xa28] sm:$0xf]
  %v457 = vld [vmem:[%s1 + $0xa2c] sm:$0xff]
  %v458 = vld [vmem:[%s1 + $0xa34] sm:$0xf]
  %v459 = vld [vmem:[%s1 + $0xa38] sm:$0xff]
  %v460 = vld [vmem:[%s1 + $0xa40] sm:$0xf]
  %v461 = vld [vmem:[%s1 + $0xa44] sm:$0xff]
  %v462 = vld [vmem:[%s1 + $0xa4c] sm:$0xf]
  %v463 = vld [vmem:[%s1 + $0xa50] sm:$0xff]
  %v464 = vld [vmem:[%s1 + $0xa58] sm:$0xf]
  %v465 = vld [vmem:[%s1 + $0xa5c] sm:$0xff]
  %v466 = vld [vmem:[%s1 + $0xa64] sm:$0xf]
  %v467 = vld [vmem:[%s1 + $0xa68] sm:$0xff]
  %v468 = vld [vmem:[%s1 + $0xa70] sm:$0xf]
  %v469 = vld [vmem:[%s1 + $0xa74] sm:$0xff]
  %v470 = vld [vmem:[%s1 + $0xa7c] sm:$0xf]
  %v471 = vld [vmem:[%s1 + $0xa80] sm:$0xff]
  %v472 = vld [vmem:[%s1 + $0xa88] sm:$0xf]
  %v473 = vld [vmem:[%s1 + $0xa8c] sm:$0xff]
  %v474 = vld [vmem:[%s1 + $0xa94] sm:$0xf]
  %v475 = vld [vmem:[%s1 + $0xa98] sm:$0xff]
  %v476 = vld [vmem:[%s1 + $0xaa0] sm:$0xf]
  %v477 = vld [vmem:[%s1 + $0xaa4] sm:$0xff]
  %v478 = vld [vmem:[%s1 + $0xaac] sm:$0xf]
  %v479 = vld [vmem:[%s1 + $0xab0] sm:$0xff]
  %v480 = vld [vmem:[%s1 + $0xab8] sm:$0xf]
  %v481 = vld [vmem:[%s1 + $0xabc] sm:$0xff]
  %v482 = vld [vmem:[%s1 + $0xac4] sm:$0xf]
  %v483 = vld [vmem:[%s1 + $0xac8] sm:$0xff]
  %v484 = vld [vmem:[%s1 + $0xad0] sm:$0xf]
  %v485 = vld [vmem:[%s1 + $0xad4] sm:$0xff]
  %v486 = vld [vmem:[%s1 + $0xadc] sm:$0xf]
  %v487 = vld [vmem:[%s1 + $0xae0] sm:$0xff]
  %v488 = vld [vmem:[%s1 + $0xae8] sm:$0xf]
  %v489 = vld [vmem:[%s1 + $0xaec] sm:$0xff]
  %v490 = vld [vmem:[%s1 + $0xaf4] sm:$0xf]
  %v491 = vld [vmem:[%s1 + $0xaf8] sm:$0xff]
  %v492 = vld [vmem:[%s1 + $0xb00] sm:$0xf]
  %v493 = vld [vmem:[%s1 + $0xb04] sm:$0xff]
  %v494 = vld [vmem:[%s1 + $0xb0c] sm:$0xf]
  %v495 = vld [vmem:[%s1 + $0xb10] sm:$0xff]
  %v496 = vld [vmem:[%s1 + $0xb18] sm:$0xf]
  %v497 = vld [vmem:[%s1 + $0xb1c] sm:$0xff]
  %v498 = vld [vmem:[%s1 + $0xb24] sm:$0xf]
  %v499 = vld [vmem:[%s1 + $0xb28] sm:$0xff]
  %v500 = vld [vmem:[%s1 + $0xb30] sm:$0xf]
  %v501 = vld [vmem:[%s1 + $0xb34] sm:$0xff]
  %v502 = vld [vmem:[%s1 + $0xb3c] sm:$0xf]
  %v503 = vld [vmem:[%s1 + $0xb40] sm:$0xff]
  %v504 = vld [vmem:[%s1 + $0xb48] sm:$0xf]
  %v505 = vld [vmem:[%s1 + $0xb4c] sm:$0xff]
  %v506 = vld [vmem:[%s1 + $0xb54] sm:$0xf]
  %v507 = vld [vmem:[%s1 + $0xb58] sm:$0xff]
  %v508 = vld [vmem:[%s1 + $0xb60] sm:$0xf]
  %v509 = vld [vmem:[%s1 + $0xb64] sm:$0xff]
  %v510 = vld [vmem:[%s1 + $0xb6c] sm:$0xf]
  %v511 = vld [vmem:[%s1 + $0xb70] sm:$0xff]
  %v512 = vld [vmem:[%s1 + $0xb78] sm:$0xf]
  %v513 = vld [vmem:[%s1 + $0xb7c] sm:$0xff]
  %v514 = vld [vmem:[%s1 + $0xb84] sm:$0xf]
  %v515 = vld [vmem:[%s1 + $0xb88] sm:$0xff]
  %v516 = vld [vmem:[%s1 + $0xb90] sm:$0xf]
  %v517 = vld [vmem:[%s1 + $0xb94] sm:$0xff]
  %v518 = vld [vmem:[%s1 + $0xb9c] sm:$0xf]
  %v519 = vld [vmem:[%s1 + $0xba0] sm:$0xff]
  %v520 = vld [vmem:[%s1 + $0xba8] sm:$0xf]
  %v521 = vld [vmem:[%s1 + $0xbac] sm:$0xff]
  %v522 = vld [vmem:[%s1 + $0xbb4] sm:$0xf]
  %v523 = vld [vmem:[%s2] sm:$0x7]
  %v525 = vlaneseq
  %v526 = vshrl.u32 %v525, 7
  %v527 = vsub.s32 0, %v526
  %v528 = vrot.slane %v523, %v527
  %v529 = vlaneseq
  %v530 = vshrl.u32 %v529, 7
  %v531 = vsub.s32 1, %v530
  %v532 = vrot.slane %v523, %v531
  %v533 = vlaneseq
  %v534 = vshrl.u32 %v533, 7
  %v535 = vsub.s32 2, %v534
  %v536 = vrot.slane %v523, %v535
  %v542 = vcombine.high %v21, %v21
  %v544 = vunpack.c.l.s4 1966171168
  %v545 = vunpack.c.0.s8 %v544
  %v546 = vlaneseq
  %v547 = vshrl.u32 %v546, 7
  %v548 = vsub.s32 %v545, %v547
  %v549 = vrot.slane %v21, %v548
  %v551 = vunpack.c.l.s4 1966171168
  %v552 = vunpack.c.0.s8 %v551
  %v553 = vlaneseq
  %v554 = vshrl.u32 %v553, 7
  %v555 = vsub.s32 %v552, %v554
  %v556 = vrot.slane %v542, %v555
  %v557 = vcombine.high %v549, %v549
  %v558 = vcombine.high %v556, %v556
  %v560 = vunpack.c.l.s4 1966171168
  %v561 = vunpack.c.0.s8 %v560
  %v562 = vlaneseq
  %v563 = vshrl.u32 %v562, 7
  %v564 = vsub.s32 %v561, %v563
  %v565 = vrot.slane %v549, %v564
  %v567 = vunpack.c.l.s4 1966171168
  %v568 = vunpack.c.0.s8 %v567
  %v569 = vlaneseq
  %v570 = vshrl.u32 %v569, 7
  %v571 = vsub.s32 %v568, %v570
  %v572 = vrot.slane %v556, %v571
  %v574 = vunpack.c.l.s4 1966171168
  %v575 = vunpack.c.0.s8 %v574
  %v576 = vlaneseq
  %v577 = vshrl.u32 %v576, 7
  %v578 = vsub.s32 %v575, %v577
  %v579 = vrot.slane %v557, %v578
  %v581 = vunpack.c.l.s4 1966171168
  %v582 = vunpack.c.0.s8 %v581
  %v583 = vlaneseq
  %v584 = vshrl.u32 %v583, 7
  %v585 = vsub.s32 %v582, %v584
  %v586 = vrot.slane %v558, %v585
  %v587 = vcombine.high %v565, %v565
  %v588 = vcombine.high %v572, %v572
  %v589 = vcombine.high %v579, %v579
  %v590 = vcombine.high %v586, %v586
  %v591 = vcombine.high %v22, %v22
  %v593 = vunpack.c.l.s4 1966171168
  %v594 = vunpack.c.0.s8 %v593
  %v595 = vlaneseq
  %v596 = vshrl.u32 %v595, 7
  %v597 = vsub.s32 %v594, %v596
  %v598 = vrot.slane %v22, %v597
  %v600 = vunpack.c.l.s4 1966171168
  %v601 = vunpack.c.0.s8 %v600
  %v602 = vlaneseq
  %v603 = vshrl.u32 %v602, 7
  %v604 = vsub.s32 %v601, %v603
  %v605 = vrot.slane %v591, %v604
  %v606 = vcombine.high %v598, %v598
  %v607 = vcombine.high %v605, %v605
  %v609 = vunpack.c.l.s4 1966171168
  %v610 = vunpack.c.0.s8 %v609
  %v611 = vlaneseq
  %v612 = vshrl.u32 %v611, 7
  %v613 = vsub.s32 %v610, %v612
  %v614 = vrot.slane %v598, %v613
  %v616 = vunpack.c.l.s4 1966171168
  %v617 = vunpack.c.0.s8 %v616
  %v618 = vlaneseq
  %v619 = vshrl.u32 %v618, 7
  %v620 = vsub.s32 %v617, %v619
  %v621 = vrot.slane %v605, %v620
  %v623 = vunpack.c.l.s4 1966171168
  %v624 = vunpack.c.0.s8 %v623
  %v625 = vlaneseq
  %v626 = vshrl.u32 %v625, 7
  %v627 = vsub.s32 %v624, %v626
  %v628 = vrot.slane %v606, %v627
  %v630 = vunpack.c.l.s4 1966171168
  %v631 = vunpack.c.0.s8 %v630
  %v632 = vlaneseq
  %v633 = vshrl.u32 %v632, 7
  %v634 = vsub.s32 %v631, %v633
  %v635 = vrot.slane %v607, %v634
  %v636 = vcombine.high %v614, %v614
  %v637 = vcombine.high %v621, %v621
  %v638 = vcombine.high %v628, %v628
  %v639 = vcombine.high %v635, %v635
  %v1155 = vunpack.c.l.b16 %v23
  %v1156 = vunpack.c.h.b16 %v23
  %v1157 = vunpack.c.l.b16 %v24
  %v1158 = vunpack.c.l.b16 %v25
  %v1159 = vunpack.c.h.b16 %v25
  %v1160 = vunpack.c.l.b16 %v26
  %v1161 = vunpack.c.l.b16 %v27
  %v1162 = vunpack.c.h.b16 %v27
  %v1163 = vunpack.c.l.b16 %v28
  %v1164 = vunpack.c.l.b16 %v29
  %v1165 = vunpack.c.h.b16 %v29
  %v1166 = vunpack.c.l.b16 %v30
  %v1167 = vunpack.c.l.b16 %v31
  %v1168 = vunpack.c.h.b16 %v31
  %v1169 = vunpack.c.l.b16 %v32
  %v1170 = vunpack.c.l.b16 %v33
  %v1171 = vunpack.c.h.b16 %v33
  %v1172 = vunpack.c.l.b16 %v34
  %v1173 = vunpack.c.l.b16 %v35
  %v1174 = vunpack.c.h.b16 %v35
  %v1175 = vunpack.c.l.b16 %v36
  %v1176 = vunpack.c.l.b16 %v37
  %v1177 = vunpack.c.h.b16 %v37
  %v1178 = vunpack.c.l.b16 %v38
  %v1179 = vunpack.c.l.b16 %v39
  %v1180 = vunpack.c.h.b16 %v39
  %v1181 = vunpack.c.l.b16 %v40
  %v1182 = vunpack.c.l.b16 %v41
  %v1183 = vunpack.c.h.b16 %v41
  %v1184 = vunpack.c.l.b16 %v42
  %v1185 = vunpack.c.l.b16 %v43
  %v1186 = vunpack.c.h.b16 %v43
  %v1187 = vunpack.c.l.b16 %v44
  %v1188 = vunpack.c.l.b16 %v45
  %v1189 = vunpack.c.h.b16 %v45
  %v1190 = vunpack.c.l.b16 %v46
  %v1191 = vunpack.c.l.b16 %v47
  %v1192 = vunpack.c.h.b16 %v47
  %v1193 = vunpack.c.l.b16 %v48
  %v1194 = vunpack.c.l.b16 %v49
  %v1195 = vunpack.c.h.b16 %v49
  %v1196 = vunpack.c.l.b16 %v50
  %v1197 = vunpack.c.l.b16 %v51
  %v1198 = vunpack.c.h.b16 %v51
  %v1199 = vunpack.c.l.b16 %v52
  %v1200 = vunpack.c.l.b16 %v53
  %v1201 = vunpack.c.h.b16 %v53
  %v1202 = vunpack.c.l.b16 %v54
  %v1203 = vunpack.c.l.b16 %v55
  %v1204 = vunpack.c.h.b16 %v55
  %v1205 = vunpack.c.l.b16 %v56
  %v1206 = vunpack.c.l.b16 %v57
  %v1207 = vunpack.c.h.b16 %v57
  %v1208 = vunpack.c.l.b16 %v58
  %v1209 = vunpack.c.l.b16 %v59
  %v1210 = vunpack.c.h.b16 %v59
  %v1211 = vunpack.c.l.b16 %v60
  %v1212 = vunpack.c.l.b16 %v61
  %v1213 = vunpack.c.h.b16 %v61
  %v1214 = vunpack.c.l.b16 %v62
  %v1215 = vunpack.c.l.b16 %v63
  %v1216 = vunpack.c.h.b16 %v63
  %v1217 = vunpack.c.l.b16 %v64
  %v1218 = vunpack.c.l.b16 %v65
  %v1219 = vunpack.c.h.b16 %v65
  %v1220 = vunpack.c.l.b16 %v66
  %v1221 = vunpack.c.l.b16 %v67
  %v1222 = vunpack.c.h.b16 %v67
  %v1223 = vunpack.c.l.b16 %v68
  %v1224 = vunpack.c.l.b16 %v69
  %v1225 = vunpack.c.h.b16 %v69
  %v1226 = vunpack.c.l.b16 %v70
  %v1227 = vunpack.c.l.b16 %v71
  %v1228 = vunpack.c.h.b16 %v71
  %v1229 = vunpack.c.l.b16 %v72
  %v1230 = vunpack.c.l.b16 %v73
  %v1231 = vunpack.c.h.b16 %v73
  %v1232 = vunpack.c.l.b16 %v74
  %v1233 = vunpack.c.l.b16 %v75
  %v1234 = vunpack.c.h.b16 %v75
  %v1235 = vunpack.c.l.b16 %v76
  %v1236 = vunpack.c.l.b16 %v77
  %v1237 = vunpack.c.h.b16 %v77
  %v1238 = vunpack.c.l.b16 %v78
  %v1239 = vunpack.c.l.b16 %v79
  %v1240 = vunpack.c.h.b16 %v79
  %v1241 = vunpack.c.l.b16 %v80
  %v1242 = vunpack.c.l.b16 %v81
  %v1243 = vunpack.c.h.b16 %v81
  %v1244 = vunpack.c.l.b16 %v82
  %v1245 = vunpack.c.l.b16 %v83
  %v1246 = vunpack.c.h.b16 %v83
  %v1247 = vunpack.c.l.b16 %v84
  %v1248 = vunpack.c.l.b16 %v85
  %v1249 = vunpack.c.h.b16 %v85
  %v1250 = vunpack.c.l.b16 %v86
  %v1251 = vunpack.c.l.b16 %v87
  %v1252 = vunpack.c.h.b16 %v87
  %v1253 = vunpack.c.l.b16 %v88
  %v1254 = vunpack.c.l.b16 %v89
  %v1255 = vunpack.c.h.b16 %v89
  %v1256 = vunpack.c.l.b16 %v90
  %v1257 = vunpack.c.l.b16 %v91
  %v1258 = vunpack.c.h.b16 %v91
  %v1259 = vunpack.c.l.b16 %v92
  %v1260 = vunpack.c.l.b16 %v93
  %v1261 = vunpack.c.h.b16 %v93
  %v1262 = vunpack.c.l.b16 %v94
  %v1263 = vunpack.c.l.b16 %v95
  %v1264 = vunpack.c.h.b16 %v95
  %v1265 = vunpack.c.l.b16 %v96
  %v1266 = vunpack.c.l.b16 %v97
  %v1267 = vunpack.c.h.b16 %v97
  %v1268 = vunpack.c.l.b16 %v98
  %v1269 = vunpack.c.l.b16 %v99
  %v1270 = vunpack.c.h.b16 %v99
  %v1271 = vunpack.c.l.b16 %v100
  %v1272 = vunpack.c.l.b16 %v101
  %v1273 = vunpack.c.h.b16 %v101
  %v1274 = vunpack.c.l.b16 %v102
  %v1275 = vunpack.c.l.b16 %v103
  %v1276 = vunpack.c.h.b16 %v103
  %v1277 = vunpack.c.l.b16 %v104
  %v1278 = vunpack.c.l.b16 %v105
  %v1279 = vunpack.c.h.b16 %v105
  %v1280 = vunpack.c.l.b16 %v106
  %v1281 = vunpack.c.l.b16 %v107
  %v1282 = vunpack.c.h.b16 %v107
  %v1283 = vunpack.c.l.b16 %v108
  %v1284 = vunpack.c.l.b16 %v109
  %v1285 = vunpack.c.h.b16 %v109
  %v1286 = vunpack.c.l.b16 %v110
  %v1287 = vunpack.c.l.b16 %v111
  %v1288 = vunpack.c.h.b16 %v111
  %v1289 = vunpack.c.l.b16 %v112
  %v1290 = vunpack.c.l.b16 %v113
  %v1291 = vunpack.c.h.b16 %v113
  %v1292 = vunpack.c.l.b16 %v114
  %v1293 = vunpack.c.l.b16 %v115
  %v1294 = vunpack.c.h.b16 %v115
  %v1295 = vunpack.c.l.b16 %v116
  %v1296 = vunpack.c.l.b16 %v117
  %v1297 = vunpack.c.h.b16 %v117
  %v1298 = vunpack.c.l.b16 %v118
  %v1299 = vunpack.c.l.b16 %v119
  %v1300 = vunpack.c.h.b16 %v119
  %v1301 = vunpack.c.l.b16 %v120
  %v1302 = vunpack.c.l.b16 %v121
  %v1303 = vunpack.c.h.b16 %v121
  %v1304 = vunpack.c.l.b16 %v122
  %v1305 = vunpack.c.l.b16 %v123
  %v1306 = vunpack.c.h.b16 %v123
  %v1307 = vunpack.c.l.b16 %v124
  %v1308 = vunpack.c.l.b16 %v125
  %v1309 = vunpack.c.h.b16 %v125
  %v1310 = vunpack.c.l.b16 %v126
  %v1311 = vunpack.c.l.b16 %v127
  %v1312 = vunpack.c.h.b16 %v127
  %v1313 = vunpack.c.l.b16 %v128
  %v1314 = vunpack.c.l.b16 %v129
  %v1315 = vunpack.c.h.b16 %v129
  %v1316 = vunpack.c.l.b16 %v130
  %v1317 = vunpack.c.l.b16 %v131
  %v1318 = vunpack.c.h.b16 %v131
  %v1319 = vunpack.c.l.b16 %v132
  %v1320 = vunpack.c.l.b16 %v133
  %v1321 = vunpack.c.h.b16 %v133
  %v1322 = vunpack.c.l.b16 %v134
  %v1323 = vunpack.c.l.b16 %v135
  %v1324 = vunpack.c.h.b16 %v135
  %v1325 = vunpack.c.l.b16 %v136
  %v1326 = vunpack.c.l.b16 %v137
  %v1327 = vunpack.c.h.b16 %v137
  %v1328 = vunpack.c.l.b16 %v138
  %v1329 = vunpack.c.l.b16 %v139
  %v1330 = vunpack.c.h.b16 %v139
  %v1331 = vunpack.c.l.b16 %v140
  %v1332 = vunpack.c.l.b16 %v141
  %v1333 = vunpack.c.h.b16 %v141
  %v1334 = vunpack.c.l.b16 %v142
  %v1335 = vunpack.c.l.b16 %v143
  %v1336 = vunpack.c.h.b16 %v143
  %v1337 = vunpack.c.l.b16 %v144
  %v1338 = vunpack.c.l.b16 %v145
  %v1339 = vunpack.c.h.b16 %v145
  %v1340 = vunpack.c.l.b16 %v146
  %v1341 = vunpack.c.l.b16 %v147
  %v1342 = vunpack.c.h.b16 %v147
  %v1343 = vunpack.c.l.b16 %v148
  %v1344 = vunpack.c.l.b16 %v149
  %v1345 = vunpack.c.h.b16 %v149
  %v1346 = vunpack.c.l.b16 %v150
  %v1347 = vunpack.c.l.b16 %v151
  %v1348 = vunpack.c.h.b16 %v151
  %v1349 = vunpack.c.l.b16 %v152
  %v1350 = vunpack.c.l.b16 %v153
  %v1351 = vunpack.c.h.b16 %v153
  %v1352 = vunpack.c.l.b16 %v154
  %v1353 = vunpack.c.l.b16 %v155
  %v1354 = vunpack.c.h.b16 %v155
  %v1355 = vunpack.c.l.b16 %v156
  %v1356 = vunpack.c.l.b16 %v157
  %v1357 = vunpack.c.h.b16 %v157
  %v1358 = vunpack.c.l.b16 %v158
  %v1359 = vunpack.c.l.b16 %v159
  %v1360 = vunpack.c.h.b16 %v159
  %v1361 = vunpack.c.l.b16 %v160
  %v1362 = vunpack.c.l.b16 %v161
  %v1363 = vunpack.c.h.b16 %v161
  %v1364 = vunpack.c.l.b16 %v162
  %v1365 = vunpack.c.l.b16 %v163
  %v1366 = vunpack.c.h.b16 %v163
  %v1367 = vunpack.c.l.b16 %v164
  %v1368 = vunpack.c.l.b16 %v165
  %v1369 = vunpack.c.h.b16 %v165
  %v1370 = vunpack.c.l.b16 %v166
  %v1371 = vunpack.c.l.b16 %v167
  %v1372 = vunpack.c.h.b16 %v167
  %v1373 = vunpack.c.l.b16 %v168
  %v1374 = vunpack.c.l.b16 %v169
  %v1375 = vunpack.c.h.b16 %v169
  %v1376 = vunpack.c.l.b16 %v170
  %v1377 = vunpack.c.l.b16 %v171
  %v1378 = vunpack.c.h.b16 %v171
  %v1379 = vunpack.c.l.b16 %v172
  %v1380 = vunpack.c.l.b16 %v173
  %v1381 = vunpack.c.h.b16 %v173
  %v1382 = vunpack.c.l.b16 %v174
  %v1383 = vunpack.c.l.b16 %v175
  %v1384 = vunpack.c.h.b16 %v175
  %v1385 = vunpack.c.l.b16 %v176
  %v1386 = vunpack.c.l.b16 %v177
  %v1387 = vunpack.c.h.b16 %v177
  %v1388 = vunpack.c.l.b16 %v178
  %v1389 = vunpack.c.l.b16 %v179
  %v1390 = vunpack.c.h.b16 %v179
  %v1391 = vunpack.c.l.b16 %v180
  %v1392 = vunpack.c.l.b16 %v181
  %v1393 = vunpack.c.h.b16 %v181
  %v1394 = vunpack.c.l.b16 %v182
  %v1395 = vunpack.c.l.b16 %v183
  %v1396 = vunpack.c.h.b16 %v183
  %v1397 = vunpack.c.l.b16 %v184
  %v1398 = vunpack.c.l.b16 %v185
  %v1399 = vunpack.c.h.b16 %v185
  %v1400 = vunpack.c.l.b16 %v186
  %v1401 = vunpack.c.l.b16 %v187
  %v1402 = vunpack.c.h.b16 %v187
  %v1403 = vunpack.c.l.b16 %v188
  %v1404 = vunpack.c.l.b16 %v189
  %v1405 = vunpack.c.h.b16 %v189
  %v1406 = vunpack.c.l.b16 %v190
  %v1407 = vunpack.c.l.b16 %v191
  %v1408 = vunpack.c.h.b16 %v191
  %v1409 = vunpack.c.l.b16 %v192
  %v1410 = vunpack.c.l.b16 %v193
  %v1411 = vunpack.c.h.b16 %v193
  %v1412 = vunpack.c.l.b16 %v194
  %v1413 = vunpack.c.l.b16 %v195
  %v1414 = vunpack.c.h.b16 %v195
  %v1415 = vunpack.c.l.b16 %v196
  %v1416 = vunpack.c.l.b16 %v197
  %v1417 = vunpack.c.h.b16 %v197
  %v1418 = vunpack.c.l.b16 %v198
  %v1419 = vunpack.c.l.b16 %v199
  %v1420 = vunpack.c.h.b16 %v199
  %v1421 = vunpack.c.l.b16 %v200
  %v1422 = vunpack.c.l.b16 %v201
  %v1423 = vunpack.c.h.b16 %v201
  %v1424 = vunpack.c.l.b16 %v202
  %v1425 = vunpack.c.l.b16 %v203
  %v1426 = vunpack.c.h.b16 %v203
  %v1427 = vunpack.c.l.b16 %v204
  %v1428 = vunpack.c.l.b16 %v205
  %v1429 = vunpack.c.h.b16 %v205
  %v1430 = vunpack.c.l.b16 %v206
  %v1431 = vunpack.c.l.b16 %v207
  %v1432 = vunpack.c.h.b16 %v207
  %v1433 = vunpack.c.l.b16 %v208
  %v1434 = vunpack.c.l.b16 %v209
  %v1435 = vunpack.c.h.b16 %v209
  %v1436 = vunpack.c.l.b16 %v210
  %v1437 = vunpack.c.l.b16 %v211
  %v1438 = vunpack.c.h.b16 %v211
  %v1439 = vunpack.c.l.b16 %v212
  %v1440 = vunpack.c.l.b16 %v213
  %v1441 = vunpack.c.h.b16 %v213
  %v1442 = vunpack.c.l.b16 %v214
  %v1443 = vunpack.c.l.b16 %v215
  %v1444 = vunpack.c.h.b16 %v215
  %v1445 = vunpack.c.l.b16 %v216
  %v1446 = vunpack.c.l.b16 %v217
  %v1447 = vunpack.c.h.b16 %v217
  %v1448 = vunpack.c.l.b16 %v218
  %v1449 = vunpack.c.l.b16 %v219
  %v1450 = vunpack.c.h.b16 %v219
  %v1451 = vunpack.c.l.b16 %v220
  %v1452 = vunpack.c.l.b16 %v221
  %v1453 = vunpack.c.h.b16 %v221
  %v1454 = vunpack.c.l.b16 %v222
  %v1455 = vunpack.c.l.b16 %v223
  %v1456 = vunpack.c.h.b16 %v223
  %v1457 = vunpack.c.l.b16 %v224
  %v1458 = vunpack.c.l.b16 %v225
  %v1459 = vunpack.c.h.b16 %v225
  %v1460 = vunpack.c.l.b16 %v226
  %v1461 = vunpack.c.l.b16 %v227
  %v1462 = vunpack.c.h.b16 %v227
  %v1463 = vunpack.c.l.b16 %v228
  %v1464 = vunpack.c.l.b16 %v229
  %v1465 = vunpack.c.h.b16 %v229
  %v1466 = vunpack.c.l.b16 %v230
  %v1467 = vunpack.c.l.b16 %v231
  %v1468 = vunpack.c.h.b16 %v231
  %v1469 = vunpack.c.l.b16 %v232
  %v1470 = vunpack.c.l.b16 %v233
  %v1471 = vunpack.c.h.b16 %v233
  %v1472 = vunpack.c.l.b16 %v234
  %v1473 = vunpack.c.l.b16 %v235
  %v1474 = vunpack.c.h.b16 %v235
  %v1475 = vunpack.c.l.b16 %v236
  %v1476 = vunpack.c.l.b16 %v237
  %v1477 = vunpack.c.h.b16 %v237
  %v1478 = vunpack.c.l.b16 %v238
  %v1479 = vunpack.c.l.b16 %v239
  %v1480 = vunpack.c.h.b16 %v239
  %v1481 = vunpack.c.l.b16 %v240
  %v1482 = vunpack.c.l.b16 %v241
  %v1483 = vunpack.c.h.b16 %v241
  %v1484 = vunpack.c.l.b16 %v242
  %v1485 = vunpack.c.l.b16 %v243
  %v1486 = vunpack.c.h.b16 %v243
  %v1487 = vunpack.c.l.b16 %v244
  %v1488 = vunpack.c.l.b16 %v245
  %v1489 = vunpack.c.h.b16 %v245
  %v1490 = vunpack.c.l.b16 %v246
  %v1491 = vunpack.c.l.b16 %v247
  %v1492 = vunpack.c.h.b16 %v247
  %v1493 = vunpack.c.l.b16 %v248
  %v1494 = vunpack.c.l.b16 %v249
  %v1495 = vunpack.c.h.b16 %v249
  %v1496 = vunpack.c.l.b16 %v250
  %v1497 = vunpack.c.l.b16 %v251
  %v1498 = vunpack.c.h.b16 %v251
  %v1499 = vunpack.c.l.b16 %v252
  %v1500 = vunpack.c.l.b16 %v253
  %v1501 = vunpack.c.h.b16 %v253
  %v1502 = vunpack.c.l.b16 %v254
  %v1503 = vunpack.c.l.b16 %v255
  %v1504 = vunpack.c.h.b16 %v255
  %v1505 = vunpack.c.l.b16 %v256
  %v1506 = vunpack.c.l.b16 %v257
  %v1507 = vunpack.c.h.b16 %v257
  %v1508 = vunpack.c.l.b16 %v258
  %v1509 = vunpack.c.l.b16 %v259
  %v1510 = vunpack.c.h.b16 %v259
  %v1511 = vunpack.c.l.b16 %v260
  %v1512 = vunpack.c.l.b16 %v261
  %v1513 = vunpack.c.h.b16 %v261
  %v1514 = vunpack.c.l.b16 %v262
  %v1515 = vunpack.c.l.b16 %v263
  %v1516 = vunpack.c.h.b16 %v263
  %v1517 = vunpack.c.l.b16 %v264
  %v1518 = vunpack.c.l.b16 %v265
  %v1519 = vunpack.c.h.b16 %v265
  %v1520 = vunpack.c.l.b16 %v266
  %v1521 = vunpack.c.l.b16 %v267
  %v1522 = vunpack.c.h.b16 %v267
  %v1523 = vunpack.c.l.b16 %v268
  %v1524 = vunpack.c.l.b16 %v269
  %v1525 = vunpack.c.h.b16 %v269
  %v1526 = vunpack.c.l.b16 %v270
  %v1527 = vunpack.c.l.b16 %v271
  %v1528 = vunpack.c.h.b16 %v271
  %v1529 = vunpack.c.l.b16 %v272
  %v1530 = vunpack.c.l.b16 %v273
  %v1531 = vunpack.c.h.b16 %v273
  %v1532 = vunpack.c.l.b16 %v274
  %v1533 = vunpack.c.l.b16 %v275
  %v1534 = vunpack.c.h.b16 %v275
  %v1535 = vunpack.c.l.b16 %v276
  %v1536 = vunpack.c.l.b16 %v277
  %v1537 = vunpack.c.h.b16 %v277
  %v1538 = vunpack.c.l.b16 %v278
  %v1539 = vunpack.c.l.b16 %v279
  %v1540 = vunpack.c.h.b16 %v279
  %v1541 = vunpack.c.l.b16 %v280
  %v1542 = vunpack.c.l.b16 %v281
  %v1543 = vunpack.c.h.b16 %v281
  %v1544 = vunpack.c.l.b16 %v282
  %v1545 = vunpack.c.l.b16 %v283
  %v1546 = vunpack.c.h.b16 %v283
  %v1547 = vunpack.c.l.b16 %v284
  %v1548 = vunpack.c.l.b16 %v285
  %v1549 = vunpack.c.h.b16 %v285
  %v1550 = vunpack.c.l.b16 %v286
  %v1551 = vunpack.c.l.b16 %v287
  %v1552 = vunpack.c.h.b16 %v287
  %v1553 = vunpack.c.l.b16 %v288
  %v1554 = vunpack.c.l.b16 %v289
  %v1555 = vunpack.c.h.b16 %v289
  %v1556 = vunpack.c.l.b16 %v290
  %v1557 = vunpack.c.l.b16 %v291
  %v1558 = vunpack.c.h.b16 %v291
  %v1559 = vunpack.c.l.b16 %v292
  %v1560 = vunpack.c.l.b16 %v293
  %v1561 = vunpack.c.h.b16 %v293
  %v1562 = vunpack.c.l.b16 %v294
  %v1563 = vunpack.c.l.b16 %v295
  %v1564 = vunpack.c.h.b16 %v295
  %v1565 = vunpack.c.l.b16 %v296
  %v1566 = vunpack.c.l.b16 %v297
  %v1567 = vunpack.c.h.b16 %v297
  %v1568 = vunpack.c.l.b16 %v298
  %v1569 = vunpack.c.l.b16 %v299
  %v1570 = vunpack.c.h.b16 %v299
  %v1571 = vunpack.c.l.b16 %v300
  %v1572 = vunpack.c.l.b16 %v301
  %v1573 = vunpack.c.h.b16 %v301
  %v1574 = vunpack.c.l.b16 %v302
  %v1575 = vunpack.c.l.b16 %v303
  %v1576 = vunpack.c.h.b16 %v303
  %v1577 = vunpack.c.l.b16 %v304
  %v1578 = vunpack.c.l.b16 %v305
  %v1579 = vunpack.c.h.b16 %v305
  %v1580 = vunpack.c.l.b16 %v306
  %v1581 = vunpack.c.l.b16 %v307
  %v1582 = vunpack.c.h.b16 %v307
  %v1583 = vunpack.c.l.b16 %v308
  %v1584 = vunpack.c.l.b16 %v309
  %v1585 = vunpack.c.h.b16 %v309
  %v1586 = vunpack.c.l.b16 %v310
  %v1587 = vunpack.c.l.b16 %v311
  %v1588 = vunpack.c.h.b16 %v311
  %v1589 = vunpack.c.l.b16 %v312
  %v1590 = vunpack.c.l.b16 %v313
  %v1591 = vunpack.c.h.b16 %v313
  %v1592 = vunpack.c.l.b16 %v314
  %v1593 = vunpack.c.l.b16 %v315
  %v1594 = vunpack.c.h.b16 %v315
  %v1595 = vunpack.c.l.b16 %v316
  %v1596 = vunpack.c.l.b16 %v317
  %v1597 = vunpack.c.h.b16 %v317
  %v1598 = vunpack.c.l.b16 %v318
  %v1599 = vunpack.c.l.b16 %v319
  %v1600 = vunpack.c.h.b16 %v319
  %v1601 = vunpack.c.l.b16 %v320
  %v1602 = vunpack.c.l.b16 %v321
  %v1603 = vunpack.c.h.b16 %v321
  %v1604 = vunpack.c.l.b16 %v322
  %v1605 = vunpack.c.l.b16 %v323
  %v1606 = vunpack.c.h.b16 %v323
  %v1607 = vunpack.c.l.b16 %v324
  %v1608 = vunpack.c.l.b16 %v325
  %v1609 = vunpack.c.h.b16 %v325
  %v1610 = vunpack.c.l.b16 %v326
  %v1611 = vunpack.c.l.b16 %v327
  %v1612 = vunpack.c.h.b16 %v327
  %v1613 = vunpack.c.l.b16 %v328
  %v1614 = vunpack.c.l.b16 %v329
  %v1615 = vunpack.c.h.b16 %v329
  %v1616 = vunpack.c.l.b16 %v330
  %v1617 = vunpack.c.l.b16 %v331
  %v1618 = vunpack.c.h.b16 %v331
  %v1619 = vunpack.c.l.b16 %v332
  %v1620 = vunpack.c.l.b16 %v333
  %v1621 = vunpack.c.h.b16 %v333
  %v1622 = vunpack.c.l.b16 %v334
  %v1623 = vunpack.c.l.b16 %v335
  %v1624 = vunpack.c.h.b16 %v335
  %v1625 = vunpack.c.l.b16 %v336
  %v1626 = vunpack.c.l.b16 %v337
  %v1627 = vunpack.c.h.b16 %v337
  %v1628 = vunpack.c.l.b16 %v338
  %v1629 = vunpack.c.l.b16 %v339
  %v1630 = vunpack.c.h.b16 %v339
  %v1631 = vunpack.c.l.b16 %v340
  %v1632 = vunpack.c.l.b16 %v341
  %v1633 = vunpack.c.h.b16 %v341
  %v1634 = vunpack.c.l.b16 %v342
  %v1635 = vunpack.c.l.b16 %v343
  %v1636 = vunpack.c.h.b16 %v343
  %v1637 = vunpack.c.l.b16 %v344
  %v1638 = vunpack.c.l.b16 %v345
  %v1639 = vunpack.c.h.b16 %v345
  %v1640 = vunpack.c.l.b16 %v346
  %v1641 = vunpack.c.l.b16 %v347
  %v1642 = vunpack.c.h.b16 %v347
  %v1643 = vunpack.c.l.b16 %v348
  %v1644 = vunpack.c.l.b16 %v349
  %v1645 = vunpack.c.h.b16 %v349
  %v1646 = vunpack.c.l.b16 %v350
  %v1647 = vunpack.c.l.b16 %v351
  %v1648 = vunpack.c.h.b16 %v351
  %v1649 = vunpack.c.l.b16 %v352
  %v1650 = vunpack.c.l.b16 %v353
  %v1651 = vunpack.c.h.b16 %v353
  %v1652 = vunpack.c.l.b16 %v354
  %v1653 = vunpack.c.l.b16 %v355
  %v1654 = vunpack.c.h.b16 %v355
  %v1655 = vunpack.c.l.b16 %v356
  %v1656 = vunpack.c.l.b16 %v357
  %v1657 = vunpack.c.h.b16 %v357
  %v1658 = vunpack.c.l.b16 %v358
  %v1659 = vunpack.c.l.b16 %v359
  %v1660 = vunpack.c.h.b16 %v359
  %v1661 = vunpack.c.l.b16 %v360
  %v1662 = vunpack.c.l.b16 %v361
  %v1663 = vunpack.c.h.b16 %v361
  %v1664 = vunpack.c.l.b16 %v362
  %v1665 = vunpack.c.l.b16 %v363
  %v1666 = vunpack.c.h.b16 %v363
  %v1667 = vunpack.c.l.b16 %v364
  %v1668 = vunpack.c.l.b16 %v365
  %v1669 = vunpack.c.h.b16 %v365
  %v1670 = vunpack.c.l.b16 %v366
  %v1671 = vunpack.c.l.b16 %v367
  %v1672 = vunpack.c.h.b16 %v367
  %v1673 = vunpack.c.l.b16 %v368
  %v1674 = vunpack.c.l.b16 %v369
  %v1675 = vunpack.c.h.b16 %v369
  %v1676 = vunpack.c.l.b16 %v370
  %v1677 = vunpack.c.l.b16 %v371
  %v1678 = vunpack.c.h.b16 %v371
  %v1679 = vunpack.c.l.b16 %v372
  %v1680 = vunpack.c.l.b16 %v373
  %v1681 = vunpack.c.h.b16 %v373
  %v1682 = vunpack.c.l.b16 %v374
  %v1683 = vunpack.c.l.b16 %v375
  %v1684 = vunpack.c.h.b16 %v375
  %v1685 = vunpack.c.l.b16 %v376
  %v1686 = vunpack.c.l.b16 %v377
  %v1687 = vunpack.c.h.b16 %v377
  %v1688 = vunpack.c.l.b16 %v378
  %v1689 = vunpack.c.l.b16 %v379
  %v1690 = vunpack.c.h.b16 %v379
  %v1691 = vunpack.c.l.b16 %v380
  %v1692 = vunpack.c.l.b16 %v381
  %v1693 = vunpack.c.h.b16 %v381
  %v1694 = vunpack.c.l.b16 %v382
  %v1695 = vunpack.c.l.b16 %v383
  %v1696 = vunpack.c.h.b16 %v383
  %v1697 = vunpack.c.l.b16 %v384
  %v1698 = vunpack.c.l.b16 %v385
  %v1699 = vunpack.c.h.b16 %v385
  %v1700 = vunpack.c.l.b16 %v386
  %v1701 = vunpack.c.l.b16 %v387
  %v1702 = vunpack.c.h.b16 %v387
  %v1703 = vunpack.c.l.b16 %v388
  %v1704 = vunpack.c.l.b16 %v389
  %v1705 = vunpack.c.h.b16 %v389
  %v1706 = vunpack.c.l.b16 %v390
  %v1707 = vunpack.c.l.b16 %v391
  %v1708 = vunpack.c.h.b16 %v391
  %v1709 = vunpack.c.l.b16 %v392
  %v1710 = vunpack.c.l.b16 %v393
  %v1711 = vunpack.c.h.b16 %v393
  %v1712 = vunpack.c.l.b16 %v394
  %v1713 = vunpack.c.l.b16 %v395
  %v1714 = vunpack.c.h.b16 %v395
  %v1715 = vunpack.c.l.b16 %v396
  %v1716 = vunpack.c.l.b16 %v397
  %v1717 = vunpack.c.h.b16 %v397
  %v1718 = vunpack.c.l.b16 %v398
  %v1719 = vunpack.c.l.b16 %v399
  %v1720 = vunpack.c.h.b16 %v399
  %v1721 = vunpack.c.l.b16 %v400
  %v1722 = vunpack.c.l.b16 %v401
  %v1723 = vunpack.c.h.b16 %v401
  %v1724 = vunpack.c.l.b16 %v402
  %v1725 = vunpack.c.l.b16 %v403
  %v1726 = vunpack.c.h.b16 %v403
  %v1727 = vunpack.c.l.b16 %v404
  %v1728 = vunpack.c.l.b16 %v405
  %v1729 = vunpack.c.h.b16 %v405
  %v1730 = vunpack.c.l.b16 %v406
  %v1731 = vunpack.c.l.b16 %v407
  %v1732 = vunpack.c.h.b16 %v407
  %v1733 = vunpack.c.l.b16 %v408
  %v1734 = vunpack.c.l.b16 %v409
  %v1735 = vunpack.c.h.b16 %v409
  %v1736 = vunpack.c.l.b16 %v410
  %v1737 = vunpack.c.l.b16 %v411
  %v1738 = vunpack.c.h.b16 %v411
  %v1739 = vunpack.c.l.b16 %v412
  %v1740 = vunpack.c.l.b16 %v413
  %v1741 = vunpack.c.h.b16 %v413
  %v1742 = vunpack.c.l.b16 %v414
  %v1743 = vunpack.c.l.b16 %v415
  %v1744 = vunpack.c.h.b16 %v415
  %v1745 = vunpack.c.l.b16 %v416
  %v1746 = vunpack.c.l.b16 %v417
  %v1747 = vunpack.c.h.b16 %v417
  %v1748 = vunpack.c.l.b16 %v418
  %v1749 = vunpack.c.l.b16 %v419
  %v1750 = vunpack.c.h.b16 %v419
  %v1751 = vunpack.c.l.b16 %v420
  %v1752 = vunpack.c.l.b16 %v421
  %v1753 = vunpack.c.h.b16 %v421
  %v1754 = vunpack.c.l.b16 %v422
  %v1755 = vunpack.c.l.b16 %v423
  %v1756 = vunpack.c.h.b16 %v423
  %v1757 = vunpack.c.l.b16 %v424
  %v1758 = vunpack.c.l.b16 %v425
  %v1759 = vunpack.c.h.b16 %v425
  %v1760 = vunpack.c.l.b16 %v426
  %v1761 = vunpack.c.l.b16 %v427
  %v1762 = vunpack.c.h.b16 %v427
  %v1763 = vunpack.c.l.b16 %v428
  %v1764 = vunpack.c.l.b16 %v429
  %v1765 = vunpack.c.h.b16 %v429
  %v1766 = vunpack.c.l.b16 %v430
  %v1767 = vunpack.c.l.b16 %v431
  %v1768 = vunpack.c.h.b16 %v431
  %v1769 = vunpack.c.l.b16 %v432
  %v1770 = vunpack.c.l.b16 %v433
  %v1771 = vunpack.c.h.b16 %v433
  %v1772 = vunpack.c.l.b16 %v434
  %v1773 = vunpack.c.l.b16 %v435
  %v1774 = vunpack.c.h.b16 %v435
  %v1775 = vunpack.c.l.b16 %v436
  %v1776 = vunpack.c.l.b16 %v437
  %v1777 = vunpack.c.h.b16 %v437
  %v1778 = vunpack.c.l.b16 %v438
  %v1779 = vunpack.c.l.b16 %v439
  %v1780 = vunpack.c.h.b16 %v439
  %v1781 = vunpack.c.l.b16 %v440
  %v1782 = vunpack.c.l.b16 %v441
  %v1783 = vunpack.c.h.b16 %v441
  %v1784 = vunpack.c.l.b16 %v442
  %v1785 = vunpack.c.l.b16 %v443
  %v1786 = vunpack.c.h.b16 %v443
  %v1787 = vunpack.c.l.b16 %v444
  %v1788 = vunpack.c.l.b16 %v445
  %v1789 = vunpack.c.h.b16 %v445
  %v1790 = vunpack.c.l.b16 %v446
  %v1791 = vunpack.c.l.b16 %v447
  %v1792 = vunpack.c.h.b16 %v447
  %v1793 = vunpack.c.l.b16 %v448
  %v1794 = vunpack.c.l.b16 %v449
  %v1795 = vunpack.c.h.b16 %v449
  %v1796 = vunpack.c.l.b16 %v450
  %v1797 = vunpack.c.l.b16 %v451
  %v1798 = vunpack.c.h.b16 %v451
  %v1799 = vunpack.c.l.b16 %v452
  %v1800 = vunpack.c.l.b16 %v453
  %v1801 = vunpack.c.h.b16 %v453
  %v1802 = vunpack.c.l.b16 %v454
  %v1803 = vunpack.c.l.b16 %v455
  %v1804 = vunpack.c.h.b16 %v455
  %v1805 = vunpack.c.l.b16 %v456
  %v1806 = vunpack.c.l.b16 %v457
  %v1807 = vunpack.c.h.b16 %v457
  %v1808 = vunpack.c.l.b16 %v458
  %v1809 = vunpack.c.l.b16 %v459
  %v1810 = vunpack.c.h.b16 %v459
  %v1811 = vunpack.c.l.b16 %v460
  %v1812 = vunpack.c.l.b16 %v461
  %v1813 = vunpack.c.h.b16 %v461
  %v1814 = vunpack.c.l.b16 %v462
  %v1815 = vunpack.c.l.b16 %v463
  %v1816 = vunpack.c.h.b16 %v463
  %v1817 = vunpack.c.l.b16 %v464
  %v1818 = vunpack.c.l.b16 %v465
  %v1819 = vunpack.c.h.b16 %v465
  %v1820 = vunpack.c.l.b16 %v466
  %v1821 = vunpack.c.l.b16 %v467
  %v1822 = vunpack.c.h.b16 %v467
  %v1823 = vunpack.c.l.b16 %v468
  %v1824 = vunpack.c.l.b16 %v469
  %v1825 = vunpack.c.h.b16 %v469
  %v1826 = vunpack.c.l.b16 %v470
  %v1827 = vunpack.c.l.b16 %v471
  %v1828 = vunpack.c.h.b16 %v471
  %v1829 = vunpack.c.l.b16 %v472
  %v1830 = vunpack.c.l.b16 %v473
  %v1831 = vunpack.c.h.b16 %v473
  %v1832 = vunpack.c.l.b16 %v474
  %v1833 = vunpack.c.l.b16 %v475
  %v1834 = vunpack.c.h.b16 %v475
  %v1835 = vunpack.c.l.b16 %v476
  %v1836 = vunpack.c.l.b16 %v477
  %v1837 = vunpack.c.h.b16 %v477
  %v1838 = vunpack.c.l.b16 %v478
  %v1839 = vunpack.c.l.b16 %v479
  %v1840 = vunpack.c.h.b16 %v479
  %v1841 = vunpack.c.l.b16 %v480
  %v1842 = vunpack.c.l.b16 %v481
  %v1843 = vunpack.c.h.b16 %v481
  %v1844 = vunpack.c.l.b16 %v482
  %v1845 = vunpack.c.l.b16 %v483
  %v1846 = vunpack.c.h.b16 %v483
  %v1847 = vunpack.c.l.b16 %v484
  %v1848 = vunpack.c.l.b16 %v485
  %v1849 = vunpack.c.h.b16 %v485
  %v1850 = vunpack.c.l.b16 %v486
  %v1851 = vunpack.c.l.b16 %v487
  %v1852 = vunpack.c.h.b16 %v487
  %v1853 = vunpack.c.l.b16 %v488
  %v1854 = vunpack.c.l.b16 %v489
  %v1855 = vunpack.c.h.b16 %v489
  %v1856 = vunpack.c.l.b16 %v490
  %v1857 = vunpack.c.l.b16 %v491
  %v1858 = vunpack.c.h.b16 %v491
  %v1859 = vunpack.c.l.b16 %v492
  %v1860 = vunpack.c.l.b16 %v493
  %v1861 = vunpack.c.h.b16 %v493
  %v1862 = vunpack.c.l.b16 %v494
  %v1863 = vunpack.c.l.b16 %v495
  %v1864 = vunpack.c.h.b16 %v495
  %v1865 = vunpack.c.l.b16 %v496
  %v1866 = vunpack.c.l.b16 %v497
  %v1867 = vunpack.c.h.b16 %v497
  %v1868 = vunpack.c.l.b16 %v498
  %v1869 = vunpack.c.l.b16 %v499
  %v1870 = vunpack.c.h.b16 %v499
  %v1871 = vunpack.c.l.b16 %v500
  %v1872 = vunpack.c.l.b16 %v501
  %v1873 = vunpack.c.h.b16 %v501
  %v1874 = vunpack.c.l.b16 %v502
  %v1875 = vunpack.c.l.b16 %v503
  %v1876 = vunpack.c.h.b16 %v503
  %v1877 = vunpack.c.l.b16 %v504
  %v1878 = vunpack.c.l.b16 %v505
  %v1879 = vunpack.c.h.b16 %v505
  %v1880 = vunpack.c.l.b16 %v506
  %v1881 = vunpack.c.l.b16 %v507
  %v1882 = vunpack.c.h.b16 %v507
  %v1883 = vunpack.c.l.b16 %v508
  %v1884 = vunpack.c.l.b16 %v509
  %v1885 = vunpack.c.h.b16 %v509
  %v1886 = vunpack.c.l.b16 %v510
  %v1887 = vunpack.c.l.b16 %v511
  %v1888 = vunpack.c.h.b16 %v511
  %v1889 = vunpack.c.l.b16 %v512
  %v1890 = vunpack.c.l.b16 %v513
  %v1891 = vunpack.c.h.b16 %v513
  %v1892 = vunpack.c.l.b16 %v514
  %v1893 = vunpack.c.l.b16 %v515
  %v1894 = vunpack.c.h.b16 %v515
  %v1895 = vunpack.c.l.b16 %v516
  %v1896 = vunpack.c.l.b16 %v517
  %v1897 = vunpack.c.h.b16 %v517
  %v1898 = vunpack.c.l.b16 %v518
  %v1899 = vunpack.c.l.b16 %v519
  %v1900 = vunpack.c.h.b16 %v519
  %v1901 = vunpack.c.l.b16 %v520
  %v1902 = vunpack.c.l.b16 %v521
  %v1903 = vunpack.c.h.b16 %v521
  %v1904 = vunpack.c.l.b16 %v522
  %v1905 = vpack.c.b16 %v1158, %v1155
  %v1906 = vpack.c.b16 %v1159, %v1156
  %v1907 = vpack.c.b16 %v1160, %v1157
  %v1908 = vpack.c.b16 %v1164, %v1161
  %v1909 = vpack.c.b16 %v1165, %v1162
  %v1910 = vpack.c.b16 %v1166, %v1163
  %v1911 = vpack.c.b16 %v1170, %v1167
  %v1912 = vpack.c.b16 %v1171, %v1168
  %v1913 = vpack.c.b16 %v1172, %v1169
  %v1914 = vpack.c.b16 %v1176, %v1173
  %v1915 = vpack.c.b16 %v1177, %v1174
  %v1916 = vpack.c.b16 %v1178, %v1175
  %v1917 = vpack.c.b16 %v1182, %v1179
  %v1918 = vpack.c.b16 %v1183, %v1180
  %v1919 = vpack.c.b16 %v1184, %v1181
  %v1920 = vpack.c.b16 %v1188, %v1185
  %v1921 = vpack.c.b16 %v1189, %v1186
  %v1922 = vpack.c.b16 %v1190, %v1187
  %v1923 = vpack.c.b16 %v1194, %v1191
  %v1924 = vpack.c.b16 %v1195, %v1192
  %v1925 = vpack.c.b16 %v1196, %v1193
  %v1926 = vpack.c.b16 %v1200, %v1197
  %v1927 = vpack.c.b16 %v1201, %v1198
  %v1928 = vpack.c.b16 %v1202, %v1199
  %v1929 = vpack.c.b16 %v1206, %v1203
  %v1930 = vpack.c.b16 %v1207, %v1204
  %v1931 = vpack.c.b16 %v1208, %v1205
  %v1932 = vpack.c.b16 %v1212, %v1209
  %v1933 = vpack.c.b16 %v1213, %v1210
  %v1934 = vpack.c.b16 %v1214, %v1211
  %v1935 = vpack.c.b16 %v1218, %v1215
  %v1936 = vpack.c.b16 %v1219, %v1216
  %v1937 = vpack.c.b16 %v1220, %v1217
  %v1938 = vpack.c.b16 %v1224, %v1221
  %v1939 = vpack.c.b16 %v1225, %v1222
  %v1940 = vpack.c.b16 %v1226, %v1223
  %v1941 = vpack.c.b16 %v1230, %v1227
  %v1942 = vpack.c.b16 %v1231, %v1228
  %v1943 = vpack.c.b16 %v1232, %v1229
  %v1944 = vpack.c.b16 %v1236, %v1233
  %v1945 = vpack.c.b16 %v1237, %v1234
  %v1946 = vpack.c.b16 %v1238, %v1235
  %v1947 = vpack.c.b16 %v1242, %v1239
  %v1948 = vpack.c.b16 %v1243, %v1240
  %v1949 = vpack.c.b16 %v1244, %v1241
  %v1950 = vpack.c.b16 %v1248, %v1245
  %v1951 = vpack.c.b16 %v1249, %v1246
  %v1952 = vpack.c.b16 %v1250, %v1247
  %v1953 = vpack.c.b16 %v1254, %v1251
  %v1954 = vpack.c.b16 %v1255, %v1252
  %v1955 = vpack.c.b16 %v1256, %v1253
  %v1956 = vpack.c.b16 %v1260, %v1257
  %v1957 = vpack.c.b16 %v1261, %v1258
  %v1958 = vpack.c.b16 %v1262, %v1259
  %v1959 = vpack.c.b16 %v1266, %v1263
  %v1960 = vpack.c.b16 %v1267, %v1264
  %v1961 = vpack.c.b16 %v1268, %v1265
  %v1962 = vpack.c.b16 %v1272, %v1269
  %v1963 = vpack.c.b16 %v1273, %v1270
  %v1964 = vpack.c.b16 %v1274, %v1271
  %v1965 = vpack.c.b16 %v1278, %v1275
  %v1966 = vpack.c.b16 %v1279, %v1276
  %v1967 = vpack.c.b16 %v1280, %v1277
  %v1968 = vpack.c.b16 %v1284, %v1281
  %v1969 = vpack.c.b16 %v1285, %v1282
  %v1970 = vpack.c.b16 %v1286, %v1283
  %v1971 = vpack.c.b16 %v1290, %v1287
  %v1972 = vpack.c.b16 %v1291, %v1288
  %v1973 = vpack.c.b16 %v1292, %v1289
  %v1974 = vpack.c.b16 %v1296, %v1293
  %v1975 = vpack.c.b16 %v1297, %v1294
  %v1976 = vpack.c.b16 %v1298, %v1295
  %v1977 = vpack.c.b16 %v1302, %v1299
  %v1978 = vpack.c.b16 %v1303, %v1300
  %v1979 = vpack.c.b16 %v1304, %v1301
  %v1980 = vpack.c.b16 %v1308, %v1305
  %v1981 = vpack.c.b16 %v1309, %v1306
  %v1982 = vpack.c.b16 %v1310, %v1307
  %v1983 = vpack.c.b16 %v1314, %v1311
  %v1984 = vpack.c.b16 %v1315, %v1312
  %v1985 = vpack.c.b16 %v1316, %v1313
  %v1986 = vpack.c.b16 %v1320, %v1317
  %v1987 = vpack.c.b16 %v1321, %v1318
  %v1988 = vpack.c.b16 %v1322, %v1319
  %v1989 = vpack.c.b16 %v1326, %v1323
  %v1990 = vpack.c.b16 %v1327, %v1324
  %v1991 = vpack.c.b16 %v1328, %v1325
  %v1992 = vpack.c.b16 %v1332, %v1329
  %v1993 = vpack.c.b16 %v1333, %v1330
  %v1994 = vpack.c.b16 %v1334, %v1331
  %v1995 = vpack.c.b16 %v1338, %v1335
  %v1996 = vpack.c.b16 %v1339, %v1336
  %v1997 = vpack.c.b16 %v1340, %v1337
  %v1998 = vpack.c.b16 %v1344, %v1341
  %v1999 = vpack.c.b16 %v1345, %v1342
  %v2000 = vpack.c.b16 %v1346, %v1343
  %v2001 = vpack.c.b16 %v1350, %v1347
  %v2002 = vpack.c.b16 %v1351, %v1348
  %v2003 = vpack.c.b16 %v1352, %v1349
  %v2004 = vpack.c.b16 %v1356, %v1353
  %v2005 = vpack.c.b16 %v1357, %v1354
  %v2006 = vpack.c.b16 %v1358, %v1355
  %v2007 = vpack.c.b16 %v1362, %v1359
  %v2008 = vpack.c.b16 %v1363, %v1360
  %v2009 = vpack.c.b16 %v1364, %v1361
  %v2010 = vpack.c.b16 %v1368, %v1365
  %v2011 = vpack.c.b16 %v1369, %v1366
  %v2012 = vpack.c.b16 %v1370, %v1367
  %v2013 = vpack.c.b16 %v1374, %v1371
  %v2014 = vpack.c.b16 %v1375, %v1372
  %v2015 = vpack.c.b16 %v1376, %v1373
  %v2016 = vpack.c.b16 %v1380, %v1377
  %v2017 = vpack.c.b16 %v1381, %v1378
  %v2018 = vpack.c.b16 %v1382, %v1379
  %v2019 = vpack.c.b16 %v1386, %v1383
  %v2020 = vpack.c.b16 %v1387, %v1384
  %v2021 = vpack.c.b16 %v1388, %v1385
  %v2022 = vpack.c.b16 %v1392, %v1389
  %v2023 = vpack.c.b16 %v1393, %v1390
  %v2024 = vpack.c.b16 %v1394, %v1391
  %v2025 = vpack.c.b16 %v1398, %v1395
  %v2026 = vpack.c.b16 %v1399, %v1396
  %v2027 = vpack.c.b16 %v1400, %v1397
  %v2028 = vpack.c.b16 %v1404, %v1401
  %v2029 = vpack.c.b16 %v1405, %v1402
  %v2030 = vpack.c.b16 %v1406, %v1403
  %v2031 = vpack.c.b16 %v1410, %v1407
  %v2032 = vpack.c.b16 %v1411, %v1408
  %v2033 = vpack.c.b16 %v1412, %v1409
  %v2034 = vpack.c.b16 %v1416, %v1413
  %v2035 = vpack.c.b16 %v1417, %v1414
  %v2036 = vpack.c.b16 %v1418, %v1415
  %v2037 = vpack.c.b16 %v1422, %v1419
  %v2038 = vpack.c.b16 %v1423, %v1420
  %v2039 = vpack.c.b16 %v1424, %v1421
  %v2040 = vpack.c.b16 %v1428, %v1425
  %v2041 = vpack.c.b16 %v1429, %v1426
  %v2042 = vpack.c.b16 %v1430, %v1427
  %v2043 = vpack.c.b16 %v1434, %v1431
  %v2044 = vpack.c.b16 %v1435, %v1432
  %v2045 = vpack.c.b16 %v1436, %v1433
  %v2046 = vpack.c.b16 %v1440, %v1437
  %v2047 = vpack.c.b16 %v1441, %v1438
  %v2048 = vpack.c.b16 %v1442, %v1439
  %v2049 = vpack.c.b16 %v1446, %v1443
  %v2050 = vpack.c.b16 %v1447, %v1444
  %v2051 = vpack.c.b16 %v1448, %v1445
  %v2052 = vpack.c.b16 %v1452, %v1449
  %v2053 = vpack.c.b16 %v1453, %v1450
  %v2054 = vpack.c.b16 %v1454, %v1451
  %v2055 = vpack.c.b16 %v1458, %v1455
  %v2056 = vpack.c.b16 %v1459, %v1456
  %v2057 = vpack.c.b16 %v1460, %v1457
  %v2058 = vpack.c.b16 %v1464, %v1461
  %v2059 = vpack.c.b16 %v1465, %v1462
  %v2060 = vpack.c.b16 %v1466, %v1463
  %v2061 = vpack.c.b16 %v1470, %v1467
  %v2062 = vpack.c.b16 %v1471, %v1468
  %v2063 = vpack.c.b16 %v1472, %v1469
  %v2064 = vpack.c.b16 %v1476, %v1473
  %v2065 = vpack.c.b16 %v1477, %v1474
  %v2066 = vpack.c.b16 %v1478, %v1475
  %v2067 = vpack.c.b16 %v1482, %v1479
  %v2068 = vpack.c.b16 %v1483, %v1480
  %v2069 = vpack.c.b16 %v1484, %v1481
  %v2070 = vpack.c.b16 %v1488, %v1485
  %v2071 = vpack.c.b16 %v1489, %v1486
  %v2072 = vpack.c.b16 %v1490, %v1487
  %v2073 = vpack.c.b16 %v1494, %v1491
  %v2074 = vpack.c.b16 %v1495, %v1492
  %v2075 = vpack.c.b16 %v1496, %v1493
  %v2076 = vpack.c.b16 %v1500, %v1497
  %v2077 = vpack.c.b16 %v1501, %v1498
  %v2078 = vpack.c.b16 %v1502, %v1499
  %v2079 = vpack.c.b16 %v1506, %v1503
  %v2080 = vpack.c.b16 %v1507, %v1504
  %v2081 = vpack.c.b16 %v1508, %v1505
  %v2082 = vpack.c.b16 %v1512, %v1509
  %v2083 = vpack.c.b16 %v1513, %v1510
  %v2084 = vpack.c.b16 %v1514, %v1511
  %v2085 = vpack.c.b16 %v1518, %v1515
  %v2086 = vpack.c.b16 %v1519, %v1516
  %v2087 = vpack.c.b16 %v1520, %v1517
  %v2088 = vpack.c.b16 %v1524, %v1521
  %v2089 = vpack.c.b16 %v1525, %v1522
  %v2090 = vpack.c.b16 %v1526, %v1523
  %v2091 = vpack.c.b16 %v1530, %v1527
  %v2092 = vpack.c.b16 %v1531, %v1528
  %v2093 = vpack.c.b16 %v1532, %v1529
  %v2094 = vpack.c.b16 %v1536, %v1533
  %v2095 = vpack.c.b16 %v1537, %v1534
  %v2096 = vpack.c.b16 %v1538, %v1535
  %v2097 = vpack.c.b16 %v1542, %v1539
  %v2098 = vpack.c.b16 %v1543, %v1540
  %v2099 = vpack.c.b16 %v1544, %v1541
  %v2100 = vpack.c.b16 %v1548, %v1545
  %v2101 = vpack.c.b16 %v1549, %v1546
  %v2102 = vpack.c.b16 %v1550, %v1547
  %v2103 = vpack.c.b16 %v1554, %v1551
  %v2104 = vpack.c.b16 %v1555, %v1552
  %v2105 = vpack.c.b16 %v1556, %v1553
  %v2106 = vpack.c.b16 %v1560, %v1557
  %v2107 = vpack.c.b16 %v1561, %v1558
  %v2108 = vpack.c.b16 %v1562, %v1559
  %v2109 = vpack.c.b16 %v1566, %v1563
  %v2110 = vpack.c.b16 %v1567, %v1564
  %v2111 = vpack.c.b16 %v1568, %v1565
  %v2112 = vpack.c.b16 %v1572, %v1569
  %v2113 = vpack.c.b16 %v1573, %v1570
  %v2114 = vpack.c.b16 %v1574, %v1571
  %v2115 = vpack.c.b16 %v1578, %v1575
  %v2116 = vpack.c.b16 %v1579, %v1576
  %v2117 = vpack.c.b16 %v1580, %v1577
  %v2118 = vpack.c.b16 %v1584, %v1581
  %v2119 = vpack.c.b16 %v1585, %v1582
  %v2120 = vpack.c.b16 %v1586, %v1583
  %v2121 = vpack.c.b16 %v1590, %v1587
  %v2122 = vpack.c.b16 %v1591, %v1588
  %v2123 = vpack.c.b16 %v1592, %v1589
  %v2124 = vpack.c.b16 %v1596, %v1593
  %v2125 = vpack.c.b16 %v1597, %v1594
  %v2126 = vpack.c.b16 %v1598, %v1595
  %v2127 = vpack.c.b16 %v1602, %v1599
  %v2128 = vpack.c.b16 %v1603, %v1600
  %v2129 = vpack.c.b16 %v1604, %v1601
  %v2130 = vpack.c.b16 %v1608, %v1605
  %v2131 = vpack.c.b16 %v1609, %v1606
  %v2132 = vpack.c.b16 %v1610, %v1607
  %v2133 = vpack.c.b16 %v1614, %v1611
  %v2134 = vpack.c.b16 %v1615, %v1612
  %v2135 = vpack.c.b16 %v1616, %v1613
  %v2136 = vpack.c.b16 %v1620, %v1617
  %v2137 = vpack.c.b16 %v1621, %v1618
  %v2138 = vpack.c.b16 %v1622, %v1619
  %v2139 = vpack.c.b16 %v1626, %v1623
  %v2140 = vpack.c.b16 %v1627, %v1624
  %v2141 = vpack.c.b16 %v1628, %v1625
  %v2142 = vpack.c.b16 %v1632, %v1629
  %v2143 = vpack.c.b16 %v1633, %v1630
  %v2144 = vpack.c.b16 %v1634, %v1631
  %v2145 = vpack.c.b16 %v1638, %v1635
  %v2146 = vpack.c.b16 %v1639, %v1636
  %v2147 = vpack.c.b16 %v1640, %v1637
  %v2148 = vpack.c.b16 %v1644, %v1641
  %v2149 = vpack.c.b16 %v1645, %v1642
  %v2150 = vpack.c.b16 %v1646, %v1643
  %v2151 = vpack.c.b16 %v1650, %v1647
  %v2152 = vpack.c.b16 %v1651, %v1648
  %v2153 = vpack.c.b16 %v1652, %v1649
  %v2154 = vpack.c.b16 %v1656, %v1653
  %v2155 = vpack.c.b16 %v1657, %v1654
  %v2156 = vpack.c.b16 %v1658, %v1655
  %v2157 = vpack.c.b16 %v1662, %v1659
  %v2158 = vpack.c.b16 %v1663, %v1660
  %v2159 = vpack.c.b16 %v1664, %v1661
  %v2160 = vpack.c.b16 %v1668, %v1665
  %v2161 = vpack.c.b16 %v1669, %v1666
  %v2162 = vpack.c.b16 %v1670, %v1667
  %v2163 = vpack.c.b16 %v1674, %v1671
  %v2164 = vpack.c.b16 %v1675, %v1672
  %v2165 = vpack.c.b16 %v1676, %v1673
  %v2166 = vpack.c.b16 %v1680, %v1677
  %v2167 = vpack.c.b16 %v1681, %v1678
  %v2168 = vpack.c.b16 %v1682, %v1679
  %v2169 = vpack.c.b16 %v1686, %v1683
  %v2170 = vpack.c.b16 %v1687, %v1684
  %v2171 = vpack.c.b16 %v1688, %v1685
  %v2172 = vpack.c.b16 %v1692, %v1689
  %v2173 = vpack.c.b16 %v1693, %v1690
  %v2174 = vpack.c.b16 %v1694, %v1691
  %v2175 = vpack.c.b16 %v1698, %v1695
  %v2176 = vpack.c.b16 %v1699, %v1696
  %v2177 = vpack.c.b16 %v1700, %v1697
  %v2178 = vpack.c.b16 %v1704, %v1701
  %v2179 = vpack.c.b16 %v1705, %v1702
  %v2180 = vpack.c.b16 %v1706, %v1703
  %v2181 = vpack.c.b16 %v1710, %v1707
  %v2182 = vpack.c.b16 %v1711, %v1708
  %v2183 = vpack.c.b16 %v1712, %v1709
  %v2184 = vpack.c.b16 %v1716, %v1713
  %v2185 = vpack.c.b16 %v1717, %v1714
  %v2186 = vpack.c.b16 %v1718, %v1715
  %v2187 = vpack.c.b16 %v1722, %v1719
  %v2188 = vpack.c.b16 %v1723, %v1720
  %v2189 = vpack.c.b16 %v1724, %v1721
  %v2190 = vpack.c.b16 %v1728, %v1725
  %v2191 = vpack.c.b16 %v1729, %v1726
  %v2192 = vpack.c.b16 %v1730, %v1727
  %v2193 = vpack.c.b16 %v1734, %v1731
  %v2194 = vpack.c.b16 %v1735, %v1732
  %v2195 = vpack.c.b16 %v1736, %v1733
  %v2196 = vpack.c.b16 %v1740, %v1737
  %v2197 = vpack.c.b16 %v1741, %v1738
  %v2198 = vpack.c.b16 %v1742, %v1739
  %v2199 = vpack.c.b16 %v1746, %v1743
  %v2200 = vpack.c.b16 %v1747, %v1744
  %v2201 = vpack.c.b16 %v1748, %v1745
  %v2202 = vpack.c.b16 %v1752, %v1749
  %v2203 = vpack.c.b16 %v1753, %v1750
  %v2204 = vpack.c.b16 %v1754, %v1751
  %v2205 = vpack.c.b16 %v1758, %v1755
  %v2206 = vpack.c.b16 %v1759, %v1756
  %v2207 = vpack.c.b16 %v1760, %v1757
  %v2208 = vpack.c.b16 %v1764, %v1761
  %v2209 = vpack.c.b16 %v1765, %v1762
  %v2210 = vpack.c.b16 %v1766, %v1763
  %v2211 = vpack.c.b16 %v1770, %v1767
  %v2212 = vpack.c.b16 %v1771, %v1768
  %v2213 = vpack.c.b16 %v1772, %v1769
  %v2214 = vpack.c.b16 %v1776, %v1773
  %v2215 = vpack.c.b16 %v1777, %v1774
  %v2216 = vpack.c.b16 %v1778, %v1775
  %v2217 = vpack.c.b16 %v1782, %v1779
  %v2218 = vpack.c.b16 %v1783, %v1780
  %v2219 = vpack.c.b16 %v1784, %v1781
  %v2220 = vpack.c.b16 %v1788, %v1785
  %v2221 = vpack.c.b16 %v1789, %v1786
  %v2222 = vpack.c.b16 %v1790, %v1787
  %v2223 = vpack.c.b16 %v1794, %v1791
  %v2224 = vpack.c.b16 %v1795, %v1792
  %v2225 = vpack.c.b16 %v1796, %v1793
  %v2226 = vpack.c.b16 %v1800, %v1797
  %v2227 = vpack.c.b16 %v1801, %v1798
  %v2228 = vpack.c.b16 %v1802, %v1799
  %v2229 = vpack.c.b16 %v1806, %v1803
  %v2230 = vpack.c.b16 %v1807, %v1804
  %v2231 = vpack.c.b16 %v1808, %v1805
  %v2232 = vpack.c.b16 %v1812, %v1809
  %v2233 = vpack.c.b16 %v1813, %v1810
  %v2234 = vpack.c.b16 %v1814, %v1811
  %v2235 = vpack.c.b16 %v1818, %v1815
  %v2236 = vpack.c.b16 %v1819, %v1816
  %v2237 = vpack.c.b16 %v1820, %v1817
  %v2238 = vpack.c.b16 %v1824, %v1821
  %v2239 = vpack.c.b16 %v1825, %v1822
  %v2240 = vpack.c.b16 %v1826, %v1823
  %v2241 = vpack.c.b16 %v1830, %v1827
  %v2242 = vpack.c.b16 %v1831, %v1828
  %v2243 = vpack.c.b16 %v1832, %v1829
  %v2244 = vpack.c.b16 %v1836, %v1833
  %v2245 = vpack.c.b16 %v1837, %v1834
  %v2246 = vpack.c.b16 %v1838, %v1835
  %v2247 = vpack.c.b16 %v1842, %v1839
  %v2248 = vpack.c.b16 %v1843, %v1840
  %v2249 = vpack.c.b16 %v1844, %v1841
  %v2250 = vpack.c.b16 %v1848, %v1845
  %v2251 = vpack.c.b16 %v1849, %v1846
  %v2252 = vpack.c.b16 %v1850, %v1847
  %v2253 = vpack.c.b16 %v1854, %v1851
  %v2254 = vpack.c.b16 %v1855, %v1852
  %v2255 = vpack.c.b16 %v1856, %v1853
  %v2256 = vpack.c.b16 %v1860, %v1857
  %v2257 = vpack.c.b16 %v1861, %v1858
  %v2258 = vpack.c.b16 %v1862, %v1859
  %v2259 = vpack.c.b16 %v1866, %v1863
  %v2260 = vpack.c.b16 %v1867, %v1864
  %v2261 = vpack.c.b16 %v1868, %v1865
  %v2262 = vpack.c.b16 %v1872, %v1869
  %v2263 = vpack.c.b16 %v1873, %v1870
  %v2264 = vpack.c.b16 %v1874, %v1871
  %v2265 = vpack.c.b16 %v1878, %v1875
  %v2266 = vpack.c.b16 %v1879, %v1876
  %v2267 = vpack.c.b16 %v1880, %v1877
  %v2268 = vpack.c.b16 %v1884, %v1881
  %v2269 = vpack.c.b16 %v1885, %v1882
  %v2270 = vpack.c.b16 %v1886, %v1883
  %v2271 = vpack.c.b16 %v1890, %v1887
  %v2272 = vpack.c.b16 %v1891, %v1888
  %v2273 = vpack.c.b16 %v1892, %v1889
  %v2274 = vpack.c.b16 %v1896, %v1893
  %v2275 = vpack.c.b16 %v1897, %v1894
  %v2276 = vpack.c.b16 %v1898, %v1895
  %v2277 = vpack.c.b16 %v1902, %v1899
  %v2278 = vpack.c.b16 %v1903, %v1900
  %v2279 = vpack.c.b16 %v1904, %v1901
  %vm2655 = vcmask 654336
  %v2657 = vsel %vm2655, %v639, 0
  %2659 = vmatprep.subr.bf16.mxu0 %v1906
  %2660 = vmatpush1.bf16.msra.mxu0 %v1905
  %2661 = vmatprep.subr.bf16.mxu0 %v1909
  %2662 = vmatpush1.bf16.msra.mxu0 %v1908
  %2663 = vmatprep.subr.bf16.mxu0 %v1912
  %2664 = vmatpush1.bf16.msra.mxu0 %v1911
  %2665 = vmatprep.subr.bf16.mxu0 %v1915
  %2666 = vmatpush1.bf16.msra.mxu0 %v1914
  %2667 = vmatprep.subr.bf16.mxu0 %v1918
  %2668 = vmatpush1.bf16.msra.mxu0 %v1917
  %2669 = vmatprep.subr.bf16.mxu0 %v1921
  %2670 = vmatpush1.bf16.msra.mxu0 %v1920
  %2671 = vmatprep.subr.bf16.mxu0 %v1924
  %2672 = vmatpush1.bf16.msra.mxu0 %v1923
  %2673 = vmatprep.subr.bf16.mxu0 %v1927
  %2674 = vmatpush1.bf16.msra.mxu0 %v1926
  %2675 = vmatprep.subr.bf16.mxu0 %v1930
  %2676 = vmatpush1.bf16.msra.mxu0 %v1929
  %2677 = vmatprep.subr.bf16.mxu0 %v1933
  %2678 = vmatpush1.bf16.msra.mxu0 %v1932
  %2679 = vmatprep.subr.bf16.mxu0 %v1936
  %2680 = vmatpush1.bf16.msra.mxu0 %v1935
  %2681 = vmatprep.subr.bf16.mxu0 %v1939
  %2682 = vmatpush1.bf16.msra.mxu0 %v1938
  %2683 = vmatprep.subr.bf16.mxu0 %v1942
  %2684 = vmatpush1.bf16.msra.mxu0 %v1941
  %2685 = vmatprep.subr.bf16.mxu0 %v1945
  %2686 = vmatpush1.bf16.msra.mxu0 %v1944
  %2687 = vmatprep.subr.bf16.mxu0 %v1948
  %2688 = vmatpush1.bf16.msra.mxu0 %v1947
  %2689 = vmatprep.subr.bf16.mxu0 %v1951
  %2690 = vmatpush1.bf16.msra.mxu0 %v1950
  %2691 = vmatprep.mubr.bf16.mxu0 %v579
  %2692 = vmatmul.mubr.bf16.gmra.mrb[0].mxu0 %v565
  %v2693 = vpop.f32.mrb[0].mxu0
  %v2694 = vadd.f32 %v528, %v2693
  %v2695 = vpop.f32.mrb[0].mxu0
  %v2696 = vadd.f32 %v532, %v2695
  %v2697 = vpop.f32.mrb[0].mxu0
  %v2698 = vpop.f32.mrb[0].mxu0
  %2699 = vdwg.mxu0
  %2700 = vmatprep.subr.bf16.mxu0 %v1954
  %2701 = vmatpush1.bf16.msra.mxu0 %v1953
  %2702 = vmatprep.subr.bf16.mxu0 %v1957
  %2703 = vmatpush1.bf16.msra.mxu0 %v1956
  %2704 = vmatprep.subr.bf16.mxu0 %v1960
  %2705 = vmatpush1.bf16.msra.mxu0 %v1959
  %2706 = vmatprep.subr.bf16.mxu0 %v1963
  %2707 = vmatpush1.bf16.msra.mxu0 %v1962
  %2708 = vmatprep.subr.bf16.mxu0 %v1966
  %2709 = vmatpush1.bf16.msra.mxu0 %v1965
  %2710 = vmatprep.subr.bf16.mxu0 %v1969
  %2711 = vmatpush1.bf16.msra.mxu0 %v1968
  %2712 = vmatprep.subr.bf16.mxu0 %v1972
  %2713 = vmatpush1.bf16.msra.mxu0 %v1971
  %2714 = vmatprep.subr.bf16.mxu0 %v1975
  %2715 = vmatpush1.bf16.msra.mxu0 %v1974
  %2716 = vmatprep.subr.bf16.mxu0 %v1978
  %2717 = vmatpush1.bf16.msra.mxu0 %v1977
  %2718 = vmatprep.subr.bf16.mxu0 %v1981
  %2719 = vmatpush1.bf16.msra.mxu0 %v1980
  %2720 = vmatprep.subr.bf16.mxu0 %v1984
  %2721 = vmatpush1.bf16.msra.mxu0 %v1983
  %2722 = vmatprep.subr.bf16.mxu0 %v1987
  %2723 = vmatpush1.bf16.msra.mxu0 %v1986
  %2724 = vmatprep.subr.bf16.mxu0 %v1990
  %2725 = vmatpush1.bf16.msra.mxu0 %v1989
  %2726 = vmatprep.subr.bf16.mxu0 %v1993
  %2727 = vmatpush1.bf16.msra.mxu0 %v1992
  %2728 = vmatprep.subr.bf16.mxu0 %v1996
  %2729 = vmatpush1.bf16.msra.mxu0 %v1995
  %2730 = vmatprep.subr.bf16.mxu0 %v1999
  %2731 = vmatpush1.bf16.msra.mxu0 %v1998
  %2732 = vmatprep.mubr.bf16.mxu0 %v589
  %2733 = vmatmul.mubr.bf16.gmra.mrb[0].mxu0 %v587
  %v2734 = vpop.f32.mrb[0].mxu0
  %v2735 = vadd.f32 %v2694, %v2734
  %v2736 = vpop.f32.mrb[0].mxu0
  %v2737 = vadd.f32 %v2696, %v2736
  %v2738 = vpop.f32.mrb[0].mxu0
  %v2739 = vpop.f32.mrb[0].mxu0
  %2740 = vdwg.mxu0
  %2741 = vmatprep.subr.bf16.mxu0 %v2002
  %2742 = vmatpush1.bf16.msra.mxu0 %v2001
  %2743 = vmatprep.subr.bf16.mxu0 %v2005
  %2744 = vmatpush1.bf16.msra.mxu0 %v2004
  %2745 = vmatprep.subr.bf16.mxu0 %v2008
  %2746 = vmatpush1.bf16.msra.mxu0 %v2007
  %2747 = vmatprep.subr.bf16.mxu0 %v2011
  %2748 = vmatpush1.bf16.msra.mxu0 %v2010
  %2749 = vmatprep.subr.bf16.mxu0 %v2014
  %2750 = vmatpush1.bf16.msra.mxu0 %v2013
  %2751 = vmatprep.subr.bf16.mxu0 %v2017
  %2752 = vmatpush1.bf16.msra.mxu0 %v2016
  %2753 = vmatprep.subr.bf16.mxu0 %v2020
  %2754 = vmatpush1.bf16.msra.mxu0 %v2019
  %2755 = vmatprep.subr.bf16.mxu0 %v2023
  %2756 = vmatpush1.bf16.msra.mxu0 %v2022
  %2757 = vmatprep.subr.bf16.mxu0 %v2026
  %2758 = vmatpush1.bf16.msra.mxu0 %v2025
  %2759 = vmatprep.subr.bf16.mxu0 %v2029
  %2760 = vmatpush1.bf16.msra.mxu0 %v2028
  %2761 = vmatprep.subr.bf16.mxu0 %v2032
  %2762 = vmatpush1.bf16.msra.mxu0 %v2031
  %2763 = vmatprep.subr.bf16.mxu0 %v2035
  %2764 = vmatpush1.bf16.msra.mxu0 %v2034
  %2765 = vmatprep.subr.bf16.mxu0 %v2038
  %2766 = vmatpush1.bf16.msra.mxu0 %v2037
  %2767 = vmatprep.subr.bf16.mxu0 %v2041
  %2768 = vmatpush1.bf16.msra.mxu0 %v2040
  %2769 = vmatprep.subr.bf16.mxu0 %v2044
  %2770 = vmatpush1.bf16.msra.mxu0 %v2043
  %2771 = vmatprep.subr.bf16.mxu0 %v2047
  %2772 = vmatpush1.bf16.msra.mxu0 %v2046
  %2773 = vmatprep.mubr.bf16.mxu0 %v586
  %2774 = vmatmul.mubr.bf16.gmra.mrb[0].mxu0 %v572
  %v2775 = vpop.f32.mrb[0].mxu0
  %v2776 = vadd.f32 %v2735, %v2775
  %v2777 = vpop.f32.mrb[0].mxu0
  %v2778 = vadd.f32 %v2737, %v2777
  %v2779 = vpop.f32.mrb[0].mxu0
  %v2780 = vpop.f32.mrb[0].mxu0
  %2781 = vdwg.mxu0
  %2782 = vmatprep.subr.bf16.mxu0 %v2050
  %2783 = vmatpush1.bf16.msra.mxu0 %v2049
  %2784 = vmatprep.subr.bf16.mxu0 %v2053
  %2785 = vmatpush1.bf16.msra.mxu0 %v2052
  %2786 = vmatprep.subr.bf16.mxu0 %v2056
  %2787 = vmatpush1.bf16.msra.mxu0 %v2055
  %2788 = vmatprep.subr.bf16.mxu0 %v2059
  %2789 = vmatpush1.bf16.msra.mxu0 %v2058
  %2790 = vmatprep.subr.bf16.mxu0 %v2062
  %2791 = vmatpush1.bf16.msra.mxu0 %v2061
  %2792 = vmatprep.subr.bf16.mxu0 %v2065
  %2793 = vmatpush1.bf16.msra.mxu0 %v2064
  %2794 = vmatprep.subr.bf16.mxu0 %v2068
  %2795 = vmatpush1.bf16.msra.mxu0 %v2067
  %2796 = vmatprep.subr.bf16.mxu0 %v2071
  %2797 = vmatpush1.bf16.msra.mxu0 %v2070
  %2798 = vmatprep.subr.bf16.mxu0 %v2074
  %2799 = vmatpush1.bf16.msra.mxu0 %v2073
  %2800 = vmatprep.subr.bf16.mxu0 %v2077
  %2801 = vmatpush1.bf16.msra.mxu0 %v2076
  %2802 = vmatprep.subr.bf16.mxu0 %v2080
  %2803 = vmatpush1.bf16.msra.mxu0 %v2079
  %2804 = vmatprep.subr.bf16.mxu0 %v2083
  %2805 = vmatpush1.bf16.msra.mxu0 %v2082
  %2806 = vmatprep.subr.bf16.mxu0 %v2086
  %2807 = vmatpush1.bf16.msra.mxu0 %v2085
  %2808 = vmatprep.subr.bf16.mxu0 %v2089
  %2809 = vmatpush1.bf16.msra.mxu0 %v2088
  %2810 = vmatprep.subr.bf16.mxu0 %v2092
  %2811 = vmatpush1.bf16.msra.mxu0 %v2091
  %2812 = vmatprep.subr.bf16.mxu0 %v2095
  %2813 = vmatpush1.bf16.msra.mxu0 %v2094
  %2814 = vmatprep.mubr.bf16.mxu0 %v590
  %2815 = vmatmul.mubr.bf16.gmra.mrb[0].mxu0 %v588
  %v2816 = vpop.f32.mrb[0].mxu0
  %v2817 = vadd.f32 %v2776, %v2816
  %v2818 = vpop.f32.mrb[0].mxu0
  %v2819 = vadd.f32 %v2778, %v2818
  %v2820 = vpop.f32.mrb[0].mxu0
  %v2821 = vpop.f32.mrb[0].mxu0
  %2822 = vdwg.mxu0
  %2823 = vmatprep.subr.bf16.mxu0 %v2098
  %2824 = vmatpush1.bf16.msra.mxu0 %v2097
  %2825 = vmatprep.subr.bf16.mxu0 %v2101
  %2826 = vmatpush1.bf16.msra.mxu0 %v2100
  %2827 = vmatprep.subr.bf16.mxu0 %v2104
  %2828 = vmatpush1.bf16.msra.mxu0 %v2103
  %2829 = vmatprep.subr.bf16.mxu0 %v2107
  %2830 = vmatpush1.bf16.msra.mxu0 %v2106
  %2831 = vmatprep.subr.bf16.mxu0 %v2110
  %2832 = vmatpush1.bf16.msra.mxu0 %v2109
  %2833 = vmatprep.subr.bf16.mxu0 %v2113
  %2834 = vmatpush1.bf16.msra.mxu0 %v2112
  %2835 = vmatprep.subr.bf16.mxu0 %v2116
  %2836 = vmatpush1.bf16.msra.mxu0 %v2115
  %2837 = vmatprep.subr.bf16.mxu0 %v2119
  %2838 = vmatpush1.bf16.msra.mxu0 %v2118
  %2839 = vmatprep.subr.bf16.mxu0 %v2122
  %2840 = vmatpush1.bf16.msra.mxu0 %v2121
  %2841 = vmatprep.subr.bf16.mxu0 %v2125
  %2842 = vmatpush1.bf16.msra.mxu0 %v2124
  %2843 = vmatprep.subr.bf16.mxu0 %v2128
  %2844 = vmatpush1.bf16.msra.mxu0 %v2127
  %2845 = vmatprep.subr.bf16.mxu0 %v2131
  %2846 = vmatpush1.bf16.msra.mxu0 %v2130
  %2847 = vmatprep.subr.bf16.mxu0 %v2134
  %2848 = vmatpush1.bf16.msra.mxu0 %v2133
  %2849 = vmatprep.subr.bf16.mxu0 %v2137
  %2850 = vmatpush1.bf16.msra.mxu0 %v2136
  %2851 = vmatprep.subr.bf16.mxu0 %v2140
  %2852 = vmatpush1.bf16.msra.mxu0 %v2139
  %2853 = vmatprep.subr.bf16.mxu0 %v2143
  %2854 = vmatpush1.bf16.msra.mxu0 %v2142
  %2855 = vmatprep.mubr.bf16.mxu0 %v628
  %2856 = vmatmul.mubr.bf16.gmra.mrb[0].mxu0 %v614
  %v2857 = vpop.f32.mrb[0].mxu0
  %v2858 = vadd.f32 %v2817, %v2857
  %v2859 = vpop.f32.mrb[0].mxu0
  %v2860 = vadd.f32 %v2819, %v2859
  %v2861 = vpop.f32.mrb[0].mxu0
  %v2862 = vpop.f32.mrb[0].mxu0
  %2863 = vdwg.mxu0
  %2864 = vmatprep.subr.bf16.mxu0 %v2146
  %2865 = vmatpush1.bf16.msra.mxu0 %v2145
  %2866 = vmatprep.subr.bf16.mxu0 %v2149
  %2867 = vmatpush1.bf16.msra.mxu0 %v2148
  %2868 = vmatprep.subr.bf16.mxu0 %v2152
  %2869 = vmatpush1.bf16.msra.mxu0 %v2151
  %2870 = vmatprep.subr.bf16.mxu0 %v2155
  %2871 = vmatpush1.bf16.msra.mxu0 %v2154
  %2872 = vmatprep.subr.bf16.mxu0 %v2158
  %2873 = vmatpush1.bf16.msra.mxu0 %v2157
  %2874 = vmatprep.subr.bf16.mxu0 %v2161
  %2875 = vmatpush1.bf16.msra.mxu0 %v2160
  %2876 = vmatprep.subr.bf16.mxu0 %v2164
  %2877 = vmatpush1.bf16.msra.mxu0 %v2163
  %2878 = vmatprep.subr.bf16.mxu0 %v2167
  %2879 = vmatpush1.bf16.msra.mxu0 %v2166
  %2880 = vmatprep.subr.bf16.mxu0 %v2170
  %2881 = vmatpush1.bf16.msra.mxu0 %v2169
  %2882 = vmatprep.subr.bf16.mxu0 %v2173
  %2883 = vmatpush1.bf16.msra.mxu0 %v2172
  %2884 = vmatprep.subr.bf16.mxu0 %v2176
  %2885 = vmatpush1.bf16.msra.mxu0 %v2175
  %2886 = vmatprep.subr.bf16.mxu0 %v2179
  %2887 = vmatpush1.bf16.msra.mxu0 %v2178
  %2888 = vmatprep.subr.bf16.mxu0 %v2182
  %2889 = vmatpush1.bf16.msra.mxu0 %v2181
  %2890 = vmatprep.subr.bf16.mxu0 %v2185
  %2891 = vmatpush1.bf16.msra.mxu0 %v2184
  %2892 = vmatprep.subr.bf16.mxu0 %v2188
  %2893 = vmatpush1.bf16.msra.mxu0 %v2187
  %2894 = vmatprep.subr.bf16.mxu0 %v2191
  %2895 = vmatpush1.bf16.msra.mxu0 %v2190
  %2896 = vmatprep.mubr.bf16.mxu0 %v638
  %2897 = vmatmul.mubr.bf16.gmra.mrb[0].mxu0 %v636
  %v2898 = vpop.f32.mrb[0].mxu0
  %v2899 = vadd.f32 %v2858, %v2898
  %v2900 = vpop.f32.mrb[0].mxu0
  %v2901 = vadd.f32 %v2860, %v2900
  %v2902 = vpop.f32.mrb[0].mxu0
  %v2903 = vpop.f32.mrb[0].mxu0
  %2904 = vdwg.mxu0
  %2905 = vmatprep.subr.bf16.mxu0 %v2194
  %2906 = vmatpush1.bf16.msra.mxu0 %v2193
  %2907 = vmatprep.subr.bf16.mxu0 %v2197
  %2908 = vmatpush1.bf16.msra.mxu0 %v2196
  %2909 = vmatprep.subr.bf16.mxu0 %v2200
  %2910 = vmatpush1.bf16.msra.mxu0 %v2199
  %2911 = vmatprep.subr.bf16.mxu0 %v2203
  %2912 = vmatpush1.bf16.msra.mxu0 %v2202
  %2913 = vmatprep.subr.bf16.mxu0 %v2206
  %2914 = vmatpush1.bf16.msra.mxu0 %v2205
  %2915 = vmatprep.subr.bf16.mxu0 %v2209
  %2916 = vmatpush1.bf16.msra.mxu0 %v2208
  %2917 = vmatprep.subr.bf16.mxu0 %v2212
  %2918 = vmatpush1.bf16.msra.mxu0 %v2211
  %2919 = vmatprep.subr.bf16.mxu0 %v2215
  %2920 = vmatpush1.bf16.msra.mxu0 %v2214
  %2921 = vmatprep.subr.bf16.mxu0 %v2218
  %2922 = vmatpush1.bf16.msra.mxu0 %v2217
  %2923 = vmatprep.subr.bf16.mxu0 %v2221
  %2924 = vmatpush1.bf16.msra.mxu0 %v2220
  %2925 = vmatprep.subr.bf16.mxu0 %v2224
  %2926 = vmatpush1.bf16.msra.mxu0 %v2223
  %2927 = vmatprep.subr.bf16.mxu0 %v2227
  %2928 = vmatpush1.bf16.msra.mxu0 %v2226
  %2929 = vmatprep.subr.bf16.mxu0 %v2230
  %2930 = vmatpush1.bf16.msra.mxu0 %v2229
  %2931 = vmatprep.subr.bf16.mxu0 %v2233
  %2932 = vmatpush1.bf16.msra.mxu0 %v2232
  %2933 = vmatprep.subr.bf16.mxu0 %v2236
  %2934 = vmatpush1.bf16.msra.mxu0 %v2235
  %2935 = vmatprep.subr.bf16.mxu0 %v2239
  %2936 = vmatpush1.bf16.msra.mxu0 %v2238
  %2937 = vmatprep.mubr.bf16.mxu0 %v635
  %2938 = vmatmul.mubr.bf16.gmra.mrb[0].mxu0 %v621
  %v2939 = vpop.f32.mrb[0].mxu0
  %v2940 = vadd.f32 %v2899, %v2939
  %v2941 = vpop.f32.mrb[0].mxu0
  %v2942 = vadd.f32 %v2901, %v2941
  %v2943 = vpop.f32.mrb[0].mxu0
  %v2944 = vpop.f32.mrb[0].mxu0
  %2945 = vdwg.mxu0
  %2946 = vmatprep.subr.bf16.mxu0 %v2242
  %2947 = vmatpush1.bf16.msra.mxu0 %v2241
  %2948 = vmatprep.subr.bf16.mxu0 %v2245
  %2949 = vmatpush1.bf16.msra.mxu0 %v2244
  %2950 = vmatprep.subr.bf16.mxu0 %v2248
  %2951 = vmatpush1.bf16.msra.mxu0 %v2247
  %2952 = vmatprep.subr.bf16.mxu0 %v2251
  %2953 = vmatpush1.bf16.msra.mxu0 %v2250
  %2954 = vmatprep.subr.bf16.mxu0 %v2254
  %2955 = vmatpush1.bf16.msra.mxu0 %v2253
  %2956 = vmatprep.subr.bf16.mxu0 %v2257
  %2957 = vmatpush1.bf16.msra.mxu0 %v2256
  %2958 = vmatprep.subr.bf16.mxu0 %v2260
  %2959 = vmatpush1.bf16.msra.mxu0 %v2259
  %2960 = vmatprep.subr.bf16.mxu0 %v2263
  %2961 = vmatpush1.bf16.msra.mxu0 %v2262
  %2962 = vmatprep.subr.bf16.mxu0 %v2266
  %2963 = vmatpush1.bf16.msra.mxu0 %v2265
  %2964 = vmatprep.subr.bf16.mxu0 %v2269
  %2965 = vmatpush1.bf16.msra.mxu0 %v2268
  %2966 = vmatprep.subr.bf16.mxu0 %v2272
  %2967 = vmatpush1.bf16.msra.mxu0 %v2271
  %2968 = vmatprep.subr.bf16.mxu0 %v2275
  %2969 = vmatpush1.bf16.msra.mxu0 %v2274
  %2970 = vmatprep.subr.bf16.mxu0 %v2278
  %2971 = vmatpush1.bf16.msra.mxu0 %v2277
  %2972 = vmatprep.subr.bf16.mxu0 0
  %2973 = vmatpush1.bf16.msra.mxu0 0
  %2974 = vmatprep.subr.bf16.mxu0 0
  %2975 = vmatpush1.bf16.msra.mxu0 0
  %2976 = vmatprep.subr.bf16.mxu0 0
  %2977 = vmatpush1.bf16.msra.mxu0 0
  %2978 = vmatprep.mubr.bf16.mxu0 %v2657
  %2979 = vmatmul.mubr.bf16.gmra.mrb[0].mxu0 %v637
  %v2980 = vpop.f32.mrb[0].mxu0
  %v2981 = vadd.f32 %v2940, %v2980
  %v2982 = vpop.f32.mrb[0].mxu0
  %v2983 = vadd.f32 %v2942, %v2982
  %v2984 = vpop.f32.mrb[0].mxu0
  %v2985 = vpop.f32.mrb[0].mxu0
  %2986 = vdwg.mxu0
  %2987 = vmatprep.subr.bf16.mxu0 0
  %2988 = vmatpush1.bf16.msra.mxu0 %v1907
  %2989 = vmatprep.subr.bf16.mxu0 0
  %2990 = vmatpush1.bf16.msra.mxu0 %v1910
  %2991 = vmatprep.subr.bf16.mxu0 0
  %2992 = vmatpush1.bf16.msra.mxu0 %v1913
  %2993 = vmatprep.subr.bf16.mxu0 0
  %2994 = vmatpush1.bf16.msra.mxu0 %v1916
  %2995 = vmatprep.subr.bf16.mxu0 0
  %2996 = vmatpush1.bf16.msra.mxu0 %v1919
  %2997 = vmatprep.subr.bf16.mxu0 0
  %2998 = vmatpush1.bf16.msra.mxu0 %v1922
  %2999 = vmatprep.subr.bf16.mxu0 0
  %3000 = vmatpush1.bf16.msra.mxu0 %v1925
  %3001 = vmatprep.subr.bf16.mxu0 0
  %3002 = vmatpush1.bf16.msra.mxu0 %v1928
  %3003 = vmatprep.subr.bf16.mxu0 0
  %3004 = vmatpush1.bf16.msra.mxu0 %v1931
  %3005 = vmatprep.subr.bf16.mxu0 0
  %3006 = vmatpush1.bf16.msra.mxu0 %v1934
  %3007 = vmatprep.subr.bf16.mxu0 0
  %3008 = vmatpush1.bf16.msra.mxu0 %v1937
  %3009 = vmatprep.subr.bf16.mxu0 0
  %3010 = vmatpush1.bf16.msra.mxu0 %v1940
  %3011 = vmatprep.subr.bf16.mxu0 0
  %3012 = vmatpush1.bf16.msra.mxu0 %v1943
  %3013 = vmatprep.subr.bf16.mxu0 0
  %3014 = vmatpush1.bf16.msra.mxu0 %v1946
  %3015 = vmatprep.subr.bf16.mxu0 0
  %3016 = vmatpush1.bf16.msra.mxu0 %v1949
  %3017 = vmatprep.subr.bf16.mxu0 0
  %3018 = vmatpush1.bf16.msra.mxu0 %v1952
  %3019 = vmatprep.mubr.bf16.mxu0 %v579
  %3020 = vmatmul.mubr.bf16.gmra.mrb[0].mxu0 %v565
  %v3021 = vpop.f32.mrb[0].mxu0
  %v3022 = vadd.f32 %v536, %v3021
  %v3023 = vpop.f32.mrb[0].mxu0
  %v3024 = vpop.f32.mrb[0].mxu0
  %v3025 = vpop.f32.mrb[0].mxu0
  %3026 = vdwg.mxu0
  %3027 = vmatprep.subr.bf16.mxu0 0
  %3028 = vmatpush1.bf16.msra.mxu0 %v1955
  %3029 = vmatprep.subr.bf16.mxu0 0
  %3030 = vmatpush1.bf16.msra.mxu0 %v1958
  %3031 = vmatprep.subr.bf16.mxu0 0
  %3032 = vmatpush1.bf16.msra.mxu0 %v1961
  %3033 = vmatprep.subr.bf16.mxu0 0
  %3034 = vmatpush1.bf16.msra.mxu0 %v1964
  %3035 = vmatprep.subr.bf16.mxu0 0
  %3036 = vmatpush1.bf16.msra.mxu0 %v1967
  %3037 = vmatprep.subr.bf16.mxu0 0
  %3038 = vmatpush1.bf16.msra.mxu0 %v1970
  %3039 = vmatprep.subr.bf16.mxu0 0
  %3040 = vmatpush1.bf16.msra.mxu0 %v1973
  %3041 = vmatprep.subr.bf16.mxu0 0
  %3042 = vmatpush1.bf16.msra.mxu0 %v1976
  %3043 = vmatprep.subr.bf16.mxu0 0
  %3044 = vmatpush1.bf16.msra.mxu0 %v1979
  %3045 = vmatprep.subr.bf16.mxu0 0
  %3046 = vmatpush1.bf16.msra.mxu0 %v1982
  %3047 = vmatprep.subr.bf16.mxu0 0
  %3048 = vmatpush1.bf16.msra.mxu0 %v1985
  %3049 = vmatprep.subr.bf16.mxu0 0
  %3050 = vmatpush1.bf16.msra.mxu0 %v1988
  %3051 = vmatprep.subr.bf16.mxu0 0
  %3052 = vmatpush1.bf16.msra.mxu0 %v1991
  %3053 = vmatprep.subr.bf16.mxu0 0
  %3054 = vmatpush1.bf16.msra.mxu0 %v1994
  %3055 = vmatprep.subr.bf16.mxu0 0
  %3056 = vmatpush1.bf16.msra.mxu0 %v1997
  %3057 = vmatprep.subr.bf16.mxu0 0
  %3058 = vmatpush1.bf16.msra.mxu0 %v2000
  %3059 = vmatprep.mubr.bf16.mxu0 %v589
  %3060 = vmatmul.mubr.bf16.gmra.mrb[0].mxu0 %v587
  %v3061 = vpop.f32.mrb[0].mxu0
  %v3062 = vadd.f32 %v3022, %v3061
  %v3063 = vpop.f32.mrb[0].mxu0
  %v3064 = vpop.f32.mrb[0].mxu0
  %v3065 = vpop.f32.mrb[0].mxu0
  %3066 = vdwg.mxu0
  %3067 = vmatprep.subr.bf16.mxu0 0
  %3068 = vmatpush1.bf16.msra.mxu0 %v2003
  %3069 = vmatprep.subr.bf16.mxu0 0
  %3070 = vmatpush1.bf16.msra.mxu0 %v2006
  %3071 = vmatprep.subr.bf16.mxu0 0
  %3072 = vmatpush1.bf16.msra.mxu0 %v2009
  %3073 = vmatprep.subr.bf16.mxu0 0
  %3074 = vmatpush1.bf16.msra.mxu0 %v2012
  %3075 = vmatprep.subr.bf16.mxu0 0
  %3076 = vmatpush1.bf16.msra.mxu0 %v2015
  %3077 = vmatprep.subr.bf16.mxu0 0
  %3078 = vmatpush1.bf16.msra.mxu0 %v2018
  %3079 = vmatprep.subr.bf16.mxu0 0
  %3080 = vmatpush1.bf16.msra.mxu0 %v2021
  %3081 = vmatprep.subr.bf16.mxu0 0
  %3082 = vmatpush1.bf16.msra.mxu0 %v2024
  %3083 = vmatprep.subr.bf16.mxu0 0
  %3084 = vmatpush1.bf16.msra.mxu0 %v2027
  %3085 = vmatprep.subr.bf16.mxu0 0
  %3086 = vmatpush1.bf16.msra.mxu0 %v2030
  %3087 = vmatprep.subr.bf16.mxu0 0
  %3088 = vmatpush1.bf16.msra.mxu0 %v2033
  %3089 = vmatprep.subr.bf16.mxu0 0
  %3090 = vmatpush1.bf16.msra.mxu0 %v2036
  %3091 = vmatprep.subr.bf16.mxu0 0
  %3092 = vmatpush1.bf16.msra.mxu0 %v2039
  %3093 = vmatprep.subr.bf16.mxu0 0
  %3094 = vmatpush1.bf16.msra.mxu0 %v2042
  %3095 = vmatprep.subr.bf16.mxu0 0
  %3096 = vmatpush1.bf16.msra.mxu0 %v2045
  %3097 = vmatprep.subr.bf16.mxu0 0
  %3098 = vmatpush1.bf16.msra.mxu0 %v2048
  %3099 = vmatprep.mubr.bf16.mxu0 %v586
  %3100 = vmatmul.mubr.bf16.gmra.mrb[0].mxu0 %v572
  %v3101 = vpop.f32.mrb[0].mxu0
  %v3102 = vadd.f32 %v3062, %v3101
  %v3103 = vpop.f32.mrb[0].mxu0
  %v3104 = vpop.f32.mrb[0].mxu0
  %v3105 = vpop.f32.mrb[0].mxu0
  %3106 = vdwg.mxu0
  %3107 = vmatprep.subr.bf16.mxu0 0
  %3108 = vmatpush1.bf16.msra.mxu0 %v2051
  %3109 = vmatprep.subr.bf16.mxu0 0
  %3110 = vmatpush1.bf16.msra.mxu0 %v2054
  %3111 = vmatprep.subr.bf16.mxu0 0
  %3112 = vmatpush1.bf16.msra.mxu0 %v2057
  %3113 = vmatprep.subr.bf16.mxu0 0
  %3114 = vmatpush1.bf16.msra.mxu0 %v2060
  %3115 = vmatprep.subr.bf16.mxu0 0
  %3116 = vmatpush1.bf16.msra.mxu0 %v2063
  %3117 = vmatprep.subr.bf16.mxu0 0
  %3118 = vmatpush1.bf16.msra.mxu0 %v2066
  %3119 = vmatprep.subr.bf16.mxu0 0
  %3120 = vmatpush1.bf16.msra.mxu0 %v2069
  %3121 = vmatprep.subr.bf16.mxu0 0
  %3122 = vmatpush1.bf16.msra.mxu0 %v2072
  %3123 = vmatprep.subr.bf16.mxu0 0
  %3124 = vmatpush1.bf16.msra.mxu0 %v2075
  %3125 = vmatprep.subr.bf16.mxu0 0
  %3126 = vmatpush1.bf16.msra.mxu0 %v2078
  %3127 = vmatprep.subr.bf16.mxu0 0
  %3128 = vmatpush1.bf16.msra.mxu0 %v2081
  %3129 = vmatprep.subr.bf16.mxu0 0
  %3130 = vmatpush1.bf16.msra.mxu0 %v2084
  %3131 = vmatprep.subr.bf16.mxu0 0
  %3132 = vmatpush1.bf16.msra.mxu0 %v2087
  %3133 = vmatprep.subr.bf16.mxu0 0
  %3134 = vmatpush1.bf16.msra.mxu0 %v2090
  %3135 = vmatprep.subr.bf16.mxu0 0
  %3136 = vmatpush1.bf16.msra.mxu0 %v2093
  %3137 = vmatprep.subr.bf16.mxu0 0
  %3138 = vmatpush1.bf16.msra.mxu0 %v2096
  %3139 = vmatprep.mubr.bf16.mxu0 %v590
  %3140 = vmatmul.mubr.bf16.gmra.mrb[0].mxu0 %v588
  %v3141 = vpop.f32.mrb[0].mxu0
  %v3142 = vadd.f32 %v3102, %v3141
  %v3143 = vpop.f32.mrb[0].mxu0
  %v3144 = vpop.f32.mrb[0].mxu0
  %v3145 = vpop.f32.mrb[0].mxu0
  %3146 = vdwg.mxu0
  %3147 = vmatprep.subr.bf16.mxu0 0
  %3148 = vmatpush1.bf16.msra.mxu0 %v2099
  %3149 = vmatprep.subr.bf16.mxu0 0
  %3150 = vmatpush1.bf16.msra.mxu0 %v2102
  %3151 = vmatprep.subr.bf16.mxu0 0
  %3152 = vmatpush1.bf16.msra.mxu0 %v2105
  %3153 = vmatprep.subr.bf16.mxu0 0
  %3154 = vmatpush1.bf16.msra.mxu0 %v2108
  %3155 = vmatprep.subr.bf16.mxu0 0
  %3156 = vmatpush1.bf16.msra.mxu0 %v2111
  %3157 = vmatprep.subr.bf16.mxu0 0
  %3158 = vmatpush1.bf16.msra.mxu0 %v2114
  %3159 = vmatprep.subr.bf16.mxu0 0
  %3160 = vmatpush1.bf16.msra.mxu0 %v2117
  %3161 = vmatprep.subr.bf16.mxu0 0
  %3162 = vmatpush1.bf16.msra.mxu0 %v2120
  %3163 = vmatprep.subr.bf16.mxu0 0
  %3164 = vmatpush1.bf16.msra.mxu0 %v2123
  %3165 = vmatprep.subr.bf16.mxu0 0
  %3166 = vmatpush1.bf16.msra.mxu0 %v2126
  %3167 = vmatprep.subr.bf16.mxu0 0
  %3168 = vmatpush1.bf16.msra.mxu0 %v2129
  %3169 = vmatprep.subr.bf16.mxu0 0
  %3170 = vmatpush1.bf16.msra.mxu0 %v2132
  %3171 = vmatprep.subr.bf16.mxu0 0
  %3172 = vmatpush1.bf16.msra.mxu0 %v2135
  %3173 = vmatprep.subr.bf16.mxu0 0
  %3174 = vmatpush1.bf16.msra.mxu0 %v2138
  %3175 = vmatprep.subr.bf16.mxu0 0
  %3176 = vmatpush1.bf16.msra.mxu0 %v2141
  %3177 = vmatprep.subr.bf16.mxu0 0
  %3178 = vmatpush1.bf16.msra.mxu0 %v2144
  %3179 = vmatprep.mubr.bf16.mxu0 %v628
  %3180 = vmatmul.mubr.bf16.gmra.mrb[0].mxu0 %v614
  %v3181 = vpop.f32.mrb[0].mxu0
  %v3182 = vadd.f32 %v3142, %v3181
  %v3183 = vpop.f32.mrb[0].mxu0
  %v3184 = vpop.f32.mrb[0].mxu0
  %v3185 = vpop.f32.mrb[0].mxu0
  %3186 = vdwg.mxu0
  %3187 = vmatprep.subr.bf16.mxu0 0
  %3188 = vmatpush1.bf16.msra.mxu0 %v2147
  %3189 = vmatprep.subr.bf16.mxu0 0
  %3190 = vmatpush1.bf16.msra.mxu0 %v2150
  %3191 = vmatprep.subr.bf16.mxu0 0
  %3192 = vmatpush1.bf16.msra.mxu0 %v2153
  %3193 = vmatprep.subr.bf16.mxu0 0
  %3194 = vmatpush1.bf16.msra.mxu0 %v2156
  %3195 = vmatprep.subr.bf16.mxu0 0
  %3196 = vmatpush1.bf16.msra.mxu0 %v2159
  %3197 = vmatprep.subr.bf16.mxu0 0
  %3198 = vmatpush1.bf16.msra.mxu0 %v2162
  %3199 = vmatprep.subr.bf16.mxu0 0
  %3200 = vmatpush1.bf16.msra.mxu0 %v2165
  %3201 = vmatprep.subr.bf16.mxu0 0
  %3202 = vmatpush1.bf16.msra.mxu0 %v2168
  %3203 = vmatprep.subr.bf16.mxu0 0
  %3204 = vmatpush1.bf16.msra.mxu0 %v2171
  %3205 = vmatprep.subr.bf16.mxu0 0
  %3206 = vmatpush1.bf16.msra.mxu0 %v2174
  %3207 = vmatprep.subr.bf16.mxu0 0
  %3208 = vmatpush1.bf16.msra.mxu0 %v2177
  %3209 = vmatprep.subr.bf16.mxu0 0
  %3210 = vmatpush1.bf16.msra.mxu0 %v2180
  %3211 = vmatprep.subr.bf16.mxu0 0
  %3212 = vmatpush1.bf16.msra.mxu0 %v2183
  %3213 = vmatprep.subr.bf16.mxu0 0
  %3214 = vmatpush1.bf16.msra.mxu0 %v2186
  %3215 = vmatprep.subr.bf16.mxu0 0
  %3216 = vmatpush1.bf16.msra.mxu0 %v2189
  %3217 = vmatprep.subr.bf16.mxu0 0
  %3218 = vmatpush1.bf16.msra.mxu0 %v2192
  %3219 = vmatprep.mubr.bf16.mxu0 %v638
  %3220 = vmatmul.mubr.bf16.gmra.mrb[0].mxu0 %v636
  %v3221 = vpop.f32.mrb[0].mxu0
  %v3222 = vadd.f32 %v3182, %v3221
  %v3223 = vpop.f32.mrb[0].mxu0
  %v3224 = vpop.f32.mrb[0].mxu0
  %v3225 = vpop.f32.mrb[0].mxu0
  %3226 = vdwg.mxu0
  %3227 = vmatprep.subr.bf16.mxu0 0
  %3228 = vmatpush1.bf16.msra.mxu0 %v2195
  %3229 = vmatprep.subr.bf16.mxu0 0
  %3230 = vmatpush1.bf16.msra.mxu0 %v2198
  %3231 = vmatprep.subr.bf16.mxu0 0
  %3232 = vmatpush1.bf16.msra.mxu0 %v2201
  %3233 = vmatprep.subr.bf16.mxu0 0
  %3234 = vmatpush1.bf16.msra.mxu0 %v2204
  %3235 = vmatprep.subr.bf16.mxu0 0
  %3236 = vmatpush1.bf16.msra.mxu0 %v2207
  %3237 = vmatprep.subr.bf16.mxu0 0
  %3238 = vmatpush1.bf16.msra.mxu0 %v2210
  %3239 = vmatprep.subr.bf16.mxu0 0
  %3240 = vmatpush1.bf16.msra.mxu0 %v2213
  %3241 = vmatprep.subr.bf16.mxu0 0
  %3242 = vmatpush1.bf16.msra.mxu0 %v2216
  %3243 = vmatprep.subr.bf16.mxu0 0
  %3244 = vmatpush1.bf16.msra.mxu0 %v2219
  %3245 = vmatprep.subr.bf16.mxu0 0
  %3246 = vmatpush1.bf16.msra.mxu0 %v2222
  %3247 = vmatprep.subr.bf16.mxu0 0
  %3248 = vmatpush1.bf16.msra.mxu0 %v2225
  %3249 = vmatprep.subr.bf16.mxu0 0
  %3250 = vmatpush1.bf16.msra.mxu0 %v2228
  %3251 = vmatprep.subr.bf16.mxu0 0
  %3252 = vmatpush1.bf16.msra.mxu0 %v2231
  %3253 = vmatprep.subr.bf16.mxu0 0
  %3254 = vmatpush1.bf16.msra.mxu0 %v2234
  %3255 = vmatprep.subr.bf16.mxu0 0
  %3256 = vmatpush1.bf16.msra.mxu0 %v2237
  %3257 = vmatprep.subr.bf16.mxu0 0
  %3258 = vmatpush1.bf16.msra.mxu0 %v2240
  %3259 = vmatprep.mubr.bf16.mxu0 %v635
  %3260 = vmatmul.mubr.bf16.gmra.mrb[0].mxu0 %v621
  %v3261 = vpop.f32.mrb[0].mxu0
  %v3262 = vadd.f32 %v3222, %v3261
  %v3263 = vpop.f32.mrb[0].mxu0
  %v3264 = vpop.f32.mrb[0].mxu0
  %v3265 = vpop.f32.mrb[0].mxu0
  %3266 = vdwg.mxu0
  %3267 = vmatprep.subr.bf16.mxu0 0
  %3268 = vmatpush1.bf16.msra.mxu0 %v2243
  %3269 = vmatprep.subr.bf16.mxu0 0
  %3270 = vmatpush1.bf16.msra.mxu0 %v2246
  %3271 = vmatprep.subr.bf16.mxu0 0
  %3272 = vmatpush1.bf16.msra.mxu0 %v2249
  %3273 = vmatprep.subr.bf16.mxu0 0
  %3274 = vmatpush1.bf16.msra.mxu0 %v2252
  %3275 = vmatprep.subr.bf16.mxu0 0
  %3276 = vmatpush1.bf16.msra.mxu0 %v2255
  %3277 = vmatprep.subr.bf16.mxu0 0
  %3278 = vmatpush1.bf16.msra.mxu0 %v2258
  %3279 = vmatprep.subr.bf16.mxu0 0
  %3280 = vmatpush1.bf16.msra.mxu0 %v2261
  %3281 = vmatprep.subr.bf16.mxu0 0
  %3282 = vmatpush1.bf16.msra.mxu0 %v2264
  %3283 = vmatprep.subr.bf16.mxu0 0
  %3284 = vmatpush1.bf16.msra.mxu0 %v2267
  %3285 = vmatprep.subr.bf16.mxu0 0
  %3286 = vmatpush1.bf16.msra.mxu0 %v2270
  %3287 = vmatprep.subr.bf16.mxu0 0
  %3288 = vmatpush1.bf16.msra.mxu0 %v2273
  %3289 = vmatprep.subr.bf16.mxu0 0
  %3290 = vmatpush1.bf16.msra.mxu0 %v2276
  %3291 = vmatprep.subr.bf16.mxu0 0
  %3292 = vmatpush1.bf16.msra.mxu0 %v2279
  %3293 = vmatprep.subr.bf16.mxu0 0
  %3294 = vmatpush1.bf16.msra.mxu0 0
  %3295 = vmatprep.subr.bf16.mxu0 0
  %3296 = vmatpush1.bf16.msra.mxu0 0
  %3297 = vmatprep.subr.bf16.mxu0 0
  %3298 = vmatpush1.bf16.msra.mxu0 0
  %3299 = vmatprep.mubr.bf16.mxu0 %v2657
  %3300 = vmatmul.mubr.bf16.gmra.mrb[0].mxu0 %v637
  %v3301 = vpop.f32.mrb[0].mxu0
  %v3302 = vadd.f32 %v3262, %v3301
  %v3303 = vpop.f32.mrb[0].mxu0
  %v3304 = vpop.f32.mrb[0].mxu0
  %v3305 = vpop.f32.mrb[0].mxu0
  %3306 = vdwg.mxu0
  %v3307 = vmax.f32 %v2981, 0.0
  %v3308 = vmax.f32 %v2983, 0.0
  %v3309 = vmax.f32 %v3302, 0.0
  %v3310 = vpack.c.bf16 %v3307, %v3307
  %v3311 = vpack.c.bf16 %v3308, %v3308
  %v3312 = vpack.c.bf16 %v3309, %v3309
  %v3313 = vld [vmem:[%s3] sm:$0xf]
  %v3314 = vld [vmem:[%s3 + $0x4] sm:$0xf]
  %v3315 = vld [vmem:[%s3 + $0x8] sm:$0xf]
  %v3316 = vld [vmem:[%s3 + $0xc] sm:$0xf]
  %v3317 = vld [vmem:[%s3 + $0x10] sm:$0xf]
  %v3318 = vld [vmem:[%s3 + $0x14] sm:$0xf]
  %v3319 = vld [vmem:[%s3 + $0x18] sm:$0xf]
  %v3320 = vld [vmem:[%s3 + $0x1c] sm:$0xf]
  %v3321 = vld [vmem:[%s3 + $0x20] sm:$0xf]
  %v3322 = vld [vmem:[%s3 + $0x24] sm:$0xf]
  %v3323 = vld [vmem:[%s3 + $0x28] sm:$0xf]
  %v3324 = vld [vmem:[%s3 + $0x2c] sm:$0xf]
  %v3325 = vld [vmem:[%s3 + $0x30] sm:$0xf]
  %v3326 = vld [vmem:[%s3 + $0x34] sm:$0xf]
  %v3327 = vld [vmem:[%s3 + $0x38] sm:$0xf]
  %v3328 = vld [vmem:[%s3 + $0x3c] sm:$0xf]
  %v3329 = vld [vmem:[%s3 + $0x40] sm:$0xf]
  %v3330 = vld [vmem:[%s3 + $0x44] sm:$0xf]
  %v3331 = vld [vmem:[%s3 + $0x48] sm:$0xf]
  %v3332 = vld [vmem:[%s3 + $0x4c] sm:$0xf]
  %v3333 = vld [vmem:[%s3 + $0x50] sm:$0xf]
  %v3334 = vld [vmem:[%s3 + $0x54] sm:$0xf]
  %v3335 = vld [vmem:[%s3 + $0x58] sm:$0xf]
  %v3336 = vld [vmem:[%s3 + $0x5c] sm:$0xf]
  %v3337 = vld [vmem:[%s3 + $0x60] sm:$0xf]
  %v3338 = vld [vmem:[%s3 + $0x64] sm:$0xf]
  %v3339 = vld [vmem:[%s3 + $0x68] sm:$0xf]
  %v3340 = vld [vmem:[%s3 + $0x6c] sm:$0xf]
  %v3341 = vld [vmem:[%s3 + $0x70] sm:$0xf]
  %v3342 = vld [vmem:[%s3 + $0x74] sm:$0xf]
  %v3343 = vld [vmem:[%s3 + $0x78] sm:$0xf]
  %v3344 = vld [vmem:[%s3 + $0x7c] sm:$0xf]
  %v3345 = vld [vmem:[%s3 + $0x80] sm:$0xf]
  %v3346 = vld [vmem:[%s3 + $0x84] sm:$0xf]
  %v3347 = vld [vmem:[%s3 + $0x88] sm:$0xf]
  %v3348 = vld [vmem:[%s3 + $0x8c] sm:$0xf]
  %v3349 = vld [vmem:[%s3 + $0x90] sm:$0xf]
  %v3350 = vld [vmem:[%s3 + $0x94] sm:$0x3]
  %v3351 = vld [vmem:[%s4] sm:$0x1]
  %v3353 = vlaneseq
  %v3354 = vshrl.u32 %v3353, 7
  %v3355 = vsub.s32 0, %v3354
  %v3356 = vrot.slane %v3351, %v3355
  %v3396 = vunpack.c.l.b16 %v3313
  %v3397 = vunpack.c.l.b16 %v3314
  %v3398 = vunpack.c.l.b16 %v3315
  %v3399 = vunpack.c.l.b16 %v3316
  %v3400 = vunpack.c.l.b16 %v3317
  %v3401 = vunpack.c.l.b16 %v3318
  %v3402 = vunpack.c.l.b16 %v3319
  %v3403 = vunpack.c.l.b16 %v3320
  %v3404 = vunpack.c.l.b16 %v3321
  %v3405 = vunpack.c.l.b16 %v3322
  %v3406 = vunpack.c.l.b16 %v3323
  %v3407 = vunpack.c.l.b16 %v3324
  %v3408 = vunpack.c.l.b16 %v3325
  %v3409 = vunpack.c.l.b16 %v3326
  %v3410 = vunpack.c.l.b16 %v3327
  %v3411 = vunpack.c.l.b16 %v3328
  %v3412 = vunpack.c.l.b16 %v3329
  %v3413 = vunpack.c.l.b16 %v3330
  %v3414 = vunpack.c.l.b16 %v3331
  %v3415 = vunpack.c.l.b16 %v3332
  %v3416 = vunpack.c.l.b16 %v3333
  %v3417 = vunpack.c.l.b16 %v3334
  %v3418 = vunpack.c.l.b16 %v3335
  %v3419 = vunpack.c.l.b16 %v3336
  %v3420 = vunpack.c.l.b16 %v3337
  %v3421 = vunpack.c.l.b16 %v3338
  %v3422 = vunpack.c.l.b16 %v3339
  %v3423 = vunpack.c.l.b16 %v3340
  %v3424 = vunpack.c.l.b16 %v3341
  %v3425 = vunpack.c.l.b16 %v3342
  %v3426 = vunpack.c.l.b16 %v3343
  %v3427 = vunpack.c.l.b16 %v3344
  %v3428 = vunpack.c.l.b16 %v3345
  %v3429 = vunpack.c.l.b16 %v3346
  %v3430 = vunpack.c.l.b16 %v3347
  %v3431 = vunpack.c.l.b16 %v3348
  %v3432 = vunpack.c.l.b16 %v3349
  %v3433 = vunpack.c.l.b16 %v3350
  %v3434 = vpack.c.b16 %v3397, %v3396
  %v3435 = vpack.c.b16 %v3399, %v3398
  %v3436 = vpack.c.b16 %v3401, %v3400
  %v3437 = vpack.c.b16 %v3403, %v3402
  %v3438 = vpack.c.b16 %v3405, %v3404
  %v3439 = vpack.c.b16 %v3407, %v3406
  %v3440 = vpack.c.b16 %v3409, %v3408
  %v3441 = vpack.c.b16 %v3411, %v3410
  %v3442 = vpack.c.b16 %v3413, %v3412
  %v3443 = vpack.c.b16 %v3415, %v3414
  %v3444 = vpack.c.b16 %v3417, %v3416
  %v3445 = vpack.c.b16 %v3419, %v3418
  %v3446 = vpack.c.b16 %v3421, %v3420
  %v3447 = vpack.c.b16 %v3423, %v3422
  %v3448 = vpack.c.b16 %v3425, %v3424
  %v3449 = vpack.c.b16 %v3427, %v3426
  %v3450 = vpack.c.b16 %v3429, %v3428
  %v3451 = vpack.c.b16 %v3431, %v3430
  %v3452 = vpack.c.b16 %v3433, %v3432
  %vm3471 = vcmask 359424
  %v3473 = vsel %vm3471, %v3312, 0
  %vm3475 = vcmask 1045504
  %v3477 = vsel %vm3475, %v3452, 0
  %3479 = vmatprep.subr.bf16.mxu0 0
  %3480 = vmatpush1.bf16.msra.mxu0 %v3434
  %3481 = vmatprep.subr.bf16.mxu0 0
  %3482 = vmatpush1.bf16.msra.mxu0 %v3435
  %3483 = vmatprep.subr.bf16.mxu0 0
  %3484 = vmatpush1.bf16.msra.mxu0 %v3436
  %3485 = vmatprep.subr.bf16.mxu0 0
  %3486 = vmatpush1.bf16.msra.mxu0 %v3437
  %3487 = vmatprep.subr.bf16.mxu0 0
  %3488 = vmatpush1.bf16.msra.mxu0 %v3438
  %3489 = vmatprep.subr.bf16.mxu0 0
  %3490 = vmatpush1.bf16.msra.mxu0 %v3439
  %3491 = vmatprep.subr.bf16.mxu0 0
  %3492 = vmatpush1.bf16.msra.mxu0 %v3440
  %3493 = vmatprep.subr.bf16.mxu0 0
  %3494 = vmatpush1.bf16.msra.mxu0 %v3441
  %3495 = vmatprep.subr.bf16.mxu0 0
  %3496 = vmatpush1.bf16.msra.mxu0 %v3442
  %3497 = vmatprep.subr.bf16.mxu0 0
  %3498 = vmatpush1.bf16.msra.mxu0 %v3443
  %3499 = vmatprep.subr.bf16.mxu0 0
  %3500 = vmatpush1.bf16.msra.mxu0 %v3444
  %3501 = vmatprep.subr.bf16.mxu0 0
  %3502 = vmatpush1.bf16.msra.mxu0 %v3445
  %3503 = vmatprep.subr.bf16.mxu0 0
  %3504 = vmatpush1.bf16.msra.mxu0 %v3446
  %3505 = vmatprep.subr.bf16.mxu0 0
  %3506 = vmatpush1.bf16.msra.mxu0 %v3447
  %3507 = vmatprep.subr.bf16.mxu0 0
  %3508 = vmatpush1.bf16.msra.mxu0 %v3448
  %3509 = vmatprep.subr.bf16.mxu0 0
  %3510 = vmatpush1.bf16.msra.mxu0 %v3449
  %3511 = vmatprep.mubr.bf16.mxu0 %v3311
  %3512 = vmatmul.mubr.bf16.gmra.mrb[0].mxu0 %v3310
  %v3513 = vpop.f32.mrb[0].mxu0
  %v3514 = vadd.f32 %v3356, %v3513
  %v3515 = vpop.f32.mrb[0].mxu0
  %v3516 = vpop.f32.mrb[0].mxu0
  %v3517 = vpop.f32.mrb[0].mxu0
  %3518 = vdwg.mxu0
  %3519 = vmatprep.subr.bf16.mxu0 0
  %3520 = vmatpush1.bf16.msra.mxu0 %v3450
  %3521 = vmatprep.subr.bf16.mxu0 0
  %3522 = vmatpush1.bf16.msra.mxu0 %v3451
  %3523 = vmatprep.subr.bf16.mxu0 0
  %3524 = vmatpush1.bf16.msra.mxu0 %v3477
  %3525 = vmatprep.subr.bf16.mxu0 0
  %3526 = vmatpush1.bf16.msra.mxu0 0
  %3527 = vmatprep.subr.bf16.mxu0 0
  %3528 = vmatpush1.bf16.msra.mxu0 0
  %3529 = vmatprep.subr.bf16.mxu0 0
  %3530 = vmatpush1.bf16.msra.mxu0 0
  %3531 = vmatprep.subr.bf16.mxu0 0
  %3532 = vmatpush1.bf16.msra.mxu0 0
  %3533 = vmatprep.subr.bf16.mxu0 0
  %3534 = vmatpush1.bf16.msra.mxu0 0
  %3535 = vmatprep.subr.bf16.mxu0 0
  %3536 = vmatpush1.bf16.msra.mxu0 0
  %3537 = vmatprep.subr.bf16.mxu0 0
  %3538 = vmatpush1.bf16.msra.mxu0 0
  %3539 = vmatprep.subr.bf16.mxu0 0
  %3540 = vmatpush1.bf16.msra.mxu0 0
  %3541 = vmatprep.subr.bf16.mxu0 0
  %3542 = vmatpush1.bf16.msra.mxu0 0
  %3543 = vmatprep.subr.bf16.mxu0 0
  %3544 = vmatpush1.bf16.msra.mxu0 0
  %3545 = vmatprep.subr.bf16.mxu0 0
  %3546 = vmatpush1.bf16.msra.mxu0 0
  %3547 = vmatprep.subr.bf16.mxu0 0
  %3548 = vmatpush1.bf16.msra.mxu0 0
  %3549 = vmatprep.subr.bf16.mxu0 0
  %3550 = vmatpush1.bf16.msra.mxu0 0
  %3551 = vmatprep.mubr.bf16.mxu0 0
  %3552 = vmatmul.mubr.bf16.gmra.mrb[0].mxu0 %v3473
  %v3553 = vpop.f32.mrb[0].mxu0
  %v3554 = vadd.f32 %v3514, %v3553
  %v3555 = vpop.f32.mrb[0].mxu0
  %v3556 = vpop.f32.mrb[0].mxu0
  %v3557 = vpop.f32.mrb[0].mxu0
  %3558 = vdwg.mxu0
  %vm3559 = vcmask 9216
  %3560 = vst.msk [vmem:[%s5] sm:$0x3] %vm3559, %v3554
  // Predicated region
  $region22: #{resnet_forward.3} parent=0 // pred_check
    _
  $region23: #{resnet_forward.3} parent=0 // pred_check_branch
    %3562 = sbr.rel (0) target = $region25
  $region24: #{resnet_forward.3} parent=0 // pred_region
    _
  $region25: #{resnet_forward.3} parent=0 // pred_fallthru
    _
  // Predicated region
  $region26: #{resnet_forward.3} parent=0 // pred_check
    _
  $region27: #{resnet_forward.3} parent=0 // pred_check_branch
    %3564 = sbr.rel (0) target = $region29
  $region28: #{resnet_forward.3} parent=0 // pred_region
    _
  $region29: #{resnet_forward.3} parent=0 // pred_fallthru
    _

</llo_original>
